<compile_context>
chip_gen: v7x
topology: tpu7x:2x2x1
jax: 0.10.0
libtpu: 0.0.40
codegen_flags: <defaults>
</compile_context>

<pallas_src>
import functools

import numpy as np
import jax
import jax.numpy as jnp
from jax.experimental import pallas as pl
from jax.experimental.pallas import tpu as pltpu


# ----------------------------------------------------------------------------
# Constant selection-matrix builders (init-time, numpy)
# ----------------------------------------------------------------------------
def _conv_gather_matrices(h_in, w_in, h_out, w_out, k, s, p, n):
    """G[t, q_in, q_out] = 1 iff input position q_in feeds tap t of output q_out.

    Column convention for every activation: q = (row * W + col) * n + batch.
    Out-of-bounds taps (padding) are simply all-zero columns.
    """
    kk = k * k
    g = np.zeros((kk, h_in * w_in * n, h_out * w_out * n), np.float32)
    for kh in range(k):
        for kw in range(k):
            t = kh * k + kw
            for oh in range(h_out):
                ih = oh * s + kh - p
                if ih < 0 or ih >= h_in:
                    continue
                for ow in range(w_out):
                    iw = ow * s + kw - p
                    if iw < 0 or iw >= w_in:
                        continue
                    qi = (ih * w_in + iw) * n
                    qo = (oh * w_out + ow) * n
                    for b in range(n):
                        g[t, qi + b, qo + b] = 1.0
    return g


def _flatten_select_matrices(s_last, n):
    """E[s, q, b] selects the N batch columns of spatial position s."""
    e = np.zeros((s_last, s_last * n, n), np.float32)
    for s in range(s_last):
        for b in range(n):
            e[s, s * n + b, b] = 1.0
    return e


# ----------------------------------------------------------------------------
# Fused forward kernel (built per static architecture / batch size)
# ----------------------------------------------------------------------------
def _build_fused_kernel(n_conv, taps_per_conv, s_last, n_fc_rest, fc1_is_last):
    def kernel(*refs):
        it = iter(refs)
        a = next(it)[...]                                   # [C_in, H*W*N]

        # ---- conv block: out = relu(sum_t W_t @ (a @ G_t) + b) ----
        for li in range(n_conv):
            g_ref = next(it)                                # [KK, Q_in, Q_out]
            w_ref = next(it)                                # [KK, OC, IC]
            b_ref = next(it)                                # [OC, 1]
            acc = None
            for t in range(taps_per_conv[li]):
                tap = jnp.dot(a, g_ref[t],
                              preferred_element_type=jnp.float32)   # [IC, Q_out]
                part = jnp.dot(w_ref[t], tap,
                               preferred_element_type=jnp.float32)  # [OC, Q_out]
                acc = part if acc is None else acc + part
            a = jnp.maximum(acc + b_ref[...], 0.0)          # [OC, Q_out]

        # ---- torch.flatten + first Linear, folded together ----
        e_ref = next(it)                                    # [S, Q_last, N]
        fw_ref = next(it)                                   # [S, F1, C_last]
        fb_ref = next(it)                                   # [F1, 1]
        h = None
        for s in range(s_last):
            blk = jnp.dot(a, e_ref[s],
                          preferred_element_type=jnp.float32)       # [C_last, N]
            part = jnp.dot(fw_ref[s], blk,
                           preferred_element_type=jnp.float32)      # [F1, N]
            h = part if h is None else h + part
        h = h + fb_ref[...]
        if not fc1_is_last:
            h = jnp.maximum(h, 0.0)

        # ---- remaining FC layers ----
        for li in range(n_fc_rest):
            w_ref = next(it)                                # [F_out, F_in]
            b_ref = next(it)                                # [F_out, 1]
            h = jnp.dot(w_ref[...], h,
                        preferred_element_type=jnp.float32) + b_ref[...]
            if li != n_fc_rest - 1:
                h = jnp.maximum(h, 0.0)

        o_ref = next(it)                                    # [out_dim, N]
        o_ref[...] = h.astype(o_ref.dtype)

    return kernel


def _fused_forward(x, operands, *, kernel, output_dim):
    """x: [N, C, H, W] -> [N, output_dim].  Single pallas_call for everything."""
    n, c, h, w = x.shape
    # Only wrapper-side glue: relayout the network input to channel-major
    # [C, H*W*N] (columns ordered (spatial, batch)), and transpose the output.
    a0 = jnp.transpose(x.astype(jnp.float32), (1, 2, 3, 0)).reshape(c, h * w * n)
    inputs = [a0] + list(operands)
    out_t = pl.pallas_call(
        kernel,
        out_shape=jax.ShapeDtypeStruct((output_dim, n), jnp.float32),
        in_specs=[pl.BlockSpec(memory_space=pltpu.MemorySpace.VMEM)] * len(inputs),
        out_specs=pl.BlockSpec(memory_space=pltpu.MemorySpace.VMEM),
    )(*inputs)
    return out_t.T                                          # [N, output_dim]


# ----------------------------------------------------------------------------
# CNNValueNetwork (deterministic synthetic parameters)
# ----------------------------------------------------------------------------
class CNNValueNetworkPallas:
    def __init__(self, input_width, input_height, input_channels_count,
                 kernel_sizes, output_channels_list, strides, paddings,
                 hidden_dims_fully_connected=None, output_dim=1, key=None):
        assert len(kernel_sizes) == len(output_channels_list) == len(strides) == len(paddings)
        assert len(kernel_sizes) >= 1
        hidden_dims_fully_connected = hidden_dims_fully_connected or []
        if key is None:
            key = jax.random.PRNGKey(0)

        self.input_height = input_height
        self.input_width = input_width
        self.kernel_sizes = list(kernel_sizes)
        self.strides = list(strides)
        self.paddings = list(paddings)
        self.output_dim = output_dim

        # Conv parameters (PyTorch OIHW layout), deterministic init.
        self.conv_params = []
        self._conv_spatial = []           # (H_in, W_in, H_out, W_out) per layer
        in_c = input_channels_count
        h, w = input_height, input_width
        for k, oc, s, p in zip(kernel_sizes, output_channels_list, strides, paddings):
            key, kw_, kb_ = jax.random.split(key, 3)
            fan_in = in_c * k * k
            wgt = jax.random.normal(kw_, (oc, in_c, k, k), jnp.float32) * (1.0 / float(np.sqrt(fan_in)))
            bias = jax.random.normal(kb_, (oc,), jnp.float32) * 0.01
            self.conv_params.append((wgt, bias))
            h_out = (h + 2 * p - k) // s + 1
            w_out = (w + 2 * p - k) // s + 1
            self._conv_spatial.append((h, w, h_out, w_out))
            h, w, in_c = h_out, w_out, oc

        self._s_last = h * w
        self._c_last = in_c
        self.mlp_input_dims = in_c * h * w

        # MLP parameters ([din, dout] weights, like x @ W + b).
        self.fc_params = []
        dims = [self.mlp_input_dims] + list(hidden_dims_fully_connected) + [output_dim]
        for din, dout in zip(dims[:-1], dims[1:]):
            key, kw_, kb_ = jax.random.split(key, 3)
            wgt = jax.random.normal(kw_, (din, dout), jnp.float32) * (1.0 / float(np.sqrt(din)))
            bias = jax.random.normal(kb_, (dout,), jnp.float32) * 0.01
            self.fc_params.append((wgt, bias))

        self._cache = {}   # batch_size -> (jitted callable, operand list)

    # ------------------------------------------------------------------ #
    def _prepare(self, n_batch):
        if n_batch in self._cache:
            return self._cache[n_batch]

        operands = []
        # Conv layers: gather matrices + per-tap weights + bias.
        for li, (wgt, bias) in enumerate(self.conv_params):
            k, s, p = self.kernel_sizes[li], self.strides[li], self.paddings[li]
            h_in, w_in, h_out, w_out = self._conv_spatial[li]
            g = _conv_gather_matrices(h_in, w_in, h_out, w_out, k, s, p, n_batch)
            oc, ic = wgt.shape[0], wgt.shape[1]
            w_taps = jnp.transpose(wgt, (2, 3, 0, 1)).reshape(k * k, oc, ic)
            if li == 0:
                w_taps = w_taps * (1.0 / 255.0)   # fold the /255 input scale
            operands += [jnp.asarray(g), w_taps, bias.reshape(oc, 1)]

        # Flatten + first FC layer, folded together.
        e = _flatten_select_matrices(self._s_last, n_batch)
        w0, b0 = self.fc_params[0]
        f1 = w0.shape[1]
        # Torch flatten order is (c, s): fc1_blocks[s, f, c] = W[c*S + s, f]
        fc1_blocks = w0.reshape(self._c_last, self._s_last, f1).transpose(1, 2, 0)
        operands += [jnp.asarray(e), fc1_blocks, b0.reshape(f1, 1)]

        # Remaining FC layers (pre-transposed so the kernel does W^T @ h).
        for wgt, bias in self.fc_params[1:]:
            operands += [jnp.transpose(wgt), bias.reshape(bias.shape[0], 1)]

        kernel = _build_fused_kernel(
            n_conv=len(self.conv_params),
            taps_per_conv=[k * k for k in self.kernel_sizes],
            s_last=self._s_last,
            n_fc_rest=len(self.fc_params) - 1,
            fc1_is_last=(len(self.fc_params) == 1),
        )
        call = jax.jit(functools.partial(_fused_forward, kernel=kernel,
                                         output_dim=self.output_dim))
        self._cache[n_batch] = (call, operands)
        return self._cache[n_batch]

    def forward(self, x):
        call, operands = self._prepare(x.shape[0])
        return call(x, operands)

    # ------------------------------------------------------------------ #
    # Pure-JAX reference mirroring the PyTorch module (for validation).
    def reference_forward(self, x):
        h = x / 255.0
        for li, (wgt, bias) in enumerate(self.conv_params):
            s, p = self.strides[li], self.paddings[li]
            h = jax.lax.conv_general_dilated(
                h, wgt, window_strides=(s, s), padding=[(p, p), (p, p)],
                dimension_numbers=("NCHW", "OIHW", "NCHW"))
            h = jnp.maximum(h + bias[None, :, None, None], 0.0)
        h = h.reshape(h.shape[0], -1)        # torch.flatten(start_dim=1) on NCHW
        n_fc = len(self.fc_params)
        for li, (wgt, bias) in enumerate(self.fc_params):
            h = h @ wgt + bias
            if li != n_fc - 1:
                h = jnp.maximum(h, 0.0)
        return h


if __name__ == "__main__":
    key = jax.random.PRNGKey(0)
    k_in, k_net = jax.random.split(key)

    # Small, forward-consistent configuration.
    batch, in_c, H, W = 2, 4, 16, 16
    net = CNNValueNetworkPallas(
        input_width=W, input_height=H, input_channels_count=in_c,
        kernel_sizes=[3, 3], output_channels_list=[8, 16],
        strides=[2, 2], paddings=[1, 1],
        hidden_dims_fully_connected=[32], output_dim=1, key=k_net)

    x = jax.random.uniform(k_in, (batch, in_c, H, W), jnp.float32, 0.0, 255.0)

    out = jax.block_until_ready(net.forward(x))
    assert out.shape == (batch, 1), out.shape

    ref = jax.block_until_ready(net.reference_forward(x))
    assert jnp.allclose(out, ref, atol=1e-4, rtol=1e-3), (out, ref)

    print("KERNEL_OK")
</pallas_src>

<mosaic_0001>
module attributes {stable_mosaic.version = 11 : i64} {
  func.func @kernel(%arg0: memref<4x512xf32, #tpu.memory_space<vmem>>, %arg1: memref<9x512x128xf32, #tpu.memory_space<vmem>>, %arg2: memref<9x8x4xf32, #tpu.memory_space<vmem>>, %arg3: memref<8x1xf32, #tpu.memory_space<vmem>>, %arg4: memref<9x128x32xf32, #tpu.memory_space<vmem>>, %arg5: memref<9x16x8xf32, #tpu.memory_space<vmem>>, %arg6: memref<16x1xf32, #tpu.memory_space<vmem>>, %arg7: memref<16x32x2xf32, #tpu.memory_space<vmem>>, %arg8: memref<16x32x16xf32, #tpu.memory_space<vmem>>, %arg9: memref<32x1xf32, #tpu.memory_space<vmem>>, %arg10: memref<1x32xf32, #tpu.memory_space<vmem>>, %arg11: memref<1x1xf32, #tpu.memory_space<vmem>>, %arg12: memref<1x2xf32, #tpu.memory_space<vmem>>) attributes {dimension_semantics = [], scalar_prefetch = 0 : i64, scratch_operands = 0 : i64, tpu.core_type = #tpu.core_type<tc>} {
    %c0 = arith.constant 0 : index
    %c0_0 = arith.constant 0 : index
    %0 = vector.load %arg0[%c0, %c0_0] : memref<4x512xf32, #tpu.memory_space<vmem>>, vector<4x512xf32>
    %c0_1 = arith.constant 0 : index
    %c0_2 = arith.constant 0 : index
    %c0_3 = arith.constant 0 : index
    %1 = vector.load %arg1[%c0_1, %c0_2, %c0_3] : memref<9x512x128xf32, #tpu.memory_space<vmem>>, vector<1x512x128xf32>
    %2 = vector.shape_cast %1 : vector<1x512x128xf32> to vector<512x128xf32>
    %cst = arith.constant dense<0.000000e+00> : vector<4x128xf32>
    %3 = tpu.matmul %0, %2, %cst {dimension_numbers = #tpu.dot_dimension_numbers<[1], [0], [0], [1], [0, 0, 1, 1], [], []>} : vector<4x512xf32>, vector<512x128xf32>, vector<4x128xf32> -> vector<4x128xf32>
    %c0_4 = arith.constant 0 : index
    %c0_5 = arith.constant 0 : index
    %c0_6 = arith.constant 0 : index
    %4 = vector.load %arg2[%c0_4, %c0_5, %c0_6] : memref<9x8x4xf32, #tpu.memory_space<vmem>>, vector<1x8x4xf32>
    %5 = vector.shape_cast %4 : vector<1x8x4xf32> to vector<8x4xf32>
    %cst_7 = arith.constant dense<0.000000e+00> : vector<8x128xf32>
    %6 = tpu.matmul %5, %3, %cst_7 {dimension_numbers = #tpu.dot_dimension_numbers<[1], [0], [0], [1], [0, 0, 1, 1], [], []>} : vector<8x4xf32>, vector<4x128xf32>, vector<8x128xf32> -> vector<8x128xf32>
    %c1 = arith.constant 1 : index
    %c0_8 = arith.constant 0 : index
    %c0_9 = arith.constant 0 : index
    %7 = vector.load %arg1[%c1, %c0_8, %c0_9] : memref<9x512x128xf32, #tpu.memory_space<vmem>>, vector<1x512x128xf32>
    %8 = vector.shape_cast %7 : vector<1x512x128xf32> to vector<512x128xf32>
    %cst_10 = arith.constant dense<0.000000e+00> : vector<4x128xf32>
    %9 = tpu.matmul %0, %8, %cst_10 {dimension_numbers = #tpu.dot_dimension_numbers<[1], [0], [0], [1], [0, 0, 1, 1], [], []>} : vector<4x512xf32>, vector<512x128xf32>, vector<4x128xf32> -> vector<4x128xf32>
    %c1_11 = arith.constant 1 : index
    %c0_12 = arith.constant 0 : index
    %c0_13 = arith.constant 0 : index
    %10 = vector.load %arg2[%c1_11, %c0_12, %c0_13] : memref<9x8x4xf32, #tpu.memory_space<vmem>>, vector<1x8x4xf32>
    %11 = vector.shape_cast %10 : vector<1x8x4xf32> to vector<8x4xf32>
    %cst_14 = arith.constant dense<0.000000e+00> : vector<8x128xf32>
    %12 = tpu.matmul %11, %9, %cst_14 {dimension_numbers = #tpu.dot_dimension_numbers<[1], [0], [0], [1], [0, 0, 1, 1], [], []>} : vector<8x4xf32>, vector<4x128xf32>, vector<8x128xf32> -> vector<8x128xf32>
    %13 = arith.addf %6, %12 : vector<8x128xf32>
    %c2 = arith.constant 2 : index
    %c0_15 = arith.constant 0 : index
    %c0_16 = arith.constant 0 : index
    %14 = vector.load %arg1[%c2, %c0_15, %c0_16] : memref<9x512x128xf32, #tpu.memory_space<vmem>>, vector<1x512x128xf32>
    %15 = vector.shape_cast %14 : vector<1x512x128xf32> to vector<512x128xf32>
    %cst_17 = arith.constant dense<0.000000e+00> : vector<4x128xf32>
    %16 = tpu.matmul %0, %15, %cst_17 {dimension_numbers = #tpu.dot_dimension_numbers<[1], [0], [0], [1], [0, 0, 1, 1], [], []>} : vector<4x512xf32>, vector<512x128xf32>, vector<4x128xf32> -> vector<4x128xf32>
    %c2_18 = arith.constant 2 : index
    %c0_19 = arith.constant 0 : index
    %c0_20 = arith.constant 0 : index
    %17 = vector.load %arg2[%c2_18, %c0_19, %c0_20] : memref<9x8x4xf32, #tpu.memory_space<vmem>>, vector<1x8x4xf32>
    %18 = vector.shape_cast %17 : vector<1x8x4xf32> to vector<8x4xf32>
    %cst_21 = arith.constant dense<0.000000e+00> : vector<8x128xf32>
    %19 = tpu.matmul %18, %16, %cst_21 {dimension_numbers = #tpu.dot_dimension_numbers<[1], [0], [0], [1], [0, 0, 1, 1], [], []>} : vector<8x4xf32>, vector<4x128xf32>, vector<8x128xf32> -> vector<8x128xf32>
    %20 = arith.addf %13, %19 : vector<8x128xf32>
    %c3 = arith.constant 3 : index
    %c0_22 = arith.constant 0 : index
    %c0_23 = arith.constant 0 : index
    %21 = vector.load %arg1[%c3, %c0_22, %c0_23] : memref<9x512x128xf32, #tpu.memory_space<vmem>>, vector<1x512x128xf32>
    %22 = vector.shape_cast %21 : vector<1x512x128xf32> to vector<512x128xf32>
    %cst_24 = arith.constant dense<0.000000e+00> : vector<4x128xf32>
    %23 = tpu.matmul %0, %22, %cst_24 {dimension_numbers = #tpu.dot_dimension_numbers<[1], [0], [0], [1], [0, 0, 1, 1], [], []>} : vector<4x512xf32>, vector<512x128xf32>, vector<4x128xf32> -> vector<4x128xf32>
    %c3_25 = arith.constant 3 : index
    %c0_26 = arith.constant 0 : index
    %c0_27 = arith.constant 0 : index
    %24 = vector.load %arg2[%c3_25, %c0_26, %c0_27] : memref<9x8x4xf32, #tpu.memory_space<vmem>>, vector<1x8x4xf32>
    %25 = vector.shape_cast %24 : vector<1x8x4xf32> to vector<8x4xf32>
    %cst_28 = arith.constant dense<0.000000e+00> : vector<8x128xf32>
    %26 = tpu.matmul %25, %23, %cst_28 {dimension_numbers = #tpu.dot_dimension_numbers<[1], [0], [0], [1], [0, 0, 1, 1], [], []>} : vector<8x4xf32>, vector<4x128xf32>, vector<8x128xf32> -> vector<8x128xf32>
    %27 = arith.addf %20, %26 : vector<8x128xf32>
    %c4 = arith.constant 4 : index
    %c0_29 = arith.constant 0 : index
    %c0_30 = arith.constant 0 : index
    %28 = vector.load %arg1[%c4, %c0_29, %c0_30] : memref<9x512x128xf32, #tpu.memory_space<vmem>>, vector<1x512x128xf32>
    %29 = vector.shape_cast %28 : vector<1x512x128xf32> to vector<512x128xf32>
    %cst_31 = arith.constant dense<0.000000e+00> : vector<4x128xf32>
    %30 = tpu.matmul %0, %29, %cst_31 {dimension_numbers = #tpu.dot_dimension_numbers<[1], [0], [0], [1], [0, 0, 1, 1], [], []>} : vector<4x512xf32>, vector<512x128xf32>, vector<4x128xf32> -> vector<4x128xf32>
    %c4_32 = arith.constant 4 : index
    %c0_33 = arith.constant 0 : index
    %c0_34 = arith.constant 0 : index
    %31 = vector.load %arg2[%c4_32, %c0_33, %c0_34] : memref<9x8x4xf32, #tpu.memory_space<vmem>>, vector<1x8x4xf32>
    %32 = vector.shape_cast %31 : vector<1x8x4xf32> to vector<8x4xf32>
    %cst_35 = arith.constant dense<0.000000e+00> : vector<8x128xf32>
    %33 = tpu.matmul %32, %30, %cst_35 {dimension_numbers = #tpu.dot_dimension_numbers<[1], [0], [0], [1], [0, 0, 1, 1], [], []>} : vector<8x4xf32>, vector<4x128xf32>, vector<8x128xf32> -> vector<8x128xf32>
    %34 = arith.addf %27, %33 : vector<8x128xf32>
    %c5 = arith.constant 5 : index
    %c0_36 = arith.constant 0 : index
    %c0_37 = arith.constant 0 : index
    %35 = vector.load %arg1[%c5, %c0_36, %c0_37] : memref<9x512x128xf32, #tpu.memory_space<vmem>>, vector<1x512x128xf32>
    %36 = vector.shape_cast %35 : vector<1x512x128xf32> to vector<512x128xf32>
    %cst_38 = arith.constant dense<0.000000e+00> : vector<4x128xf32>
    %37 = tpu.matmul %0, %36, %cst_38 {dimension_numbers = #tpu.dot_dimension_numbers<[1], [0], [0], [1], [0, 0, 1, 1], [], []>} : vector<4x512xf32>, vector<512x128xf32>, vector<4x128xf32> -> vector<4x128xf32>
    %c5_39 = arith.constant 5 : index
    %c0_40 = arith.constant 0 : index
    %c0_41 = arith.constant 0 : index
    %38 = vector.load %arg2[%c5_39, %c0_40, %c0_41] : memref<9x8x4xf32, #tpu.memory_space<vmem>>, vector<1x8x4xf32>
    %39 = vector.shape_cast %38 : vector<1x8x4xf32> to vector<8x4xf32>
    %cst_42 = arith.constant dense<0.000000e+00> : vector<8x128xf32>
    %40 = tpu.matmul %39, %37, %cst_42 {dimension_numbers = #tpu.dot_dimension_numbers<[1], [0], [0], [1], [0, 0, 1, 1], [], []>} : vector<8x4xf32>, vector<4x128xf32>, vector<8x128xf32> -> vector<8x128xf32>
    %41 = arith.addf %34, %40 : vector<8x128xf32>
    %c6 = arith.constant 6 : index
    %c0_43 = arith.constant 0 : index
    %c0_44 = arith.constant 0 : index
    %42 = vector.load %arg1[%c6, %c0_43, %c0_44] : memref<9x512x128xf32, #tpu.memory_space<vmem>>, vector<1x512x128xf32>
    %43 = vector.shape_cast %42 : vector<1x512x128xf32> to vector<512x128xf32>
    %cst_45 = arith.constant dense<0.000000e+00> : vector<4x128xf32>
    %44 = tpu.matmul %0, %43, %cst_45 {dimension_numbers = #tpu.dot_dimension_numbers<[1], [0], [0], [1], [0, 0, 1, 1], [], []>} : vector<4x512xf32>, vector<512x128xf32>, vector<4x128xf32> -> vector<4x128xf32>
    %c6_46 = arith.constant 6 : index
    %c0_47 = arith.constant 0 : index
    %c0_48 = arith.constant 0 : index
    %45 = vector.load %arg2[%c6_46, %c0_47, %c0_48] : memref<9x8x4xf32, #tpu.memory_space<vmem>>, vector<1x8x4xf32>
    %46 = vector.shape_cast %45 : vector<1x8x4xf32> to vector<8x4xf32>
    %cst_49 = arith.constant dense<0.000000e+00> : vector<8x128xf32>
    %47 = tpu.matmul %46, %44, %cst_49 {dimension_numbers = #tpu.dot_dimension_numbers<[1], [0], [0], [1], [0, 0, 1, 1], [], []>} : vector<8x4xf32>, vector<4x128xf32>, vector<8x128xf32> -> vector<8x128xf32>
    %48 = arith.addf %41, %47 : vector<8x128xf32>
    %c7 = arith.constant 7 : index
    %c0_50 = arith.constant 0 : index
    %c0_51 = arith.constant 0 : index
    %49 = vector.load %arg1[%c7, %c0_50, %c0_51] : memref<9x512x128xf32, #tpu.memory_space<vmem>>, vector<1x512x128xf32>
    %50 = vector.shape_cast %49 : vector<1x512x128xf32> to vector<512x128xf32>
    %cst_52 = arith.constant dense<0.000000e+00> : vector<4x128xf32>
    %51 = tpu.matmul %0, %50, %cst_52 {dimension_numbers = #tpu.dot_dimension_numbers<[1], [0], [0], [1], [0, 0, 1, 1], [], []>} : vector<4x512xf32>, vector<512x128xf32>, vector<4x128xf32> -> vector<4x128xf32>
    %c7_53 = arith.constant 7 : index
    %c0_54 = arith.constant 0 : index
    %c0_55 = arith.constant 0 : index
    %52 = vector.load %arg2[%c7_53, %c0_54, %c0_55] : memref<9x8x4xf32, #tpu.memory_space<vmem>>, vector<1x8x4xf32>
    %53 = vector.shape_cast %52 : vector<1x8x4xf32> to vector<8x4xf32>
    %cst_56 = arith.constant dense<0.000000e+00> : vector<8x128xf32>
    %54 = tpu.matmul %53, %51, %cst_56 {dimension_numbers = #tpu.dot_dimension_numbers<[1], [0], [0], [1], [0, 0, 1, 1], [], []>} : vector<8x4xf32>, vector<4x128xf32>, vector<8x128xf32> -> vector<8x128xf32>
    %55 = arith.addf %48, %54 : vector<8x128xf32>
    %c8 = arith.constant 8 : index
    %c0_57 = arith.constant 0 : index
    %c0_58 = arith.constant 0 : index
    %56 = vector.load %arg1[%c8, %c0_57, %c0_58] : memref<9x512x128xf32, #tpu.memory_space<vmem>>, vector<1x512x128xf32>
    %57 = vector.shape_cast %56 : vector<1x512x128xf32> to vector<512x128xf32>
    %cst_59 = arith.constant dense<0.000000e+00> : vector<4x128xf32>
    %58 = tpu.matmul %0, %57, %cst_59 {dimension_numbers = #tpu.dot_dimension_numbers<[1], [0], [0], [1], [0, 0, 1, 1], [], []>} : vector<4x512xf32>, vector<512x128xf32>, vector<4x128xf32> -> vector<4x128xf32>
    %c8_60 = arith.constant 8 : index
    %c0_61 = arith.constant 0 : index
    %c0_62 = arith.constant 0 : index
    %59 = vector.load %arg2[%c8_60, %c0_61, %c0_62] : memref<9x8x4xf32, #tpu.memory_space<vmem>>, vector<1x8x4xf32>
    %60 = vector.shape_cast %59 : vector<1x8x4xf32> to vector<8x4xf32>
    %cst_63 = arith.constant dense<0.000000e+00> : vector<8x128xf32>
    %61 = tpu.matmul %60, %58, %cst_63 {dimension_numbers = #tpu.dot_dimension_numbers<[1], [0], [0], [1], [0, 0, 1, 1], [], []>} : vector<8x4xf32>, vector<4x128xf32>, vector<8x128xf32> -> vector<8x128xf32>
    %62 = arith.addf %55, %61 : vector<8x128xf32>
    %c0_64 = arith.constant 0 : index
    %c0_65 = arith.constant 0 : index
    %63 = vector.load %arg3[%c0_64, %c0_65] : memref<8x1xf32, #tpu.memory_space<vmem>>, vector<8x1xf32>
    %64 = vector.broadcast %63 : vector<8x1xf32> to vector<8x128xf32>
    %65 = arith.addf %62, %64 : vector<8x128xf32>
    %cst_66 = arith.constant 0.000000e+00 : f32
    %66 = vector.broadcast %cst_66 : f32 to vector<8x128xf32>
    %67 = arith.maximumf %65, %66 : vector<8x128xf32>
    %c0_67 = arith.constant 0 : index
    %c0_68 = arith.constant 0 : index
    %c0_69 = arith.constant 0 : index
    %68 = vector.load %arg4[%c0_67, %c0_68, %c0_69] : memref<9x128x32xf32, #tpu.memory_space<vmem>>, vector<1x128x32xf32>
    %69 = vector.shape_cast %68 : vector<1x128x32xf32> to vector<128x32xf32>
    %cst_70 = arith.constant dense<0.000000e+00> : vector<8x32xf32>
    %70 = tpu.matmul %67, %69, %cst_70 {dimension_numbers = #tpu.dot_dimension_numbers<[1], [0], [0], [1], [0, 0, 1, 1], [], []>} : vector<8x128xf32>, vector<128x32xf32>, vector<8x32xf32> -> vector<8x32xf32>
    %c0_71 = arith.constant 0 : index
    %c0_72 = arith.constant 0 : index
    %c0_73 = arith.constant 0 : index
    %71 = vector.load %arg5[%c0_71, %c0_72, %c0_73] : memref<9x16x8xf32, #tpu.memory_space<vmem>>, vector<1x16x8xf32>
    %72 = vector.shape_cast %71 : vector<1x16x8xf32> to vector<16x8xf32>
    %cst_74 = arith.constant dense<0.000000e+00> : vector<16x32xf32>
    %73 = tpu.matmul %72, %70, %cst_74 {dimension_numbers = #tpu.dot_dimension_numbers<[1], [0], [0], [1], [0, 0, 1, 1], [], []>} : vector<16x8xf32>, vector<8x32xf32>, vector<16x32xf32> -> vector<16x32xf32>
    %c1_75 = arith.constant 1 : index
    %c0_76 = arith.constant 0 : index
    %c0_77 = arith.constant 0 : index
    %74 = vector.load %arg4[%c1_75, %c0_76, %c0_77] : memref<9x128x32xf32, #tpu.memory_space<vmem>>, vector<1x128x32xf32>
    %75 = vector.shape_cast %74 : vector<1x128x32xf32> to vector<128x32xf32>
    %cst_78 = arith.constant dense<0.000000e+00> : vector<8x32xf32>
    %76 = tpu.matmul %67, %75, %cst_78 {dimension_numbers = #tpu.dot_dimension_numbers<[1], [0], [0], [1], [0, 0, 1, 1], [], []>} : vector<8x128xf32>, vector<128x32xf32>, vector<8x32xf32> -> vector<8x32xf32>
    %c1_79 = arith.constant 1 : index
    %c0_80 = arith.constant 0 : index
    %c0_81 = arith.constant 0 : index
    %77 = vector.load %arg5[%c1_79, %c0_80, %c0_81] : memref<9x16x8xf32, #tpu.memory_space<vmem>>, vector<1x16x8xf32>
    %78 = vector.shape_cast %77 : vector<1x16x8xf32> to vector<16x8xf32>
    %cst_82 = arith.constant dense<0.000000e+00> : vector<16x32xf32>
    %79 = tpu.matmul %78, %76, %cst_82 {dimension_numbers = #tpu.dot_dimension_numbers<[1], [0], [0], [1], [0, 0, 1, 1], [], []>} : vector<16x8xf32>, vector<8x32xf32>, vector<16x32xf32> -> vector<16x32xf32>
    %80 = arith.addf %73, %79 : vector<16x32xf32>
    %c2_83 = arith.constant 2 : index
    %c0_84 = arith.constant 0 : index
    %c0_85 = arith.constant 0 : index
    %81 = vector.load %arg4[%c2_83, %c0_84, %c0_85] : memref<9x128x32xf32, #tpu.memory_space<vmem>>, vector<1x128x32xf32>
    %82 = vector.shape_cast %81 : vector<1x128x32xf32> to vector<128x32xf32>
    %cst_86 = arith.constant dense<0.000000e+00> : vector<8x32xf32>
    %83 = tpu.matmul %67, %82, %cst_86 {dimension_numbers = #tpu.dot_dimension_numbers<[1], [0], [0], [1], [0, 0, 1, 1], [], []>} : vector<8x128xf32>, vector<128x32xf32>, vector<8x32xf32> -> vector<8x32xf32>
    %c2_87 = arith.constant 2 : index
    %c0_88 = arith.constant 0 : index
    %c0_89 = arith.constant 0 : index
    %84 = vector.load %arg5[%c2_87, %c0_88, %c0_89] : memref<9x16x8xf32, #tpu.memory_space<vmem>>, vector<1x16x8xf32>
    %85 = vector.shape_cast %84 : vector<1x16x8xf32> to vector<16x8xf32>
    %cst_90 = arith.constant dense<0.000000e+00> : vector<16x32xf32>
    %86 = tpu.matmul %85, %83, %cst_90 {dimension_numbers = #tpu.dot_dimension_numbers<[1], [0], [0], [1], [0, 0, 1, 1], [], []>} : vector<16x8xf32>, vector<8x32xf32>, vector<16x32xf32> -> vector<16x32xf32>
    %87 = arith.addf %80, %86 : vector<16x32xf32>
    %c3_91 = arith.constant 3 : index
    %c0_92 = arith.constant 0 : index
    %c0_93 = arith.constant 0 : index
    %88 = vector.load %arg4[%c3_91, %c0_92, %c0_93] : memref<9x128x32xf32, #tpu.memory_space<vmem>>, vector<1x128x32xf32>
    %89 = vector.shape_cast %88 : vector<1x128x32xf32> to vector<128x32xf32>
    %cst_94 = arith.constant dense<0.000000e+00> : vector<8x32xf32>
    %90 = tpu.matmul %67, %89, %cst_94 {dimension_numbers = #tpu.dot_dimension_numbers<[1], [0], [0], [1], [0, 0, 1, 1], [], []>} : vector<8x128xf32>, vector<128x32xf32>, vector<8x32xf32> -> vector<8x32xf32>
    %c3_95 = arith.constant 3 : index
    %c0_96 = arith.constant 0 : index
    %c0_97 = arith.constant 0 : index
    %91 = vector.load %arg5[%c3_95, %c0_96, %c0_97] : memref<9x16x8xf32, #tpu.memory_space<vmem>>, vector<1x16x8xf32>
    %92 = vector.shape_cast %91 : vector<1x16x8xf32> to vector<16x8xf32>
    %cst_98 = arith.constant dense<0.000000e+00> : vector<16x32xf32>
    %93 = tpu.matmul %92, %90, %cst_98 {dimension_numbers = #tpu.dot_dimension_numbers<[1], [0], [0], [1], [0, 0, 1, 1], [], []>} : vector<16x8xf32>, vector<8x32xf32>, vector<16x32xf32> -> vector<16x32xf32>
    %94 = arith.addf %87, %93 : vector<16x32xf32>
    %c4_99 = arith.constant 4 : index
    %c0_100 = arith.constant 0 : index
    %c0_101 = arith.constant 0 : index
    %95 = vector.load %arg4[%c4_99, %c0_100, %c0_101] : memref<9x128x32xf32, #tpu.memory_space<vmem>>, vector<1x128x32xf32>
    %96 = vector.shape_cast %95 : vector<1x128x32xf32> to vector<128x32xf32>
    %cst_102 = arith.constant dense<0.000000e+00> : vector<8x32xf32>
    %97 = tpu.matmul %67, %96, %cst_102 {dimension_numbers = #tpu.dot_dimension_numbers<[1], [0], [0], [1], [0, 0, 1, 1], [], []>} : vector<8x128xf32>, vector<128x32xf32>, vector<8x32xf32> -> vector<8x32xf32>
    %c4_103 = arith.constant 4 : index
    %c0_104 = arith.constant 0 : index
    %c0_105 = arith.constant 0 : index
    %98 = vector.load %arg5[%c4_103, %c0_104, %c0_105] : memref<9x16x8xf32, #tpu.memory_space<vmem>>, vector<1x16x8xf32>
    %99 = vector.shape_cast %98 : vector<1x16x8xf32> to vector<16x8xf32>
    %cst_106 = arith.constant dense<0.000000e+00> : vector<16x32xf32>
    %100 = tpu.matmul %99, %97, %cst_106 {dimension_numbers = #tpu.dot_dimension_numbers<[1], [0], [0], [1], [0, 0, 1, 1], [], []>} : vector<16x8xf32>, vector<8x32xf32>, vector<16x32xf32> -> vector<16x32xf32>
    %101 = arith.addf %94, %100 : vector<16x32xf32>
    %c5_107 = arith.constant 5 : index
    %c0_108 = arith.constant 0 : index
    %c0_109 = arith.constant 0 : index
    %102 = vector.load %arg4[%c5_107, %c0_108, %c0_109] : memref<9x128x32xf32, #tpu.memory_space<vmem>>, vector<1x128x32xf32>
    %103 = vector.shape_cast %102 : vector<1x128x32xf32> to vector<128x32xf32>
    %cst_110 = arith.constant dense<0.000000e+00> : vector<8x32xf32>
    %104 = tpu.matmul %67, %103, %cst_110 {dimension_numbers = #tpu.dot_dimension_numbers<[1], [0], [0], [1], [0, 0, 1, 1], [], []>} : vector<8x128xf32>, vector<128x32xf32>, vector<8x32xf32> -> vector<8x32xf32>
    %c5_111 = arith.constant 5 : index
    %c0_112 = arith.constant 0 : index
    %c0_113 = arith.constant 0 : index
    %105 = vector.load %arg5[%c5_111, %c0_112, %c0_113] : memref<9x16x8xf32, #tpu.memory_space<vmem>>, vector<1x16x8xf32>
    %106 = vector.shape_cast %105 : vector<1x16x8xf32> to vector<16x8xf32>
    %cst_114 = arith.constant dense<0.000000e+00> : vector<16x32xf32>
    %107 = tpu.matmul %106, %104, %cst_114 {dimension_numbers = #tpu.dot_dimension_numbers<[1], [0], [0], [1], [0, 0, 1, 1], [], []>} : vector<16x8xf32>, vector<8x32xf32>, vector<16x32xf32> -> vector<16x32xf32>
    %108 = arith.addf %101, %107 : vector<16x32xf32>
    %c6_115 = arith.constant 6 : index
    %c0_116 = arith.constant 0 : index
    %c0_117 = arith.constant 0 : index
    %109 = vector.load %arg4[%c6_115, %c0_116, %c0_117] : memref<9x128x32xf32, #tpu.memory_space<vmem>>, vector<1x128x32xf32>
    %110 = vector.shape_cast %109 : vector<1x128x32xf32> to vector<128x32xf32>
    %cst_118 = arith.constant dense<0.000000e+00> : vector<8x32xf32>
    %111 = tpu.matmul %67, %110, %cst_118 {dimension_numbers = #tpu.dot_dimension_numbers<[1], [0], [0], [1], [0, 0, 1, 1], [], []>} : vector<8x128xf32>, vector<128x32xf32>, vector<8x32xf32> -> vector<8x32xf32>
    %c6_119 = arith.constant 6 : index
    %c0_120 = arith.constant 0 : index
    %c0_121 = arith.constant 0 : index
    %112 = vector.load %arg5[%c6_119, %c0_120, %c0_121] : memref<9x16x8xf32, #tpu.memory_space<vmem>>, vector<1x16x8xf32>
    %113 = vector.shape_cast %112 : vector<1x16x8xf32> to vector<16x8xf32>
    %cst_122 = arith.constant dense<0.000000e+00> : vector<16x32xf32>
    %114 = tpu.matmul %113, %111, %cst_122 {dimension_numbers = #tpu.dot_dimension_numbers<[1], [0], [0], [1], [0, 0, 1, 1], [], []>} : vector<16x8xf32>, vector<8x32xf32>, vector<16x32xf32> -> vector<16x32xf32>
    %115 = arith.addf %108, %114 : vector<16x32xf32>
    %c7_123 = arith.constant 7 : index
    %c0_124 = arith.constant 0 : index
    %c0_125 = arith.constant 0 : index
    %116 = vector.load %arg4[%c7_123, %c0_124, %c0_125] : memref<9x128x32xf32, #tpu.memory_space<vmem>>, vector<1x128x32xf32>
    %117 = vector.shape_cast %116 : vector<1x128x32xf32> to vector<128x32xf32>
    %cst_126 = arith.constant dense<0.000000e+00> : vector<8x32xf32>
    %118 = tpu.matmul %67, %117, %cst_126 {dimension_numbers = #tpu.dot_dimension_numbers<[1], [0], [0], [1], [0, 0, 1, 1], [], []>} : vector<8x128xf32>, vector<128x32xf32>, vector<8x32xf32> -> vector<8x32xf32>
    %c7_127 = arith.constant 7 : index
    %c0_128 = arith.constant 0 : index
    %c0_129 = arith.constant 0 : index
    %119 = vector.load %arg5[%c7_127, %c0_128, %c0_129] : memref<9x16x8xf32, #tpu.memory_space<vmem>>, vector<1x16x8xf32>
    %120 = vector.shape_cast %119 : vector<1x16x8xf32> to vector<16x8xf32>
    %cst_130 = arith.constant dense<0.000000e+00> : vector<16x32xf32>
    %121 = tpu.matmul %120, %118, %cst_130 {dimension_numbers = #tpu.dot_dimension_numbers<[1], [0], [0], [1], [0, 0, 1, 1], [], []>} : vector<16x8xf32>, vector<8x32xf32>, vector<16x32xf32> -> vector<16x32xf32>
    %122 = arith.addf %115, %121 : vector<16x32xf32>
    %c8_131 = arith.constant 8 : index
    %c0_132 = arith.constant 0 : index
    %c0_133 = arith.constant 0 : index
    %123 = vector.load %arg4[%c8_131, %c0_132, %c0_133] : memref<9x128x32xf32, #tpu.memory_space<vmem>>, vector<1x128x32xf32>
    %124 = vector.shape_cast %123 : vector<1x128x32xf32> to vector<128x32xf32>
    %cst_134 = arith.constant dense<0.000000e+00> : vector<8x32xf32>
    %125 = tpu.matmul %67, %124, %cst_134 {dimension_numbers = #tpu.dot_dimension_numbers<[1], [0], [0], [1], [0, 0, 1, 1], [], []>} : vector<8x128xf32>, vector<128x32xf32>, vector<8x32xf32> -> vector<8x32xf32>
    %c8_135 = arith.constant 8 : index
    %c0_136 = arith.constant 0 : index
    %c0_137 = arith.constant 0 : index
    %126 = vector.load %arg5[%c8_135, %c0_136, %c0_137] : memref<9x16x8xf32, #tpu.memory_space<vmem>>, vector<1x16x8xf32>
    %127 = vector.shape_cast %126 : vector<1x16x8xf32> to vector<16x8xf32>
    %cst_138 = arith.constant dense<0.000000e+00> : vector<16x32xf32>
    %128 = tpu.matmul %127, %125, %cst_138 {dimension_numbers = #tpu.dot_dimension_numbers<[1], [0], [0], [1], [0, 0, 1, 1], [], []>} : vector<16x8xf32>, vector<8x32xf32>, vector<16x32xf32> -> vector<16x32xf32>
    %129 = arith.addf %122, %128 : vector<16x32xf32>
    %c0_139 = arith.constant 0 : index
    %c0_140 = arith.constant 0 : index
    %130 = vector.load %arg6[%c0_139, %c0_140] : memref<16x1xf32, #tpu.memory_space<vmem>>, vector<16x1xf32>
    %131 = vector.broadcast %130 : vector<16x1xf32> to vector<16x32xf32>
    %132 = arith.addf %129, %131 : vector<16x32xf32>
    %cst_141 = arith.constant 0.000000e+00 : f32
    %133 = vector.broadcast %cst_141 : f32 to vector<16x32xf32>
    %134 = arith.maximumf %132, %133 : vector<16x32xf32>
    %c0_142 = arith.constant 0 : index
    %c0_143 = arith.constant 0 : index
    %c0_144 = arith.constant 0 : index
    %135 = vector.load %arg7[%c0_142, %c0_143, %c0_144] : memref<16x32x2xf32, #tpu.memory_space<vmem>>, vector<1x32x2xf32>
    %136 = vector.shape_cast %135 : vector<1x32x2xf32> to vector<32x2xf32>
    %cst_145 = arith.constant dense<0.000000e+00> : vector<16x2xf32>
    %137 = tpu.matmul %134, %136, %cst_145 {dimension_numbers = #tpu.dot_dimension_numbers<[1], [0], [0], [1], [0, 0, 1, 1], [], []>} : vector<16x32xf32>, vector<32x2xf32>, vector<16x2xf32> -> vector<16x2xf32>
    %c0_146 = arith.constant 0 : index
    %c0_147 = arith.constant 0 : index
    %c0_148 = arith.constant 0 : index
    %138 = vector.load %arg8[%c0_146, %c0_147, %c0_148] : memref<16x32x16xf32, #tpu.memory_space<vmem>>, vector<1x32x16xf32>
    %139 = vector.shape_cast %138 : vector<1x32x16xf32> to vector<32x16xf32>
    %cst_149 = arith.constant dense<0.000000e+00> : vector<32x2xf32>
    %140 = tpu.matmul %139, %137, %cst_149 {dimension_numbers = #tpu.dot_dimension_numbers<[1], [0], [0], [1], [0, 0, 1, 1], [], []>} : vector<32x16xf32>, vector<16x2xf32>, vector<32x2xf32> -> vector<32x2xf32>
    %c1_150 = arith.constant 1 : index
    %c0_151 = arith.constant 0 : index
    %c0_152 = arith.constant 0 : index
    %141 = vector.load %arg7[%c1_150, %c0_151, %c0_152] : memref<16x32x2xf32, #tpu.memory_space<vmem>>, vector<1x32x2xf32>
    %142 = vector.shape_cast %141 : vector<1x32x2xf32> to vector<32x2xf32>
    %cst_153 = arith.constant dense<0.000000e+00> : vector<16x2xf32>
    %143 = tpu.matmul %134, %142, %cst_153 {dimension_numbers = #tpu.dot_dimension_numbers<[1], [0], [0], [1], [0, 0, 1, 1], [], []>} : vector<16x32xf32>, vector<32x2xf32>, vector<16x2xf32> -> vector<16x2xf32>
    %c1_154 = arith.constant 1 : index
    %c0_155 = arith.constant 0 : index
    %c0_156 = arith.constant 0 : index
    %144 = vector.load %arg8[%c1_154, %c0_155, %c0_156] : memref<16x32x16xf32, #tpu.memory_space<vmem>>, vector<1x32x16xf32>
    %145 = vector.shape_cast %144 : vector<1x32x16xf32> to vector<32x16xf32>
    %cst_157 = arith.constant dense<0.000000e+00> : vector<32x2xf32>
    %146 = tpu.matmul %145, %143, %cst_157 {dimension_numbers = #tpu.dot_dimension_numbers<[1], [0], [0], [1], [0, 0, 1, 1], [], []>} : vector<32x16xf32>, vector<16x2xf32>, vector<32x2xf32> -> vector<32x2xf32>
    %147 = arith.addf %140, %146 : vector<32x2xf32>
    %c2_158 = arith.constant 2 : index
    %c0_159 = arith.constant 0 : index
    %c0_160 = arith.constant 0 : index
    %148 = vector.load %arg7[%c2_158, %c0_159, %c0_160] : memref<16x32x2xf32, #tpu.memory_space<vmem>>, vector<1x32x2xf32>
    %149 = vector.shape_cast %148 : vector<1x32x2xf32> to vector<32x2xf32>
    %cst_161 = arith.constant dense<0.000000e+00> : vector<16x2xf32>
    %150 = tpu.matmul %134, %149, %cst_161 {dimension_numbers = #tpu.dot_dimension_numbers<[1], [0], [0], [1], [0, 0, 1, 1], [], []>} : vector<16x32xf32>, vector<32x2xf32>, vector<16x2xf32> -> vector<16x2xf32>
    %c2_162 = arith.constant 2 : index
    %c0_163 = arith.constant 0 : index
    %c0_164 = arith.constant 0 : index
    %151 = vector.load %arg8[%c2_162, %c0_163, %c0_164] : memref<16x32x16xf32, #tpu.memory_space<vmem>>, vector<1x32x16xf32>
    %152 = vector.shape_cast %151 : vector<1x32x16xf32> to vector<32x16xf32>
    %cst_165 = arith.constant dense<0.000000e+00> : vector<32x2xf32>
    %153 = tpu.matmul %152, %150, %cst_165 {dimension_numbers = #tpu.dot_dimension_numbers<[1], [0], [0], [1], [0, 0, 1, 1], [], []>} : vector<32x16xf32>, vector<16x2xf32>, vector<32x2xf32> -> vector<32x2xf32>
    %154 = arith.addf %147, %153 : vector<32x2xf32>
    %c3_166 = arith.constant 3 : index
    %c0_167 = arith.constant 0 : index
    %c0_168 = arith.constant 0 : index
    %155 = vector.load %arg7[%c3_166, %c0_167, %c0_168] : memref<16x32x2xf32, #tpu.memory_space<vmem>>, vector<1x32x2xf32>
    %156 = vector.shape_cast %155 : vector<1x32x2xf32> to vector<32x2xf32>
    %cst_169 = arith.constant dense<0.000000e+00> : vector<16x2xf32>
    %157 = tpu.matmul %134, %156, %cst_169 {dimension_numbers = #tpu.dot_dimension_numbers<[1], [0], [0], [1], [0, 0, 1, 1], [], []>} : vector<16x32xf32>, vector<32x2xf32>, vector<16x2xf32> -> vector<16x2xf32>
    %c3_170 = arith.constant 3 : index
    %c0_171 = arith.constant 0 : index
    %c0_172 = arith.constant 0 : index
    %158 = vector.load %arg8[%c3_170, %c0_171, %c0_172] : memref<16x32x16xf32, #tpu.memory_space<vmem>>, vector<1x32x16xf32>
    %159 = vector.shape_cast %158 : vector<1x32x16xf32> to vector<32x16xf32>
    %cst_173 = arith.constant dense<0.000000e+00> : vector<32x2xf32>
    %160 = tpu.matmul %159, %157, %cst_173 {dimension_numbers = #tpu.dot_dimension_numbers<[1], [0], [0], [1], [0, 0, 1, 1], [], []>} : vector<32x16xf32>, vector<16x2xf32>, vector<32x2xf32> -> vector<32x2xf32>
    %161 = arith.addf %154, %160 : vector<32x2xf32>
    %c4_174 = arith.constant 4 : index
    %c0_175 = arith.constant 0 : index
    %c0_176 = arith.constant 0 : index
    %162 = vector.load %arg7[%c4_174, %c0_175, %c0_176] : memref<16x32x2xf32, #tpu.memory_space<vmem>>, vector<1x32x2xf32>
    %163 = vector.shape_cast %162 : vector<1x32x2xf32> to vector<32x2xf32>
    %cst_177 = arith.constant dense<0.000000e+00> : vector<16x2xf32>
    %164 = tpu.matmul %134, %163, %cst_177 {dimension_numbers = #tpu.dot_dimension_numbers<[1], [0], [0], [1], [0, 0, 1, 1], [], []>} : vector<16x32xf32>, vector<32x2xf32>, vector<16x2xf32> -> vector<16x2xf32>
    %c4_178 = arith.constant 4 : index
    %c0_179 = arith.constant 0 : index
    %c0_180 = arith.constant 0 : index
    %165 = vector.load %arg8[%c4_178, %c0_179, %c0_180] : memref<16x32x16xf32, #tpu.memory_space<vmem>>, vector<1x32x16xf32>
    %166 = vector.shape_cast %165 : vector<1x32x16xf32> to vector<32x16xf32>
    %cst_181 = arith.constant dense<0.000000e+00> : vector<32x2xf32>
    %167 = tpu.matmul %166, %164, %cst_181 {dimension_numbers = #tpu.dot_dimension_numbers<[1], [0], [0], [1], [0, 0, 1, 1], [], []>} : vector<32x16xf32>, vector<16x2xf32>, vector<32x2xf32> -> vector<32x2xf32>
    %168 = arith.addf %161, %167 : vector<32x2xf32>
    %c5_182 = arith.constant 5 : index
    %c0_183 = arith.constant 0 : index
    %c0_184 = arith.constant 0 : index
    %169 = vector.load %arg7[%c5_182, %c0_183, %c0_184] : memref<16x32x2xf32, #tpu.memory_space<vmem>>, vector<1x32x2xf32>
    %170 = vector.shape_cast %169 : vector<1x32x2xf32> to vector<32x2xf32>
    %cst_185 = arith.constant dense<0.000000e+00> : vector<16x2xf32>
    %171 = tpu.matmul %134, %170, %cst_185 {dimension_numbers = #tpu.dot_dimension_numbers<[1], [0], [0], [1], [0, 0, 1, 1], [], []>} : vector<16x32xf32>, vector<32x2xf32>, vector<16x2xf32> -> vector<16x2xf32>
    %c5_186 = arith.constant 5 : index
    %c0_187 = arith.constant 0 : index
    %c0_188 = arith.constant 0 : index
    %172 = vector.load %arg8[%c5_186, %c0_187, %c0_188] : memref<16x32x16xf32, #tpu.memory_space<vmem>>, vector<1x32x16xf32>
    %173 = vector.shape_cast %172 : vector<1x32x16xf32> to vector<32x16xf32>
    %cst_189 = arith.constant dense<0.000000e+00> : vector<32x2xf32>
    %174 = tpu.matmul %173, %171, %cst_189 {dimension_numbers = #tpu.dot_dimension_numbers<[1], [0], [0], [1], [0, 0, 1, 1], [], []>} : vector<32x16xf32>, vector<16x2xf32>, vector<32x2xf32> -> vector<32x2xf32>
    %175 = arith.addf %168, %174 : vector<32x2xf32>
    %c6_190 = arith.constant 6 : index
    %c0_191 = arith.constant 0 : index
    %c0_192 = arith.constant 0 : index
    %176 = vector.load %arg7[%c6_190, %c0_191, %c0_192] : memref<16x32x2xf32, #tpu.memory_space<vmem>>, vector<1x32x2xf32>
    %177 = vector.shape_cast %176 : vector<1x32x2xf32> to vector<32x2xf32>
    %cst_193 = arith.constant dense<0.000000e+00> : vector<16x2xf32>
    %178 = tpu.matmul %134, %177, %cst_193 {dimension_numbers = #tpu.dot_dimension_numbers<[1], [0], [0], [1], [0, 0, 1, 1], [], []>} : vector<16x32xf32>, vector<32x2xf32>, vector<16x2xf32> -> vector<16x2xf32>
    %c6_194 = arith.constant 6 : index
    %c0_195 = arith.constant 0 : index
    %c0_196 = arith.constant 0 : index
    %179 = vector.load %arg8[%c6_194, %c0_195, %c0_196] : memref<16x32x16xf32, #tpu.memory_space<vmem>>, vector<1x32x16xf32>
    %180 = vector.shape_cast %179 : vector<1x32x16xf32> to vector<32x16xf32>
    %cst_197 = arith.constant dense<0.000000e+00> : vector<32x2xf32>
    %181 = tpu.matmul %180, %178, %cst_197 {dimension_numbers = #tpu.dot_dimension_numbers<[1], [0], [0], [1], [0, 0, 1, 1], [], []>} : vector<32x16xf32>, vector<16x2xf32>, vector<32x2xf32> -> vector<32x2xf32>
    %182 = arith.addf %175, %181 : vector<32x2xf32>
    %c7_198 = arith.constant 7 : index
    %c0_199 = arith.constant 0 : index
    %c0_200 = arith.constant 0 : index
    %183 = vector.load %arg7[%c7_198, %c0_199, %c0_200] : memref<16x32x2xf32, #tpu.memory_space<vmem>>, vector<1x32x2xf32>
    %184 = vector.shape_cast %183 : vector<1x32x2xf32> to vector<32x2xf32>
    %cst_201 = arith.constant dense<0.000000e+00> : vector<16x2xf32>
    %185 = tpu.matmul %134, %184, %cst_201 {dimension_numbers = #tpu.dot_dimension_numbers<[1], [0], [0], [1], [0, 0, 1, 1], [], []>} : vector<16x32xf32>, vector<32x2xf32>, vector<16x2xf32> -> vector<16x2xf32>
    %c7_202 = arith.constant 7 : index
    %c0_203 = arith.constant 0 : index
    %c0_204 = arith.constant 0 : index
    %186 = vector.load %arg8[%c7_202, %c0_203, %c0_204] : memref<16x32x16xf32, #tpu.memory_space<vmem>>, vector<1x32x16xf32>
    %187 = vector.shape_cast %186 : vector<1x32x16xf32> to vector<32x16xf32>
    %cst_205 = arith.constant dense<0.000000e+00> : vector<32x2xf32>
    %188 = tpu.matmul %187, %185, %cst_205 {dimension_numbers = #tpu.dot_dimension_numbers<[1], [0], [0], [1], [0, 0, 1, 1], [], []>} : vector<32x16xf32>, vector<16x2xf32>, vector<32x2xf32> -> vector<32x2xf32>
    %189 = arith.addf %182, %188 : vector<32x2xf32>
    %c8_206 = arith.constant 8 : index
    %c0_207 = arith.constant 0 : index
    %c0_208 = arith.constant 0 : index
    %190 = vector.load %arg7[%c8_206, %c0_207, %c0_208] : memref<16x32x2xf32, #tpu.memory_space<vmem>>, vector<1x32x2xf32>
    %191 = vector.shape_cast %190 : vector<1x32x2xf32> to vector<32x2xf32>
    %cst_209 = arith.constant dense<0.000000e+00> : vector<16x2xf32>
    %192 = tpu.matmul %134, %191, %cst_209 {dimension_numbers = #tpu.dot_dimension_numbers<[1], [0], [0], [1], [0, 0, 1, 1], [], []>} : vector<16x32xf32>, vector<32x2xf32>, vector<16x2xf32> -> vector<16x2xf32>
    %c8_210 = arith.constant 8 : index
    %c0_211 = arith.constant 0 : index
    %c0_212 = arith.constant 0 : index
    %193 = vector.load %arg8[%c8_210, %c0_211, %c0_212] : memref<16x32x16xf32, #tpu.memory_space<vmem>>, vector<1x32x16xf32>
    %194 = vector.shape_cast %193 : vector<1x32x16xf32> to vector<32x16xf32>
    %cst_213 = arith.constant dense<0.000000e+00> : vector<32x2xf32>
    %195 = tpu.matmul %194, %192, %cst_213 {dimension_numbers = #tpu.dot_dimension_numbers<[1], [0], [0], [1], [0, 0, 1, 1], [], []>} : vector<32x16xf32>, vector<16x2xf32>, vector<32x2xf32> -> vector<32x2xf32>
    %196 = arith.addf %189, %195 : vector<32x2xf32>
    %c9 = arith.constant 9 : index
    %c0_214 = arith.constant 0 : index
    %c0_215 = arith.constant 0 : index
    %197 = vector.load %arg7[%c9, %c0_214, %c0_215] : memref<16x32x2xf32, #tpu.memory_space<vmem>>, vector<1x32x2xf32>
    %198 = vector.shape_cast %197 : vector<1x32x2xf32> to vector<32x2xf32>
    %cst_216 = arith.constant dense<0.000000e+00> : vector<16x2xf32>
    %199 = tpu.matmul %134, %198, %cst_216 {dimension_numbers = #tpu.dot_dimension_numbers<[1], [0], [0], [1], [0, 0, 1, 1], [], []>} : vector<16x32xf32>, vector<32x2xf32>, vector<16x2xf32> -> vector<16x2xf32>
    %c9_217 = arith.constant 9 : index
    %c0_218 = arith.constant 0 : index
    %c0_219 = arith.constant 0 : index
    %200 = vector.load %arg8[%c9_217, %c0_218, %c0_219] : memref<16x32x16xf32, #tpu.memory_space<vmem>>, vector<1x32x16xf32>
    %201 = vector.shape_cast %200 : vector<1x32x16xf32> to vector<32x16xf32>
    %cst_220 = arith.constant dense<0.000000e+00> : vector<32x2xf32>
    %202 = tpu.matmul %201, %199, %cst_220 {dimension_numbers = #tpu.dot_dimension_numbers<[1], [0], [0], [1], [0, 0, 1, 1], [], []>} : vector<32x16xf32>, vector<16x2xf32>, vector<32x2xf32> -> vector<32x2xf32>
    %203 = arith.addf %196, %202 : vector<32x2xf32>
    %c10 = arith.constant 10 : index
    %c0_221 = arith.constant 0 : index
    %c0_222 = arith.constant 0 : index
    %204 = vector.load %arg7[%c10, %c0_221, %c0_222] : memref<16x32x2xf32, #tpu.memory_space<vmem>>, vector<1x32x2xf32>
    %205 = vector.shape_cast %204 : vector<1x32x2xf32> to vector<32x2xf32>
    %cst_223 = arith.constant dense<0.000000e+00> : vector<16x2xf32>
    %206 = tpu.matmul %134, %205, %cst_223 {dimension_numbers = #tpu.dot_dimension_numbers<[1], [0], [0], [1], [0, 0, 1, 1], [], []>} : vector<16x32xf32>, vector<32x2xf32>, vector<16x2xf32> -> vector<16x2xf32>
    %c10_224 = arith.constant 10 : index
    %c0_225 = arith.constant 0 : index
    %c0_226 = arith.constant 0 : index
    %207 = vector.load %arg8[%c10_224, %c0_225, %c0_226] : memref<16x32x16xf32, #tpu.memory_space<vmem>>, vector<1x32x16xf32>
    %208 = vector.shape_cast %207 : vector<1x32x16xf32> to vector<32x16xf32>
    %cst_227 = arith.constant dense<0.000000e+00> : vector<32x2xf32>
    %209 = tpu.matmul %208, %206, %cst_227 {dimension_numbers = #tpu.dot_dimension_numbers<[1], [0], [0], [1], [0, 0, 1, 1], [], []>} : vector<32x16xf32>, vector<16x2xf32>, vector<32x2xf32> -> vector<32x2xf32>
    %210 = arith.addf %203, %209 : vector<32x2xf32>
    %c11 = arith.constant 11 : index
    %c0_228 = arith.constant 0 : index
    %c0_229 = arith.constant 0 : index
    %211 = vector.load %arg7[%c11, %c0_228, %c0_229] : memref<16x32x2xf32, #tpu.memory_space<vmem>>, vector<1x32x2xf32>
    %212 = vector.shape_cast %211 : vector<1x32x2xf32> to vector<32x2xf32>
    %cst_230 = arith.constant dense<0.000000e+00> : vector<16x2xf32>
    %213 = tpu.matmul %134, %212, %cst_230 {dimension_numbers = #tpu.dot_dimension_numbers<[1], [0], [0], [1], [0, 0, 1, 1], [], []>} : vector<16x32xf32>, vector<32x2xf32>, vector<16x2xf32> -> vector<16x2xf32>
    %c11_231 = arith.constant 11 : index
    %c0_232 = arith.constant 0 : index
    %c0_233 = arith.constant 0 : index
    %214 = vector.load %arg8[%c11_231, %c0_232, %c0_233] : memref<16x32x16xf32, #tpu.memory_space<vmem>>, vector<1x32x16xf32>
    %215 = vector.shape_cast %214 : vector<1x32x16xf32> to vector<32x16xf32>
    %cst_234 = arith.constant dense<0.000000e+00> : vector<32x2xf32>
    %216 = tpu.matmul %215, %213, %cst_234 {dimension_numbers = #tpu.dot_dimension_numbers<[1], [0], [0], [1], [0, 0, 1, 1], [], []>} : vector<32x16xf32>, vector<16x2xf32>, vector<32x2xf32> -> vector<32x2xf32>
    %217 = arith.addf %210, %216 : vector<32x2xf32>
    %c12 = arith.constant 12 : index
    %c0_235 = arith.constant 0 : index
    %c0_236 = arith.constant 0 : index
    %218 = vector.load %arg7[%c12, %c0_235, %c0_236] : memref<16x32x2xf32, #tpu.memory_space<vmem>>, vector<1x32x2xf32>
    %219 = vector.shape_cast %218 : vector<1x32x2xf32> to vector<32x2xf32>
    %cst_237 = arith.constant dense<0.000000e+00> : vector<16x2xf32>
    %220 = tpu.matmul %134, %219, %cst_237 {dimension_numbers = #tpu.dot_dimension_numbers<[1], [0], [0], [1], [0, 0, 1, 1], [], []>} : vector<16x32xf32>, vector<32x2xf32>, vector<16x2xf32> -> vector<16x2xf32>
    %c12_238 = arith.constant 12 : index
    %c0_239 = arith.constant 0 : index
    %c0_240 = arith.constant 0 : index
    %221 = vector.load %arg8[%c12_238, %c0_239, %c0_240] : memref<16x32x16xf32, #tpu.memory_space<vmem>>, vector<1x32x16xf32>
    %222 = vector.shape_cast %221 : vector<1x32x16xf32> to vector<32x16xf32>
    %cst_241 = arith.constant dense<0.000000e+00> : vector<32x2xf32>
    %223 = tpu.matmul %222, %220, %cst_241 {dimension_numbers = #tpu.dot_dimension_numbers<[1], [0], [0], [1], [0, 0, 1, 1], [], []>} : vector<32x16xf32>, vector<16x2xf32>, vector<32x2xf32> -> vector<32x2xf32>
    %224 = arith.addf %217, %223 : vector<32x2xf32>
    %c13 = arith.constant 13 : index
    %c0_242 = arith.constant 0 : index
    %c0_243 = arith.constant 0 : index
    %225 = vector.load %arg7[%c13, %c0_242, %c0_243] : memref<16x32x2xf32, #tpu.memory_space<vmem>>, vector<1x32x2xf32>
    %226 = vector.shape_cast %225 : vector<1x32x2xf32> to vector<32x2xf32>
    %cst_244 = arith.constant dense<0.000000e+00> : vector<16x2xf32>
    %227 = tpu.matmul %134, %226, %cst_244 {dimension_numbers = #tpu.dot_dimension_numbers<[1], [0], [0], [1], [0, 0, 1, 1], [], []>} : vector<16x32xf32>, vector<32x2xf32>, vector<16x2xf32> -> vector<16x2xf32>
    %c13_245 = arith.constant 13 : index
    %c0_246 = arith.constant 0 : index
    %c0_247 = arith.constant 0 : index
    %228 = vector.load %arg8[%c13_245, %c0_246, %c0_247] : memref<16x32x16xf32, #tpu.memory_space<vmem>>, vector<1x32x16xf32>
    %229 = vector.shape_cast %228 : vector<1x32x16xf32> to vector<32x16xf32>
    %cst_248 = arith.constant dense<0.000000e+00> : vector<32x2xf32>
    %230 = tpu.matmul %229, %227, %cst_248 {dimension_numbers = #tpu.dot_dimension_numbers<[1], [0], [0], [1], [0, 0, 1, 1], [], []>} : vector<32x16xf32>, vector<16x2xf32>, vector<32x2xf32> -> vector<32x2xf32>
    %231 = arith.addf %224, %230 : vector<32x2xf32>
    %c14 = arith.constant 14 : index
    %c0_249 = arith.constant 0 : index
    %c0_250 = arith.constant 0 : index
    %232 = vector.load %arg7[%c14, %c0_249, %c0_250] : memref<16x32x2xf32, #tpu.memory_space<vmem>>, vector<1x32x2xf32>
    %233 = vector.shape_cast %232 : vector<1x32x2xf32> to vector<32x2xf32>
    %cst_251 = arith.constant dense<0.000000e+00> : vector<16x2xf32>
    %234 = tpu.matmul %134, %233, %cst_251 {dimension_numbers = #tpu.dot_dimension_numbers<[1], [0], [0], [1], [0, 0, 1, 1], [], []>} : vector<16x32xf32>, vector<32x2xf32>, vector<16x2xf32> -> vector<16x2xf32>
    %c14_252 = arith.constant 14 : index
    %c0_253 = arith.constant 0 : index
    %c0_254 = arith.constant 0 : index
    %235 = vector.load %arg8[%c14_252, %c0_253, %c0_254] : memref<16x32x16xf32, #tpu.memory_space<vmem>>, vector<1x32x16xf32>
    %236 = vector.shape_cast %235 : vector<1x32x16xf32> to vector<32x16xf32>
    %cst_255 = arith.constant dense<0.000000e+00> : vector<32x2xf32>
    %237 = tpu.matmul %236, %234, %cst_255 {dimension_numbers = #tpu.dot_dimension_numbers<[1], [0], [0], [1], [0, 0, 1, 1], [], []>} : vector<32x16xf32>, vector<16x2xf32>, vector<32x2xf32> -> vector<32x2xf32>
    %238 = arith.addf %231, %237 : vector<32x2xf32>
    %c15 = arith.constant 15 : index
    %c0_256 = arith.constant 0 : index
    %c0_257 = arith.constant 0 : index
    %239 = vector.load %arg7[%c15, %c0_256, %c0_257] : memref<16x32x2xf32, #tpu.memory_space<vmem>>, vector<1x32x2xf32>
    %240 = vector.shape_cast %239 : vector<1x32x2xf32> to vector<32x2xf32>
    %cst_258 = arith.constant dense<0.000000e+00> : vector<16x2xf32>
    %241 = tpu.matmul %134, %240, %cst_258 {dimension_numbers = #tpu.dot_dimension_numbers<[1], [0], [0], [1], [0, 0, 1, 1], [], []>} : vector<16x32xf32>, vector<32x2xf32>, vector<16x2xf32> -> vector<16x2xf32>
    %c15_259 = arith.constant 15 : index
    %c0_260 = arith.constant 0 : index
    %c0_261 = arith.constant 0 : index
    %242 = vector.load %arg8[%c15_259, %c0_260, %c0_261] : memref<16x32x16xf32, #tpu.memory_space<vmem>>, vector<1x32x16xf32>
    %243 = vector.shape_cast %242 : vector<1x32x16xf32> to vector<32x16xf32>
    %cst_262 = arith.constant dense<0.000000e+00> : vector<32x2xf32>
    %244 = tpu.matmul %243, %241, %cst_262 {dimension_numbers = #tpu.dot_dimension_numbers<[1], [0], [0], [1], [0, 0, 1, 1], [], []>} : vector<32x16xf32>, vector<16x2xf32>, vector<32x2xf32> -> vector<32x2xf32>
    %245 = arith.addf %238, %244 : vector<32x2xf32>
    %c0_263 = arith.constant 0 : index
    %c0_264 = arith.constant 0 : index
    %246 = vector.load %arg9[%c0_263, %c0_264] : memref<32x1xf32, #tpu.memory_space<vmem>>, vector<32x1xf32>
    %247 = vector.broadcast %246 : vector<32x1xf32> to vector<32x2xf32>
    %248 = arith.addf %245, %247 : vector<32x2xf32>
    %cst_265 = arith.constant 0.000000e+00 : f32
    %249 = vector.broadcast %cst_265 : f32 to vector<32x2xf32>
    %250 = arith.maximumf %248, %249 : vector<32x2xf32>
    %c0_266 = arith.constant 0 : index
    %c0_267 = arith.constant 0 : index
    %251 = vector.load %arg10[%c0_266, %c0_267] : memref<1x32xf32, #tpu.memory_space<vmem>>, vector<1x32xf32>
    %cst_268 = arith.constant dense<0.000000e+00> : vector<1x2xf32>
    %252 = tpu.matmul %251, %250, %cst_268 {dimension_numbers = #tpu.dot_dimension_numbers<[1], [0], [0], [1], [0, 0, 1, 1], [], []>} : vector<1x32xf32>, vector<32x2xf32>, vector<1x2xf32> -> vector<1x2xf32>
    %c0_269 = arith.constant 0 : index
    %c0_270 = arith.constant 0 : index
    %253 = vector.load %arg11[%c0_269, %c0_270] : memref<1x1xf32, #tpu.memory_space<vmem>>, vector<1x1xf32>
    %254 = vector.broadcast %253 : vector<1x1xf32> to vector<1x2xf32>
    %255 = arith.addf %252, %254 : vector<1x2xf32>
    %c0_271 = arith.constant 0 : index
    %c0_272 = arith.constant 0 : index
    %256 = vector.load %arg12[%c0_271, %c0_272] : memref<1x2xf32, #tpu.memory_space<vmem>>, vector<1x2xf32>
    tpu.vector_store %arg12[%c0_271, %c0_272], %255 {strides = array<i32>} : memref<1x2xf32, #tpu.memory_space<vmem>>, vector<1x2xf32>,
    return
  }
}

</mosaic_0001>

<llo_original>
// kernel: _fused_forward.1
$region0: #{_fused_forward.1}
  #allocation0 [shape = 'u32[]', space=smem, size = 0x4, offset = 0x4, fixed_abs, tag = 'smem constant byte address 0x4 - core index']
  #allocation1 [shape = 'u32[144,128]{1,0:T(1,128)}', space=vmem, size = 0x12000, scoped, tag = 'internal scratch']
  #allocation2 [shape = 'f32[1,1]{1,0:T(1,128)S(1)}', space=vmem, size = 0x200, scoped, tag = 'scoped memory for _fused_forward.1']
  %s0 = inlined_call_operand.vmem [shape: f32[4,512], index: 0, kind: input, shape index: {}]
  %s1 = inlined_call_operand.hbm [shape: f32[9,512,128], index: 1, kind: input, shape index: {}]
  %s2 = inlined_call_operand.vmem [shape: f32[9,8,4], index: 2, kind: input, shape index: {}]
  %s3 = inlined_call_operand.vmem [shape: f32[8,1], index: 3, kind: input, shape index: {}]
  %s4 = inlined_call_operand.vmem [shape: f32[9,128,32], index: 4, kind: input, shape index: {}]
  %s5 = inlined_call_operand.vmem [shape: f32[9,16,8], index: 5, kind: input, shape index: {}]
  %s6 = inlined_call_operand.vmem [shape: f32[16,1], index: 6, kind: input, shape index: {}]
  %s7 = inlined_call_operand.vmem [shape: f32[16,32,2], index: 7, kind: input, shape index: {}]
  %s8 = inlined_call_operand.vmem [shape: f32[16,32,16], index: 8, kind: input, shape index: {}]
  %s9 = inlined_call_operand.vmem [shape: f32[32,1], index: 9, kind: input, shape index: {}]
  %s10 = inlined_call_operand.hbm [shape: f32[1,32], index: 10, kind: input, shape index: {}]
  %s11 = inlined_call_operand.<no memory space> [shape: f32[1,1], index: 11, kind: input, shape index: {}]
  %s12 = inlined_call_operand.hbm [shape: f32[1,2], index: 12, kind: output, shape index: {}]
  %s13 = sld [smem:[#allocation0]]
  $region66: #{_fused_forward.1} parent=0
    _
  %s15 = ssub.s32 1, %s13
  %s16 = scalar_select 0, %s15, %s13
  %v17 = vstv %s11
  %18 = vst [vmem:[#allocation2] sm:$0x1] %v17
  $region1: #{_fused_forward.1} parent=0
    #allocation3 [shape = 'u8[2359296]{0}', space=vmem, size = 0x240000, scoped, tag = 'input window, operand 1, single buffered']
    #allocation4 [shape = 's32[1]{0}', space=sflag, size = 0x4, scoped, tag = 'scoped memory for _fused_forward.1']
    #allocation5 [shape = 's32[1]{0}', space=sflag, size = 0x4, scoped, tag = 'scoped memory for _fused_forward.1']
    #allocation6 [shape = 'u8[512]{0}', space=vmem, size = 0x400, scoped, tag = 'input window, operand 10, single buffered']
    #allocation7 [shape = 's32[1]{0}', space=sflag, size = 0x4, scoped, tag = 'scoped memory for _fused_forward.1']
    #allocation8 [shape = 'u8[512]{0}', space=vmem, size = 0x400, scoped, tag = 'output window, operand 0, single buffered']
    %19 = vsyncpa [#allocation4], 0
    %20 = vsyncpa [#allocation7], 0
    %21 = vsyncpa [#allocation5], 0
    // Predicated region
    $region2: #{_fused_forward.1} parent=1 // pred_check
      _
    $region3: #{_fused_forward.1} parent=1 // pred_check_branch
      %23 = sbr.rel (0) target = $region5
    $region4: #{_fused_forward.1} parent=1 // pred_region
      _
    $region5: #{_fused_forward.1} parent=1 // pred_fallthru
      _
    // Predicated region
    $region6: #{_fused_forward.1} parent=1 // pred_check
      _
    $region7: #{_fused_forward.1} parent=1 // pred_check_branch
      %25 = sbr.rel (0) target = $region9
    $region8: #{_fused_forward.1} parent=1 // pred_region
      %s27 = ssub.s32 73728, 73728
      %28 = vsyncadd [#allocation4], %s27
      %s29 = sshll.u32 [#allocation3], 4
      %s30 = int_to_ptr.vmem [resolvable:$true] %s29
      %35 = dma.hbm_to_vmem [thread:$0]  %s1, 73728, %s30, [#allocation4], 128, 128, 8
    $region9: #{_fused_forward.1} parent=1 // pred_fallthru
      _
    // Predicated region
    $region10: #{_fused_forward.1} parent=1 // pred_check
      _
    $region11: #{_fused_forward.1} parent=1 // pred_check_branch
      %37 = sbr.rel (0) target = $region13
    $region12: #{_fused_forward.1} parent=1 // pred_region
      _
    $region13: #{_fused_forward.1} parent=1 // pred_fallthru
      _
    // Predicated region
    $region14: #{_fused_forward.1} parent=1 // pred_check
      _
    $region15: #{_fused_forward.1} parent=1 // pred_check_branch
      %39 = sbr.rel (0) target = $region17
    $region16: #{_fused_forward.1} parent=1 // pred_region
      _
    $region17: #{_fused_forward.1} parent=1 // pred_fallthru
      _
    // Predicated region
    $region18: #{_fused_forward.1} parent=1 // pred_check
      _
    $region19: #{_fused_forward.1} parent=1 // pred_check_branch
      %41 = sbr.rel (0) target = $region21
    $region20: #{_fused_forward.1} parent=1 // pred_region
      _
    $region21: #{_fused_forward.1} parent=1 // pred_fallthru
      _
    // Predicated region
    $region22: #{_fused_forward.1} parent=1 // pred_check
      _
    $region23: #{_fused_forward.1} parent=1 // pred_check_branch
      %43 = sbr.rel (0) target = $region25
    $region24: #{_fused_forward.1} parent=1 // pred_region
      _
    $region25: #{_fused_forward.1} parent=1 // pred_fallthru
      _
    // Predicated region
    $region26: #{_fused_forward.1} parent=1 // pred_check
      _
    $region27: #{_fused_forward.1} parent=1 // pred_check_branch
      %45 = sbr.rel (0) target = $region29
    $region28: #{_fused_forward.1} parent=1 // pred_region
      _
    $region29: #{_fused_forward.1} parent=1 // pred_fallthru
      _
    // Predicated region
    $region30: #{_fused_forward.1} parent=1 // pred_check
      _
    $region31: #{_fused_forward.1} parent=1 // pred_check_branch
      %47 = sbr.rel (0) target = $region33
    $region32: #{_fused_forward.1} parent=1 // pred_region
      _
    $region33: #{_fused_forward.1} parent=1 // pred_fallthru
      _
    // Predicated region
    $region34: #{_fused_forward.1} parent=1 // pred_check
      _
    $region35: #{_fused_forward.1} parent=1 // pred_check_branch
      %49 = sbr.rel (0) target = $region37
    $region36: #{_fused_forward.1} parent=1 // pred_region
      _
    $region37: #{_fused_forward.1} parent=1 // pred_fallthru
      _
    // Predicated region
    $region38: #{_fused_forward.1} parent=1 // pred_check
      _
    $region39: #{_fused_forward.1} parent=1 // pred_check_branch
      %51 = sbr.rel (0) target = $region41
    $region40: #{_fused_forward.1} parent=1 // pred_region
      _
    $region41: #{_fused_forward.1} parent=1 // pred_fallthru
      _
    // Predicated region
    $region42: #{_fused_forward.1} parent=1 // pred_check
      _
    $region43: #{_fused_forward.1} parent=1 // pred_check_branch
      %53 = sbr.rel (0) target = $region45
    $region44: #{_fused_forward.1} parent=1 // pred_region
      %s55 = ssub.s32 16, 16
      %56 = vsyncadd [#allocation7], %s55
      %s58 = sshll.u32 [#allocation6], 4
      %s59 = int_to_ptr.vmem [resolvable:$true] %s58
      %61 = dma.hbm_to_vmem [thread:$0]  %s10, 16, %s59, [#allocation7]
    $region45: #{_fused_forward.1} parent=1 // pred_fallthru
      _
    // Predicated region
    $region46: #{_fused_forward.1} parent=1 // pred_check
      _
    $region47: #{_fused_forward.1} parent=1 // pred_check_branch
      %63 = sbr.rel (0) target = $region49
    $region48: #{_fused_forward.1} parent=1 // pred_region
      _
    $region49: #{_fused_forward.1} parent=1 // pred_fallthru
      _
    // Predicated region
    $region50: #{_fused_forward.1} parent=1 // pred_check
      _
    $region51: #{_fused_forward.1} parent=1 // pred_check_branch
      %65 = sbr.rel (0) target = $region53
    $region52: #{_fused_forward.1} parent=1 // pred_region
      %66 = dma.done [#allocation4], 73728
    $region53: #{_fused_forward.1} parent=1 // pred_fallthru
      _
    // Predicated region
    $region54: #{_fused_forward.1} parent=1 // pred_check
      _
    $region55: #{_fused_forward.1} parent=1 // pred_check_branch
      %68 = sbr.rel (0) target = $region57
    $region56: #{_fused_forward.1} parent=1 // pred_region
      %69 = dma.done [#allocation7], 16
    $region57: #{_fused_forward.1} parent=1 // pred_fallthru
      _
    %v70 = vld [vmem:[%s0] sm:$0xff]
    %v71 = vld [vmem:[%s0 + $0x8] sm:$0xff]
    %v72 = vld [vmem:[#allocation3] sm:$0xff]
    %v73 = vld [vmem:[#allocation3 + $0x8] sm:$0xff]
    %v74 = vld [vmem:[#allocation3 + $0x10] sm:$0xff]
    %v75 = vld [vmem:[#allocation3 + $0x18] sm:$0xff]
    %v76 = vld [vmem:[#allocation3 + $0x20] sm:$0xff]
    %v77 = vld [vmem:[#allocation3 + $0x28] sm:$0xff]
    %v78 = vld [vmem:[#allocation3 + $0x30] sm:$0xff]
    %v79 = vld [vmem:[#allocation3 + $0x38] sm:$0xff]
    %v80 = vld [vmem:[#allocation3 + $0x40] sm:$0xff]
    %v81 = vld [vmem:[#allocation3 + $0x48] sm:$0xff]
    %v82 = vld [vmem:[#allocation3 + $0x50] sm:$0xff]
    %v83 = vld [vmem:[#allocation3 + $0x58] sm:$0xff]
    %v84 = vld [vmem:[#allocation3 + $0x60] sm:$0xff]
    %v85 = vld [vmem:[#allocation3 + $0x68] sm:$0xff]
    %v86 = vld [vmem:[#allocation3 + $0x70] sm:$0xff]
    %v87 = vld [vmem:[#allocation3 + $0x78] sm:$0xff]
    %v88 = vld [vmem:[#allocation3 + $0x80] sm:$0xff]
    %v89 = vld [vmem:[#allocation3 + $0x88] sm:$0xff]
    %v90 = vld [vmem:[#allocation3 + $0x90] sm:$0xff]
    %v91 = vld [vmem:[#allocation3 + $0x98] sm:$0xff]
    %v92 = vld [vmem:[#allocation3 + $0xa0] sm:$0xff]
    %v93 = vld [vmem:[#allocation3 + $0xa8] sm:$0xff]
    %v94 = vld [vmem:[#allocation3 + $0xb0] sm:$0xff]
    %v95 = vld [vmem:[#allocation3 + $0xb8] sm:$0xff]
    %v96 = vld [vmem:[#allocation3 + $0xc0] sm:$0xff]
    %v97 = vld [vmem:[#allocation3 + $0xc8] sm:$0xff]
    %v98 = vld [vmem:[#allocation3 + $0xd0] sm:$0xff]
    %v99 = vld [vmem:[#allocation3 + $0xd8] sm:$0xff]
    %v100 = vld [vmem:[#allocation3 + $0xe0] sm:$0xff]
    %v101 = vld [vmem:[#allocation3 + $0xe8] sm:$0xff]
    %v102 = vld [vmem:[#allocation3 + $0xf0] sm:$0xff]
    %v103 = vld [vmem:[#allocation3 + $0xf8] sm:$0xff]
    %v104 = vld [vmem:[#allocation3 + $0x100] sm:$0xff]
    %v105 = vld [vmem:[#allocation3 + $0x108] sm:$0xff]
    %v106 = vld [vmem:[#allocation3 + $0x110] sm:$0xff]
    %v107 = vld [vmem:[#allocation3 + $0x118] sm:$0xff]
    %v108 = vld [vmem:[#allocation3 + $0x120] sm:$0xff]
    %v109 = vld [vmem:[#allocation3 + $0x128] sm:$0xff]
    %v110 = vld [vmem:[#allocation3 + $0x130] sm:$0xff]
    %v111 = vld [vmem:[#allocation3 + $0x138] sm:$0xff]
    %v112 = vld [vmem:[#allocation3 + $0x140] sm:$0xff]
    %v113 = vld [vmem:[#allocation3 + $0x148] sm:$0xff]
    %v114 = vld [vmem:[#allocation3 + $0x150] sm:$0xff]
    %v115 = vld [vmem:[#allocation3 + $0x158] sm:$0xff]
    %v116 = vld [vmem:[#allocation3 + $0x160] sm:$0xff]
    %v117 = vld [vmem:[#allocation3 + $0x168] sm:$0xff]
    %v118 = vld [vmem:[#allocation3 + $0x170] sm:$0xff]
    %v119 = vld [vmem:[#allocation3 + $0x178] sm:$0xff]
    %v120 = vld [vmem:[#allocation3 + $0x180] sm:$0xff]
    %v121 = vld [vmem:[#allocation3 + $0x188] sm:$0xff]
    %v122 = vld [vmem:[#allocation3 + $0x190] sm:$0xff]
    %v123 = vld [vmem:[#allocation3 + $0x198] sm:$0xff]
    %v124 = vld [vmem:[#allocation3 + $0x1a0] sm:$0xff]
    %v125 = vld [vmem:[#allocation3 + $0x1a8] sm:$0xff]
    %v126 = vld [vmem:[#allocation3 + $0x1b0] sm:$0xff]
    %v127 = vld [vmem:[#allocation3 + $0x1b8] sm:$0xff]
    %v128 = vld [vmem:[#allocation3 + $0x1c0] sm:$0xff]
    %v129 = vld [vmem:[#allocation3 + $0x1c8] sm:$0xff]
    %v130 = vld [vmem:[#allocation3 + $0x1d0] sm:$0xff]
    %v131 = vld [vmem:[#allocation3 + $0x1d8] sm:$0xff]
    %v132 = vld [vmem:[#allocation3 + $0x1e0] sm:$0xff]
    %v133 = vld [vmem:[#allocation3 + $0x1e8] sm:$0xff]
    %v134 = vld [vmem:[#allocation3 + $0x1f0] sm:$0xff]
    %v135 = vld [vmem:[#allocation3 + $0x1f8] sm:$0xff]
    %v138 = vcombine.high %v70, %v70
    %v139 = vcombine.high %v71, %v71
    %142 = vmatprep.subr.mxu0 0.0
    %143 = vmatpush1.msra.mxu0 %v72
    %144 = vmatprep.subr.mxu0 0.0
    %145 = vmatpush1.msra.mxu0 %v73
    %146 = vmatprep.subr.mxu0 0.0
    %147 = vmatpush1.msra.mxu0 %v74
    %148 = vmatprep.subr.mxu0 0.0
    %149 = vmatpush1.msra.mxu0 %v75
    %150 = vmatprep.subr.mxu0 0.0
    %151 = vmatpush1.msra.mxu0 %v76
    %152 = vmatprep.subr.mxu0 0.0
    %153 = vmatpush1.msra.mxu0 %v77
    %154 = vmatprep.subr.mxu0 0.0
    %155 = vmatpush1.msra.mxu0 %v78
    %156 = vmatprep.subr.mxu0 0.0
    %157 = vmatpush1.msra.mxu0 %v79
    %158 = vmatprep.subr.mxu0 0.0
    %159 = vmatpush1.msra.mxu0 %v80
    %160 = vmatprep.subr.mxu0 0.0
    %161 = vmatpush1.msra.mxu0 %v81
    %162 = vmatprep.subr.mxu0 0.0
    %163 = vmatpush1.msra.mxu0 %v82
    %164 = vmatprep.subr.mxu0 0.0
    %165 = vmatpush1.msra.mxu0 %v83
    %166 = vmatprep.subr.mxu0 0.0
    %167 = vmatpush1.msra.mxu0 %v84
    %168 = vmatprep.subr.mxu0 0.0
    %169 = vmatpush1.msra.mxu0 %v85
    %170 = vmatprep.subr.mxu0 0.0
    %171 = vmatpush1.msra.mxu0 %v86
    %172 = vmatprep.subr.mxu0 0.0
    %173 = vmatpush1.msra.mxu0 %v87
    %174 = vmatprep.subr.mxu0 0.0
    %175 = vmatpush1.msra.mxu0 %v88
    %176 = vmatprep.subr.mxu0 0.0
    %177 = vmatpush1.msra.mxu0 %v89
    %178 = vmatprep.subr.mxu0 0.0
    %179 = vmatpush1.msra.mxu0 %v90
    %180 = vmatprep.subr.mxu0 0.0
    %181 = vmatpush1.msra.mxu0 %v91
    %182 = vmatprep.subr.mxu0 0.0
    %183 = vmatpush1.msra.mxu0 %v92
    %184 = vmatprep.subr.mxu0 0.0
    %185 = vmatpush1.msra.mxu0 %v93
    %186 = vmatprep.subr.mxu0 0.0
    %187 = vmatpush1.msra.mxu0 %v94
    %188 = vmatprep.subr.mxu0 0.0
    %189 = vmatpush1.msra.mxu0 %v95
    %190 = vmatprep.subr.mxu0 0.0
    %191 = vmatpush1.msra.mxu0 %v96
    %192 = vmatprep.subr.mxu0 0.0
    %193 = vmatpush1.msra.mxu0 %v97
    %194 = vmatprep.subr.mxu0 0.0
    %195 = vmatpush1.msra.mxu0 %v98
    %196 = vmatprep.subr.mxu0 0.0
    %197 = vmatpush1.msra.mxu0 %v99
    %198 = vmatprep.subr.mxu0 0.0
    %199 = vmatpush1.msra.mxu0 %v100
    %200 = vmatprep.subr.mxu0 0.0
    %201 = vmatpush1.msra.mxu0 %v101
    %202 = vmatprep.subr.mxu0 0.0
    %203 = vmatpush1.msra.mxu0 %v102
    %204 = vmatprep.subr.mxu0 0.0
    %205 = vmatpush1.msra.mxu0 %v103
    %206 = vmatprep.mubr.f32.mxu0 %v138
    %207 = vmatmul.mubr.f32.gmra.mrb[0].mxu0 %v70
    %v208 = vpop.f32.mrb[0].mxu0
    %v209 = vadd.f32 0.0, %v208
    %v210 = vpop.f32.mrb[0].mxu0
    %211 = vdwg.mxu0
    %212 = vmatprep.subr.mxu0 0.0
    %213 = vmatpush1.msra.mxu0 %v104
    %214 = vmatprep.subr.mxu0 0.0
    %215 = vmatpush1.msra.mxu0 %v105
    %216 = vmatprep.subr.mxu0 0.0
    %217 = vmatpush1.msra.mxu0 %v106
    %218 = vmatprep.subr.mxu0 0.0
    %219 = vmatpush1.msra.mxu0 %v107
    %220 = vmatprep.subr.mxu0 0.0
    %221 = vmatpush1.msra.mxu0 %v108
    %222 = vmatprep.subr.mxu0 0.0
    %223 = vmatpush1.msra.mxu0 %v109
    %224 = vmatprep.subr.mxu0 0.0
    %225 = vmatpush1.msra.mxu0 %v110
    %226 = vmatprep.subr.mxu0 0.0
    %227 = vmatpush1.msra.mxu0 %v111
    %228 = vmatprep.subr.mxu0 0.0
    %229 = vmatpush1.msra.mxu0 %v112
    %230 = vmatprep.subr.mxu0 0.0
    %231 = vmatpush1.msra.mxu0 %v113
    %232 = vmatprep.subr.mxu0 0.0
    %233 = vmatpush1.msra.mxu0 %v114
    %234 = vmatprep.subr.mxu0 0.0
    %235 = vmatpush1.msra.mxu0 %v115
    %236 = vmatprep.subr.mxu0 0.0
    %237 = vmatpush1.msra.mxu0 %v116
    %238 = vmatprep.subr.mxu0 0.0
    %239 = vmatpush1.msra.mxu0 %v117
    %240 = vmatprep.subr.mxu0 0.0
    %241 = vmatpush1.msra.mxu0 %v118
    %242 = vmatprep.subr.mxu0 0.0
    %243 = vmatpush1.msra.mxu0 %v119
    %244 = vmatprep.subr.mxu0 0.0
    %245 = vmatpush1.msra.mxu0 %v120
    %246 = vmatprep.subr.mxu0 0.0
    %247 = vmatpush1.msra.mxu0 %v121
    %248 = vmatprep.subr.mxu0 0.0
    %249 = vmatpush1.msra.mxu0 %v122
    %250 = vmatprep.subr.mxu0 0.0
    %251 = vmatpush1.msra.mxu0 %v123
    %252 = vmatprep.subr.mxu0 0.0
    %253 = vmatpush1.msra.mxu0 %v124
    %254 = vmatprep.subr.mxu0 0.0
    %255 = vmatpush1.msra.mxu0 %v125
    %256 = vmatprep.subr.mxu0 0.0
    %257 = vmatpush1.msra.mxu0 %v126
    %258 = vmatprep.subr.mxu0 0.0
    %259 = vmatpush1.msra.mxu0 %v127
    %260 = vmatprep.subr.mxu0 0.0
    %261 = vmatpush1.msra.mxu0 %v128
    %262 = vmatprep.subr.mxu0 0.0
    %263 = vmatpush1.msra.mxu0 %v129
    %264 = vmatprep.subr.mxu0 0.0
    %265 = vmatpush1.msra.mxu0 %v130
    %266 = vmatprep.subr.mxu0 0.0
    %267 = vmatpush1.msra.mxu0 %v131
    %268 = vmatprep.subr.mxu0 0.0
    %269 = vmatpush1.msra.mxu0 %v132
    %270 = vmatprep.subr.mxu0 0.0
    %271 = vmatpush1.msra.mxu0 %v133
    %272 = vmatprep.subr.mxu0 0.0
    %273 = vmatpush1.msra.mxu0 %v134
    %274 = vmatprep.subr.mxu0 0.0
    %275 = vmatpush1.msra.mxu0 %v135
    %276 = vmatprep.mubr.f32.mxu0 %v139
    %277 = vmatmul.mubr.f32.gmra.mrb[0].mxu0 %v71
    %v278 = vpop.f32.mrb[0].mxu0
    %v279 = vadd.f32 %v209, %v278
    %v280 = vpop.f32.mrb[0].mxu0
    %281 = vdwg.mxu0
    %v282 = vld [vmem:[%s2] sm:$0xff]
    %s283 = scalar_lea.vmem [#allocation3], 512
    %v284 = vld [vmem:[%s283] sm:$0xff]
    %v285 = vld [vmem:[%s283 + $0x8] sm:$0xff]
    %v286 = vld [vmem:[%s283 + $0x10] sm:$0xff]
    %v287 = vld [vmem:[%s283 + $0x18] sm:$0xff]
    %v288 = vld [vmem:[%s283 + $0x20] sm:$0xff]
    %v289 = vld [vmem:[%s283 + $0x28] sm:$0xff]
    %v290 = vld [vmem:[%s283 + $0x30] sm:$0xff]
    %v291 = vld [vmem:[%s283 + $0x38] sm:$0xff]
    %v292 = vld [vmem:[%s283 + $0x40] sm:$0xff]
    %v293 = vld [vmem:[%s283 + $0x48] sm:$0xff]
    %v294 = vld [vmem:[%s283 + $0x50] sm:$0xff]
    %v295 = vld [vmem:[%s283 + $0x58] sm:$0xff]
    %v296 = vld [vmem:[%s283 + $0x60] sm:$0xff]
    %v297 = vld [vmem:[%s283 + $0x68] sm:$0xff]
    %v298 = vld [vmem:[%s283 + $0x70] sm:$0xff]
    %v299 = vld [vmem:[%s283 + $0x78] sm:$0xff]
    %v300 = vld [vmem:[%s283 + $0x80] sm:$0xff]
    %v301 = vld [vmem:[%s283 + $0x88] sm:$0xff]
    %v302 = vld [vmem:[%s283 + $0x90] sm:$0xff]
    %v303 = vld [vmem:[%s283 + $0x98] sm:$0xff]
    %v304 = vld [vmem:[%s283 + $0xa0] sm:$0xff]
    %v305 = vld [vmem:[%s283 + $0xa8] sm:$0xff]
    %v306 = vld [vmem:[%s283 + $0xb0] sm:$0xff]
    %v307 = vld [vmem:[%s283 + $0xb8] sm:$0xff]
    %v308 = vld [vmem:[%s283 + $0xc0] sm:$0xff]
    %v309 = vld [vmem:[%s283 + $0xc8] sm:$0xff]
    %v310 = vld [vmem:[%s283 + $0xd0] sm:$0xff]
    %v311 = vld [vmem:[%s283 + $0xd8] sm:$0xff]
    %v312 = vld [vmem:[%s283 + $0xe0] sm:$0xff]
    %v313 = vld [vmem:[%s283 + $0xe8] sm:$0xff]
    %v314 = vld [vmem:[%s283 + $0xf0] sm:$0xff]
    %v315 = vld [vmem:[%s283 + $0xf8] sm:$0xff]
    %v316 = vld [vmem:[%s283 + $0x100] sm:$0xff]
    %v317 = vld [vmem:[%s283 + $0x108] sm:$0xff]
    %v318 = vld [vmem:[%s283 + $0x110] sm:$0xff]
    %v319 = vld [vmem:[%s283 + $0x118] sm:$0xff]
    %v320 = vld [vmem:[%s283 + $0x120] sm:$0xff]
    %v321 = vld [vmem:[%s283 + $0x128] sm:$0xff]
    %v322 = vld [vmem:[%s283 + $0x130] sm:$0xff]
    %v323 = vld [vmem:[%s283 + $0x138] sm:$0xff]
    %v324 = vld [vmem:[%s283 + $0x140] sm:$0xff]
    %v325 = vld [vmem:[%s283 + $0x148] sm:$0xff]
    %v326 = vld [vmem:[%s283 + $0x150] sm:$0xff]
    %v327 = vld [vmem:[%s283 + $0x158] sm:$0xff]
    %v328 = vld [vmem:[%s283 + $0x160] sm:$0xff]
    %v329 = vld [vmem:[%s283 + $0x168] sm:$0xff]
    %v330 = vld [vmem:[%s283 + $0x170] sm:$0xff]
    %v331 = vld [vmem:[%s283 + $0x178] sm:$0xff]
    %v332 = vld [vmem:[%s283 + $0x180] sm:$0xff]
    %v333 = vld [vmem:[%s283 + $0x188] sm:$0xff]
    %v334 = vld [vmem:[%s283 + $0x190] sm:$0xff]
    %v335 = vld [vmem:[%s283 + $0x198] sm:$0xff]
    %v336 = vld [vmem:[%s283 + $0x1a0] sm:$0xff]
    %v337 = vld [vmem:[%s283 + $0x1a8] sm:$0xff]
    %v338 = vld [vmem:[%s283 + $0x1b0] sm:$0xff]
    %v339 = vld [vmem:[%s283 + $0x1b8] sm:$0xff]
    %v340 = vld [vmem:[%s283 + $0x1c0] sm:$0xff]
    %v341 = vld [vmem:[%s283 + $0x1c8] sm:$0xff]
    %v342 = vld [vmem:[%s283 + $0x1d0] sm:$0xff]
    %v343 = vld [vmem:[%s283 + $0x1d8] sm:$0xff]
    %v344 = vld [vmem:[%s283 + $0x1e0] sm:$0xff]
    %v345 = vld [vmem:[%s283 + $0x1e8] sm:$0xff]
    %v346 = vld [vmem:[%s283 + $0x1f0] sm:$0xff]
    %v347 = vld [vmem:[%s283 + $0x1f8] sm:$0xff]
    %348 = vmatprep.subr.mxu0 0.0
    %349 = vmatpush1.msra.mxu0 %v284
    %350 = vmatprep.subr.mxu0 0.0
    %351 = vmatpush1.msra.mxu0 %v285
    %352 = vmatprep.subr.mxu0 0.0
    %353 = vmatpush1.msra.mxu0 %v286
    %354 = vmatprep.subr.mxu0 0.0
    %355 = vmatpush1.msra.mxu0 %v287
    %356 = vmatprep.subr.mxu0 0.0
    %357 = vmatpush1.msra.mxu0 %v288
    %358 = vmatprep.subr.mxu0 0.0
    %359 = vmatpush1.msra.mxu0 %v289
    %360 = vmatprep.subr.mxu0 0.0
    %361 = vmatpush1.msra.mxu0 %v290
    %362 = vmatprep.subr.mxu0 0.0
    %363 = vmatpush1.msra.mxu0 %v291
    %364 = vmatprep.subr.mxu0 0.0
    %365 = vmatpush1.msra.mxu0 %v292
    %366 = vmatprep.subr.mxu0 0.0
    %367 = vmatpush1.msra.mxu0 %v293
    %368 = vmatprep.subr.mxu0 0.0
    %369 = vmatpush1.msra.mxu0 %v294
    %370 = vmatprep.subr.mxu0 0.0
    %371 = vmatpush1.msra.mxu0 %v295
    %372 = vmatprep.subr.mxu0 0.0
    %373 = vmatpush1.msra.mxu0 %v296
    %374 = vmatprep.subr.mxu0 0.0
    %375 = vmatpush1.msra.mxu0 %v297
    %376 = vmatprep.subr.mxu0 0.0
    %377 = vmatpush1.msra.mxu0 %v298
    %378 = vmatprep.subr.mxu0 0.0
    %379 = vmatpush1.msra.mxu0 %v299
    %380 = vmatprep.subr.mxu0 0.0
    %381 = vmatpush1.msra.mxu0 %v300
    %382 = vmatprep.subr.mxu0 0.0
    %383 = vmatpush1.msra.mxu0 %v301
    %384 = vmatprep.subr.mxu0 0.0
    %385 = vmatpush1.msra.mxu0 %v302
    %386 = vmatprep.subr.mxu0 0.0
    %387 = vmatpush1.msra.mxu0 %v303
    %388 = vmatprep.subr.mxu0 0.0
    %389 = vmatpush1.msra.mxu0 %v304
    %390 = vmatprep.subr.mxu0 0.0
    %391 = vmatpush1.msra.mxu0 %v305
    %392 = vmatprep.subr.mxu0 0.0
    %393 = vmatpush1.msra.mxu0 %v306
    %394 = vmatprep.subr.mxu0 0.0
    %395 = vmatpush1.msra.mxu0 %v307
    %396 = vmatprep.subr.mxu0 0.0
    %397 = vmatpush1.msra.mxu0 %v308
    %398 = vmatprep.subr.mxu0 0.0
    %399 = vmatpush1.msra.mxu0 %v309
    %400 = vmatprep.subr.mxu0 0.0
    %401 = vmatpush1.msra.mxu0 %v310
    %402 = vmatprep.subr.mxu0 0.0
    %403 = vmatpush1.msra.mxu0 %v311
    %404 = vmatprep.subr.mxu0 0.0
    %405 = vmatpush1.msra.mxu0 %v312
    %406 = vmatprep.subr.mxu0 0.0
    %407 = vmatpush1.msra.mxu0 %v313
    %408 = vmatprep.subr.mxu0 0.0
    %409 = vmatpush1.msra.mxu0 %v314
    %410 = vmatprep.subr.mxu0 0.0
    %411 = vmatpush1.msra.mxu0 %v315
    %412 = vmatprep.mubr.f32.mxu0 %v138
    %413 = vmatmul.mubr.f32.gmra.mrb[0].mxu0 %v70
    %v414 = vpop.f32.mrb[0].mxu0
    %v415 = vadd.f32 0.0, %v414
    %v416 = vpop.f32.mrb[0].mxu0
    %417 = vdwg.mxu0
    %418 = vmatprep.subr.mxu0 0.0
    %419 = vmatpush1.msra.mxu0 %v316
    %420 = vmatprep.subr.mxu0 0.0
    %421 = vmatpush1.msra.mxu0 %v317
    %422 = vmatprep.subr.mxu0 0.0
    %423 = vmatpush1.msra.mxu0 %v318
    %424 = vmatprep.subr.mxu0 0.0
    %425 = vmatpush1.msra.mxu0 %v319
    %426 = vmatprep.subr.mxu0 0.0
    %427 = vmatpush1.msra.mxu0 %v320
    %428 = vmatprep.subr.mxu0 0.0
    %429 = vmatpush1.msra.mxu0 %v321
    %430 = vmatprep.subr.mxu0 0.0
    %431 = vmatpush1.msra.mxu0 %v322
    %432 = vmatprep.subr.mxu0 0.0
    %433 = vmatpush1.msra.mxu0 %v323
    %434 = vmatprep.subr.mxu0 0.0
    %435 = vmatpush1.msra.mxu0 %v324
    %436 = vmatprep.subr.mxu0 0.0
    %437 = vmatpush1.msra.mxu0 %v325
    %438 = vmatprep.subr.mxu0 0.0
    %439 = vmatpush1.msra.mxu0 %v326
    %440 = vmatprep.subr.mxu0 0.0
    %441 = vmatpush1.msra.mxu0 %v327
    %442 = vmatprep.subr.mxu0 0.0
    %443 = vmatpush1.msra.mxu0 %v328
    %444 = vmatprep.subr.mxu0 0.0
    %445 = vmatpush1.msra.mxu0 %v329
    %446 = vmatprep.subr.mxu0 0.0
    %447 = vmatpush1.msra.mxu0 %v330
    %448 = vmatprep.subr.mxu0 0.0
    %449 = vmatpush1.msra.mxu0 %v331
    %450 = vmatprep.subr.mxu0 0.0
    %451 = vmatpush1.msra.mxu0 %v332
    %452 = vmatprep.subr.mxu0 0.0
    %453 = vmatpush1.msra.mxu0 %v333
    %454 = vmatprep.subr.mxu0 0.0
    %455 = vmatpush1.msra.mxu0 %v334
    %456 = vmatprep.subr.mxu0 0.0
    %457 = vmatpush1.msra.mxu0 %v335
    %458 = vmatprep.subr.mxu0 0.0
    %459 = vmatpush1.msra.mxu0 %v336
    %460 = vmatprep.subr.mxu0 0.0
    %461 = vmatpush1.msra.mxu0 %v337
    %462 = vmatprep.subr.mxu0 0.0
    %463 = vmatpush1.msra.mxu0 %v338
    %464 = vmatprep.subr.mxu0 0.0
    %465 = vmatpush1.msra.mxu0 %v339
    %466 = vmatprep.subr.mxu0 0.0
    %467 = vmatpush1.msra.mxu0 %v340
    %468 = vmatprep.subr.mxu0 0.0
    %469 = vmatpush1.msra.mxu0 %v341
    %470 = vmatprep.subr.mxu0 0.0
    %471 = vmatpush1.msra.mxu0 %v342
    %472 = vmatprep.subr.mxu0 0.0
    %473 = vmatpush1.msra.mxu0 %v343
    %474 = vmatprep.subr.mxu0 0.0
    %475 = vmatpush1.msra.mxu0 %v344
    %476 = vmatprep.subr.mxu0 0.0
    %477 = vmatpush1.msra.mxu0 %v345
    %478 = vmatprep.subr.mxu0 0.0
    %479 = vmatpush1.msra.mxu0 %v346
    %480 = vmatprep.subr.mxu0 0.0
    %481 = vmatpush1.msra.mxu0 %v347
    %482 = vmatprep.mubr.f32.mxu0 %v139
    %483 = vmatmul.mubr.f32.gmra.mrb[0].mxu0 %v71
    %v484 = vpop.f32.mrb[0].mxu0
    %v485 = vadd.f32 %v415, %v484
    %v486 = vpop.f32.mrb[0].mxu0
    %487 = vdwg.mxu0
    %s488 = scalar_lea.vmem %s2, 8
    %v489 = vld [vmem:[%s488] sm:$0xff]
    %vm490 = vcmask 31744
    %v492 = vsel %vm490, %v489, 0
    %vm494 = vcmask 1043456
    %v496 = vsel %vm494, %v485, 0
    %498 = vmatprep.subr.mxu0 0.0
    %499 = vmatpush1.msra.mxu0 %v496
    %500 = vmatprep.subr.mxu0 0.0
    %501 = vmatpush1.msra.mxu0 0.0
    %502 = vmatprep.subr.mxu0 0.0
    %503 = vmatpush1.msra.mxu0 0.0
    %504 = vmatprep.subr.mxu0 0.0
    %505 = vmatpush1.msra.mxu0 0.0
    %506 = vmatprep.subr.mxu0 0.0
    %507 = vmatpush1.msra.mxu0 0.0
    %508 = vmatprep.subr.mxu0 0.0
    %509 = vmatpush1.msra.mxu0 0.0
    %510 = vmatprep.subr.mxu0 0.0
    %511 = vmatpush1.msra.mxu0 0.0
    %512 = vmatprep.subr.mxu0 0.0
    %513 = vmatpush1.msra.mxu0 0.0
    %514 = vmatprep.subr.mxu0 0.0
    %515 = vmatpush1.msra.mxu0 0.0
    %516 = vmatprep.subr.mxu0 0.0
    %517 = vmatpush1.msra.mxu0 0.0
    %518 = vmatprep.subr.mxu0 0.0
    %519 = vmatpush1.msra.mxu0 0.0
    %520 = vmatprep.subr.mxu0 0.0
    %521 = vmatpush1.msra.mxu0 0.0
    %522 = vmatprep.subr.mxu0 0.0
    %523 = vmatpush1.msra.mxu0 0.0
    %524 = vmatprep.subr.mxu0 0.0
    %525 = vmatpush1.msra.mxu0 0.0
    %526 = vmatprep.subr.mxu0 0.0
    %527 = vmatpush1.msra.mxu0 0.0
    %528 = vmatprep.subr.mxu0 0.0
    %529 = vmatpush1.msra.mxu0 0.0
    %530 = vmatprep.subr.mxu0 0.0
    %531 = vmatpush1.msra.mxu0 0.0
    %532 = vmatprep.subr.mxu0 0.0
    %533 = vmatpush1.msra.mxu0 0.0
    %534 = vmatprep.subr.mxu0 0.0
    %535 = vmatpush1.msra.mxu0 0.0
    %536 = vmatprep.subr.mxu0 0.0
    %537 = vmatpush1.msra.mxu0 0.0
    %538 = vmatprep.subr.mxu0 0.0
    %539 = vmatpush1.msra.mxu0 0.0
    %540 = vmatprep.subr.mxu0 0.0
    %541 = vmatpush1.msra.mxu0 0.0
    %542 = vmatprep.subr.mxu0 0.0
    %543 = vmatpush1.msra.mxu0 0.0
    %544 = vmatprep.subr.mxu0 0.0
    %545 = vmatpush1.msra.mxu0 0.0
    %546 = vmatprep.subr.mxu0 0.0
    %547 = vmatpush1.msra.mxu0 0.0
    %548 = vmatprep.subr.mxu0 0.0
    %549 = vmatpush1.msra.mxu0 0.0
    %550 = vmatprep.subr.mxu0 0.0
    %551 = vmatpush1.msra.mxu0 0.0
    %552 = vmatprep.subr.mxu0 0.0
    %553 = vmatpush1.msra.mxu0 0.0
    %554 = vmatprep.subr.mxu0 0.0
    %555 = vmatpush1.msra.mxu0 0.0
    %556 = vmatprep.subr.mxu0 0.0
    %557 = vmatpush1.msra.mxu0 0.0
    %558 = vmatprep.subr.mxu0 0.0
    %559 = vmatpush1.msra.mxu0 0.0
    %560 = vmatprep.subr.mxu0 0.0
    %561 = vmatpush1.msra.mxu0 0.0
    %562 = vmatprep.mubr.f32.mxu0 0.0
    %563 = vmatmul.mubr.f32.gmra.mrb[0].mxu0 %v492
    %v564 = vpop.f32.mrb[0].mxu0
    %v565 = vadd.f32 0.0, %v564
    %v566 = vpop.f32.mrb[0].mxu0
    %567 = vdwg.mxu0
    %v569 = vsel %vm490, %v282, 0
    %v572 = vsel %vm494, %v279, 0
    %574 = vmatprep.subr.mxu0 0.0
    %575 = vmatpush1.msra.mxu0 %v572
    %576 = vmatprep.subr.mxu0 0.0
    %577 = vmatpush1.msra.mxu0 0.0
    %578 = vmatprep.subr.mxu0 0.0
    %579 = vmatpush1.msra.mxu0 0.0
    %580 = vmatprep.subr.mxu0 0.0
    %581 = vmatpush1.msra.mxu0 0.0
    %582 = vmatprep.subr.mxu0 0.0
    %583 = vmatpush1.msra.mxu0 0.0
    %584 = vmatprep.subr.mxu0 0.0
    %585 = vmatpush1.msra.mxu0 0.0
    %586 = vmatprep.subr.mxu0 0.0
    %587 = vmatpush1.msra.mxu0 0.0
    %588 = vmatprep.subr.mxu0 0.0
    %589 = vmatpush1.msra.mxu0 0.0
    %590 = vmatprep.subr.mxu0 0.0
    %591 = vmatpush1.msra.mxu0 0.0
    %592 = vmatprep.subr.mxu0 0.0
    %593 = vmatpush1.msra.mxu0 0.0
    %594 = vmatprep.subr.mxu0 0.0
    %595 = vmatpush1.msra.mxu0 0.0
    %596 = vmatprep.subr.mxu0 0.0
    %597 = vmatpush1.msra.mxu0 0.0
    %598 = vmatprep.subr.mxu0 0.0
    %599 = vmatpush1.msra.mxu0 0.0
    %600 = vmatprep.subr.mxu0 0.0
    %601 = vmatpush1.msra.mxu0 0.0
    %602 = vmatprep.subr.mxu0 0.0
    %603 = vmatpush1.msra.mxu0 0.0
    %604 = vmatprep.subr.mxu0 0.0
    %605 = vmatpush1.msra.mxu0 0.0
    %606 = vmatprep.subr.mxu0 0.0
    %607 = vmatpush1.msra.mxu0 0.0
    %608 = vmatprep.subr.mxu0 0.0
    %609 = vmatpush1.msra.mxu0 0.0
    %610 = vmatprep.subr.mxu0 0.0
    %611 = vmatpush1.msra.mxu0 0.0
    %612 = vmatprep.subr.mxu0 0.0
    %613 = vmatpush1.msra.mxu0 0.0
    %614 = vmatprep.subr.mxu0 0.0
    %615 = vmatpush1.msra.mxu0 0.0
    %616 = vmatprep.subr.mxu0 0.0
    %617 = vmatpush1.msra.mxu0 0.0
    %618 = vmatprep.subr.mxu0 0.0
    %619 = vmatpush1.msra.mxu0 0.0
    %620 = vmatprep.subr.mxu0 0.0
    %621 = vmatpush1.msra.mxu0 0.0
    %622 = vmatprep.subr.mxu0 0.0
    %623 = vmatpush1.msra.mxu0 0.0
    %624 = vmatprep.subr.mxu0 0.0
    %625 = vmatpush1.msra.mxu0 0.0
    %626 = vmatprep.subr.mxu0 0.0
    %627 = vmatpush1.msra.mxu0 0.0
    %628 = vmatprep.subr.mxu0 0.0
    %629 = vmatpush1.msra.mxu0 0.0
    %630 = vmatprep.subr.mxu0 0.0
    %631 = vmatpush1.msra.mxu0 0.0
    %632 = vmatprep.subr.mxu0 0.0
    %633 = vmatpush1.msra.mxu0 0.0
    %634 = vmatprep.subr.mxu0 0.0
    %635 = vmatpush1.msra.mxu0 0.0
    %636 = vmatprep.subr.mxu0 0.0
    %637 = vmatpush1.msra.mxu0 0.0
    %638 = vmatprep.mubr.f32.mxu0 0.0
    %639 = vmatmul.mubr.f32.gmra.mrb[0].mxu0 %v569
    %v640 = vpop.f32.mrb[0].mxu0
    %v641 = vadd.f32 %v565, %v640
    %v642 = vpop.f32.mrb[0].mxu0
    %643 = vdwg.mxu0
    %s644 = scalar_lea.vmem [#allocation3], 1024
    %v645 = vld [vmem:[%s644] sm:$0xff]
    %v646 = vld [vmem:[%s644 + $0x8] sm:$0xff]
    %v647 = vld [vmem:[%s644 + $0x10] sm:$0xff]
    %v648 = vld [vmem:[%s644 + $0x18] sm:$0xff]
    %v649 = vld [vmem:[%s644 + $0x20] sm:$0xff]
    %v650 = vld [vmem:[%s644 + $0x28] sm:$0xff]
    %v651 = vld [vmem:[%s644 + $0x30] sm:$0xff]
    %v652 = vld [vmem:[%s644 + $0x38] sm:$0xff]
    %v653 = vld [vmem:[%s644 + $0x40] sm:$0xff]
    %v654 = vld [vmem:[%s644 + $0x48] sm:$0xff]
    %v655 = vld [vmem:[%s644 + $0x50] sm:$0xff]
    %v656 = vld [vmem:[%s644 + $0x58] sm:$0xff]
    %v657 = vld [vmem:[%s644 + $0x60] sm:$0xff]
    %v658 = vld [vmem:[%s644 + $0x68] sm:$0xff]
    %v659 = vld [vmem:[%s644 + $0x70] sm:$0xff]
    %v660 = vld [vmem:[%s644 + $0x78] sm:$0xff]
    %v661 = vld [vmem:[%s644 + $0x80] sm:$0xff]
    %v662 = vld [vmem:[%s644 + $0x88] sm:$0xff]
    %v663 = vld [vmem:[%s644 + $0x90] sm:$0xff]
    %v664 = vld [vmem:[%s644 + $0x98] sm:$0xff]
    %v665 = vld [vmem:[%s644 + $0xa0] sm:$0xff]
    %v666 = vld [vmem:[%s644 + $0xa8] sm:$0xff]
    %v667 = vld [vmem:[%s644 + $0xb0] sm:$0xff]
    %v668 = vld [vmem:[%s644 + $0xb8] sm:$0xff]
    %v669 = vld [vmem:[%s644 + $0xc0] sm:$0xff]
    %v670 = vld [vmem:[%s644 + $0xc8] sm:$0xff]
    %v671 = vld [vmem:[%s644 + $0xd0] sm:$0xff]
    %v672 = vld [vmem:[%s644 + $0xd8] sm:$0xff]
    %v673 = vld [vmem:[%s644 + $0xe0] sm:$0xff]
    %v674 = vld [vmem:[%s644 + $0xe8] sm:$0xff]
    %v675 = vld [vmem:[%s644 + $0xf0] sm:$0xff]
    %v676 = vld [vmem:[%s644 + $0xf8] sm:$0xff]
    %v677 = vld [vmem:[%s644 + $0x100] sm:$0xff]
    %v678 = vld [vmem:[%s644 + $0x108] sm:$0xff]
    %v679 = vld [vmem:[%s644 + $0x110] sm:$0xff]
    %v680 = vld [vmem:[%s644 + $0x118] sm:$0xff]
    %v681 = vld [vmem:[%s644 + $0x120] sm:$0xff]
    %v682 = vld [vmem:[%s644 + $0x128] sm:$0xff]
    %v683 = vld [vmem:[%s644 + $0x130] sm:$0xff]
    %v684 = vld [vmem:[%s644 + $0x138] sm:$0xff]
    %v685 = vld [vmem:[%s644 + $0x140] sm:$0xff]
    %v686 = vld [vmem:[%s644 + $0x148] sm:$0xff]
    %v687 = vld [vmem:[%s644 + $0x150] sm:$0xff]
    %v688 = vld [vmem:[%s644 + $0x158] sm:$0xff]
    %v689 = vld [vmem:[%s644 + $0x160] sm:$0xff]
    %v690 = vld [vmem:[%s644 + $0x168] sm:$0xff]
    %v691 = vld [vmem:[%s644 + $0x170] sm:$0xff]
    %v692 = vld [vmem:[%s644 + $0x178] sm:$0xff]
    %v693 = vld [vmem:[%s644 + $0x180] sm:$0xff]
    %v694 = vld [vmem:[%s644 + $0x188] sm:$0xff]
    %v695 = vld [vmem:[%s644 + $0x190] sm:$0xff]
    %v696 = vld [vmem:[%s644 + $0x198] sm:$0xff]
    %v697 = vld [vmem:[%s644 + $0x1a0] sm:$0xff]
    %v698 = vld [vmem:[%s644 + $0x1a8] sm:$0xff]
    %v699 = vld [vmem:[%s644 + $0x1b0] sm:$0xff]
    %v700 = vld [vmem:[%s644 + $0x1b8] sm:$0xff]
    %v701 = vld [vmem:[%s644 + $0x1c0] sm:$0xff]
    %v702 = vld [vmem:[%s644 + $0x1c8] sm:$0xff]
    %v703 = vld [vmem:[%s644 + $0x1d0] sm:$0xff]
    %v704 = vld [vmem:[%s644 + $0x1d8] sm:$0xff]
    %v705 = vld [vmem:[%s644 + $0x1e0] sm:$0xff]
    %v706 = vld [vmem:[%s644 + $0x1e8] sm:$0xff]
    %v707 = vld [vmem:[%s644 + $0x1f0] sm:$0xff]
    %v708 = vld [vmem:[%s644 + $0x1f8] sm:$0xff]
    %709 = vmatprep.subr.mxu0 0.0
    %710 = vmatpush1.msra.mxu0 %v645
    %711 = vmatprep.subr.mxu0 0.0
    %712 = vmatpush1.msra.mxu0 %v646
    %713 = vmatprep.subr.mxu0 0.0
    %714 = vmatpush1.msra.mxu0 %v647
    %715 = vmatprep.subr.mxu0 0.0
    %716 = vmatpush1.msra.mxu0 %v648
    %717 = vmatprep.subr.mxu0 0.0
    %718 = vmatpush1.msra.mxu0 %v649
    %719 = vmatprep.subr.mxu0 0.0
    %720 = vmatpush1.msra.mxu0 %v650
    %721 = vmatprep.subr.mxu0 0.0
    %722 = vmatpush1.msra.mxu0 %v651
    %723 = vmatprep.subr.mxu0 0.0
    %724 = vmatpush1.msra.mxu0 %v652
    %725 = vmatprep.subr.mxu0 0.0
    %726 = vmatpush1.msra.mxu0 %v653
    %727 = vmatprep.subr.mxu0 0.0
    %728 = vmatpush1.msra.mxu0 %v654
    %729 = vmatprep.subr.mxu0 0.0
    %730 = vmatpush1.msra.mxu0 %v655
    %731 = vmatprep.subr.mxu0 0.0
    %732 = vmatpush1.msra.mxu0 %v656
    %733 = vmatprep.subr.mxu0 0.0
    %734 = vmatpush1.msra.mxu0 %v657
    %735 = vmatprep.subr.mxu0 0.0
    %736 = vmatpush1.msra.mxu0 %v658
    %737 = vmatprep.subr.mxu0 0.0
    %738 = vmatpush1.msra.mxu0 %v659
    %739 = vmatprep.subr.mxu0 0.0
    %740 = vmatpush1.msra.mxu0 %v660
    %741 = vmatprep.subr.mxu0 0.0
    %742 = vmatpush1.msra.mxu0 %v661
    %743 = vmatprep.subr.mxu0 0.0
    %744 = vmatpush1.msra.mxu0 %v662
    %745 = vmatprep.subr.mxu0 0.0
    %746 = vmatpush1.msra.mxu0 %v663
    %747 = vmatprep.subr.mxu0 0.0
    %748 = vmatpush1.msra.mxu0 %v664
    %749 = vmatprep.subr.mxu0 0.0
    %750 = vmatpush1.msra.mxu0 %v665
    %751 = vmatprep.subr.mxu0 0.0
    %752 = vmatpush1.msra.mxu0 %v666
    %753 = vmatprep.subr.mxu0 0.0
    %754 = vmatpush1.msra.mxu0 %v667
    %755 = vmatprep.subr.mxu0 0.0
    %756 = vmatpush1.msra.mxu0 %v668
    %757 = vmatprep.subr.mxu0 0.0
    %758 = vmatpush1.msra.mxu0 %v669
    %759 = vmatprep.subr.mxu0 0.0
    %760 = vmatpush1.msra.mxu0 %v670
    %761 = vmatprep.subr.mxu0 0.0
    %762 = vmatpush1.msra.mxu0 %v671
    %763 = vmatprep.subr.mxu0 0.0
    %764 = vmatpush1.msra.mxu0 %v672
    %765 = vmatprep.subr.mxu0 0.0
    %766 = vmatpush1.msra.mxu0 %v673
    %767 = vmatprep.subr.mxu0 0.0
    %768 = vmatpush1.msra.mxu0 %v674
    %769 = vmatprep.subr.mxu0 0.0
    %770 = vmatpush1.msra.mxu0 %v675
    %771 = vmatprep.subr.mxu0 0.0
    %772 = vmatpush1.msra.mxu0 %v676
    %773 = vmatprep.mubr.f32.mxu0 %v138
    %774 = vmatmul.mubr.f32.gmra.mrb[0].mxu0 %v70
    %v775 = vpop.f32.mrb[0].mxu0
    %v776 = vadd.f32 0.0, %v775
    %v777 = vpop.f32.mrb[0].mxu0
    %778 = vdwg.mxu0
    %779 = vmatprep.subr.mxu0 0.0
    %780 = vmatpush1.msra.mxu0 %v677
    %781 = vmatprep.subr.mxu0 0.0
    %782 = vmatpush1.msra.mxu0 %v678
    %783 = vmatprep.subr.mxu0 0.0
    %784 = vmatpush1.msra.mxu0 %v679
    %785 = vmatprep.subr.mxu0 0.0
    %786 = vmatpush1.msra.mxu0 %v680
    %787 = vmatprep.subr.mxu0 0.0
    %788 = vmatpush1.msra.mxu0 %v681
    %789 = vmatprep.subr.mxu0 0.0
    %790 = vmatpush1.msra.mxu0 %v682
    %791 = vmatprep.subr.mxu0 0.0
    %792 = vmatpush1.msra.mxu0 %v683
    %793 = vmatprep.subr.mxu0 0.0
    %794 = vmatpush1.msra.mxu0 %v684
    %795 = vmatprep.subr.mxu0 0.0
    %796 = vmatpush1.msra.mxu0 %v685
    %797 = vmatprep.subr.mxu0 0.0
    %798 = vmatpush1.msra.mxu0 %v686
    %799 = vmatprep.subr.mxu0 0.0
    %800 = vmatpush1.msra.mxu0 %v687
    %801 = vmatprep.subr.mxu0 0.0
    %802 = vmatpush1.msra.mxu0 %v688
    %803 = vmatprep.subr.mxu0 0.0
    %804 = vmatpush1.msra.mxu0 %v689
    %805 = vmatprep.subr.mxu0 0.0
    %806 = vmatpush1.msra.mxu0 %v690
    %807 = vmatprep.subr.mxu0 0.0
    %808 = vmatpush1.msra.mxu0 %v691
    %809 = vmatprep.subr.mxu0 0.0
    %810 = vmatpush1.msra.mxu0 %v692
    %811 = vmatprep.subr.mxu0 0.0
    %812 = vmatpush1.msra.mxu0 %v693
    %813 = vmatprep.subr.mxu0 0.0
    %814 = vmatpush1.msra.mxu0 %v694
    %815 = vmatprep.subr.mxu0 0.0
    %816 = vmatpush1.msra.mxu0 %v695
    %817 = vmatprep.subr.mxu0 0.0
    %818 = vmatpush1.msra.mxu0 %v696
    %819 = vmatprep.subr.mxu0 0.0
    %820 = vmatpush1.msra.mxu0 %v697
    %821 = vmatprep.subr.mxu0 0.0
    %822 = vmatpush1.msra.mxu0 %v698
    %823 = vmatprep.subr.mxu0 0.0
    %824 = vmatpush1.msra.mxu0 %v699
    %825 = vmatprep.subr.mxu0 0.0
    %826 = vmatpush1.msra.mxu0 %v700
    %827 = vmatprep.subr.mxu0 0.0
    %828 = vmatpush1.msra.mxu0 %v701
    %829 = vmatprep.subr.mxu0 0.0
    %830 = vmatpush1.msra.mxu0 %v702
    %831 = vmatprep.subr.mxu0 0.0
    %832 = vmatpush1.msra.mxu0 %v703
    %833 = vmatprep.subr.mxu0 0.0
    %834 = vmatpush1.msra.mxu0 %v704
    %835 = vmatprep.subr.mxu0 0.0
    %836 = vmatpush1.msra.mxu0 %v705
    %837 = vmatprep.subr.mxu0 0.0
    %838 = vmatpush1.msra.mxu0 %v706
    %839 = vmatprep.subr.mxu0 0.0
    %840 = vmatpush1.msra.mxu0 %v707
    %841 = vmatprep.subr.mxu0 0.0
    %842 = vmatpush1.msra.mxu0 %v708
    %843 = vmatprep.mubr.f32.mxu0 %v139
    %844 = vmatmul.mubr.f32.gmra.mrb[0].mxu0 %v71
    %v845 = vpop.f32.mrb[0].mxu0
    %v846 = vadd.f32 %v776, %v845
    %v847 = vpop.f32.mrb[0].mxu0
    %848 = vdwg.mxu0
    %s849 = scalar_lea.vmem %s2, 16
    %v850 = vld [vmem:[%s849] sm:$0xff]
    %v852 = vsel %vm490, %v850, 0
    %v855 = vsel %vm494, %v846, 0
    %857 = vmatprep.subr.mxu0 0.0
    %858 = vmatpush1.msra.mxu0 %v855
    %859 = vmatprep.subr.mxu0 0.0
    %860 = vmatpush1.msra.mxu0 0.0
    %861 = vmatprep.subr.mxu0 0.0
    %862 = vmatpush1.msra.mxu0 0.0
    %863 = vmatprep.subr.mxu0 0.0
    %864 = vmatpush1.msra.mxu0 0.0
    %865 = vmatprep.subr.mxu0 0.0
    %866 = vmatpush1.msra.mxu0 0.0
    %867 = vmatprep.subr.mxu0 0.0
    %868 = vmatpush1.msra.mxu0 0.0
    %869 = vmatprep.subr.mxu0 0.0
    %870 = vmatpush1.msra.mxu0 0.0
    %871 = vmatprep.subr.mxu0 0.0
    %872 = vmatpush1.msra.mxu0 0.0
    %873 = vmatprep.subr.mxu0 0.0
    %874 = vmatpush1.msra.mxu0 0.0
    %875 = vmatprep.subr.mxu0 0.0
    %876 = vmatpush1.msra.mxu0 0.0
    %877 = vmatprep.subr.mxu0 0.0
    %878 = vmatpush1.msra.mxu0 0.0
    %879 = vmatprep.subr.mxu0 0.0
    %880 = vmatpush1.msra.mxu0 0.0
    %881 = vmatprep.subr.mxu0 0.0
    %882 = vmatpush1.msra.mxu0 0.0
    %883 = vmatprep.subr.mxu0 0.0
    %884 = vmatpush1.msra.mxu0 0.0
    %885 = vmatprep.subr.mxu0 0.0
    %886 = vmatpush1.msra.mxu0 0.0
    %887 = vmatprep.subr.mxu0 0.0
    %888 = vmatpush1.msra.mxu0 0.0
    %889 = vmatprep.subr.mxu0 0.0
    %890 = vmatpush1.msra.mxu0 0.0
    %891 = vmatprep.subr.mxu0 0.0
    %892 = vmatpush1.msra.mxu0 0.0
    %893 = vmatprep.subr.mxu0 0.0
    %894 = vmatpush1.msra.mxu0 0.0
    %895 = vmatprep.subr.mxu0 0.0
    %896 = vmatpush1.msra.mxu0 0.0
    %897 = vmatprep.subr.mxu0 0.0
    %898 = vmatpush1.msra.mxu0 0.0
    %899 = vmatprep.subr.mxu0 0.0
    %900 = vmatpush1.msra.mxu0 0.0
    %901 = vmatprep.subr.mxu0 0.0
    %902 = vmatpush1.msra.mxu0 0.0
    %903 = vmatprep.subr.mxu0 0.0
    %904 = vmatpush1.msra.mxu0 0.0
    %905 = vmatprep.subr.mxu0 0.0
    %906 = vmatpush1.msra.mxu0 0.0
    %907 = vmatprep.subr.mxu0 0.0
    %908 = vmatpush1.msra.mxu0 0.0
    %909 = vmatprep.subr.mxu0 0.0
    %910 = vmatpush1.msra.mxu0 0.0
    %911 = vmatprep.subr.mxu0 0.0
    %912 = vmatpush1.msra.mxu0 0.0
    %913 = vmatprep.subr.mxu0 0.0
    %914 = vmatpush1.msra.mxu0 0.0
    %915 = vmatprep.subr.mxu0 0.0
    %916 = vmatpush1.msra.mxu0 0.0
    %917 = vmatprep.subr.mxu0 0.0
    %918 = vmatpush1.msra.mxu0 0.0
    %919 = vmatprep.subr.mxu0 0.0
    %920 = vmatpush1.msra.mxu0 0.0
    %921 = vmatprep.mubr.f32.mxu0 0.0
    %922 = vmatmul.mubr.f32.gmra.mrb[0].mxu0 %v852
    %v923 = vpop.f32.mrb[0].mxu0
    %v924 = vadd.f32 0.0, %v923
    %v925 = vpop.f32.mrb[0].mxu0
    %926 = vdwg.mxu0
    %v927 = vadd.f32 %v641, %v924
    %s928 = scalar_lea.vmem [#allocation3], 1536
    %v929 = vld [vmem:[%s928] sm:$0xff]
    %v930 = vld [vmem:[%s928 + $0x8] sm:$0xff]
    %v931 = vld [vmem:[%s928 + $0x10] sm:$0xff]
    %v932 = vld [vmem:[%s928 + $0x18] sm:$0xff]
    %v933 = vld [vmem:[%s928 + $0x20] sm:$0xff]
    %v934 = vld [vmem:[%s928 + $0x28] sm:$0xff]
    %v935 = vld [vmem:[%s928 + $0x30] sm:$0xff]
    %v936 = vld [vmem:[%s928 + $0x38] sm:$0xff]
    %v937 = vld [vmem:[%s928 + $0x40] sm:$0xff]
    %v938 = vld [vmem:[%s928 + $0x48] sm:$0xff]
    %v939 = vld [vmem:[%s928 + $0x50] sm:$0xff]
    %v940 = vld [vmem:[%s928 + $0x58] sm:$0xff]
    %v941 = vld [vmem:[%s928 + $0x60] sm:$0xff]
    %v942 = vld [vmem:[%s928 + $0x68] sm:$0xff]
    %v943 = vld [vmem:[%s928 + $0x70] sm:$0xff]
    %v944 = vld [vmem:[%s928 + $0x78] sm:$0xff]
    %v945 = vld [vmem:[%s928 + $0x80] sm:$0xff]
    %v946 = vld [vmem:[%s928 + $0x88] sm:$0xff]
    %v947 = vld [vmem:[%s928 + $0x90] sm:$0xff]
    %v948 = vld [vmem:[%s928 + $0x98] sm:$0xff]
    %v949 = vld [vmem:[%s928 + $0xa0] sm:$0xff]
    %v950 = vld [vmem:[%s928 + $0xa8] sm:$0xff]
    %v951 = vld [vmem:[%s928 + $0xb0] sm:$0xff]
    %v952 = vld [vmem:[%s928 + $0xb8] sm:$0xff]
    %v953 = vld [vmem:[%s928 + $0xc0] sm:$0xff]
    %v954 = vld [vmem:[%s928 + $0xc8] sm:$0xff]
    %v955 = vld [vmem:[%s928 + $0xd0] sm:$0xff]
    %v956 = vld [vmem:[%s928 + $0xd8] sm:$0xff]
    %v957 = vld [vmem:[%s928 + $0xe0] sm:$0xff]
    %v958 = vld [vmem:[%s928 + $0xe8] sm:$0xff]
    %v959 = vld [vmem:[%s928 + $0xf0] sm:$0xff]
    %v960 = vld [vmem:[%s928 + $0xf8] sm:$0xff]
    %v961 = vld [vmem:[%s928 + $0x100] sm:$0xff]
    %v962 = vld [vmem:[%s928 + $0x108] sm:$0xff]
    %v963 = vld [vmem:[%s928 + $0x110] sm:$0xff]
    %v964 = vld [vmem:[%s928 + $0x118] sm:$0xff]
    %v965 = vld [vmem:[%s928 + $0x120] sm:$0xff]
    %v966 = vld [vmem:[%s928 + $0x128] sm:$0xff]
    %v967 = vld [vmem:[%s928 + $0x130] sm:$0xff]
    %v968 = vld [vmem:[%s928 + $0x138] sm:$0xff]
    %v969 = vld [vmem:[%s928 + $0x140] sm:$0xff]
    %v970 = vld [vmem:[%s928 + $0x148] sm:$0xff]
    %v971 = vld [vmem:[%s928 + $0x150] sm:$0xff]
    %v972 = vld [vmem:[%s928 + $0x158] sm:$0xff]
    %v973 = vld [vmem:[%s928 + $0x160] sm:$0xff]
    %v974 = vld [vmem:[%s928 + $0x168] sm:$0xff]
    %v975 = vld [vmem:[%s928 + $0x170] sm:$0xff]
    %v976 = vld [vmem:[%s928 + $0x178] sm:$0xff]
    %v977 = vld [vmem:[%s928 + $0x180] sm:$0xff]
    %v978 = vld [vmem:[%s928 + $0x188] sm:$0xff]
    %v979 = vld [vmem:[%s928 + $0x190] sm:$0xff]
    %v980 = vld [vmem:[%s928 + $0x198] sm:$0xff]
    %v981 = vld [vmem:[%s928 + $0x1a0] sm:$0xff]
    %v982 = vld [vmem:[%s928 + $0x1a8] sm:$0xff]
    %v983 = vld [vmem:[%s928 + $0x1b0] sm:$0xff]
    %v984 = vld [vmem:[%s928 + $0x1b8] sm:$0xff]
    %v985 = vld [vmem:[%s928 + $0x1c0] sm:$0xff]
    %v986 = vld [vmem:[%s928 + $0x1c8] sm:$0xff]
    %v987 = vld [vmem:[%s928 + $0x1d0] sm:$0xff]
    %v988 = vld [vmem:[%s928 + $0x1d8] sm:$0xff]
    %v989 = vld [vmem:[%s928 + $0x1e0] sm:$0xff]
    %v990 = vld [vmem:[%s928 + $0x1e8] sm:$0xff]
    %v991 = vld [vmem:[%s928 + $0x1f0] sm:$0xff]
    %v992 = vld [vmem:[%s928 + $0x1f8] sm:$0xff]
    %993 = vmatprep.subr.mxu0 0.0
    %994 = vmatpush1.msra.mxu0 %v929
    %995 = vmatprep.subr.mxu0 0.0
    %996 = vmatpush1.msra.mxu0 %v930
    %997 = vmatprep.subr.mxu0 0.0
    %998 = vmatpush1.msra.mxu0 %v931
    %999 = vmatprep.subr.mxu0 0.0
    %1000 = vmatpush1.msra.mxu0 %v932
    %1001 = vmatprep.subr.mxu0 0.0
    %1002 = vmatpush1.msra.mxu0 %v933
    %1003 = vmatprep.subr.mxu0 0.0
    %1004 = vmatpush1.msra.mxu0 %v934
    %1005 = vmatprep.subr.mxu0 0.0
    %1006 = vmatpush1.msra.mxu0 %v935
    %1007 = vmatprep.subr.mxu0 0.0
    %1008 = vmatpush1.msra.mxu0 %v936
    %1009 = vmatprep.subr.mxu0 0.0
    %1010 = vmatpush1.msra.mxu0 %v937
    %1011 = vmatprep.subr.mxu0 0.0
    %1012 = vmatpush1.msra.mxu0 %v938
    %1013 = vmatprep.subr.mxu0 0.0
    %1014 = vmatpush1.msra.mxu0 %v939
    %1015 = vmatprep.subr.mxu0 0.0
    %1016 = vmatpush1.msra.mxu0 %v940
    %1017 = vmatprep.subr.mxu0 0.0
    %1018 = vmatpush1.msra.mxu0 %v941
    %1019 = vmatprep.subr.mxu0 0.0
    %1020 = vmatpush1.msra.mxu0 %v942
    %1021 = vmatprep.subr.mxu0 0.0
    %1022 = vmatpush1.msra.mxu0 %v943
    %1023 = vmatprep.subr.mxu0 0.0
    %1024 = vmatpush1.msra.mxu0 %v944
    %1025 = vmatprep.subr.mxu0 0.0
    %1026 = vmatpush1.msra.mxu0 %v945
    %1027 = vmatprep.subr.mxu0 0.0
    %1028 = vmatpush1.msra.mxu0 %v946
    %1029 = vmatprep.subr.mxu0 0.0
    %1030 = vmatpush1.msra.mxu0 %v947
    %1031 = vmatprep.subr.mxu0 0.0
    %1032 = vmatpush1.msra.mxu0 %v948
    %1033 = vmatprep.subr.mxu0 0.0
    %1034 = vmatpush1.msra.mxu0 %v949
    %1035 = vmatprep.subr.mxu0 0.0
    %1036 = vmatpush1.msra.mxu0 %v950
    %1037 = vmatprep.subr.mxu0 0.0
    %1038 = vmatpush1.msra.mxu0 %v951
    %1039 = vmatprep.subr.mxu0 0.0
    %1040 = vmatpush1.msra.mxu0 %v952
    %1041 = vmatprep.subr.mxu0 0.0
    %1042 = vmatpush1.msra.mxu0 %v953
    %1043 = vmatprep.subr.mxu0 0.0
    %1044 = vmatpush1.msra.mxu0 %v954
    %1045 = vmatprep.subr.mxu0 0.0
    %1046 = vmatpush1.msra.mxu0 %v955
    %1047 = vmatprep.subr.mxu0 0.0
    %1048 = vmatpush1.msra.mxu0 %v956
    %1049 = vmatprep.subr.mxu0 0.0
    %1050 = vmatpush1.msra.mxu0 %v957
    %1051 = vmatprep.subr.mxu0 0.0
    %1052 = vmatpush1.msra.mxu0 %v958
    %1053 = vmatprep.subr.mxu0 0.0
    %1054 = vmatpush1.msra.mxu0 %v959
    %1055 = vmatprep.subr.mxu0 0.0
    %1056 = vmatpush1.msra.mxu0 %v960
    %1057 = vmatprep.mubr.f32.mxu0 %v138
    %1058 = vmatmul.mubr.f32.gmra.mrb[0].mxu0 %v70
    %v1059 = vpop.f32.mrb[0].mxu0
    %v1060 = vadd.f32 0.0, %v1059
    %v1061 = vpop.f32.mrb[0].mxu0
    %1062 = vdwg.mxu0
    %1063 = vmatprep.subr.mxu0 0.0
    %1064 = vmatpush1.msra.mxu0 %v961
    %1065 = vmatprep.subr.mxu0 0.0
    %1066 = vmatpush1.msra.mxu0 %v962
    %1067 = vmatprep.subr.mxu0 0.0
    %1068 = vmatpush1.msra.mxu0 %v963
    %1069 = vmatprep.subr.mxu0 0.0
    %1070 = vmatpush1.msra.mxu0 %v964
    %1071 = vmatprep.subr.mxu0 0.0
    %1072 = vmatpush1.msra.mxu0 %v965
    %1073 = vmatprep.subr.mxu0 0.0
    %1074 = vmatpush1.msra.mxu0 %v966
    %1075 = vmatprep.subr.mxu0 0.0
    %1076 = vmatpush1.msra.mxu0 %v967
    %1077 = vmatprep.subr.mxu0 0.0
    %1078 = vmatpush1.msra.mxu0 %v968
    %1079 = vmatprep.subr.mxu0 0.0
    %1080 = vmatpush1.msra.mxu0 %v969
    %1081 = vmatprep.subr.mxu0 0.0
    %1082 = vmatpush1.msra.mxu0 %v970
    %1083 = vmatprep.subr.mxu0 0.0
    %1084 = vmatpush1.msra.mxu0 %v971
    %1085 = vmatprep.subr.mxu0 0.0
    %1086 = vmatpush1.msra.mxu0 %v972
    %1087 = vmatprep.subr.mxu0 0.0
    %1088 = vmatpush1.msra.mxu0 %v973
    %1089 = vmatprep.subr.mxu0 0.0
    %1090 = vmatpush1.msra.mxu0 %v974
    %1091 = vmatprep.subr.mxu0 0.0
    %1092 = vmatpush1.msra.mxu0 %v975
    %1093 = vmatprep.subr.mxu0 0.0
    %1094 = vmatpush1.msra.mxu0 %v976
    %1095 = vmatprep.subr.mxu0 0.0
    %1096 = vmatpush1.msra.mxu0 %v977
    %1097 = vmatprep.subr.mxu0 0.0
    %1098 = vmatpush1.msra.mxu0 %v978
    %1099 = vmatprep.subr.mxu0 0.0
    %1100 = vmatpush1.msra.mxu0 %v979
    %1101 = vmatprep.subr.mxu0 0.0
    %1102 = vmatpush1.msra.mxu0 %v980
    %1103 = vmatprep.subr.mxu0 0.0
    %1104 = vmatpush1.msra.mxu0 %v981
    %1105 = vmatprep.subr.mxu0 0.0
    %1106 = vmatpush1.msra.mxu0 %v982
    %1107 = vmatprep.subr.mxu0 0.0
    %1108 = vmatpush1.msra.mxu0 %v983
    %1109 = vmatprep.subr.mxu0 0.0
    %1110 = vmatpush1.msra.mxu0 %v984
    %1111 = vmatprep.subr.mxu0 0.0
    %1112 = vmatpush1.msra.mxu0 %v985
    %1113 = vmatprep.subr.mxu0 0.0
    %1114 = vmatpush1.msra.mxu0 %v986
    %1115 = vmatprep.subr.mxu0 0.0
    %1116 = vmatpush1.msra.mxu0 %v987
    %1117 = vmatprep.subr.mxu0 0.0
    %1118 = vmatpush1.msra.mxu0 %v988
    %1119 = vmatprep.subr.mxu0 0.0
    %1120 = vmatpush1.msra.mxu0 %v989
    %1121 = vmatprep.subr.mxu0 0.0
    %1122 = vmatpush1.msra.mxu0 %v990
    %1123 = vmatprep.subr.mxu0 0.0
    %1124 = vmatpush1.msra.mxu0 %v991
    %1125 = vmatprep.subr.mxu0 0.0
    %1126 = vmatpush1.msra.mxu0 %v992
    %1127 = vmatprep.mubr.f32.mxu0 %v139
    %1128 = vmatmul.mubr.f32.gmra.mrb[0].mxu0 %v71
    %v1129 = vpop.f32.mrb[0].mxu0
    %v1130 = vadd.f32 %v1060, %v1129
    %v1131 = vpop.f32.mrb[0].mxu0
    %1132 = vdwg.mxu0
    %s1133 = scalar_lea.vmem %s2, 24
    %v1134 = vld [vmem:[%s1133] sm:$0xff]
    %v1136 = vsel %vm490, %v1134, 0
    %v1139 = vsel %vm494, %v1130, 0
    %1141 = vmatprep.subr.mxu0 0.0
    %1142 = vmatpush1.msra.mxu0 %v1139
    %1143 = vmatprep.subr.mxu0 0.0
    %1144 = vmatpush1.msra.mxu0 0.0
    %1145 = vmatprep.subr.mxu0 0.0
    %1146 = vmatpush1.msra.mxu0 0.0
    %1147 = vmatprep.subr.mxu0 0.0
    %1148 = vmatpush1.msra.mxu0 0.0
    %1149 = vmatprep.subr.mxu0 0.0
    %1150 = vmatpush1.msra.mxu0 0.0
    %1151 = vmatprep.subr.mxu0 0.0
    %1152 = vmatpush1.msra.mxu0 0.0
    %1153 = vmatprep.subr.mxu0 0.0
    %1154 = vmatpush1.msra.mxu0 0.0
    %1155 = vmatprep.subr.mxu0 0.0
    %1156 = vmatpush1.msra.mxu0 0.0
    %1157 = vmatprep.subr.mxu0 0.0
    %1158 = vmatpush1.msra.mxu0 0.0
    %1159 = vmatprep.subr.mxu0 0.0
    %1160 = vmatpush1.msra.mxu0 0.0
    %1161 = vmatprep.subr.mxu0 0.0
    %1162 = vmatpush1.msra.mxu0 0.0
    %1163 = vmatprep.subr.mxu0 0.0
    %1164 = vmatpush1.msra.mxu0 0.0
    %1165 = vmatprep.subr.mxu0 0.0
    %1166 = vmatpush1.msra.mxu0 0.0
    %1167 = vmatprep.subr.mxu0 0.0
    %1168 = vmatpush1.msra.mxu0 0.0
    %1169 = vmatprep.subr.mxu0 0.0
    %1170 = vmatpush1.msra.mxu0 0.0
    %1171 = vmatprep.subr.mxu0 0.0
    %1172 = vmatpush1.msra.mxu0 0.0
    %1173 = vmatprep.subr.mxu0 0.0
    %1174 = vmatpush1.msra.mxu0 0.0
    %1175 = vmatprep.subr.mxu0 0.0
    %1176 = vmatpush1.msra.mxu0 0.0
    %1177 = vmatprep.subr.mxu0 0.0
    %1178 = vmatpush1.msra.mxu0 0.0
    %1179 = vmatprep.subr.mxu0 0.0
    %1180 = vmatpush1.msra.mxu0 0.0
    %1181 = vmatprep.subr.mxu0 0.0
    %1182 = vmatpush1.msra.mxu0 0.0
    %1183 = vmatprep.subr.mxu0 0.0
    %1184 = vmatpush1.msra.mxu0 0.0
    %1185 = vmatprep.subr.mxu0 0.0
    %1186 = vmatpush1.msra.mxu0 0.0
    %1187 = vmatprep.subr.mxu0 0.0
    %1188 = vmatpush1.msra.mxu0 0.0
    %1189 = vmatprep.subr.mxu0 0.0
    %1190 = vmatpush1.msra.mxu0 0.0
    %1191 = vmatprep.subr.mxu0 0.0
    %1192 = vmatpush1.msra.mxu0 0.0
    %1193 = vmatprep.subr.mxu0 0.0
    %1194 = vmatpush1.msra.mxu0 0.0
    %1195 = vmatprep.subr.mxu0 0.0
    %1196 = vmatpush1.msra.mxu0 0.0
    %1197 = vmatprep.subr.mxu0 0.0
    %1198 = vmatpush1.msra.mxu0 0.0
    %1199 = vmatprep.subr.mxu0 0.0
    %1200 = vmatpush1.msra.mxu0 0.0
    %1201 = vmatprep.subr.mxu0 0.0
    %1202 = vmatpush1.msra.mxu0 0.0
    %1203 = vmatprep.subr.mxu0 0.0
    %1204 = vmatpush1.msra.mxu0 0.0
    %1205 = vmatprep.mubr.f32.mxu0 0.0
    %1206 = vmatmul.mubr.f32.gmra.mrb[0].mxu0 %v1136
    %v1207 = vpop.f32.mrb[0].mxu0
    %v1208 = vadd.f32 0.0, %v1207
    %v1209 = vpop.f32.mrb[0].mxu0
    %1210 = vdwg.mxu0
    %v1211 = vadd.f32 %v927, %v1208
    %s1212 = scalar_lea.vmem [#allocation3], 2048
    %v1213 = vld [vmem:[%s1212] sm:$0xff]
    %v1214 = vld [vmem:[%s1212 + $0x8] sm:$0xff]
    %v1215 = vld [vmem:[%s1212 + $0x10] sm:$0xff]
    %v1216 = vld [vmem:[%s1212 + $0x18] sm:$0xff]
    %v1217 = vld [vmem:[%s1212 + $0x20] sm:$0xff]
    %v1218 = vld [vmem:[%s1212 + $0x28] sm:$0xff]
    %v1219 = vld [vmem:[%s1212 + $0x30] sm:$0xff]
    %v1220 = vld [vmem:[%s1212 + $0x38] sm:$0xff]
    %v1221 = vld [vmem:[%s1212 + $0x40] sm:$0xff]
    %v1222 = vld [vmem:[%s1212 + $0x48] sm:$0xff]
    %v1223 = vld [vmem:[%s1212 + $0x50] sm:$0xff]
    %v1224 = vld [vmem:[%s1212 + $0x58] sm:$0xff]
    %v1225 = vld [vmem:[%s1212 + $0x60] sm:$0xff]
    %v1226 = vld [vmem:[%s1212 + $0x68] sm:$0xff]
    %v1227 = vld [vmem:[%s1212 + $0x70] sm:$0xff]
    %v1228 = vld [vmem:[%s1212 + $0x78] sm:$0xff]
    %v1229 = vld [vmem:[%s1212 + $0x80] sm:$0xff]
    %v1230 = vld [vmem:[%s1212 + $0x88] sm:$0xff]
    %v1231 = vld [vmem:[%s1212 + $0x90] sm:$0xff]
    %v1232 = vld [vmem:[%s1212 + $0x98] sm:$0xff]
    %v1233 = vld [vmem:[%s1212 + $0xa0] sm:$0xff]
    %v1234 = vld [vmem:[%s1212 + $0xa8] sm:$0xff]
    %v1235 = vld [vmem:[%s1212 + $0xb0] sm:$0xff]
    %v1236 = vld [vmem:[%s1212 + $0xb8] sm:$0xff]
    %v1237 = vld [vmem:[%s1212 + $0xc0] sm:$0xff]
    %v1238 = vld [vmem:[%s1212 + $0xc8] sm:$0xff]
    %v1239 = vld [vmem:[%s1212 + $0xd0] sm:$0xff]
    %v1240 = vld [vmem:[%s1212 + $0xd8] sm:$0xff]
    %v1241 = vld [vmem:[%s1212 + $0xe0] sm:$0xff]
    %v1242 = vld [vmem:[%s1212 + $0xe8] sm:$0xff]
    %v1243 = vld [vmem:[%s1212 + $0xf0] sm:$0xff]
    %v1244 = vld [vmem:[%s1212 + $0xf8] sm:$0xff]
    %v1245 = vld [vmem:[%s1212 + $0x100] sm:$0xff]
    %v1246 = vld [vmem:[%s1212 + $0x108] sm:$0xff]
    %v1247 = vld [vmem:[%s1212 + $0x110] sm:$0xff]
    %v1248 = vld [vmem:[%s1212 + $0x118] sm:$0xff]
    %v1249 = vld [vmem:[%s1212 + $0x120] sm:$0xff]
    %v1250 = vld [vmem:[%s1212 + $0x128] sm:$0xff]
    %v1251 = vld [vmem:[%s1212 + $0x130] sm:$0xff]
    %v1252 = vld [vmem:[%s1212 + $0x138] sm:$0xff]
    %v1253 = vld [vmem:[%s1212 + $0x140] sm:$0xff]
    %v1254 = vld [vmem:[%s1212 + $0x148] sm:$0xff]
    %v1255 = vld [vmem:[%s1212 + $0x150] sm:$0xff]
    %v1256 = vld [vmem:[%s1212 + $0x158] sm:$0xff]
    %v1257 = vld [vmem:[%s1212 + $0x160] sm:$0xff]
    %v1258 = vld [vmem:[%s1212 + $0x168] sm:$0xff]
    %v1259 = vld [vmem:[%s1212 + $0x170] sm:$0xff]
    %v1260 = vld [vmem:[%s1212 + $0x178] sm:$0xff]
    %v1261 = vld [vmem:[%s1212 + $0x180] sm:$0xff]
    %v1262 = vld [vmem:[%s1212 + $0x188] sm:$0xff]
    %v1263 = vld [vmem:[%s1212 + $0x190] sm:$0xff]
    %v1264 = vld [vmem:[%s1212 + $0x198] sm:$0xff]
    %v1265 = vld [vmem:[%s1212 + $0x1a0] sm:$0xff]
    %v1266 = vld [vmem:[%s1212 + $0x1a8] sm:$0xff]
    %v1267 = vld [vmem:[%s1212 + $0x1b0] sm:$0xff]
    %v1268 = vld [vmem:[%s1212 + $0x1b8] sm:$0xff]
    %v1269 = vld [vmem:[%s1212 + $0x1c0] sm:$0xff]
    %v1270 = vld [vmem:[%s1212 + $0x1c8] sm:$0xff]
    %v1271 = vld [vmem:[%s1212 + $0x1d0] sm:$0xff]
    %v1272 = vld [vmem:[%s1212 + $0x1d8] sm:$0xff]
    %v1273 = vld [vmem:[%s1212 + $0x1e0] sm:$0xff]
    %v1274 = vld [vmem:[%s1212 + $0x1e8] sm:$0xff]
    %v1275 = vld [vmem:[%s1212 + $0x1f0] sm:$0xff]
    %v1276 = vld [vmem:[%s1212 + $0x1f8] sm:$0xff]
    %1277 = vmatprep.subr.mxu0 0.0
    %1278 = vmatpush1.msra.mxu0 %v1213
    %1279 = vmatprep.subr.mxu0 0.0
    %1280 = vmatpush1.msra.mxu0 %v1214
    %1281 = vmatprep.subr.mxu0 0.0
    %1282 = vmatpush1.msra.mxu0 %v1215
    %1283 = vmatprep.subr.mxu0 0.0
    %1284 = vmatpush1.msra.mxu0 %v1216
    %1285 = vmatprep.subr.mxu0 0.0
    %1286 = vmatpush1.msra.mxu0 %v1217
    %1287 = vmatprep.subr.mxu0 0.0
    %1288 = vmatpush1.msra.mxu0 %v1218
    %1289 = vmatprep.subr.mxu0 0.0
    %1290 = vmatpush1.msra.mxu0 %v1219
    %1291 = vmatprep.subr.mxu0 0.0
    %1292 = vmatpush1.msra.mxu0 %v1220
    %1293 = vmatprep.subr.mxu0 0.0
    %1294 = vmatpush1.msra.mxu0 %v1221
    %1295 = vmatprep.subr.mxu0 0.0
    %1296 = vmatpush1.msra.mxu0 %v1222
    %1297 = vmatprep.subr.mxu0 0.0
    %1298 = vmatpush1.msra.mxu0 %v1223
    %1299 = vmatprep.subr.mxu0 0.0
    %1300 = vmatpush1.msra.mxu0 %v1224
    %1301 = vmatprep.subr.mxu0 0.0
    %1302 = vmatpush1.msra.mxu0 %v1225
    %1303 = vmatprep.subr.mxu0 0.0
    %1304 = vmatpush1.msra.mxu0 %v1226
    %1305 = vmatprep.subr.mxu0 0.0
    %1306 = vmatpush1.msra.mxu0 %v1227
    %1307 = vmatprep.subr.mxu0 0.0
    %1308 = vmatpush1.msra.mxu0 %v1228
    %1309 = vmatprep.subr.mxu0 0.0
    %1310 = vmatpush1.msra.mxu0 %v1229
    %1311 = vmatprep.subr.mxu0 0.0
    %1312 = vmatpush1.msra.mxu0 %v1230
    %1313 = vmatprep.subr.mxu0 0.0
    %1314 = vmatpush1.msra.mxu0 %v1231
    %1315 = vmatprep.subr.mxu0 0.0
    %1316 = vmatpush1.msra.mxu0 %v1232
    %1317 = vmatprep.subr.mxu0 0.0
    %1318 = vmatpush1.msra.mxu0 %v1233
    %1319 = vmatprep.subr.mxu0 0.0
    %1320 = vmatpush1.msra.mxu0 %v1234
    %1321 = vmatprep.subr.mxu0 0.0
    %1322 = vmatpush1.msra.mxu0 %v1235
    %1323 = vmatprep.subr.mxu0 0.0
    %1324 = vmatpush1.msra.mxu0 %v1236
    %1325 = vmatprep.subr.mxu0 0.0
    %1326 = vmatpush1.msra.mxu0 %v1237
    %1327 = vmatprep.subr.mxu0 0.0
    %1328 = vmatpush1.msra.mxu0 %v1238
    %1329 = vmatprep.subr.mxu0 0.0
    %1330 = vmatpush1.msra.mxu0 %v1239
    %1331 = vmatprep.subr.mxu0 0.0
    %1332 = vmatpush1.msra.mxu0 %v1240
    %1333 = vmatprep.subr.mxu0 0.0
    %1334 = vmatpush1.msra.mxu0 %v1241
    %1335 = vmatprep.subr.mxu0 0.0
    %1336 = vmatpush1.msra.mxu0 %v1242
    %1337 = vmatprep.subr.mxu0 0.0
    %1338 = vmatpush1.msra.mxu0 %v1243
    %1339 = vmatprep.subr.mxu0 0.0
    %1340 = vmatpush1.msra.mxu0 %v1244
    %1341 = vmatprep.mubr.f32.mxu0 %v138
    %1342 = vmatmul.mubr.f32.gmra.mrb[0].mxu0 %v70
    %v1343 = vpop.f32.mrb[0].mxu0
    %v1344 = vadd.f32 0.0, %v1343
    %v1345 = vpop.f32.mrb[0].mxu0
    %1346 = vdwg.mxu0
    %1347 = vmatprep.subr.mxu0 0.0
    %1348 = vmatpush1.msra.mxu0 %v1245
    %1349 = vmatprep.subr.mxu0 0.0
    %1350 = vmatpush1.msra.mxu0 %v1246
    %1351 = vmatprep.subr.mxu0 0.0
    %1352 = vmatpush1.msra.mxu0 %v1247
    %1353 = vmatprep.subr.mxu0 0.0
    %1354 = vmatpush1.msra.mxu0 %v1248
    %1355 = vmatprep.subr.mxu0 0.0
    %1356 = vmatpush1.msra.mxu0 %v1249
    %1357 = vmatprep.subr.mxu0 0.0
    %1358 = vmatpush1.msra.mxu0 %v1250
    %1359 = vmatprep.subr.mxu0 0.0
    %1360 = vmatpush1.msra.mxu0 %v1251
    %1361 = vmatprep.subr.mxu0 0.0
    %1362 = vmatpush1.msra.mxu0 %v1252
    %1363 = vmatprep.subr.mxu0 0.0
    %1364 = vmatpush1.msra.mxu0 %v1253
    %1365 = vmatprep.subr.mxu0 0.0
    %1366 = vmatpush1.msra.mxu0 %v1254
    %1367 = vmatprep.subr.mxu0 0.0
    %1368 = vmatpush1.msra.mxu0 %v1255
    %1369 = vmatprep.subr.mxu0 0.0
    %1370 = vmatpush1.msra.mxu0 %v1256
    %1371 = vmatprep.subr.mxu0 0.0
    %1372 = vmatpush1.msra.mxu0 %v1257
    %1373 = vmatprep.subr.mxu0 0.0
    %1374 = vmatpush1.msra.mxu0 %v1258
    %1375 = vmatprep.subr.mxu0 0.0
    %1376 = vmatpush1.msra.mxu0 %v1259
    %1377 = vmatprep.subr.mxu0 0.0
    %1378 = vmatpush1.msra.mxu0 %v1260
    %1379 = vmatprep.subr.mxu0 0.0
    %1380 = vmatpush1.msra.mxu0 %v1261
    %1381 = vmatprep.subr.mxu0 0.0
    %1382 = vmatpush1.msra.mxu0 %v1262
    %1383 = vmatprep.subr.mxu0 0.0
    %1384 = vmatpush1.msra.mxu0 %v1263
    %1385 = vmatprep.subr.mxu0 0.0
    %1386 = vmatpush1.msra.mxu0 %v1264
    %1387 = vmatprep.subr.mxu0 0.0
    %1388 = vmatpush1.msra.mxu0 %v1265
    %1389 = vmatprep.subr.mxu0 0.0
    %1390 = vmatpush1.msra.mxu0 %v1266
    %1391 = vmatprep.subr.mxu0 0.0
    %1392 = vmatpush1.msra.mxu0 %v1267
    %1393 = vmatprep.subr.mxu0 0.0
    %1394 = vmatpush1.msra.mxu0 %v1268
    %1395 = vmatprep.subr.mxu0 0.0
    %1396 = vmatpush1.msra.mxu0 %v1269
    %1397 = vmatprep.subr.mxu0 0.0
    %1398 = vmatpush1.msra.mxu0 %v1270
    %1399 = vmatprep.subr.mxu0 0.0
    %1400 = vmatpush1.msra.mxu0 %v1271
    %1401 = vmatprep.subr.mxu0 0.0
    %1402 = vmatpush1.msra.mxu0 %v1272
    %1403 = vmatprep.subr.mxu0 0.0
    %1404 = vmatpush1.msra.mxu0 %v1273
    %1405 = vmatprep.subr.mxu0 0.0
    %1406 = vmatpush1.msra.mxu0 %v1274
    %1407 = vmatprep.subr.mxu0 0.0
    %1408 = vmatpush1.msra.mxu0 %v1275
    %1409 = vmatprep.subr.mxu0 0.0
    %1410 = vmatpush1.msra.mxu0 %v1276
    %1411 = vmatprep.mubr.f32.mxu0 %v139
    %1412 = vmatmul.mubr.f32.gmra.mrb[0].mxu0 %v71
    %v1413 = vpop.f32.mrb[0].mxu0
    %v1414 = vadd.f32 %v1344, %v1413
    %v1415 = vpop.f32.mrb[0].mxu0
    %1416 = vdwg.mxu0
    %s1417 = scalar_lea.vmem %s2, 32
    %v1418 = vld [vmem:[%s1417] sm:$0xff]
    %v1420 = vsel %vm490, %v1418, 0
    %v1423 = vsel %vm494, %v1414, 0
    %1425 = vmatprep.subr.mxu0 0.0
    %1426 = vmatpush1.msra.mxu0 %v1423
    %1427 = vmatprep.subr.mxu0 0.0
    %1428 = vmatpush1.msra.mxu0 0.0
    %1429 = vmatprep.subr.mxu0 0.0
    %1430 = vmatpush1.msra.mxu0 0.0
    %1431 = vmatprep.subr.mxu0 0.0
    %1432 = vmatpush1.msra.mxu0 0.0
    %1433 = vmatprep.subr.mxu0 0.0
    %1434 = vmatpush1.msra.mxu0 0.0
    %1435 = vmatprep.subr.mxu0 0.0
    %1436 = vmatpush1.msra.mxu0 0.0
    %1437 = vmatprep.subr.mxu0 0.0
    %1438 = vmatpush1.msra.mxu0 0.0
    %1439 = vmatprep.subr.mxu0 0.0
    %1440 = vmatpush1.msra.mxu0 0.0
    %1441 = vmatprep.subr.mxu0 0.0
    %1442 = vmatpush1.msra.mxu0 0.0
    %1443 = vmatprep.subr.mxu0 0.0
    %1444 = vmatpush1.msra.mxu0 0.0
    %1445 = vmatprep.subr.mxu0 0.0
    %1446 = vmatpush1.msra.mxu0 0.0
    %1447 = vmatprep.subr.mxu0 0.0
    %1448 = vmatpush1.msra.mxu0 0.0
    %1449 = vmatprep.subr.mxu0 0.0
    %1450 = vmatpush1.msra.mxu0 0.0
    %1451 = vmatprep.subr.mxu0 0.0
    %1452 = vmatpush1.msra.mxu0 0.0
    %1453 = vmatprep.subr.mxu0 0.0
    %1454 = vmatpush1.msra.mxu0 0.0
    %1455 = vmatprep.subr.mxu0 0.0
    %1456 = vmatpush1.msra.mxu0 0.0
    %1457 = vmatprep.subr.mxu0 0.0
    %1458 = vmatpush1.msra.mxu0 0.0
    %1459 = vmatprep.subr.mxu0 0.0
    %1460 = vmatpush1.msra.mxu0 0.0
    %1461 = vmatprep.subr.mxu0 0.0
    %1462 = vmatpush1.msra.mxu0 0.0
    %1463 = vmatprep.subr.mxu0 0.0
    %1464 = vmatpush1.msra.mxu0 0.0
    %1465 = vmatprep.subr.mxu0 0.0
    %1466 = vmatpush1.msra.mxu0 0.0
    %1467 = vmatprep.subr.mxu0 0.0
    %1468 = vmatpush1.msra.mxu0 0.0
    %1469 = vmatprep.subr.mxu0 0.0
    %1470 = vmatpush1.msra.mxu0 0.0
    %1471 = vmatprep.subr.mxu0 0.0
    %1472 = vmatpush1.msra.mxu0 0.0
    %1473 = vmatprep.subr.mxu0 0.0
    %1474 = vmatpush1.msra.mxu0 0.0
    %1475 = vmatprep.subr.mxu0 0.0
    %1476 = vmatpush1.msra.mxu0 0.0
    %1477 = vmatprep.subr.mxu0 0.0
    %1478 = vmatpush1.msra.mxu0 0.0
    %1479 = vmatprep.subr.mxu0 0.0
    %1480 = vmatpush1.msra.mxu0 0.0
    %1481 = vmatprep.subr.mxu0 0.0
    %1482 = vmatpush1.msra.mxu0 0.0
    %1483 = vmatprep.subr.mxu0 0.0
    %1484 = vmatpush1.msra.mxu0 0.0
    %1485 = vmatprep.subr.mxu0 0.0
    %1486 = vmatpush1.msra.mxu0 0.0
    %1487 = vmatprep.subr.mxu0 0.0
    %1488 = vmatpush1.msra.mxu0 0.0
    %1489 = vmatprep.mubr.f32.mxu0 0.0
    %1490 = vmatmul.mubr.f32.gmra.mrb[0].mxu0 %v1420
    %v1491 = vpop.f32.mrb[0].mxu0
    %v1492 = vadd.f32 0.0, %v1491
    %v1493 = vpop.f32.mrb[0].mxu0
    %1494 = vdwg.mxu0
    %v1495 = vadd.f32 %v1211, %v1492
    %s1496 = scalar_lea.vmem [#allocation3], 2560
    %v1497 = vld [vmem:[%s1496] sm:$0xff]
    %v1498 = vld [vmem:[%s1496 + $0x8] sm:$0xff]
    %v1499 = vld [vmem:[%s1496 + $0x10] sm:$0xff]
    %v1500 = vld [vmem:[%s1496 + $0x18] sm:$0xff]
    %v1501 = vld [vmem:[%s1496 + $0x20] sm:$0xff]
    %v1502 = vld [vmem:[%s1496 + $0x28] sm:$0xff]
    %v1503 = vld [vmem:[%s1496 + $0x30] sm:$0xff]
    %v1504 = vld [vmem:[%s1496 + $0x38] sm:$0xff]
    %v1505 = vld [vmem:[%s1496 + $0x40] sm:$0xff]
    %v1506 = vld [vmem:[%s1496 + $0x48] sm:$0xff]
    %v1507 = vld [vmem:[%s1496 + $0x50] sm:$0xff]
    %v1508 = vld [vmem:[%s1496 + $0x58] sm:$0xff]
    %v1509 = vld [vmem:[%s1496 + $0x60] sm:$0xff]
    %v1510 = vld [vmem:[%s1496 + $0x68] sm:$0xff]
    %v1511 = vld [vmem:[%s1496 + $0x70] sm:$0xff]
    %v1512 = vld [vmem:[%s1496 + $0x78] sm:$0xff]
    %v1513 = vld [vmem:[%s1496 + $0x80] sm:$0xff]
    %v1514 = vld [vmem:[%s1496 + $0x88] sm:$0xff]
    %v1515 = vld [vmem:[%s1496 + $0x90] sm:$0xff]
    %v1516 = vld [vmem:[%s1496 + $0x98] sm:$0xff]
    %v1517 = vld [vmem:[%s1496 + $0xa0] sm:$0xff]
    %v1518 = vld [vmem:[%s1496 + $0xa8] sm:$0xff]
    %v1519 = vld [vmem:[%s1496 + $0xb0] sm:$0xff]
    %v1520 = vld [vmem:[%s1496 + $0xb8] sm:$0xff]
    %v1521 = vld [vmem:[%s1496 + $0xc0] sm:$0xff]
    %v1522 = vld [vmem:[%s1496 + $0xc8] sm:$0xff]
    %v1523 = vld [vmem:[%s1496 + $0xd0] sm:$0xff]
    %v1524 = vld [vmem:[%s1496 + $0xd8] sm:$0xff]
    %v1525 = vld [vmem:[%s1496 + $0xe0] sm:$0xff]
    %v1526 = vld [vmem:[%s1496 + $0xe8] sm:$0xff]
    %v1527 = vld [vmem:[%s1496 + $0xf0] sm:$0xff]
    %v1528 = vld [vmem:[%s1496 + $0xf8] sm:$0xff]
    %v1529 = vld [vmem:[%s1496 + $0x100] sm:$0xff]
    %v1530 = vld [vmem:[%s1496 + $0x108] sm:$0xff]
    %v1531 = vld [vmem:[%s1496 + $0x110] sm:$0xff]
    %v1532 = vld [vmem:[%s1496 + $0x118] sm:$0xff]
    %v1533 = vld [vmem:[%s1496 + $0x120] sm:$0xff]
    %v1534 = vld [vmem:[%s1496 + $0x128] sm:$0xff]
    %v1535 = vld [vmem:[%s1496 + $0x130] sm:$0xff]
    %v1536 = vld [vmem:[%s1496 + $0x138] sm:$0xff]
    %v1537 = vld [vmem:[%s1496 + $0x140] sm:$0xff]
    %v1538 = vld [vmem:[%s1496 + $0x148] sm:$0xff]
    %v1539 = vld [vmem:[%s1496 + $0x150] sm:$0xff]
    %v1540 = vld [vmem:[%s1496 + $0x158] sm:$0xff]
    %v1541 = vld [vmem:[%s1496 + $0x160] sm:$0xff]
    %v1542 = vld [vmem:[%s1496 + $0x168] sm:$0xff]
    %v1543 = vld [vmem:[%s1496 + $0x170] sm:$0xff]
    %v1544 = vld [vmem:[%s1496 + $0x178] sm:$0xff]
    %v1545 = vld [vmem:[%s1496 + $0x180] sm:$0xff]
    %v1546 = vld [vmem:[%s1496 + $0x188] sm:$0xff]
    %v1547 = vld [vmem:[%s1496 + $0x190] sm:$0xff]
    %v1548 = vld [vmem:[%s1496 + $0x198] sm:$0xff]
    %v1549 = vld [vmem:[%s1496 + $0x1a0] sm:$0xff]
    %v1550 = vld [vmem:[%s1496 + $0x1a8] sm:$0xff]
    %v1551 = vld [vmem:[%s1496 + $0x1b0] sm:$0xff]
    %v1552 = vld [vmem:[%s1496 + $0x1b8] sm:$0xff]
    %v1553 = vld [vmem:[%s1496 + $0x1c0] sm:$0xff]
    %v1554 = vld [vmem:[%s1496 + $0x1c8] sm:$0xff]
    %v1555 = vld [vmem:[%s1496 + $0x1d0] sm:$0xff]
    %v1556 = vld [vmem:[%s1496 + $0x1d8] sm:$0xff]
    %v1557 = vld [vmem:[%s1496 + $0x1e0] sm:$0xff]
    %v1558 = vld [vmem:[%s1496 + $0x1e8] sm:$0xff]
    %v1559 = vld [vmem:[%s1496 + $0x1f0] sm:$0xff]
    %v1560 = vld [vmem:[%s1496 + $0x1f8] sm:$0xff]
    %1561 = vmatprep.subr.mxu0 0.0
    %1562 = vmatpush1.msra.mxu0 %v1497
    %1563 = vmatprep.subr.mxu0 0.0
    %1564 = vmatpush1.msra.mxu0 %v1498
    %1565 = vmatprep.subr.mxu0 0.0
    %1566 = vmatpush1.msra.mxu0 %v1499
    %1567 = vmatprep.subr.mxu0 0.0
    %1568 = vmatpush1.msra.mxu0 %v1500
    %1569 = vmatprep.subr.mxu0 0.0
    %1570 = vmatpush1.msra.mxu0 %v1501
    %1571 = vmatprep.subr.mxu0 0.0
    %1572 = vmatpush1.msra.mxu0 %v1502
    %1573 = vmatprep.subr.mxu0 0.0
    %1574 = vmatpush1.msra.mxu0 %v1503
    %1575 = vmatprep.subr.mxu0 0.0
    %1576 = vmatpush1.msra.mxu0 %v1504
    %1577 = vmatprep.subr.mxu0 0.0
    %1578 = vmatpush1.msra.mxu0 %v1505
    %1579 = vmatprep.subr.mxu0 0.0
    %1580 = vmatpush1.msra.mxu0 %v1506
    %1581 = vmatprep.subr.mxu0 0.0
    %1582 = vmatpush1.msra.mxu0 %v1507
    %1583 = vmatprep.subr.mxu0 0.0
    %1584 = vmatpush1.msra.mxu0 %v1508
    %1585 = vmatprep.subr.mxu0 0.0
    %1586 = vmatpush1.msra.mxu0 %v1509
    %1587 = vmatprep.subr.mxu0 0.0
    %1588 = vmatpush1.msra.mxu0 %v1510
    %1589 = vmatprep.subr.mxu0 0.0
    %1590 = vmatpush1.msra.mxu0 %v1511
    %1591 = vmatprep.subr.mxu0 0.0
    %1592 = vmatpush1.msra.mxu0 %v1512
    %1593 = vmatprep.subr.mxu0 0.0
    %1594 = vmatpush1.msra.mxu0 %v1513
    %1595 = vmatprep.subr.mxu0 0.0
    %1596 = vmatpush1.msra.mxu0 %v1514
    %1597 = vmatprep.subr.mxu0 0.0
    %1598 = vmatpush1.msra.mxu0 %v1515
    %1599 = vmatprep.subr.mxu0 0.0
    %1600 = vmatpush1.msra.mxu0 %v1516
    %1601 = vmatprep.subr.mxu0 0.0
    %1602 = vmatpush1.msra.mxu0 %v1517
    %1603 = vmatprep.subr.mxu0 0.0
    %1604 = vmatpush1.msra.mxu0 %v1518
    %1605 = vmatprep.subr.mxu0 0.0
    %1606 = vmatpush1.msra.mxu0 %v1519
    %1607 = vmatprep.subr.mxu0 0.0
    %1608 = vmatpush1.msra.mxu0 %v1520
    %1609 = vmatprep.subr.mxu0 0.0
    %1610 = vmatpush1.msra.mxu0 %v1521
    %1611 = vmatprep.subr.mxu0 0.0
    %1612 = vmatpush1.msra.mxu0 %v1522
    %1613 = vmatprep.subr.mxu0 0.0
    %1614 = vmatpush1.msra.mxu0 %v1523
    %1615 = vmatprep.subr.mxu0 0.0
    %1616 = vmatpush1.msra.mxu0 %v1524
    %1617 = vmatprep.subr.mxu0 0.0
    %1618 = vmatpush1.msra.mxu0 %v1525
    %1619 = vmatprep.subr.mxu0 0.0
    %1620 = vmatpush1.msra.mxu0 %v1526
    %1621 = vmatprep.subr.mxu0 0.0
    %1622 = vmatpush1.msra.mxu0 %v1527
    %1623 = vmatprep.subr.mxu0 0.0
    %1624 = vmatpush1.msra.mxu0 %v1528
    %1625 = vmatprep.mubr.f32.mxu0 %v138
    %1626 = vmatmul.mubr.f32.gmra.mrb[0].mxu0 %v70
    %v1627 = vpop.f32.mrb[0].mxu0
    %v1628 = vadd.f32 0.0, %v1627
    %v1629 = vpop.f32.mrb[0].mxu0
    %1630 = vdwg.mxu0
    %1631 = vmatprep.subr.mxu0 0.0
    %1632 = vmatpush1.msra.mxu0 %v1529
    %1633 = vmatprep.subr.mxu0 0.0
    %1634 = vmatpush1.msra.mxu0 %v1530
    %1635 = vmatprep.subr.mxu0 0.0
    %1636 = vmatpush1.msra.mxu0 %v1531
    %1637 = vmatprep.subr.mxu0 0.0
    %1638 = vmatpush1.msra.mxu0 %v1532
    %1639 = vmatprep.subr.mxu0 0.0
    %1640 = vmatpush1.msra.mxu0 %v1533
    %1641 = vmatprep.subr.mxu0 0.0
    %1642 = vmatpush1.msra.mxu0 %v1534
    %1643 = vmatprep.subr.mxu0 0.0
    %1644 = vmatpush1.msra.mxu0 %v1535
    %1645 = vmatprep.subr.mxu0 0.0
    %1646 = vmatpush1.msra.mxu0 %v1536
    %1647 = vmatprep.subr.mxu0 0.0
    %1648 = vmatpush1.msra.mxu0 %v1537
    %1649 = vmatprep.subr.mxu0 0.0
    %1650 = vmatpush1.msra.mxu0 %v1538
    %1651 = vmatprep.subr.mxu0 0.0
    %1652 = vmatpush1.msra.mxu0 %v1539
    %1653 = vmatprep.subr.mxu0 0.0
    %1654 = vmatpush1.msra.mxu0 %v1540
    %1655 = vmatprep.subr.mxu0 0.0
    %1656 = vmatpush1.msra.mxu0 %v1541
    %1657 = vmatprep.subr.mxu0 0.0
    %1658 = vmatpush1.msra.mxu0 %v1542
    %1659 = vmatprep.subr.mxu0 0.0
    %1660 = vmatpush1.msra.mxu0 %v1543
    %1661 = vmatprep.subr.mxu0 0.0
    %1662 = vmatpush1.msra.mxu0 %v1544
    %1663 = vmatprep.subr.mxu0 0.0
    %1664 = vmatpush1.msra.mxu0 %v1545
    %1665 = vmatprep.subr.mxu0 0.0
    %1666 = vmatpush1.msra.mxu0 %v1546
    %1667 = vmatprep.subr.mxu0 0.0
    %1668 = vmatpush1.msra.mxu0 %v1547
    %1669 = vmatprep.subr.mxu0 0.0
    %1670 = vmatpush1.msra.mxu0 %v1548
    %1671 = vmatprep.subr.mxu0 0.0
    %1672 = vmatpush1.msra.mxu0 %v1549
    %1673 = vmatprep.subr.mxu0 0.0
    %1674 = vmatpush1.msra.mxu0 %v1550
    %1675 = vmatprep.subr.mxu0 0.0
    %1676 = vmatpush1.msra.mxu0 %v1551
    %1677 = vmatprep.subr.mxu0 0.0
    %1678 = vmatpush1.msra.mxu0 %v1552
    %1679 = vmatprep.subr.mxu0 0.0
    %1680 = vmatpush1.msra.mxu0 %v1553
    %1681 = vmatprep.subr.mxu0 0.0
    %1682 = vmatpush1.msra.mxu0 %v1554
    %1683 = vmatprep.subr.mxu0 0.0
    %1684 = vmatpush1.msra.mxu0 %v1555
    %1685 = vmatprep.subr.mxu0 0.0
    %1686 = vmatpush1.msra.mxu0 %v1556
    %1687 = vmatprep.subr.mxu0 0.0
    %1688 = vmatpush1.msra.mxu0 %v1557
    %1689 = vmatprep.subr.mxu0 0.0
    %1690 = vmatpush1.msra.mxu0 %v1558
    %1691 = vmatprep.subr.mxu0 0.0
    %1692 = vmatpush1.msra.mxu0 %v1559
    %1693 = vmatprep.subr.mxu0 0.0
    %1694 = vmatpush1.msra.mxu0 %v1560
    %1695 = vmatprep.mubr.f32.mxu0 %v139
    %1696 = vmatmul.mubr.f32.gmra.mrb[0].mxu0 %v71
    %v1697 = vpop.f32.mrb[0].mxu0
    %v1698 = vadd.f32 %v1628, %v1697
    %v1699 = vpop.f32.mrb[0].mxu0
    %1700 = vdwg.mxu0
    %s1701 = scalar_lea.vmem %s2, 40
    %v1702 = vld [vmem:[%s1701] sm:$0xff]
    %v1704 = vsel %vm490, %v1702, 0
    %v1707 = vsel %vm494, %v1698, 0
    %1709 = vmatprep.subr.mxu0 0.0
    %1710 = vmatpush1.msra.mxu0 %v1707
    %1711 = vmatprep.subr.mxu0 0.0
    %1712 = vmatpush1.msra.mxu0 0.0
    %1713 = vmatprep.subr.mxu0 0.0
    %1714 = vmatpush1.msra.mxu0 0.0
    %1715 = vmatprep.subr.mxu0 0.0
    %1716 = vmatpush1.msra.mxu0 0.0
    %1717 = vmatprep.subr.mxu0 0.0
    %1718 = vmatpush1.msra.mxu0 0.0
    %1719 = vmatprep.subr.mxu0 0.0
    %1720 = vmatpush1.msra.mxu0 0.0
    %1721 = vmatprep.subr.mxu0 0.0
    %1722 = vmatpush1.msra.mxu0 0.0
    %1723 = vmatprep.subr.mxu0 0.0
    %1724 = vmatpush1.msra.mxu0 0.0
    %1725 = vmatprep.subr.mxu0 0.0
    %1726 = vmatpush1.msra.mxu0 0.0
    %1727 = vmatprep.subr.mxu0 0.0
    %1728 = vmatpush1.msra.mxu0 0.0
    %1729 = vmatprep.subr.mxu0 0.0
    %1730 = vmatpush1.msra.mxu0 0.0
    %1731 = vmatprep.subr.mxu0 0.0
    %1732 = vmatpush1.msra.mxu0 0.0
    %1733 = vmatprep.subr.mxu0 0.0
    %1734 = vmatpush1.msra.mxu0 0.0
    %1735 = vmatprep.subr.mxu0 0.0
    %1736 = vmatpush1.msra.mxu0 0.0
    %1737 = vmatprep.subr.mxu0 0.0
    %1738 = vmatpush1.msra.mxu0 0.0
    %1739 = vmatprep.subr.mxu0 0.0
    %1740 = vmatpush1.msra.mxu0 0.0
    %1741 = vmatprep.subr.mxu0 0.0
    %1742 = vmatpush1.msra.mxu0 0.0
    %1743 = vmatprep.subr.mxu0 0.0
    %1744 = vmatpush1.msra.mxu0 0.0
    %1745 = vmatprep.subr.mxu0 0.0
    %1746 = vmatpush1.msra.mxu0 0.0
    %1747 = vmatprep.subr.mxu0 0.0
    %1748 = vmatpush1.msra.mxu0 0.0
    %1749 = vmatprep.subr.mxu0 0.0
    %1750 = vmatpush1.msra.mxu0 0.0
    %1751 = vmatprep.subr.mxu0 0.0
    %1752 = vmatpush1.msra.mxu0 0.0
    %1753 = vmatprep.subr.mxu0 0.0
    %1754 = vmatpush1.msra.mxu0 0.0
    %1755 = vmatprep.subr.mxu0 0.0
    %1756 = vmatpush1.msra.mxu0 0.0
    %1757 = vmatprep.subr.mxu0 0.0
    %1758 = vmatpush1.msra.mxu0 0.0
    %1759 = vmatprep.subr.mxu0 0.0
    %1760 = vmatpush1.msra.mxu0 0.0
    %1761 = vmatprep.subr.mxu0 0.0
    %1762 = vmatpush1.msra.mxu0 0.0
    %1763 = vmatprep.subr.mxu0 0.0
    %1764 = vmatpush1.msra.mxu0 0.0
    %1765 = vmatprep.subr.mxu0 0.0
    %1766 = vmatpush1.msra.mxu0 0.0
    %1767 = vmatprep.subr.mxu0 0.0
    %1768 = vmatpush1.msra.mxu0 0.0
    %1769 = vmatprep.subr.mxu0 0.0
    %1770 = vmatpush1.msra.mxu0 0.0
    %1771 = vmatprep.subr.mxu0 0.0
    %1772 = vmatpush1.msra.mxu0 0.0
    %1773 = vmatprep.mubr.f32.mxu0 0.0
    %1774 = vmatmul.mubr.f32.gmra.mrb[0].mxu0 %v1704
    %v1775 = vpop.f32.mrb[0].mxu0
    %v1776 = vadd.f32 0.0, %v1775
    %v1777 = vpop.f32.mrb[0].mxu0
    %1778 = vdwg.mxu0
    %v1779 = vadd.f32 %v1495, %v1776
    %s1780 = scalar_lea.vmem [#allocation3], 3072
    %v1781 = vld [vmem:[%s1780] sm:$0xff]
    %v1782 = vld [vmem:[%s1780 + $0x8] sm:$0xff]
    %v1783 = vld [vmem:[%s1780 + $0x10] sm:$0xff]
    %v1784 = vld [vmem:[%s1780 + $0x18] sm:$0xff]
    %v1785 = vld [vmem:[%s1780 + $0x20] sm:$0xff]
    %v1786 = vld [vmem:[%s1780 + $0x28] sm:$0xff]
    %v1787 = vld [vmem:[%s1780 + $0x30] sm:$0xff]
    %v1788 = vld [vmem:[%s1780 + $0x38] sm:$0xff]
    %v1789 = vld [vmem:[%s1780 + $0x40] sm:$0xff]
    %v1790 = vld [vmem:[%s1780 + $0x48] sm:$0xff]
    %v1791 = vld [vmem:[%s1780 + $0x50] sm:$0xff]
    %v1792 = vld [vmem:[%s1780 + $0x58] sm:$0xff]
    %v1793 = vld [vmem:[%s1780 + $0x60] sm:$0xff]
    %v1794 = vld [vmem:[%s1780 + $0x68] sm:$0xff]
    %v1795 = vld [vmem:[%s1780 + $0x70] sm:$0xff]
    %v1796 = vld [vmem:[%s1780 + $0x78] sm:$0xff]
    %v1797 = vld [vmem:[%s1780 + $0x80] sm:$0xff]
    %v1798 = vld [vmem:[%s1780 + $0x88] sm:$0xff]
    %v1799 = vld [vmem:[%s1780 + $0x90] sm:$0xff]
    %v1800 = vld [vmem:[%s1780 + $0x98] sm:$0xff]
    %v1801 = vld [vmem:[%s1780 + $0xa0] sm:$0xff]
    %v1802 = vld [vmem:[%s1780 + $0xa8] sm:$0xff]
    %v1803 = vld [vmem:[%s1780 + $0xb0] sm:$0xff]
    %v1804 = vld [vmem:[%s1780 + $0xb8] sm:$0xff]
    %v1805 = vld [vmem:[%s1780 + $0xc0] sm:$0xff]
    %v1806 = vld [vmem:[%s1780 + $0xc8] sm:$0xff]
    %v1807 = vld [vmem:[%s1780 + $0xd0] sm:$0xff]
    %v1808 = vld [vmem:[%s1780 + $0xd8] sm:$0xff]
    %v1809 = vld [vmem:[%s1780 + $0xe0] sm:$0xff]
    %v1810 = vld [vmem:[%s1780 + $0xe8] sm:$0xff]
    %v1811 = vld [vmem:[%s1780 + $0xf0] sm:$0xff]
    %v1812 = vld [vmem:[%s1780 + $0xf8] sm:$0xff]
    %v1813 = vld [vmem:[%s1780 + $0x100] sm:$0xff]
    %v1814 = vld [vmem:[%s1780 + $0x108] sm:$0xff]
    %v1815 = vld [vmem:[%s1780 + $0x110] sm:$0xff]
    %v1816 = vld [vmem:[%s1780 + $0x118] sm:$0xff]
    %v1817 = vld [vmem:[%s1780 + $0x120] sm:$0xff]
    %v1818 = vld [vmem:[%s1780 + $0x128] sm:$0xff]
    %v1819 = vld [vmem:[%s1780 + $0x130] sm:$0xff]
    %v1820 = vld [vmem:[%s1780 + $0x138] sm:$0xff]
    %v1821 = vld [vmem:[%s1780 + $0x140] sm:$0xff]
    %v1822 = vld [vmem:[%s1780 + $0x148] sm:$0xff]
    %v1823 = vld [vmem:[%s1780 + $0x150] sm:$0xff]
    %v1824 = vld [vmem:[%s1780 + $0x158] sm:$0xff]
    %v1825 = vld [vmem:[%s1780 + $0x160] sm:$0xff]
    %v1826 = vld [vmem:[%s1780 + $0x168] sm:$0xff]
    %v1827 = vld [vmem:[%s1780 + $0x170] sm:$0xff]
    %v1828 = vld [vmem:[%s1780 + $0x178] sm:$0xff]
    %v1829 = vld [vmem:[%s1780 + $0x180] sm:$0xff]
    %v1830 = vld [vmem:[%s1780 + $0x188] sm:$0xff]
    %v1831 = vld [vmem:[%s1780 + $0x190] sm:$0xff]
    %v1832 = vld [vmem:[%s1780 + $0x198] sm:$0xff]
    %v1833 = vld [vmem:[%s1780 + $0x1a0] sm:$0xff]
    %v1834 = vld [vmem:[%s1780 + $0x1a8] sm:$0xff]
    %v1835 = vld [vmem:[%s1780 + $0x1b0] sm:$0xff]
    %v1836 = vld [vmem:[%s1780 + $0x1b8] sm:$0xff]
    %v1837 = vld [vmem:[%s1780 + $0x1c0] sm:$0xff]
    %v1838 = vld [vmem:[%s1780 + $0x1c8] sm:$0xff]
    %v1839 = vld [vmem:[%s1780 + $0x1d0] sm:$0xff]
    %v1840 = vld [vmem:[%s1780 + $0x1d8] sm:$0xff]
    %v1841 = vld [vmem:[%s1780 + $0x1e0] sm:$0xff]
    %v1842 = vld [vmem:[%s1780 + $0x1e8] sm:$0xff]
    %v1843 = vld [vmem:[%s1780 + $0x1f0] sm:$0xff]
    %v1844 = vld [vmem:[%s1780 + $0x1f8] sm:$0xff]
    %1845 = vmatprep.subr.mxu0 0.0
    %1846 = vmatpush1.msra.mxu0 %v1781
    %1847 = vmatprep.subr.mxu0 0.0
    %1848 = vmatpush1.msra.mxu0 %v1782
    %1849 = vmatprep.subr.mxu0 0.0
    %1850 = vmatpush1.msra.mxu0 %v1783
    %1851 = vmatprep.subr.mxu0 0.0
    %1852 = vmatpush1.msra.mxu0 %v1784
    %1853 = vmatprep.subr.mxu0 0.0
    %1854 = vmatpush1.msra.mxu0 %v1785
    %1855 = vmatprep.subr.mxu0 0.0
    %1856 = vmatpush1.msra.mxu0 %v1786
    %1857 = vmatprep.subr.mxu0 0.0
    %1858 = vmatpush1.msra.mxu0 %v1787
    %1859 = vmatprep.subr.mxu0 0.0
    %1860 = vmatpush1.msra.mxu0 %v1788
    %1861 = vmatprep.subr.mxu0 0.0
    %1862 = vmatpush1.msra.mxu0 %v1789
    %1863 = vmatprep.subr.mxu0 0.0
    %1864 = vmatpush1.msra.mxu0 %v1790
    %1865 = vmatprep.subr.mxu0 0.0
    %1866 = vmatpush1.msra.mxu0 %v1791
    %1867 = vmatprep.subr.mxu0 0.0
    %1868 = vmatpush1.msra.mxu0 %v1792
    %1869 = vmatprep.subr.mxu0 0.0
    %1870 = vmatpush1.msra.mxu0 %v1793
    %1871 = vmatprep.subr.mxu0 0.0
    %1872 = vmatpush1.msra.mxu0 %v1794
    %1873 = vmatprep.subr.mxu0 0.0
    %1874 = vmatpush1.msra.mxu0 %v1795
    %1875 = vmatprep.subr.mxu0 0.0
    %1876 = vmatpush1.msra.mxu0 %v1796
    %1877 = vmatprep.subr.mxu0 0.0
    %1878 = vmatpush1.msra.mxu0 %v1797
    %1879 = vmatprep.subr.mxu0 0.0
    %1880 = vmatpush1.msra.mxu0 %v1798
    %1881 = vmatprep.subr.mxu0 0.0
    %1882 = vmatpush1.msra.mxu0 %v1799
    %1883 = vmatprep.subr.mxu0 0.0
    %1884 = vmatpush1.msra.mxu0 %v1800
    %1885 = vmatprep.subr.mxu0 0.0
    %1886 = vmatpush1.msra.mxu0 %v1801
    %1887 = vmatprep.subr.mxu0 0.0
    %1888 = vmatpush1.msra.mxu0 %v1802
    %1889 = vmatprep.subr.mxu0 0.0
    %1890 = vmatpush1.msra.mxu0 %v1803
    %1891 = vmatprep.subr.mxu0 0.0
    %1892 = vmatpush1.msra.mxu0 %v1804
    %1893 = vmatprep.subr.mxu0 0.0
    %1894 = vmatpush1.msra.mxu0 %v1805
    %1895 = vmatprep.subr.mxu0 0.0
    %1896 = vmatpush1.msra.mxu0 %v1806
    %1897 = vmatprep.subr.mxu0 0.0
    %1898 = vmatpush1.msra.mxu0 %v1807
    %1899 = vmatprep.subr.mxu0 0.0
    %1900 = vmatpush1.msra.mxu0 %v1808
    %1901 = vmatprep.subr.mxu0 0.0
    %1902 = vmatpush1.msra.mxu0 %v1809
    %1903 = vmatprep.subr.mxu0 0.0
    %1904 = vmatpush1.msra.mxu0 %v1810
    %1905 = vmatprep.subr.mxu0 0.0
    %1906 = vmatpush1.msra.mxu0 %v1811
    %1907 = vmatprep.subr.mxu0 0.0
    %1908 = vmatpush1.msra.mxu0 %v1812
    %1909 = vmatprep.mubr.f32.mxu0 %v138
    %1910 = vmatmul.mubr.f32.gmra.mrb[0].mxu0 %v70
    %v1911 = vpop.f32.mrb[0].mxu0
    %v1912 = vadd.f32 0.0, %v1911
    %v1913 = vpop.f32.mrb[0].mxu0
    %1914 = vdwg.mxu0
    %1915 = vmatprep.subr.mxu0 0.0
    %1916 = vmatpush1.msra.mxu0 %v1813
    %1917 = vmatprep.subr.mxu0 0.0
    %1918 = vmatpush1.msra.mxu0 %v1814
    %1919 = vmatprep.subr.mxu0 0.0
    %1920 = vmatpush1.msra.mxu0 %v1815
    %1921 = vmatprep.subr.mxu0 0.0
    %1922 = vmatpush1.msra.mxu0 %v1816
    %1923 = vmatprep.subr.mxu0 0.0
    %1924 = vmatpush1.msra.mxu0 %v1817
    %1925 = vmatprep.subr.mxu0 0.0
    %1926 = vmatpush1.msra.mxu0 %v1818
    %1927 = vmatprep.subr.mxu0 0.0
    %1928 = vmatpush1.msra.mxu0 %v1819
    %1929 = vmatprep.subr.mxu0 0.0
    %1930 = vmatpush1.msra.mxu0 %v1820
    %1931 = vmatprep.subr.mxu0 0.0
    %1932 = vmatpush1.msra.mxu0 %v1821
    %1933 = vmatprep.subr.mxu0 0.0
    %1934 = vmatpush1.msra.mxu0 %v1822
    %1935 = vmatprep.subr.mxu0 0.0
    %1936 = vmatpush1.msra.mxu0 %v1823
    %1937 = vmatprep.subr.mxu0 0.0
    %1938 = vmatpush1.msra.mxu0 %v1824
    %1939 = vmatprep.subr.mxu0 0.0
    %1940 = vmatpush1.msra.mxu0 %v1825
    %1941 = vmatprep.subr.mxu0 0.0
    %1942 = vmatpush1.msra.mxu0 %v1826
    %1943 = vmatprep.subr.mxu0 0.0
    %1944 = vmatpush1.msra.mxu0 %v1827
    %1945 = vmatprep.subr.mxu0 0.0
    %1946 = vmatpush1.msra.mxu0 %v1828
    %1947 = vmatprep.subr.mxu0 0.0
    %1948 = vmatpush1.msra.mxu0 %v1829
    %1949 = vmatprep.subr.mxu0 0.0
    %1950 = vmatpush1.msra.mxu0 %v1830
    %1951 = vmatprep.subr.mxu0 0.0
    %1952 = vmatpush1.msra.mxu0 %v1831
    %1953 = vmatprep.subr.mxu0 0.0
    %1954 = vmatpush1.msra.mxu0 %v1832
    %1955 = vmatprep.subr.mxu0 0.0
    %1956 = vmatpush1.msra.mxu0 %v1833
    %1957 = vmatprep.subr.mxu0 0.0
    %1958 = vmatpush1.msra.mxu0 %v1834
    %1959 = vmatprep.subr.mxu0 0.0
    %1960 = vmatpush1.msra.mxu0 %v1835
    %1961 = vmatprep.subr.mxu0 0.0
    %1962 = vmatpush1.msra.mxu0 %v1836
    %1963 = vmatprep.subr.mxu0 0.0
    %1964 = vmatpush1.msra.mxu0 %v1837
    %1965 = vmatprep.subr.mxu0 0.0
    %1966 = vmatpush1.msra.mxu0 %v1838
    %1967 = vmatprep.subr.mxu0 0.0
    %1968 = vmatpush1.msra.mxu0 %v1839
    %1969 = vmatprep.subr.mxu0 0.0
    %1970 = vmatpush1.msra.mxu0 %v1840
    %1971 = vmatprep.subr.mxu0 0.0
    %1972 = vmatpush1.msra.mxu0 %v1841
    %1973 = vmatprep.subr.mxu0 0.0
    %1974 = vmatpush1.msra.mxu0 %v1842
    %1975 = vmatprep.subr.mxu0 0.0
    %1976 = vmatpush1.msra.mxu0 %v1843
    %1977 = vmatprep.subr.mxu0 0.0
    %1978 = vmatpush1.msra.mxu0 %v1844
    %1979 = vmatprep.mubr.f32.mxu0 %v139
    %1980 = vmatmul.mubr.f32.gmra.mrb[0].mxu0 %v71
    %v1981 = vpop.f32.mrb[0].mxu0
    %v1982 = vadd.f32 %v1912, %v1981
    %v1983 = vpop.f32.mrb[0].mxu0
    %1984 = vdwg.mxu0
    %s1985 = scalar_lea.vmem %s2, 48
    %v1986 = vld [vmem:[%s1985] sm:$0xff]
    %v1988 = vsel %vm490, %v1986, 0
    %v1991 = vsel %vm494, %v1982, 0
    %1993 = vmatprep.subr.mxu0 0.0
    %1994 = vmatpush1.msra.mxu0 %v1991
    %1995 = vmatprep.subr.mxu0 0.0
    %1996 = vmatpush1.msra.mxu0 0.0
    %1997 = vmatprep.subr.mxu0 0.0
    %1998 = vmatpush1.msra.mxu0 0.0
    %1999 = vmatprep.subr.mxu0 0.0
    %2000 = vmatpush1.msra.mxu0 0.0
    %2001 = vmatprep.subr.mxu0 0.0
    %2002 = vmatpush1.msra.mxu0 0.0
    %2003 = vmatprep.subr.mxu0 0.0
    %2004 = vmatpush1.msra.mxu0 0.0
    %2005 = vmatprep.subr.mxu0 0.0
    %2006 = vmatpush1.msra.mxu0 0.0
    %2007 = vmatprep.subr.mxu0 0.0
    %2008 = vmatpush1.msra.mxu0 0.0
    %2009 = vmatprep.subr.mxu0 0.0
    %2010 = vmatpush1.msra.mxu0 0.0
    %2011 = vmatprep.subr.mxu0 0.0
    %2012 = vmatpush1.msra.mxu0 0.0
    %2013 = vmatprep.subr.mxu0 0.0
    %2014 = vmatpush1.msra.mxu0 0.0
    %2015 = vmatprep.subr.mxu0 0.0
    %2016 = vmatpush1.msra.mxu0 0.0
    %2017 = vmatprep.subr.mxu0 0.0
    %2018 = vmatpush1.msra.mxu0 0.0
    %2019 = vmatprep.subr.mxu0 0.0
    %2020 = vmatpush1.msra.mxu0 0.0
    %2021 = vmatprep.subr.mxu0 0.0
    %2022 = vmatpush1.msra.mxu0 0.0
    %2023 = vmatprep.subr.mxu0 0.0
    %2024 = vmatpush1.msra.mxu0 0.0
    %2025 = vmatprep.subr.mxu0 0.0
    %2026 = vmatpush1.msra.mxu0 0.0
    %2027 = vmatprep.subr.mxu0 0.0
    %2028 = vmatpush1.msra.mxu0 0.0
    %2029 = vmatprep.subr.mxu0 0.0
    %2030 = vmatpush1.msra.mxu0 0.0
    %2031 = vmatprep.subr.mxu0 0.0
    %2032 = vmatpush1.msra.mxu0 0.0
    %2033 = vmatprep.subr.mxu0 0.0
    %2034 = vmatpush1.msra.mxu0 0.0
    %2035 = vmatprep.subr.mxu0 0.0
    %2036 = vmatpush1.msra.mxu0 0.0
    %2037 = vmatprep.subr.mxu0 0.0
    %2038 = vmatpush1.msra.mxu0 0.0
    %2039 = vmatprep.subr.mxu0 0.0
    %2040 = vmatpush1.msra.mxu0 0.0
    %2041 = vmatprep.subr.mxu0 0.0
    %2042 = vmatpush1.msra.mxu0 0.0
    %2043 = vmatprep.subr.mxu0 0.0
    %2044 = vmatpush1.msra.mxu0 0.0
    %2045 = vmatprep.subr.mxu0 0.0
    %2046 = vmatpush1.msra.mxu0 0.0
    %2047 = vmatprep.subr.mxu0 0.0
    %2048 = vmatpush1.msra.mxu0 0.0
    %2049 = vmatprep.subr.mxu0 0.0
    %2050 = vmatpush1.msra.mxu0 0.0
    %2051 = vmatprep.subr.mxu0 0.0
    %2052 = vmatpush1.msra.mxu0 0.0
    %2053 = vmatprep.subr.mxu0 0.0
    %2054 = vmatpush1.msra.mxu0 0.0
    %2055 = vmatprep.subr.mxu0 0.0
    %2056 = vmatpush1.msra.mxu0 0.0
    %2057 = vmatprep.mubr.f32.mxu0 0.0
    %2058 = vmatmul.mubr.f32.gmra.mrb[0].mxu0 %v1988
    %v2059 = vpop.f32.mrb[0].mxu0
    %v2060 = vadd.f32 0.0, %v2059
    %v2061 = vpop.f32.mrb[0].mxu0
    %2062 = vdwg.mxu0
    %v2063 = vadd.f32 %v1779, %v2060
    %s2064 = scalar_lea.vmem [#allocation3], 3584
    %v2065 = vld [vmem:[%s2064] sm:$0xff]
    %v2066 = vld [vmem:[%s2064 + $0x8] sm:$0xff]
    %v2067 = vld [vmem:[%s2064 + $0x10] sm:$0xff]
    %v2068 = vld [vmem:[%s2064 + $0x18] sm:$0xff]
    %v2069 = vld [vmem:[%s2064 + $0x20] sm:$0xff]
    %v2070 = vld [vmem:[%s2064 + $0x28] sm:$0xff]
    %v2071 = vld [vmem:[%s2064 + $0x30] sm:$0xff]
    %v2072 = vld [vmem:[%s2064 + $0x38] sm:$0xff]
    %v2073 = vld [vmem:[%s2064 + $0x40] sm:$0xff]
    %v2074 = vld [vmem:[%s2064 + $0x48] sm:$0xff]
    %v2075 = vld [vmem:[%s2064 + $0x50] sm:$0xff]
    %v2076 = vld [vmem:[%s2064 + $0x58] sm:$0xff]
    %v2077 = vld [vmem:[%s2064 + $0x60] sm:$0xff]
    %v2078 = vld [vmem:[%s2064 + $0x68] sm:$0xff]
    %v2079 = vld [vmem:[%s2064 + $0x70] sm:$0xff]
    %v2080 = vld [vmem:[%s2064 + $0x78] sm:$0xff]
    %v2081 = vld [vmem:[%s2064 + $0x80] sm:$0xff]
    %v2082 = vld [vmem:[%s2064 + $0x88] sm:$0xff]
    %v2083 = vld [vmem:[%s2064 + $0x90] sm:$0xff]
    %v2084 = vld [vmem:[%s2064 + $0x98] sm:$0xff]
    %v2085 = vld [vmem:[%s2064 + $0xa0] sm:$0xff]
    %v2086 = vld [vmem:[%s2064 + $0xa8] sm:$0xff]
    %v2087 = vld [vmem:[%s2064 + $0xb0] sm:$0xff]
    %v2088 = vld [vmem:[%s2064 + $0xb8] sm:$0xff]
    %v2089 = vld [vmem:[%s2064 + $0xc0] sm:$0xff]
    %v2090 = vld [vmem:[%s2064 + $0xc8] sm:$0xff]
    %v2091 = vld [vmem:[%s2064 + $0xd0] sm:$0xff]
    %v2092 = vld [vmem:[%s2064 + $0xd8] sm:$0xff]
    %v2093 = vld [vmem:[%s2064 + $0xe0] sm:$0xff]
    %v2094 = vld [vmem:[%s2064 + $0xe8] sm:$0xff]
    %v2095 = vld [vmem:[%s2064 + $0xf0] sm:$0xff]
    %v2096 = vld [vmem:[%s2064 + $0xf8] sm:$0xff]
    %v2097 = vld [vmem:[%s2064 + $0x100] sm:$0xff]
    %v2098 = vld [vmem:[%s2064 + $0x108] sm:$0xff]
    %v2099 = vld [vmem:[%s2064 + $0x110] sm:$0xff]
    %v2100 = vld [vmem:[%s2064 + $0x118] sm:$0xff]
    %v2101 = vld [vmem:[%s2064 + $0x120] sm:$0xff]
    %v2102 = vld [vmem:[%s2064 + $0x128] sm:$0xff]
    %v2103 = vld [vmem:[%s2064 + $0x130] sm:$0xff]
    %v2104 = vld [vmem:[%s2064 + $0x138] sm:$0xff]
    %v2105 = vld [vmem:[%s2064 + $0x140] sm:$0xff]
    %v2106 = vld [vmem:[%s2064 + $0x148] sm:$0xff]
    %v2107 = vld [vmem:[%s2064 + $0x150] sm:$0xff]
    %v2108 = vld [vmem:[%s2064 + $0x158] sm:$0xff]
    %v2109 = vld [vmem:[%s2064 + $0x160] sm:$0xff]
    %v2110 = vld [vmem:[%s2064 + $0x168] sm:$0xff]
    %v2111 = vld [vmem:[%s2064 + $0x170] sm:$0xff]
    %v2112 = vld [vmem:[%s2064 + $0x178] sm:$0xff]
    %v2113 = vld [vmem:[%s2064 + $0x180] sm:$0xff]
    %v2114 = vld [vmem:[%s2064 + $0x188] sm:$0xff]
    %v2115 = vld [vmem:[%s2064 + $0x190] sm:$0xff]
    %v2116 = vld [vmem:[%s2064 + $0x198] sm:$0xff]
    %v2117 = vld [vmem:[%s2064 + $0x1a0] sm:$0xff]
    %v2118 = vld [vmem:[%s2064 + $0x1a8] sm:$0xff]
    %v2119 = vld [vmem:[%s2064 + $0x1b0] sm:$0xff]
    %v2120 = vld [vmem:[%s2064 + $0x1b8] sm:$0xff]
    %v2121 = vld [vmem:[%s2064 + $0x1c0] sm:$0xff]
    %v2122 = vld [vmem:[%s2064 + $0x1c8] sm:$0xff]
    %v2123 = vld [vmem:[%s2064 + $0x1d0] sm:$0xff]
    %v2124 = vld [vmem:[%s2064 + $0x1d8] sm:$0xff]
    %v2125 = vld [vmem:[%s2064 + $0x1e0] sm:$0xff]
    %v2126 = vld [vmem:[%s2064 + $0x1e8] sm:$0xff]
    %v2127 = vld [vmem:[%s2064 + $0x1f0] sm:$0xff]
    %v2128 = vld [vmem:[%s2064 + $0x1f8] sm:$0xff]
    %2129 = vmatprep.subr.mxu0 0.0
    %2130 = vmatpush1.msra.mxu0 %v2065
    %2131 = vmatprep.subr.mxu0 0.0
    %2132 = vmatpush1.msra.mxu0 %v2066
    %2133 = vmatprep.subr.mxu0 0.0
    %2134 = vmatpush1.msra.mxu0 %v2067
    %2135 = vmatprep.subr.mxu0 0.0
    %2136 = vmatpush1.msra.mxu0 %v2068
    %2137 = vmatprep.subr.mxu0 0.0
    %2138 = vmatpush1.msra.mxu0 %v2069
    %2139 = vmatprep.subr.mxu0 0.0
    %2140 = vmatpush1.msra.mxu0 %v2070
    %2141 = vmatprep.subr.mxu0 0.0
    %2142 = vmatpush1.msra.mxu0 %v2071
    %2143 = vmatprep.subr.mxu0 0.0
    %2144 = vmatpush1.msra.mxu0 %v2072
    %2145 = vmatprep.subr.mxu0 0.0
    %2146 = vmatpush1.msra.mxu0 %v2073
    %2147 = vmatprep.subr.mxu0 0.0
    %2148 = vmatpush1.msra.mxu0 %v2074
    %2149 = vmatprep.subr.mxu0 0.0
    %2150 = vmatpush1.msra.mxu0 %v2075
    %2151 = vmatprep.subr.mxu0 0.0
    %2152 = vmatpush1.msra.mxu0 %v2076
    %2153 = vmatprep.subr.mxu0 0.0
    %2154 = vmatpush1.msra.mxu0 %v2077
    %2155 = vmatprep.subr.mxu0 0.0
    %2156 = vmatpush1.msra.mxu0 %v2078
    %2157 = vmatprep.subr.mxu0 0.0
    %2158 = vmatpush1.msra.mxu0 %v2079
    %2159 = vmatprep.subr.mxu0 0.0
    %2160 = vmatpush1.msra.mxu0 %v2080
    %2161 = vmatprep.subr.mxu0 0.0
    %2162 = vmatpush1.msra.mxu0 %v2081
    %2163 = vmatprep.subr.mxu0 0.0
    %2164 = vmatpush1.msra.mxu0 %v2082
    %2165 = vmatprep.subr.mxu0 0.0
    %2166 = vmatpush1.msra.mxu0 %v2083
    %2167 = vmatprep.subr.mxu0 0.0
    %2168 = vmatpush1.msra.mxu0 %v2084
    %2169 = vmatprep.subr.mxu0 0.0
    %2170 = vmatpush1.msra.mxu0 %v2085
    %2171 = vmatprep.subr.mxu0 0.0
    %2172 = vmatpush1.msra.mxu0 %v2086
    %2173 = vmatprep.subr.mxu0 0.0
    %2174 = vmatpush1.msra.mxu0 %v2087
    %2175 = vmatprep.subr.mxu0 0.0
    %2176 = vmatpush1.msra.mxu0 %v2088
    %2177 = vmatprep.subr.mxu0 0.0
    %2178 = vmatpush1.msra.mxu0 %v2089
    %2179 = vmatprep.subr.mxu0 0.0
    %2180 = vmatpush1.msra.mxu0 %v2090
    %2181 = vmatprep.subr.mxu0 0.0
    %2182 = vmatpush1.msra.mxu0 %v2091
    %2183 = vmatprep.subr.mxu0 0.0
    %2184 = vmatpush1.msra.mxu0 %v2092
    %2185 = vmatprep.subr.mxu0 0.0
    %2186 = vmatpush1.msra.mxu0 %v2093
    %2187 = vmatprep.subr.mxu0 0.0
    %2188 = vmatpush1.msra.mxu0 %v2094
    %2189 = vmatprep.subr.mxu0 0.0
    %2190 = vmatpush1.msra.mxu0 %v2095
    %2191 = vmatprep.subr.mxu0 0.0
    %2192 = vmatpush1.msra.mxu0 %v2096
    %2193 = vmatprep.mubr.f32.mxu0 %v138
    %2194 = vmatmul.mubr.f32.gmra.mrb[0].mxu0 %v70
    %v2195 = vpop.f32.mrb[0].mxu0
    %v2196 = vadd.f32 0.0, %v2195
    %v2197 = vpop.f32.mrb[0].mxu0
    %2198 = vdwg.mxu0
    %2199 = vmatprep.subr.mxu0 0.0
    %2200 = vmatpush1.msra.mxu0 %v2097
    %2201 = vmatprep.subr.mxu0 0.0
    %2202 = vmatpush1.msra.mxu0 %v2098
    %2203 = vmatprep.subr.mxu0 0.0
    %2204 = vmatpush1.msra.mxu0 %v2099
    %2205 = vmatprep.subr.mxu0 0.0
    %2206 = vmatpush1.msra.mxu0 %v2100
    %2207 = vmatprep.subr.mxu0 0.0
    %2208 = vmatpush1.msra.mxu0 %v2101
    %2209 = vmatprep.subr.mxu0 0.0
    %2210 = vmatpush1.msra.mxu0 %v2102
    %2211 = vmatprep.subr.mxu0 0.0
    %2212 = vmatpush1.msra.mxu0 %v2103
    %2213 = vmatprep.subr.mxu0 0.0
    %2214 = vmatpush1.msra.mxu0 %v2104
    %2215 = vmatprep.subr.mxu0 0.0
    %2216 = vmatpush1.msra.mxu0 %v2105
    %2217 = vmatprep.subr.mxu0 0.0
    %2218 = vmatpush1.msra.mxu0 %v2106
    %2219 = vmatprep.subr.mxu0 0.0
    %2220 = vmatpush1.msra.mxu0 %v2107
    %2221 = vmatprep.subr.mxu0 0.0
    %2222 = vmatpush1.msra.mxu0 %v2108
    %2223 = vmatprep.subr.mxu0 0.0
    %2224 = vmatpush1.msra.mxu0 %v2109
    %2225 = vmatprep.subr.mxu0 0.0
    %2226 = vmatpush1.msra.mxu0 %v2110
    %2227 = vmatprep.subr.mxu0 0.0
    %2228 = vmatpush1.msra.mxu0 %v2111
    %2229 = vmatprep.subr.mxu0 0.0
    %2230 = vmatpush1.msra.mxu0 %v2112
    %2231 = vmatprep.subr.mxu0 0.0
    %2232 = vmatpush1.msra.mxu0 %v2113
    %2233 = vmatprep.subr.mxu0 0.0
    %2234 = vmatpush1.msra.mxu0 %v2114
    %2235 = vmatprep.subr.mxu0 0.0
    %2236 = vmatpush1.msra.mxu0 %v2115
    %2237 = vmatprep.subr.mxu0 0.0
    %2238 = vmatpush1.msra.mxu0 %v2116
    %2239 = vmatprep.subr.mxu0 0.0
    %2240 = vmatpush1.msra.mxu0 %v2117
    %2241 = vmatprep.subr.mxu0 0.0
    %2242 = vmatpush1.msra.mxu0 %v2118
    %2243 = vmatprep.subr.mxu0 0.0
    %2244 = vmatpush1.msra.mxu0 %v2119
    %2245 = vmatprep.subr.mxu0 0.0
    %2246 = vmatpush1.msra.mxu0 %v2120
    %2247 = vmatprep.subr.mxu0 0.0
    %2248 = vmatpush1.msra.mxu0 %v2121
    %2249 = vmatprep.subr.mxu0 0.0
    %2250 = vmatpush1.msra.mxu0 %v2122
    %2251 = vmatprep.subr.mxu0 0.0
    %2252 = vmatpush1.msra.mxu0 %v2123
    %2253 = vmatprep.subr.mxu0 0.0
    %2254 = vmatpush1.msra.mxu0 %v2124
    %2255 = vmatprep.subr.mxu0 0.0
    %2256 = vmatpush1.msra.mxu0 %v2125
    %2257 = vmatprep.subr.mxu0 0.0
    %2258 = vmatpush1.msra.mxu0 %v2126
    %2259 = vmatprep.subr.mxu0 0.0
    %2260 = vmatpush1.msra.mxu0 %v2127
    %2261 = vmatprep.subr.mxu0 0.0
    %2262 = vmatpush1.msra.mxu0 %v2128
    %2263 = vmatprep.mubr.f32.mxu0 %v139
    %2264 = vmatmul.mubr.f32.gmra.mrb[0].mxu0 %v71
    %v2265 = vpop.f32.mrb[0].mxu0
    %v2266 = vadd.f32 %v2196, %v2265
    %v2267 = vpop.f32.mrb[0].mxu0
    %2268 = vdwg.mxu0
    %s2269 = scalar_lea.vmem %s2, 56
    %v2270 = vld [vmem:[%s2269] sm:$0xff]
    %v2272 = vsel %vm490, %v2270, 0
    %v2275 = vsel %vm494, %v2266, 0
    %2277 = vmatprep.subr.mxu0 0.0
    %2278 = vmatpush1.msra.mxu0 %v2275
    %2279 = vmatprep.subr.mxu0 0.0
    %2280 = vmatpush1.msra.mxu0 0.0
    %2281 = vmatprep.subr.mxu0 0.0
    %2282 = vmatpush1.msra.mxu0 0.0
    %2283 = vmatprep.subr.mxu0 0.0
    %2284 = vmatpush1.msra.mxu0 0.0
    %2285 = vmatprep.subr.mxu0 0.0
    %2286 = vmatpush1.msra.mxu0 0.0
    %2287 = vmatprep.subr.mxu0 0.0
    %2288 = vmatpush1.msra.mxu0 0.0
    %2289 = vmatprep.subr.mxu0 0.0
    %2290 = vmatpush1.msra.mxu0 0.0
    %2291 = vmatprep.subr.mxu0 0.0
    %2292 = vmatpush1.msra.mxu0 0.0
    %2293 = vmatprep.subr.mxu0 0.0
    %2294 = vmatpush1.msra.mxu0 0.0
    %2295 = vmatprep.subr.mxu0 0.0
    %2296 = vmatpush1.msra.mxu0 0.0
    %2297 = vmatprep.subr.mxu0 0.0
    %2298 = vmatpush1.msra.mxu0 0.0
    %2299 = vmatprep.subr.mxu0 0.0
    %2300 = vmatpush1.msra.mxu0 0.0
    %2301 = vmatprep.subr.mxu0 0.0
    %2302 = vmatpush1.msra.mxu0 0.0
    %2303 = vmatprep.subr.mxu0 0.0
    %2304 = vmatpush1.msra.mxu0 0.0
    %2305 = vmatprep.subr.mxu0 0.0
    %2306 = vmatpush1.msra.mxu0 0.0
    %2307 = vmatprep.subr.mxu0 0.0
    %2308 = vmatpush1.msra.mxu0 0.0
    %2309 = vmatprep.subr.mxu0 0.0
    %2310 = vmatpush1.msra.mxu0 0.0
    %2311 = vmatprep.subr.mxu0 0.0
    %2312 = vmatpush1.msra.mxu0 0.0
    %2313 = vmatprep.subr.mxu0 0.0
    %2314 = vmatpush1.msra.mxu0 0.0
    %2315 = vmatprep.subr.mxu0 0.0
    %2316 = vmatpush1.msra.mxu0 0.0
    %2317 = vmatprep.subr.mxu0 0.0
    %2318 = vmatpush1.msra.mxu0 0.0
    %2319 = vmatprep.subr.mxu0 0.0
    %2320 = vmatpush1.msra.mxu0 0.0
    %2321 = vmatprep.subr.mxu0 0.0
    %2322 = vmatpush1.msra.mxu0 0.0
    %2323 = vmatprep.subr.mxu0 0.0
    %2324 = vmatpush1.msra.mxu0 0.0
    %2325 = vmatprep.subr.mxu0 0.0
    %2326 = vmatpush1.msra.mxu0 0.0
    %2327 = vmatprep.subr.mxu0 0.0
    %2328 = vmatpush1.msra.mxu0 0.0
    %2329 = vmatprep.subr.mxu0 0.0
    %2330 = vmatpush1.msra.mxu0 0.0
    %2331 = vmatprep.subr.mxu0 0.0
    %2332 = vmatpush1.msra.mxu0 0.0
    %2333 = vmatprep.subr.mxu0 0.0
    %2334 = vmatpush1.msra.mxu0 0.0
    %2335 = vmatprep.subr.mxu0 0.0
    %2336 = vmatpush1.msra.mxu0 0.0
    %2337 = vmatprep.subr.mxu0 0.0
    %2338 = vmatpush1.msra.mxu0 0.0
    %2339 = vmatprep.subr.mxu0 0.0
    %2340 = vmatpush1.msra.mxu0 0.0
    %2341 = vmatprep.mubr.f32.mxu0 0.0
    %2342 = vmatmul.mubr.f32.gmra.mrb[0].mxu0 %v2272
    %v2343 = vpop.f32.mrb[0].mxu0
    %v2344 = vadd.f32 0.0, %v2343
    %v2345 = vpop.f32.mrb[0].mxu0
    %2346 = vdwg.mxu0
    %v2347 = vadd.f32 %v2063, %v2344
    %s2348 = scalar_lea.vmem [#allocation3], 4096
    %v2349 = vld [vmem:[%s2348] sm:$0xff]
    %v2350 = vld [vmem:[%s2348 + $0x8] sm:$0xff]
    %v2351 = vld [vmem:[%s2348 + $0x10] sm:$0xff]
    %v2352 = vld [vmem:[%s2348 + $0x18] sm:$0xff]
    %v2353 = vld [vmem:[%s2348 + $0x20] sm:$0xff]
    %v2354 = vld [vmem:[%s2348 + $0x28] sm:$0xff]
    %v2355 = vld [vmem:[%s2348 + $0x30] sm:$0xff]
    %v2356 = vld [vmem:[%s2348 + $0x38] sm:$0xff]
    %v2357 = vld [vmem:[%s2348 + $0x40] sm:$0xff]
    %v2358 = vld [vmem:[%s2348 + $0x48] sm:$0xff]
    %v2359 = vld [vmem:[%s2348 + $0x50] sm:$0xff]
    %v2360 = vld [vmem:[%s2348 + $0x58] sm:$0xff]
    %v2361 = vld [vmem:[%s2348 + $0x60] sm:$0xff]
    %v2362 = vld [vmem:[%s2348 + $0x68] sm:$0xff]
    %v2363 = vld [vmem:[%s2348 + $0x70] sm:$0xff]
    %v2364 = vld [vmem:[%s2348 + $0x78] sm:$0xff]
    %v2365 = vld [vmem:[%s2348 + $0x80] sm:$0xff]
    %v2366 = vld [vmem:[%s2348 + $0x88] sm:$0xff]
    %v2367 = vld [vmem:[%s2348 + $0x90] sm:$0xff]
    %v2368 = vld [vmem:[%s2348 + $0x98] sm:$0xff]
    %v2369 = vld [vmem:[%s2348 + $0xa0] sm:$0xff]
    %v2370 = vld [vmem:[%s2348 + $0xa8] sm:$0xff]
    %v2371 = vld [vmem:[%s2348 + $0xb0] sm:$0xff]
    %v2372 = vld [vmem:[%s2348 + $0xb8] sm:$0xff]
    %v2373 = vld [vmem:[%s2348 + $0xc0] sm:$0xff]
    %v2374 = vld [vmem:[%s2348 + $0xc8] sm:$0xff]
    %v2375 = vld [vmem:[%s2348 + $0xd0] sm:$0xff]
    %v2376 = vld [vmem:[%s2348 + $0xd8] sm:$0xff]
    %v2377 = vld [vmem:[%s2348 + $0xe0] sm:$0xff]
    %v2378 = vld [vmem:[%s2348 + $0xe8] sm:$0xff]
    %v2379 = vld [vmem:[%s2348 + $0xf0] sm:$0xff]
    %v2380 = vld [vmem:[%s2348 + $0xf8] sm:$0xff]
    %v2381 = vld [vmem:[%s2348 + $0x100] sm:$0xff]
    %v2382 = vld [vmem:[%s2348 + $0x108] sm:$0xff]
    %v2383 = vld [vmem:[%s2348 + $0x110] sm:$0xff]
    %v2384 = vld [vmem:[%s2348 + $0x118] sm:$0xff]
    %v2385 = vld [vmem:[%s2348 + $0x120] sm:$0xff]
    %v2386 = vld [vmem:[%s2348 + $0x128] sm:$0xff]
    %v2387 = vld [vmem:[%s2348 + $0x130] sm:$0xff]
    %v2388 = vld [vmem:[%s2348 + $0x138] sm:$0xff]
    %v2389 = vld [vmem:[%s2348 + $0x140] sm:$0xff]
    %v2390 = vld [vmem:[%s2348 + $0x148] sm:$0xff]
    %v2391 = vld [vmem:[%s2348 + $0x150] sm:$0xff]
    %v2392 = vld [vmem:[%s2348 + $0x158] sm:$0xff]
    %v2393 = vld [vmem:[%s2348 + $0x160] sm:$0xff]
    %v2394 = vld [vmem:[%s2348 + $0x168] sm:$0xff]
    %v2395 = vld [vmem:[%s2348 + $0x170] sm:$0xff]
    %v2396 = vld [vmem:[%s2348 + $0x178] sm:$0xff]
    %v2397 = vld [vmem:[%s2348 + $0x180] sm:$0xff]
    %v2398 = vld [vmem:[%s2348 + $0x188] sm:$0xff]
    %v2399 = vld [vmem:[%s2348 + $0x190] sm:$0xff]
    %v2400 = vld [vmem:[%s2348 + $0x198] sm:$0xff]
    %v2401 = vld [vmem:[%s2348 + $0x1a0] sm:$0xff]
    %v2402 = vld [vmem:[%s2348 + $0x1a8] sm:$0xff]
    %v2403 = vld [vmem:[%s2348 + $0x1b0] sm:$0xff]
    %v2404 = vld [vmem:[%s2348 + $0x1b8] sm:$0xff]
    %v2405 = vld [vmem:[%s2348 + $0x1c0] sm:$0xff]
    %v2406 = vld [vmem:[%s2348 + $0x1c8] sm:$0xff]
    %v2407 = vld [vmem:[%s2348 + $0x1d0] sm:$0xff]
    %v2408 = vld [vmem:[%s2348 + $0x1d8] sm:$0xff]
    %v2409 = vld [vmem:[%s2348 + $0x1e0] sm:$0xff]
    %v2410 = vld [vmem:[%s2348 + $0x1e8] sm:$0xff]
    %v2411 = vld [vmem:[%s2348 + $0x1f0] sm:$0xff]
    %v2412 = vld [vmem:[%s2348 + $0x1f8] sm:$0xff]
    %2413 = vmatprep.subr.mxu0 0.0
    %2414 = vmatpush1.msra.mxu0 %v2349
    %2415 = vmatprep.subr.mxu0 0.0
    %2416 = vmatpush1.msra.mxu0 %v2350
    %2417 = vmatprep.subr.mxu0 0.0
    %2418 = vmatpush1.msra.mxu0 %v2351
    %2419 = vmatprep.subr.mxu0 0.0
    %2420 = vmatpush1.msra.mxu0 %v2352
    %2421 = vmatprep.subr.mxu0 0.0
    %2422 = vmatpush1.msra.mxu0 %v2353
    %2423 = vmatprep.subr.mxu0 0.0
    %2424 = vmatpush1.msra.mxu0 %v2354
    %2425 = vmatprep.subr.mxu0 0.0
    %2426 = vmatpush1.msra.mxu0 %v2355
    %2427 = vmatprep.subr.mxu0 0.0
    %2428 = vmatpush1.msra.mxu0 %v2356
    %2429 = vmatprep.subr.mxu0 0.0
    %2430 = vmatpush1.msra.mxu0 %v2357
    %2431 = vmatprep.subr.mxu0 0.0
    %2432 = vmatpush1.msra.mxu0 %v2358
    %2433 = vmatprep.subr.mxu0 0.0
    %2434 = vmatpush1.msra.mxu0 %v2359
    %2435 = vmatprep.subr.mxu0 0.0
    %2436 = vmatpush1.msra.mxu0 %v2360
    %2437 = vmatprep.subr.mxu0 0.0
    %2438 = vmatpush1.msra.mxu0 %v2361
    %2439 = vmatprep.subr.mxu0 0.0
    %2440 = vmatpush1.msra.mxu0 %v2362
    %2441 = vmatprep.subr.mxu0 0.0
    %2442 = vmatpush1.msra.mxu0 %v2363
    %2443 = vmatprep.subr.mxu0 0.0
    %2444 = vmatpush1.msra.mxu0 %v2364
    %2445 = vmatprep.subr.mxu0 0.0
    %2446 = vmatpush1.msra.mxu0 %v2365
    %2447 = vmatprep.subr.mxu0 0.0
    %2448 = vmatpush1.msra.mxu0 %v2366
    %2449 = vmatprep.subr.mxu0 0.0
    %2450 = vmatpush1.msra.mxu0 %v2367
    %2451 = vmatprep.subr.mxu0 0.0
    %2452 = vmatpush1.msra.mxu0 %v2368
    %2453 = vmatprep.subr.mxu0 0.0
    %2454 = vmatpush1.msra.mxu0 %v2369
    %2455 = vmatprep.subr.mxu0 0.0
    %2456 = vmatpush1.msra.mxu0 %v2370
    %2457 = vmatprep.subr.mxu0 0.0
    %2458 = vmatpush1.msra.mxu0 %v2371
    %2459 = vmatprep.subr.mxu0 0.0
    %2460 = vmatpush1.msra.mxu0 %v2372
    %2461 = vmatprep.subr.mxu0 0.0
    %2462 = vmatpush1.msra.mxu0 %v2373
    %2463 = vmatprep.subr.mxu0 0.0
    %2464 = vmatpush1.msra.mxu0 %v2374
    %2465 = vmatprep.subr.mxu0 0.0
    %2466 = vmatpush1.msra.mxu0 %v2375
    %2467 = vmatprep.subr.mxu0 0.0
    %2468 = vmatpush1.msra.mxu0 %v2376
    %2469 = vmatprep.subr.mxu0 0.0
    %2470 = vmatpush1.msra.mxu0 %v2377
    %2471 = vmatprep.subr.mxu0 0.0
    %2472 = vmatpush1.msra.mxu0 %v2378
    %2473 = vmatprep.subr.mxu0 0.0
    %2474 = vmatpush1.msra.mxu0 %v2379
    %2475 = vmatprep.subr.mxu0 0.0
    %2476 = vmatpush1.msra.mxu0 %v2380
    %2477 = vmatprep.mubr.f32.mxu0 %v138
    %2478 = vmatmul.mubr.f32.gmra.mrb[0].mxu0 %v70
    %v2479 = vpop.f32.mrb[0].mxu0
    %v2480 = vadd.f32 0.0, %v2479
    %v2481 = vpop.f32.mrb[0].mxu0
    %2482 = vdwg.mxu0
    %2483 = vmatprep.subr.mxu0 0.0
    %2484 = vmatpush1.msra.mxu0 %v2381
    %2485 = vmatprep.subr.mxu0 0.0
    %2486 = vmatpush1.msra.mxu0 %v2382
    %2487 = vmatprep.subr.mxu0 0.0
    %2488 = vmatpush1.msra.mxu0 %v2383
    %2489 = vmatprep.subr.mxu0 0.0
    %2490 = vmatpush1.msra.mxu0 %v2384
    %2491 = vmatprep.subr.mxu0 0.0
    %2492 = vmatpush1.msra.mxu0 %v2385
    %2493 = vmatprep.subr.mxu0 0.0
    %2494 = vmatpush1.msra.mxu0 %v2386
    %2495 = vmatprep.subr.mxu0 0.0
    %2496 = vmatpush1.msra.mxu0 %v2387
    %2497 = vmatprep.subr.mxu0 0.0
    %2498 = vmatpush1.msra.mxu0 %v2388
    %2499 = vmatprep.subr.mxu0 0.0
    %2500 = vmatpush1.msra.mxu0 %v2389
    %2501 = vmatprep.subr.mxu0 0.0
    %2502 = vmatpush1.msra.mxu0 %v2390
    %2503 = vmatprep.subr.mxu0 0.0
    %2504 = vmatpush1.msra.mxu0 %v2391
    %2505 = vmatprep.subr.mxu0 0.0
    %2506 = vmatpush1.msra.mxu0 %v2392
    %2507 = vmatprep.subr.mxu0 0.0
    %2508 = vmatpush1.msra.mxu0 %v2393
    %2509 = vmatprep.subr.mxu0 0.0
    %2510 = vmatpush1.msra.mxu0 %v2394
    %2511 = vmatprep.subr.mxu0 0.0
    %2512 = vmatpush1.msra.mxu0 %v2395
    %2513 = vmatprep.subr.mxu0 0.0
    %2514 = vmatpush1.msra.mxu0 %v2396
    %2515 = vmatprep.subr.mxu0 0.0
    %2516 = vmatpush1.msra.mxu0 %v2397
    %2517 = vmatprep.subr.mxu0 0.0
    %2518 = vmatpush1.msra.mxu0 %v2398
    %2519 = vmatprep.subr.mxu0 0.0
    %2520 = vmatpush1.msra.mxu0 %v2399
    %2521 = vmatprep.subr.mxu0 0.0
    %2522 = vmatpush1.msra.mxu0 %v2400
    %2523 = vmatprep.subr.mxu0 0.0
    %2524 = vmatpush1.msra.mxu0 %v2401
    %2525 = vmatprep.subr.mxu0 0.0
    %2526 = vmatpush1.msra.mxu0 %v2402
    %2527 = vmatprep.subr.mxu0 0.0
    %2528 = vmatpush1.msra.mxu0 %v2403
    %2529 = vmatprep.subr.mxu0 0.0
    %2530 = vmatpush1.msra.mxu0 %v2404
    %2531 = vmatprep.subr.mxu0 0.0
    %2532 = vmatpush1.msra.mxu0 %v2405
    %2533 = vmatprep.subr.mxu0 0.0
    %2534 = vmatpush1.msra.mxu0 %v2406
    %2535 = vmatprep.subr.mxu0 0.0
    %2536 = vmatpush1.msra.mxu0 %v2407
    %2537 = vmatprep.subr.mxu0 0.0
    %2538 = vmatpush1.msra.mxu0 %v2408
    %2539 = vmatprep.subr.mxu0 0.0
    %2540 = vmatpush1.msra.mxu0 %v2409
    %2541 = vmatprep.subr.mxu0 0.0
    %2542 = vmatpush1.msra.mxu0 %v2410
    %2543 = vmatprep.subr.mxu0 0.0
    %2544 = vmatpush1.msra.mxu0 %v2411
    %2545 = vmatprep.subr.mxu0 0.0
    %2546 = vmatpush1.msra.mxu0 %v2412
    %2547 = vmatprep.mubr.f32.mxu0 %v139
    %2548 = vmatmul.mubr.f32.gmra.mrb[0].mxu0 %v71
    %v2549 = vpop.f32.mrb[0].mxu0
    %v2550 = vadd.f32 %v2480, %v2549
    %v2551 = vpop.f32.mrb[0].mxu0
    %2552 = vdwg.mxu0
    %s2553 = scalar_lea.vmem %s2, 64
    %v2554 = vld [vmem:[%s2553] sm:$0xff]
    %v2556 = vsel %vm490, %v2554, 0
    %v2559 = vsel %vm494, %v2550, 0
    %2561 = vmatprep.subr.mxu0 0.0
    %2562 = vmatpush1.msra.mxu0 %v2559
    %2563 = vmatprep.subr.mxu0 0.0
    %2564 = vmatpush1.msra.mxu0 0.0
    %2565 = vmatprep.subr.mxu0 0.0
    %2566 = vmatpush1.msra.mxu0 0.0
    %2567 = vmatprep.subr.mxu0 0.0
    %2568 = vmatpush1.msra.mxu0 0.0
    %2569 = vmatprep.subr.mxu0 0.0
    %2570 = vmatpush1.msra.mxu0 0.0
    %2571 = vmatprep.subr.mxu0 0.0
    %2572 = vmatpush1.msra.mxu0 0.0
    %2573 = vmatprep.subr.mxu0 0.0
    %2574 = vmatpush1.msra.mxu0 0.0
    %2575 = vmatprep.subr.mxu0 0.0
    %2576 = vmatpush1.msra.mxu0 0.0
    %2577 = vmatprep.subr.mxu0 0.0
    %2578 = vmatpush1.msra.mxu0 0.0
    %2579 = vmatprep.subr.mxu0 0.0
    %2580 = vmatpush1.msra.mxu0 0.0
    %2581 = vmatprep.subr.mxu0 0.0
    %2582 = vmatpush1.msra.mxu0 0.0
    %2583 = vmatprep.subr.mxu0 0.0
    %2584 = vmatpush1.msra.mxu0 0.0
    %2585 = vmatprep.subr.mxu0 0.0
    %2586 = vmatpush1.msra.mxu0 0.0
    %2587 = vmatprep.subr.mxu0 0.0
    %2588 = vmatpush1.msra.mxu0 0.0
    %2589 = vmatprep.subr.mxu0 0.0
    %2590 = vmatpush1.msra.mxu0 0.0
    %2591 = vmatprep.subr.mxu0 0.0
    %2592 = vmatpush1.msra.mxu0 0.0
    %2593 = vmatprep.subr.mxu0 0.0
    %2594 = vmatpush1.msra.mxu0 0.0
    %2595 = vmatprep.subr.mxu0 0.0
    %2596 = vmatpush1.msra.mxu0 0.0
    %2597 = vmatprep.subr.mxu0 0.0
    %2598 = vmatpush1.msra.mxu0 0.0
    %2599 = vmatprep.subr.mxu0 0.0
    %2600 = vmatpush1.msra.mxu0 0.0
    %2601 = vmatprep.subr.mxu0 0.0
    %2602 = vmatpush1.msra.mxu0 0.0
    %2603 = vmatprep.subr.mxu0 0.0
    %2604 = vmatpush1.msra.mxu0 0.0
    %2605 = vmatprep.subr.mxu0 0.0
    %2606 = vmatpush1.msra.mxu0 0.0
    %2607 = vmatprep.subr.mxu0 0.0
    %2608 = vmatpush1.msra.mxu0 0.0
    %2609 = vmatprep.subr.mxu0 0.0
    %2610 = vmatpush1.msra.mxu0 0.0
    %2611 = vmatprep.subr.mxu0 0.0
    %2612 = vmatpush1.msra.mxu0 0.0
    %2613 = vmatprep.subr.mxu0 0.0
    %2614 = vmatpush1.msra.mxu0 0.0
    %2615 = vmatprep.subr.mxu0 0.0
    %2616 = vmatpush1.msra.mxu0 0.0
    %2617 = vmatprep.subr.mxu0 0.0
    %2618 = vmatpush1.msra.mxu0 0.0
    %2619 = vmatprep.subr.mxu0 0.0
    %2620 = vmatpush1.msra.mxu0 0.0
    %2621 = vmatprep.subr.mxu0 0.0
    %2622 = vmatpush1.msra.mxu0 0.0
    %2623 = vmatprep.subr.mxu0 0.0
    %2624 = vmatpush1.msra.mxu0 0.0
    %2625 = vmatprep.mubr.f32.mxu0 0.0
    %2626 = vmatmul.mubr.f32.gmra.mrb[0].mxu0 %v2556
    %v2627 = vpop.f32.mrb[0].mxu0
    %v2628 = vadd.f32 0.0, %v2627
    %v2629 = vpop.f32.mrb[0].mxu0
    %2630 = vdwg.mxu0
    %v2631 = vadd.f32 %v2347, %v2628
    %v2632 = vld [vmem:[%s3] sm:$0xff]
    %2634 = vset.pattern.permute.xlu0 0
    %2635 = vperm.xlu0 %2634, %v2632
    %v2636 = vpop.permute.xlu0 %2635
    %v2638 = vadd.f32 %v2631, %v2636
    %v2639 = vmax.f32 %v2638, 0.0
    %v2640 = vld [vmem:[%s4] sm:$0xff]
    %v2641 = vld [vmem:[%s4 + $0x8] sm:$0xff]
    %v2642 = vld [vmem:[%s4 + $0x10] sm:$0xff]
    %v2643 = vld [vmem:[%s4 + $0x18] sm:$0xff]
    %v2644 = vld [vmem:[%s4 + $0x20] sm:$0xff]
    %v2645 = vld [vmem:[%s4 + $0x28] sm:$0xff]
    %v2646 = vld [vmem:[%s4 + $0x30] sm:$0xff]
    %v2647 = vld [vmem:[%s4 + $0x38] sm:$0xff]
    %v2648 = vld [vmem:[%s4 + $0x40] sm:$0xff]
    %v2649 = vld [vmem:[%s4 + $0x48] sm:$0xff]
    %v2650 = vld [vmem:[%s4 + $0x50] sm:$0xff]
    %v2651 = vld [vmem:[%s4 + $0x58] sm:$0xff]
    %v2652 = vld [vmem:[%s4 + $0x60] sm:$0xff]
    %v2653 = vld [vmem:[%s4 + $0x68] sm:$0xff]
    %v2654 = vld [vmem:[%s4 + $0x70] sm:$0xff]
    %v2655 = vld [vmem:[%s4 + $0x78] sm:$0xff]
    %2656 = vmatprep.subr.mxu0 0.0
    %2657 = vmatpush1.msra.mxu0 %v2640
    %2658 = vmatprep.subr.mxu0 0.0
    %2659 = vmatpush1.msra.mxu0 %v2641
    %2660 = vmatprep.subr.mxu0 0.0
    %2661 = vmatpush1.msra.mxu0 %v2642
    %2662 = vmatprep.subr.mxu0 0.0
    %2663 = vmatpush1.msra.mxu0 %v2643
    %2664 = vmatprep.subr.mxu0 0.0
    %2665 = vmatpush1.msra.mxu0 %v2644
    %2666 = vmatprep.subr.mxu0 0.0
    %2667 = vmatpush1.msra.mxu0 %v2645
    %2668 = vmatprep.subr.mxu0 0.0
    %2669 = vmatpush1.msra.mxu0 %v2646
    %2670 = vmatprep.subr.mxu0 0.0
    %2671 = vmatpush1.msra.mxu0 %v2647
    %2672 = vmatprep.subr.mxu0 0.0
    %2673 = vmatpush1.msra.mxu0 %v2648
    %2674 = vmatprep.subr.mxu0 0.0
    %2675 = vmatpush1.msra.mxu0 %v2649
    %2676 = vmatprep.subr.mxu0 0.0
    %2677 = vmatpush1.msra.mxu0 %v2650
    %2678 = vmatprep.subr.mxu0 0.0
    %2679 = vmatpush1.msra.mxu0 %v2651
    %2680 = vmatprep.subr.mxu0 0.0
    %2681 = vmatpush1.msra.mxu0 %v2652
    %2682 = vmatprep.subr.mxu0 0.0
    %2683 = vmatpush1.msra.mxu0 %v2653
    %2684 = vmatprep.subr.mxu0 0.0
    %2685 = vmatpush1.msra.mxu0 %v2654
    %2686 = vmatprep.subr.mxu0 0.0
    %2687 = vmatpush1.msra.mxu0 %v2655
    %2688 = vmatprep.subr.mxu0 0.0
    %2689 = vmatpush1.msra.mxu0 0.0
    %2690 = vmatprep.subr.mxu0 0.0
    %2691 = vmatpush1.msra.mxu0 0.0
    %2692 = vmatprep.subr.mxu0 0.0
    %2693 = vmatpush1.msra.mxu0 0.0
    %2694 = vmatprep.subr.mxu0 0.0
    %2695 = vmatpush1.msra.mxu0 0.0
    %2696 = vmatprep.subr.mxu0 0.0
    %2697 = vmatpush1.msra.mxu0 0.0
    %2698 = vmatprep.subr.mxu0 0.0
    %2699 = vmatpush1.msra.mxu0 0.0
    %2700 = vmatprep.subr.mxu0 0.0
    %2701 = vmatpush1.msra.mxu0 0.0
    %2702 = vmatprep.subr.mxu0 0.0
    %2703 = vmatpush1.msra.mxu0 0.0
    %2704 = vmatprep.subr.mxu0 0.0
    %2705 = vmatpush1.msra.mxu0 0.0
    %2706 = vmatprep.subr.mxu0 0.0
    %2707 = vmatpush1.msra.mxu0 0.0
    %2708 = vmatprep.subr.mxu0 0.0
    %2709 = vmatpush1.msra.mxu0 0.0
    %2710 = vmatprep.subr.mxu0 0.0
    %2711 = vmatpush1.msra.mxu0 0.0
    %2712 = vmatprep.subr.mxu0 0.0
    %2713 = vmatpush1.msra.mxu0 0.0
    %2714 = vmatprep.subr.mxu0 0.0
    %2715 = vmatpush1.msra.mxu0 0.0
    %2716 = vmatprep.subr.mxu0 0.0
    %2717 = vmatpush1.msra.mxu0 0.0
    %2718 = vmatprep.subr.mxu0 0.0
    %2719 = vmatpush1.msra.mxu0 0.0
    %2720 = vmatprep.mubr.f32.mxu0 0.0
    %2721 = vmatmul.mubr.f32.gmra.mrb[0].mxu0 %v2639
    %v2722 = vpop.f32.mrb[0].mxu0
    %v2723 = vadd.f32 0.0, %v2722
    %v2724 = vpop.f32.mrb[0].mxu0
    %2725 = vdwg.mxu0
    %v2726 = vld [vmem:[%s5] sm:$0xff]
    %v2727 = vld [vmem:[%s5 + $0x8] sm:$0xff]
    %s2728 = scalar_lea.vmem %s4, 128
    %v2729 = vld [vmem:[%s2728] sm:$0xff]
    %v2730 = vld [vmem:[%s2728 + $0x8] sm:$0xff]
    %v2731 = vld [vmem:[%s2728 + $0x10] sm:$0xff]
    %v2732 = vld [vmem:[%s2728 + $0x18] sm:$0xff]
    %v2733 = vld [vmem:[%s2728 + $0x20] sm:$0xff]
    %v2734 = vld [vmem:[%s2728 + $0x28] sm:$0xff]
    %v2735 = vld [vmem:[%s2728 + $0x30] sm:$0xff]
    %v2736 = vld [vmem:[%s2728 + $0x38] sm:$0xff]
    %v2737 = vld [vmem:[%s2728 + $0x40] sm:$0xff]
    %v2738 = vld [vmem:[%s2728 + $0x48] sm:$0xff]
    %v2739 = vld [vmem:[%s2728 + $0x50] sm:$0xff]
    %v2740 = vld [vmem:[%s2728 + $0x58] sm:$0xff]
    %v2741 = vld [vmem:[%s2728 + $0x60] sm:$0xff]
    %v2742 = vld [vmem:[%s2728 + $0x68] sm:$0xff]
    %v2743 = vld [vmem:[%s2728 + $0x70] sm:$0xff]
    %v2744 = vld [vmem:[%s2728 + $0x78] sm:$0xff]
    %2745 = vmatprep.subr.mxu0 0.0
    %2746 = vmatpush1.msra.mxu0 %v2729
    %2747 = vmatprep.subr.mxu0 0.0
    %2748 = vmatpush1.msra.mxu0 %v2730
    %2749 = vmatprep.subr.mxu0 0.0
    %2750 = vmatpush1.msra.mxu0 %v2731
    %2751 = vmatprep.subr.mxu0 0.0
    %2752 = vmatpush1.msra.mxu0 %v2732
    %2753 = vmatprep.subr.mxu0 0.0
    %2754 = vmatpush1.msra.mxu0 %v2733
    %2755 = vmatprep.subr.mxu0 0.0
    %2756 = vmatpush1.msra.mxu0 %v2734
    %2757 = vmatprep.subr.mxu0 0.0
    %2758 = vmatpush1.msra.mxu0 %v2735
    %2759 = vmatprep.subr.mxu0 0.0
    %2760 = vmatpush1.msra.mxu0 %v2736
    %2761 = vmatprep.subr.mxu0 0.0
    %2762 = vmatpush1.msra.mxu0 %v2737
    %2763 = vmatprep.subr.mxu0 0.0
    %2764 = vmatpush1.msra.mxu0 %v2738
    %2765 = vmatprep.subr.mxu0 0.0
    %2766 = vmatpush1.msra.mxu0 %v2739
    %2767 = vmatprep.subr.mxu0 0.0
    %2768 = vmatpush1.msra.mxu0 %v2740
    %2769 = vmatprep.subr.mxu0 0.0
    %2770 = vmatpush1.msra.mxu0 %v2741
    %2771 = vmatprep.subr.mxu0 0.0
    %2772 = vmatpush1.msra.mxu0 %v2742
    %2773 = vmatprep.subr.mxu0 0.0
    %2774 = vmatpush1.msra.mxu0 %v2743
    %2775 = vmatprep.subr.mxu0 0.0
    %2776 = vmatpush1.msra.mxu0 %v2744
    %2777 = vmatprep.subr.mxu0 0.0
    %2778 = vmatpush1.msra.mxu0 0.0
    %2779 = vmatprep.subr.mxu0 0.0
    %2780 = vmatpush1.msra.mxu0 0.0
    %2781 = vmatprep.subr.mxu0 0.0
    %2782 = vmatpush1.msra.mxu0 0.0
    %2783 = vmatprep.subr.mxu0 0.0
    %2784 = vmatpush1.msra.mxu0 0.0
    %2785 = vmatprep.subr.mxu0 0.0
    %2786 = vmatpush1.msra.mxu0 0.0
    %2787 = vmatprep.subr.mxu0 0.0
    %2788 = vmatpush1.msra.mxu0 0.0
    %2789 = vmatprep.subr.mxu0 0.0
    %2790 = vmatpush1.msra.mxu0 0.0
    %2791 = vmatprep.subr.mxu0 0.0
    %2792 = vmatpush1.msra.mxu0 0.0
    %2793 = vmatprep.subr.mxu0 0.0
    %2794 = vmatpush1.msra.mxu0 0.0
    %2795 = vmatprep.subr.mxu0 0.0
    %2796 = vmatpush1.msra.mxu0 0.0
    %2797 = vmatprep.subr.mxu0 0.0
    %2798 = vmatpush1.msra.mxu0 0.0
    %2799 = vmatprep.subr.mxu0 0.0
    %2800 = vmatpush1.msra.mxu0 0.0
    %2801 = vmatprep.subr.mxu0 0.0
    %2802 = vmatpush1.msra.mxu0 0.0
    %2803 = vmatprep.subr.mxu0 0.0
    %2804 = vmatpush1.msra.mxu0 0.0
    %2805 = vmatprep.subr.mxu0 0.0
    %2806 = vmatpush1.msra.mxu0 0.0
    %2807 = vmatprep.subr.mxu0 0.0
    %2808 = vmatpush1.msra.mxu0 0.0
    %2809 = vmatprep.mubr.f32.mxu0 0.0
    %2810 = vmatmul.mubr.f32.gmra.mrb[0].mxu0 %v2639
    %v2811 = vpop.f32.mrb[0].mxu0
    %v2812 = vadd.f32 0.0, %v2811
    %v2813 = vpop.f32.mrb[0].mxu0
    %2814 = vdwg.mxu0
    %s2815 = scalar_lea.vmem %s5, 16
    %v2816 = vld [vmem:[%s2815] sm:$0xff]
    %v2817 = vld [vmem:[%s2815 + $0x8] sm:$0xff]
    %vm2818 = vcmask 64512
    %v2820 = vsel %vm2818, %v2816, 0
    %v2823 = vsel %vm2818, %v2817, 0
    %2825 = vmatprep.subr.mxu0 0.0
    %2826 = vmatpush1.msra.mxu0 %v2812
    %2827 = vmatprep.subr.mxu0 0.0
    %2828 = vmatpush1.msra.mxu0 0.0
    %2829 = vmatprep.subr.mxu0 0.0
    %2830 = vmatpush1.msra.mxu0 0.0
    %2831 = vmatprep.subr.mxu0 0.0
    %2832 = vmatpush1.msra.mxu0 0.0
    %2833 = vmatprep.subr.mxu0 0.0
    %2834 = vmatpush1.msra.mxu0 0.0
    %2835 = vmatprep.subr.mxu0 0.0
    %2836 = vmatpush1.msra.mxu0 0.0
    %2837 = vmatprep.subr.mxu0 0.0
    %2838 = vmatpush1.msra.mxu0 0.0
    %2839 = vmatprep.subr.mxu0 0.0
    %2840 = vmatpush1.msra.mxu0 0.0
    %2841 = vmatprep.subr.mxu0 0.0
    %2842 = vmatpush1.msra.mxu0 0.0
    %2843 = vmatprep.subr.mxu0 0.0
    %2844 = vmatpush1.msra.mxu0 0.0
    %2845 = vmatprep.subr.mxu0 0.0
    %2846 = vmatpush1.msra.mxu0 0.0
    %2847 = vmatprep.subr.mxu0 0.0
    %2848 = vmatpush1.msra.mxu0 0.0
    %2849 = vmatprep.subr.mxu0 0.0
    %2850 = vmatpush1.msra.mxu0 0.0
    %2851 = vmatprep.subr.mxu0 0.0
    %2852 = vmatpush1.msra.mxu0 0.0
    %2853 = vmatprep.subr.mxu0 0.0
    %2854 = vmatpush1.msra.mxu0 0.0
    %2855 = vmatprep.subr.mxu0 0.0
    %2856 = vmatpush1.msra.mxu0 0.0
    %2857 = vmatprep.subr.mxu0 0.0
    %2858 = vmatpush1.msra.mxu0 0.0
    %2859 = vmatprep.subr.mxu0 0.0
    %2860 = vmatpush1.msra.mxu0 0.0
    %2861 = vmatprep.subr.mxu0 0.0
    %2862 = vmatpush1.msra.mxu0 0.0
    %2863 = vmatprep.subr.mxu0 0.0
    %2864 = vmatpush1.msra.mxu0 0.0
    %2865 = vmatprep.subr.mxu0 0.0
    %2866 = vmatpush1.msra.mxu0 0.0
    %2867 = vmatprep.subr.mxu0 0.0
    %2868 = vmatpush1.msra.mxu0 0.0
    %2869 = vmatprep.subr.mxu0 0.0
    %2870 = vmatpush1.msra.mxu0 0.0
    %2871 = vmatprep.subr.mxu0 0.0
    %2872 = vmatpush1.msra.mxu0 0.0
    %2873 = vmatprep.subr.mxu0 0.0
    %2874 = vmatpush1.msra.mxu0 0.0
    %2875 = vmatprep.subr.mxu0 0.0
    %2876 = vmatpush1.msra.mxu0 0.0
    %2877 = vmatprep.subr.mxu0 0.0
    %2878 = vmatpush1.msra.mxu0 0.0
    %2879 = vmatprep.subr.mxu0 0.0
    %2880 = vmatpush1.msra.mxu0 0.0
    %2881 = vmatprep.subr.mxu0 0.0
    %2882 = vmatpush1.msra.mxu0 0.0
    %2883 = vmatprep.subr.mxu0 0.0
    %2884 = vmatpush1.msra.mxu0 0.0
    %2885 = vmatprep.subr.mxu0 0.0
    %2886 = vmatpush1.msra.mxu0 0.0
    %2887 = vmatprep.subr.mxu0 0.0
    %2888 = vmatpush1.msra.mxu0 0.0
    %2889 = vmatprep.mubr.f32.mxu0 0.0
    %2890 = vmatmul.mubr.f32.gmra.mrb[0].mxu0 %v2820
    %v2891 = vpop.f32.mrb[0].mxu0
    %v2892 = vadd.f32 0.0, %v2891
    %v2893 = vpop.f32.mrb[0].mxu0
    %2894 = vmatprep.mubr.f32.mxu0 0.0
    %2895 = vmatmul.mubr.f32.gmra.mrb[0].mxu0 %v2823
    %v2896 = vpop.f32.mrb[0].mxu0
    %v2897 = vadd.f32 0.0, %v2896
    %v2898 = vpop.f32.mrb[0].mxu0
    %2899 = vdwg.mxu0
    %v2901 = vsel %vm2818, %v2726, 0
    %v2904 = vsel %vm2818, %v2727, 0
    %2906 = vmatprep.subr.mxu0 0.0
    %2907 = vmatpush1.msra.mxu0 %v2723
    %2908 = vmatprep.subr.mxu0 0.0
    %2909 = vmatpush1.msra.mxu0 0.0
    %2910 = vmatprep.subr.mxu0 0.0
    %2911 = vmatpush1.msra.mxu0 0.0
    %2912 = vmatprep.subr.mxu0 0.0
    %2913 = vmatpush1.msra.mxu0 0.0
    %2914 = vmatprep.subr.mxu0 0.0
    %2915 = vmatpush1.msra.mxu0 0.0
    %2916 = vmatprep.subr.mxu0 0.0
    %2917 = vmatpush1.msra.mxu0 0.0
    %2918 = vmatprep.subr.mxu0 0.0
    %2919 = vmatpush1.msra.mxu0 0.0
    %2920 = vmatprep.subr.mxu0 0.0
    %2921 = vmatpush1.msra.mxu0 0.0
    %2922 = vmatprep.subr.mxu0 0.0
    %2923 = vmatpush1.msra.mxu0 0.0
    %2924 = vmatprep.subr.mxu0 0.0
    %2925 = vmatpush1.msra.mxu0 0.0
    %2926 = vmatprep.subr.mxu0 0.0
    %2927 = vmatpush1.msra.mxu0 0.0
    %2928 = vmatprep.subr.mxu0 0.0
    %2929 = vmatpush1.msra.mxu0 0.0
    %2930 = vmatprep.subr.mxu0 0.0
    %2931 = vmatpush1.msra.mxu0 0.0
    %2932 = vmatprep.subr.mxu0 0.0
    %2933 = vmatpush1.msra.mxu0 0.0
    %2934 = vmatprep.subr.mxu0 0.0
    %2935 = vmatpush1.msra.mxu0 0.0
    %2936 = vmatprep.subr.mxu0 0.0
    %2937 = vmatpush1.msra.mxu0 0.0
    %2938 = vmatprep.subr.mxu0 0.0
    %2939 = vmatpush1.msra.mxu0 0.0
    %2940 = vmatprep.subr.mxu0 0.0
    %2941 = vmatpush1.msra.mxu0 0.0
    %2942 = vmatprep.subr.mxu0 0.0
    %2943 = vmatpush1.msra.mxu0 0.0
    %2944 = vmatprep.subr.mxu0 0.0
    %2945 = vmatpush1.msra.mxu0 0.0
    %2946 = vmatprep.subr.mxu0 0.0
    %2947 = vmatpush1.msra.mxu0 0.0
    %2948 = vmatprep.subr.mxu0 0.0
    %2949 = vmatpush1.msra.mxu0 0.0
    %2950 = vmatprep.subr.mxu0 0.0
    %2951 = vmatpush1.msra.mxu0 0.0
    %2952 = vmatprep.subr.mxu0 0.0
    %2953 = vmatpush1.msra.mxu0 0.0
    %2954 = vmatprep.subr.mxu0 0.0
    %2955 = vmatpush1.msra.mxu0 0.0
    %2956 = vmatprep.subr.mxu0 0.0
    %2957 = vmatpush1.msra.mxu0 0.0
    %2958 = vmatprep.subr.mxu0 0.0
    %2959 = vmatpush1.msra.mxu0 0.0
    %2960 = vmatprep.subr.mxu0 0.0
    %2961 = vmatpush1.msra.mxu0 0.0
    %2962 = vmatprep.subr.mxu0 0.0
    %2963 = vmatpush1.msra.mxu0 0.0
    %2964 = vmatprep.subr.mxu0 0.0
    %2965 = vmatpush1.msra.mxu0 0.0
    %2966 = vmatprep.subr.mxu0 0.0
    %2967 = vmatpush1.msra.mxu0 0.0
    %2968 = vmatprep.subr.mxu0 0.0
    %2969 = vmatpush1.msra.mxu0 0.0
    %2970 = vmatprep.mubr.f32.mxu0 0.0
    %2971 = vmatmul.mubr.f32.gmra.mrb[0].mxu0 %v2901
    %v2972 = vpop.f32.mrb[0].mxu0
    %v2973 = vadd.f32 %v2892, %v2972
    %v2974 = vpop.f32.mrb[0].mxu0
    %2975 = vmatprep.mubr.f32.mxu0 0.0
    %2976 = vmatmul.mubr.f32.gmra.mrb[0].mxu0 %v2904
    %v2977 = vpop.f32.mrb[0].mxu0
    %v2978 = vadd.f32 %v2897, %v2977
    %v2979 = vpop.f32.mrb[0].mxu0
    %2980 = vdwg.mxu0
    %s2981 = scalar_lea.vmem %s4, 256
    %v2982 = vld [vmem:[%s2981] sm:$0xff]
    %v2983 = vld [vmem:[%s2981 + $0x8] sm:$0xff]
    %v2984 = vld [vmem:[%s2981 + $0x10] sm:$0xff]
    %v2985 = vld [vmem:[%s2981 + $0x18] sm:$0xff]
    %v2986 = vld [vmem:[%s2981 + $0x20] sm:$0xff]
    %v2987 = vld [vmem:[%s2981 + $0x28] sm:$0xff]
    %v2988 = vld [vmem:[%s2981 + $0x30] sm:$0xff]
    %v2989 = vld [vmem:[%s2981 + $0x38] sm:$0xff]
    %v2990 = vld [vmem:[%s2981 + $0x40] sm:$0xff]
    %v2991 = vld [vmem:[%s2981 + $0x48] sm:$0xff]
    %v2992 = vld [vmem:[%s2981 + $0x50] sm:$0xff]
    %v2993 = vld [vmem:[%s2981 + $0x58] sm:$0xff]
    %v2994 = vld [vmem:[%s2981 + $0x60] sm:$0xff]
    %v2995 = vld [vmem:[%s2981 + $0x68] sm:$0xff]
    %v2996 = vld [vmem:[%s2981 + $0x70] sm:$0xff]
    %v2997 = vld [vmem:[%s2981 + $0x78] sm:$0xff]
    %2998 = vmatprep.subr.mxu0 0.0
    %2999 = vmatpush1.msra.mxu0 %v2982
    %3000 = vmatprep.subr.mxu0 0.0
    %3001 = vmatpush1.msra.mxu0 %v2983
    %3002 = vmatprep.subr.mxu0 0.0
    %3003 = vmatpush1.msra.mxu0 %v2984
    %3004 = vmatprep.subr.mxu0 0.0
    %3005 = vmatpush1.msra.mxu0 %v2985
    %3006 = vmatprep.subr.mxu0 0.0
    %3007 = vmatpush1.msra.mxu0 %v2986
    %3008 = vmatprep.subr.mxu0 0.0
    %3009 = vmatpush1.msra.mxu0 %v2987
    %3010 = vmatprep.subr.mxu0 0.0
    %3011 = vmatpush1.msra.mxu0 %v2988
    %3012 = vmatprep.subr.mxu0 0.0
    %3013 = vmatpush1.msra.mxu0 %v2989
    %3014 = vmatprep.subr.mxu0 0.0
    %3015 = vmatpush1.msra.mxu0 %v2990
    %3016 = vmatprep.subr.mxu0 0.0
    %3017 = vmatpush1.msra.mxu0 %v2991
    %3018 = vmatprep.subr.mxu0 0.0
    %3019 = vmatpush1.msra.mxu0 %v2992
    %3020 = vmatprep.subr.mxu0 0.0
    %3021 = vmatpush1.msra.mxu0 %v2993
    %3022 = vmatprep.subr.mxu0 0.0
    %3023 = vmatpush1.msra.mxu0 %v2994
    %3024 = vmatprep.subr.mxu0 0.0
    %3025 = vmatpush1.msra.mxu0 %v2995
    %3026 = vmatprep.subr.mxu0 0.0
    %3027 = vmatpush1.msra.mxu0 %v2996
    %3028 = vmatprep.subr.mxu0 0.0
    %3029 = vmatpush1.msra.mxu0 %v2997
    %3030 = vmatprep.subr.mxu0 0.0
    %3031 = vmatpush1.msra.mxu0 0.0
    %3032 = vmatprep.subr.mxu0 0.0
    %3033 = vmatpush1.msra.mxu0 0.0
    %3034 = vmatprep.subr.mxu0 0.0
    %3035 = vmatpush1.msra.mxu0 0.0
    %3036 = vmatprep.subr.mxu0 0.0
    %3037 = vmatpush1.msra.mxu0 0.0
    %3038 = vmatprep.subr.mxu0 0.0
    %3039 = vmatpush1.msra.mxu0 0.0
    %3040 = vmatprep.subr.mxu0 0.0
    %3041 = vmatpush1.msra.mxu0 0.0
    %3042 = vmatprep.subr.mxu0 0.0
    %3043 = vmatpush1.msra.mxu0 0.0
    %3044 = vmatprep.subr.mxu0 0.0
    %3045 = vmatpush1.msra.mxu0 0.0
    %3046 = vmatprep.subr.mxu0 0.0
    %3047 = vmatpush1.msra.mxu0 0.0
    %3048 = vmatprep.subr.mxu0 0.0
    %3049 = vmatpush1.msra.mxu0 0.0
    %3050 = vmatprep.subr.mxu0 0.0
    %3051 = vmatpush1.msra.mxu0 0.0
    %3052 = vmatprep.subr.mxu0 0.0
    %3053 = vmatpush1.msra.mxu0 0.0
    %3054 = vmatprep.subr.mxu0 0.0
    %3055 = vmatpush1.msra.mxu0 0.0
    %3056 = vmatprep.subr.mxu0 0.0
    %3057 = vmatpush1.msra.mxu0 0.0
    %3058 = vmatprep.subr.mxu0 0.0
    %3059 = vmatpush1.msra.mxu0 0.0
    %3060 = vmatprep.subr.mxu0 0.0
    %3061 = vmatpush1.msra.mxu0 0.0
    %3062 = vmatprep.mubr.f32.mxu0 0.0
    %3063 = vmatmul.mubr.f32.gmra.mrb[0].mxu0 %v2639
    %v3064 = vpop.f32.mrb[0].mxu0
    %v3065 = vadd.f32 0.0, %v3064
    %v3066 = vpop.f32.mrb[0].mxu0
    %3067 = vdwg.mxu0
    %s3068 = scalar_lea.vmem %s5, 32
    %v3069 = vld [vmem:[%s3068] sm:$0xff]
    %v3070 = vld [vmem:[%s3068 + $0x8] sm:$0xff]
    %v3072 = vsel %vm2818, %v3069, 0
    %v3075 = vsel %vm2818, %v3070, 0
    %3077 = vmatprep.subr.mxu0 0.0
    %3078 = vmatpush1.msra.mxu0 %v3065
    %3079 = vmatprep.subr.mxu0 0.0
    %3080 = vmatpush1.msra.mxu0 0.0
    %3081 = vmatprep.subr.mxu0 0.0
    %3082 = vmatpush1.msra.mxu0 0.0
    %3083 = vmatprep.subr.mxu0 0.0
    %3084 = vmatpush1.msra.mxu0 0.0
    %3085 = vmatprep.subr.mxu0 0.0
    %3086 = vmatpush1.msra.mxu0 0.0
    %3087 = vmatprep.subr.mxu0 0.0
    %3088 = vmatpush1.msra.mxu0 0.0
    %3089 = vmatprep.subr.mxu0 0.0
    %3090 = vmatpush1.msra.mxu0 0.0
    %3091 = vmatprep.subr.mxu0 0.0
    %3092 = vmatpush1.msra.mxu0 0.0
    %3093 = vmatprep.subr.mxu0 0.0
    %3094 = vmatpush1.msra.mxu0 0.0
    %3095 = vmatprep.subr.mxu0 0.0
    %3096 = vmatpush1.msra.mxu0 0.0
    %3097 = vmatprep.subr.mxu0 0.0
    %3098 = vmatpush1.msra.mxu0 0.0
    %3099 = vmatprep.subr.mxu0 0.0
    %3100 = vmatpush1.msra.mxu0 0.0
    %3101 = vmatprep.subr.mxu0 0.0
    %3102 = vmatpush1.msra.mxu0 0.0
    %3103 = vmatprep.subr.mxu0 0.0
    %3104 = vmatpush1.msra.mxu0 0.0
    %3105 = vmatprep.subr.mxu0 0.0
    %3106 = vmatpush1.msra.mxu0 0.0
    %3107 = vmatprep.subr.mxu0 0.0
    %3108 = vmatpush1.msra.mxu0 0.0
    %3109 = vmatprep.subr.mxu0 0.0
    %3110 = vmatpush1.msra.mxu0 0.0
    %3111 = vmatprep.subr.mxu0 0.0
    %3112 = vmatpush1.msra.mxu0 0.0
    %3113 = vmatprep.subr.mxu0 0.0
    %3114 = vmatpush1.msra.mxu0 0.0
    %3115 = vmatprep.subr.mxu0 0.0
    %3116 = vmatpush1.msra.mxu0 0.0
    %3117 = vmatprep.subr.mxu0 0.0
    %3118 = vmatpush1.msra.mxu0 0.0
    %3119 = vmatprep.subr.mxu0 0.0
    %3120 = vmatpush1.msra.mxu0 0.0
    %3121 = vmatprep.subr.mxu0 0.0
    %3122 = vmatpush1.msra.mxu0 0.0
    %3123 = vmatprep.subr.mxu0 0.0
    %3124 = vmatpush1.msra.mxu0 0.0
    %3125 = vmatprep.subr.mxu0 0.0
    %3126 = vmatpush1.msra.mxu0 0.0
    %3127 = vmatprep.subr.mxu0 0.0
    %3128 = vmatpush1.msra.mxu0 0.0
    %3129 = vmatprep.subr.mxu0 0.0
    %3130 = vmatpush1.msra.mxu0 0.0
    %3131 = vmatprep.subr.mxu0 0.0
    %3132 = vmatpush1.msra.mxu0 0.0
    %3133 = vmatprep.subr.mxu0 0.0
    %3134 = vmatpush1.msra.mxu0 0.0
    %3135 = vmatprep.subr.mxu0 0.0
    %3136 = vmatpush1.msra.mxu0 0.0
    %3137 = vmatprep.subr.mxu0 0.0
    %3138 = vmatpush1.msra.mxu0 0.0
    %3139 = vmatprep.subr.mxu0 0.0
    %3140 = vmatpush1.msra.mxu0 0.0
    %3141 = vmatprep.mubr.f32.mxu0 0.0
    %3142 = vmatmul.mubr.f32.gmra.mrb[0].mxu0 %v3072
    %v3143 = vpop.f32.mrb[0].mxu0
    %v3144 = vadd.f32 0.0, %v3143
    %v3145 = vpop.f32.mrb[0].mxu0
    %3146 = vmatprep.mubr.f32.mxu0 0.0
    %3147 = vmatmul.mubr.f32.gmra.mrb[0].mxu0 %v3075
    %v3148 = vpop.f32.mrb[0].mxu0
    %v3149 = vadd.f32 0.0, %v3148
    %v3150 = vpop.f32.mrb[0].mxu0
    %3151 = vdwg.mxu0
    %v3152 = vadd.f32 %v2973, %v3144
    %v3153 = vadd.f32 %v2978, %v3149
    %s3154 = scalar_lea.vmem %s4, 384
    %v3155 = vld [vmem:[%s3154] sm:$0xff]
    %v3156 = vld [vmem:[%s3154 + $0x8] sm:$0xff]
    %v3157 = vld [vmem:[%s3154 + $0x10] sm:$0xff]
    %v3158 = vld [vmem:[%s3154 + $0x18] sm:$0xff]
    %v3159 = vld [vmem:[%s3154 + $0x20] sm:$0xff]
    %v3160 = vld [vmem:[%s3154 + $0x28] sm:$0xff]
    %v3161 = vld [vmem:[%s3154 + $0x30] sm:$0xff]
    %v3162 = vld [vmem:[%s3154 + $0x38] sm:$0xff]
    %v3163 = vld [vmem:[%s3154 + $0x40] sm:$0xff]
    %v3164 = vld [vmem:[%s3154 + $0x48] sm:$0xff]
    %v3165 = vld [vmem:[%s3154 + $0x50] sm:$0xff]
    %v3166 = vld [vmem:[%s3154 + $0x58] sm:$0xff]
    %v3167 = vld [vmem:[%s3154 + $0x60] sm:$0xff]
    %v3168 = vld [vmem:[%s3154 + $0x68] sm:$0xff]
    %v3169 = vld [vmem:[%s3154 + $0x70] sm:$0xff]
    %v3170 = vld [vmem:[%s3154 + $0x78] sm:$0xff]
    %3171 = vmatprep.subr.mxu0 0.0
    %3172 = vmatpush1.msra.mxu0 %v3155
    %3173 = vmatprep.subr.mxu0 0.0
    %3174 = vmatpush1.msra.mxu0 %v3156
    %3175 = vmatprep.subr.mxu0 0.0
    %3176 = vmatpush1.msra.mxu0 %v3157
    %3177 = vmatprep.subr.mxu0 0.0
    %3178 = vmatpush1.msra.mxu0 %v3158
    %3179 = vmatprep.subr.mxu0 0.0
    %3180 = vmatpush1.msra.mxu0 %v3159
    %3181 = vmatprep.subr.mxu0 0.0
    %3182 = vmatpush1.msra.mxu0 %v3160
    %3183 = vmatprep.subr.mxu0 0.0
    %3184 = vmatpush1.msra.mxu0 %v3161
    %3185 = vmatprep.subr.mxu0 0.0
    %3186 = vmatpush1.msra.mxu0 %v3162
    %3187 = vmatprep.subr.mxu0 0.0
    %3188 = vmatpush1.msra.mxu0 %v3163
    %3189 = vmatprep.subr.mxu0 0.0
    %3190 = vmatpush1.msra.mxu0 %v3164
    %3191 = vmatprep.subr.mxu0 0.0
    %3192 = vmatpush1.msra.mxu0 %v3165
    %3193 = vmatprep.subr.mxu0 0.0
    %3194 = vmatpush1.msra.mxu0 %v3166
    %3195 = vmatprep.subr.mxu0 0.0
    %3196 = vmatpush1.msra.mxu0 %v3167
    %3197 = vmatprep.subr.mxu0 0.0
    %3198 = vmatpush1.msra.mxu0 %v3168
    %3199 = vmatprep.subr.mxu0 0.0
    %3200 = vmatpush1.msra.mxu0 %v3169
    %3201 = vmatprep.subr.mxu0 0.0
    %3202 = vmatpush1.msra.mxu0 %v3170
    %3203 = vmatprep.subr.mxu0 0.0
    %3204 = vmatpush1.msra.mxu0 0.0
    %3205 = vmatprep.subr.mxu0 0.0
    %3206 = vmatpush1.msra.mxu0 0.0
    %3207 = vmatprep.subr.mxu0 0.0
    %3208 = vmatpush1.msra.mxu0 0.0
    %3209 = vmatprep.subr.mxu0 0.0
    %3210 = vmatpush1.msra.mxu0 0.0
    %3211 = vmatprep.subr.mxu0 0.0
    %3212 = vmatpush1.msra.mxu0 0.0
    %3213 = vmatprep.subr.mxu0 0.0
    %3214 = vmatpush1.msra.mxu0 0.0
    %3215 = vmatprep.subr.mxu0 0.0
    %3216 = vmatpush1.msra.mxu0 0.0
    %3217 = vmatprep.subr.mxu0 0.0
    %3218 = vmatpush1.msra.mxu0 0.0
    %3219 = vmatprep.subr.mxu0 0.0
    %3220 = vmatpush1.msra.mxu0 0.0
    %3221 = vmatprep.subr.mxu0 0.0
    %3222 = vmatpush1.msra.mxu0 0.0
    %3223 = vmatprep.subr.mxu0 0.0
    %3224 = vmatpush1.msra.mxu0 0.0
    %3225 = vmatprep.subr.mxu0 0.0
    %3226 = vmatpush1.msra.mxu0 0.0
    %3227 = vmatprep.subr.mxu0 0.0
    %3228 = vmatpush1.msra.mxu0 0.0
    %3229 = vmatprep.subr.mxu0 0.0
    %3230 = vmatpush1.msra.mxu0 0.0
    %3231 = vmatprep.subr.mxu0 0.0
    %3232 = vmatpush1.msra.mxu0 0.0
    %3233 = vmatprep.subr.mxu0 0.0
    %3234 = vmatpush1.msra.mxu0 0.0
    %3235 = vmatprep.mubr.f32.mxu0 0.0
    %3236 = vmatmul.mubr.f32.gmra.mrb[0].mxu0 %v2639
    %v3237 = vpop.f32.mrb[0].mxu0
    %v3238 = vadd.f32 0.0, %v3237
    %v3239 = vpop.f32.mrb[0].mxu0
    %3240 = vdwg.mxu0
    %s3241 = scalar_lea.vmem %s5, 48
    %v3242 = vld [vmem:[%s3241] sm:$0xff]
    %v3243 = vld [vmem:[%s3241 + $0x8] sm:$0xff]
    %v3245 = vsel %vm2818, %v3242, 0
    %v3248 = vsel %vm2818, %v3243, 0
    %3250 = vmatprep.subr.mxu0 0.0
    %3251 = vmatpush1.msra.mxu0 %v3238
    %3252 = vmatprep.subr.mxu0 0.0
    %3253 = vmatpush1.msra.mxu0 0.0
    %3254 = vmatprep.subr.mxu0 0.0
    %3255 = vmatpush1.msra.mxu0 0.0
    %3256 = vmatprep.subr.mxu0 0.0
    %3257 = vmatpush1.msra.mxu0 0.0
    %3258 = vmatprep.subr.mxu0 0.0
    %3259 = vmatpush1.msra.mxu0 0.0
    %3260 = vmatprep.subr.mxu0 0.0
    %3261 = vmatpush1.msra.mxu0 0.0
    %3262 = vmatprep.subr.mxu0 0.0
    %3263 = vmatpush1.msra.mxu0 0.0
    %3264 = vmatprep.subr.mxu0 0.0
    %3265 = vmatpush1.msra.mxu0 0.0
    %3266 = vmatprep.subr.mxu0 0.0
    %3267 = vmatpush1.msra.mxu0 0.0
    %3268 = vmatprep.subr.mxu0 0.0
    %3269 = vmatpush1.msra.mxu0 0.0
    %3270 = vmatprep.subr.mxu0 0.0
    %3271 = vmatpush1.msra.mxu0 0.0
    %3272 = vmatprep.subr.mxu0 0.0
    %3273 = vmatpush1.msra.mxu0 0.0
    %3274 = vmatprep.subr.mxu0 0.0
    %3275 = vmatpush1.msra.mxu0 0.0
    %3276 = vmatprep.subr.mxu0 0.0
    %3277 = vmatpush1.msra.mxu0 0.0
    %3278 = vmatprep.subr.mxu0 0.0
    %3279 = vmatpush1.msra.mxu0 0.0
    %3280 = vmatprep.subr.mxu0 0.0
    %3281 = vmatpush1.msra.mxu0 0.0
    %3282 = vmatprep.subr.mxu0 0.0
    %3283 = vmatpush1.msra.mxu0 0.0
    %3284 = vmatprep.subr.mxu0 0.0
    %3285 = vmatpush1.msra.mxu0 0.0
    %3286 = vmatprep.subr.mxu0 0.0
    %3287 = vmatpush1.msra.mxu0 0.0
    %3288 = vmatprep.subr.mxu0 0.0
    %3289 = vmatpush1.msra.mxu0 0.0
    %3290 = vmatprep.subr.mxu0 0.0
    %3291 = vmatpush1.msra.mxu0 0.0
    %3292 = vmatprep.subr.mxu0 0.0
    %3293 = vmatpush1.msra.mxu0 0.0
    %3294 = vmatprep.subr.mxu0 0.0
    %3295 = vmatpush1.msra.mxu0 0.0
    %3296 = vmatprep.subr.mxu0 0.0
    %3297 = vmatpush1.msra.mxu0 0.0
    %3298 = vmatprep.subr.mxu0 0.0
    %3299 = vmatpush1.msra.mxu0 0.0
    %3300 = vmatprep.subr.mxu0 0.0
    %3301 = vmatpush1.msra.mxu0 0.0
    %3302 = vmatprep.subr.mxu0 0.0
    %3303 = vmatpush1.msra.mxu0 0.0
    %3304 = vmatprep.subr.mxu0 0.0
    %3305 = vmatpush1.msra.mxu0 0.0
    %3306 = vmatprep.subr.mxu0 0.0
    %3307 = vmatpush1.msra.mxu0 0.0
    %3308 = vmatprep.subr.mxu0 0.0
    %3309 = vmatpush1.msra.mxu0 0.0
    %3310 = vmatprep.subr.mxu0 0.0
    %3311 = vmatpush1.msra.mxu0 0.0
    %3312 = vmatprep.subr.mxu0 0.0
    %3313 = vmatpush1.msra.mxu0 0.0
    %3314 = vmatprep.mubr.f32.mxu0 0.0
    %3315 = vmatmul.mubr.f32.gmra.mrb[0].mxu0 %v3245
    %v3316 = vpop.f32.mrb[0].mxu0
    %v3317 = vadd.f32 0.0, %v3316
    %v3318 = vpop.f32.mrb[0].mxu0
    %3319 = vmatprep.mubr.f32.mxu0 0.0
    %3320 = vmatmul.mubr.f32.gmra.mrb[0].mxu0 %v3248
    %v3321 = vpop.f32.mrb[0].mxu0
    %v3322 = vadd.f32 0.0, %v3321
    %v3323 = vpop.f32.mrb[0].mxu0
    %3324 = vdwg.mxu0
    %v3325 = vadd.f32 %v3152, %v3317
    %v3326 = vadd.f32 %v3153, %v3322
    %s3327 = scalar_lea.vmem %s4, 512
    %v3328 = vld [vmem:[%s3327] sm:$0xff]
    %v3329 = vld [vmem:[%s3327 + $0x8] sm:$0xff]
    %v3330 = vld [vmem:[%s3327 + $0x10] sm:$0xff]
    %v3331 = vld [vmem:[%s3327 + $0x18] sm:$0xff]
    %v3332 = vld [vmem:[%s3327 + $0x20] sm:$0xff]
    %v3333 = vld [vmem:[%s3327 + $0x28] sm:$0xff]
    %v3334 = vld [vmem:[%s3327 + $0x30] sm:$0xff]
    %v3335 = vld [vmem:[%s3327 + $0x38] sm:$0xff]
    %v3336 = vld [vmem:[%s3327 + $0x40] sm:$0xff]
    %v3337 = vld [vmem:[%s3327 + $0x48] sm:$0xff]
    %v3338 = vld [vmem:[%s3327 + $0x50] sm:$0xff]
    %v3339 = vld [vmem:[%s3327 + $0x58] sm:$0xff]
    %v3340 = vld [vmem:[%s3327 + $0x60] sm:$0xff]
    %v3341 = vld [vmem:[%s3327 + $0x68] sm:$0xff]
    %v3342 = vld [vmem:[%s3327 + $0x70] sm:$0xff]
    %v3343 = vld [vmem:[%s3327 + $0x78] sm:$0xff]
    %3344 = vmatprep.subr.mxu0 0.0
    %3345 = vmatpush1.msra.mxu0 %v3328
    %3346 = vmatprep.subr.mxu0 0.0
    %3347 = vmatpush1.msra.mxu0 %v3329
    %3348 = vmatprep.subr.mxu0 0.0
    %3349 = vmatpush1.msra.mxu0 %v3330
    %3350 = vmatprep.subr.mxu0 0.0
    %3351 = vmatpush1.msra.mxu0 %v3331
    %3352 = vmatprep.subr.mxu0 0.0
    %3353 = vmatpush1.msra.mxu0 %v3332
    %3354 = vmatprep.subr.mxu0 0.0
    %3355 = vmatpush1.msra.mxu0 %v3333
    %3356 = vmatprep.subr.mxu0 0.0
    %3357 = vmatpush1.msra.mxu0 %v3334
    %3358 = vmatprep.subr.mxu0 0.0
    %3359 = vmatpush1.msra.mxu0 %v3335
    %3360 = vmatprep.subr.mxu0 0.0
    %3361 = vmatpush1.msra.mxu0 %v3336
    %3362 = vmatprep.subr.mxu0 0.0
    %3363 = vmatpush1.msra.mxu0 %v3337
    %3364 = vmatprep.subr.mxu0 0.0
    %3365 = vmatpush1.msra.mxu0 %v3338
    %3366 = vmatprep.subr.mxu0 0.0
    %3367 = vmatpush1.msra.mxu0 %v3339
    %3368 = vmatprep.subr.mxu0 0.0
    %3369 = vmatpush1.msra.mxu0 %v3340
    %3370 = vmatprep.subr.mxu0 0.0
    %3371 = vmatpush1.msra.mxu0 %v3341
    %3372 = vmatprep.subr.mxu0 0.0
    %3373 = vmatpush1.msra.mxu0 %v3342
    %3374 = vmatprep.subr.mxu0 0.0
    %3375 = vmatpush1.msra.mxu0 %v3343
    %3376 = vmatprep.subr.mxu0 0.0
    %3377 = vmatpush1.msra.mxu0 0.0
    %3378 = vmatprep.subr.mxu0 0.0
    %3379 = vmatpush1.msra.mxu0 0.0
    %3380 = vmatprep.subr.mxu0 0.0
    %3381 = vmatpush1.msra.mxu0 0.0
    %3382 = vmatprep.subr.mxu0 0.0
    %3383 = vmatpush1.msra.mxu0 0.0
    %3384 = vmatprep.subr.mxu0 0.0
    %3385 = vmatpush1.msra.mxu0 0.0
    %3386 = vmatprep.subr.mxu0 0.0
    %3387 = vmatpush1.msra.mxu0 0.0
    %3388 = vmatprep.subr.mxu0 0.0
    %3389 = vmatpush1.msra.mxu0 0.0
    %3390 = vmatprep.subr.mxu0 0.0
    %3391 = vmatpush1.msra.mxu0 0.0
    %3392 = vmatprep.subr.mxu0 0.0
    %3393 = vmatpush1.msra.mxu0 0.0
    %3394 = vmatprep.subr.mxu0 0.0
    %3395 = vmatpush1.msra.mxu0 0.0
    %3396 = vmatprep.subr.mxu0 0.0
    %3397 = vmatpush1.msra.mxu0 0.0
    %3398 = vmatprep.subr.mxu0 0.0
    %3399 = vmatpush1.msra.mxu0 0.0
    %3400 = vmatprep.subr.mxu0 0.0
    %3401 = vmatpush1.msra.mxu0 0.0
    %3402 = vmatprep.subr.mxu0 0.0
    %3403 = vmatpush1.msra.mxu0 0.0
    %3404 = vmatprep.subr.mxu0 0.0
    %3405 = vmatpush1.msra.mxu0 0.0
    %3406 = vmatprep.subr.mxu0 0.0
    %3407 = vmatpush1.msra.mxu0 0.0
    %3408 = vmatprep.mubr.f32.mxu0 0.0
    %3409 = vmatmul.mubr.f32.gmra.mrb[0].mxu0 %v2639
    %v3410 = vpop.f32.mrb[0].mxu0
    %v3411 = vadd.f32 0.0, %v3410
    %v3412 = vpop.f32.mrb[0].mxu0
    %3413 = vdwg.mxu0
    %s3414 = scalar_lea.vmem %s5, 64
    %v3415 = vld [vmem:[%s3414] sm:$0xff]
    %v3416 = vld [vmem:[%s3414 + $0x8] sm:$0xff]
    %v3418 = vsel %vm2818, %v3415, 0
    %v3421 = vsel %vm2818, %v3416, 0
    %3423 = vmatprep.subr.mxu0 0.0
    %3424 = vmatpush1.msra.mxu0 %v3411
    %3425 = vmatprep.subr.mxu0 0.0
    %3426 = vmatpush1.msra.mxu0 0.0
    %3427 = vmatprep.subr.mxu0 0.0
    %3428 = vmatpush1.msra.mxu0 0.0
    %3429 = vmatprep.subr.mxu0 0.0
    %3430 = vmatpush1.msra.mxu0 0.0
    %3431 = vmatprep.subr.mxu0 0.0
    %3432 = vmatpush1.msra.mxu0 0.0
    %3433 = vmatprep.subr.mxu0 0.0
    %3434 = vmatpush1.msra.mxu0 0.0
    %3435 = vmatprep.subr.mxu0 0.0
    %3436 = vmatpush1.msra.mxu0 0.0
    %3437 = vmatprep.subr.mxu0 0.0
    %3438 = vmatpush1.msra.mxu0 0.0
    %3439 = vmatprep.subr.mxu0 0.0
    %3440 = vmatpush1.msra.mxu0 0.0
    %3441 = vmatprep.subr.mxu0 0.0
    %3442 = vmatpush1.msra.mxu0 0.0
    %3443 = vmatprep.subr.mxu0 0.0
    %3444 = vmatpush1.msra.mxu0 0.0
    %3445 = vmatprep.subr.mxu0 0.0
    %3446 = vmatpush1.msra.mxu0 0.0
    %3447 = vmatprep.subr.mxu0 0.0
    %3448 = vmatpush1.msra.mxu0 0.0
    %3449 = vmatprep.subr.mxu0 0.0
    %3450 = vmatpush1.msra.mxu0 0.0
    %3451 = vmatprep.subr.mxu0 0.0
    %3452 = vmatpush1.msra.mxu0 0.0
    %3453 = vmatprep.subr.mxu0 0.0
    %3454 = vmatpush1.msra.mxu0 0.0
    %3455 = vmatprep.subr.mxu0 0.0
    %3456 = vmatpush1.msra.mxu0 0.0
    %3457 = vmatprep.subr.mxu0 0.0
    %3458 = vmatpush1.msra.mxu0 0.0
    %3459 = vmatprep.subr.mxu0 0.0
    %3460 = vmatpush1.msra.mxu0 0.0
    %3461 = vmatprep.subr.mxu0 0.0
    %3462 = vmatpush1.msra.mxu0 0.0
    %3463 = vmatprep.subr.mxu0 0.0
    %3464 = vmatpush1.msra.mxu0 0.0
    %3465 = vmatprep.subr.mxu0 0.0
    %3466 = vmatpush1.msra.mxu0 0.0
    %3467 = vmatprep.subr.mxu0 0.0
    %3468 = vmatpush1.msra.mxu0 0.0
    %3469 = vmatprep.subr.mxu0 0.0
    %3470 = vmatpush1.msra.mxu0 0.0
    %3471 = vmatprep.subr.mxu0 0.0
    %3472 = vmatpush1.msra.mxu0 0.0
    %3473 = vmatprep.subr.mxu0 0.0
    %3474 = vmatpush1.msra.mxu0 0.0
    %3475 = vmatprep.subr.mxu0 0.0
    %3476 = vmatpush1.msra.mxu0 0.0
    %3477 = vmatprep.subr.mxu0 0.0
    %3478 = vmatpush1.msra.mxu0 0.0
    %3479 = vmatprep.subr.mxu0 0.0
    %3480 = vmatpush1.msra.mxu0 0.0
    %3481 = vmatprep.subr.mxu0 0.0
    %3482 = vmatpush1.msra.mxu0 0.0
    %3483 = vmatprep.subr.mxu0 0.0
    %3484 = vmatpush1.msra.mxu0 0.0
    %3485 = vmatprep.subr.mxu0 0.0
    %3486 = vmatpush1.msra.mxu0 0.0
    %3487 = vmatprep.mubr.f32.mxu0 0.0
    %3488 = vmatmul.mubr.f32.gmra.mrb[0].mxu0 %v3418
    %v3489 = vpop.f32.mrb[0].mxu0
    %v3490 = vadd.f32 0.0, %v3489
    %v3491 = vpop.f32.mrb[0].mxu0
    %3492 = vmatprep.mubr.f32.mxu0 0.0
    %3493 = vmatmul.mubr.f32.gmra.mrb[0].mxu0 %v3421
    %v3494 = vpop.f32.mrb[0].mxu0
    %v3495 = vadd.f32 0.0, %v3494
    %v3496 = vpop.f32.mrb[0].mxu0
    %3497 = vdwg.mxu0
    %v3498 = vadd.f32 %v3325, %v3490
    %v3499 = vadd.f32 %v3326, %v3495
    %s3500 = scalar_lea.vmem %s4, 640
    %v3501 = vld [vmem:[%s3500] sm:$0xff]
    %v3502 = vld [vmem:[%s3500 + $0x8] sm:$0xff]
    %v3503 = vld [vmem:[%s3500 + $0x10] sm:$0xff]
    %v3504 = vld [vmem:[%s3500 + $0x18] sm:$0xff]
    %v3505 = vld [vmem:[%s3500 + $0x20] sm:$0xff]
    %v3506 = vld [vmem:[%s3500 + $0x28] sm:$0xff]
    %v3507 = vld [vmem:[%s3500 + $0x30] sm:$0xff]
    %v3508 = vld [vmem:[%s3500 + $0x38] sm:$0xff]
    %v3509 = vld [vmem:[%s3500 + $0x40] sm:$0xff]
    %v3510 = vld [vmem:[%s3500 + $0x48] sm:$0xff]
    %v3511 = vld [vmem:[%s3500 + $0x50] sm:$0xff]
    %v3512 = vld [vmem:[%s3500 + $0x58] sm:$0xff]
    %v3513 = vld [vmem:[%s3500 + $0x60] sm:$0xff]
    %v3514 = vld [vmem:[%s3500 + $0x68] sm:$0xff]
    %v3515 = vld [vmem:[%s3500 + $0x70] sm:$0xff]
    %v3516 = vld [vmem:[%s3500 + $0x78] sm:$0xff]
    %3517 = vmatprep.subr.mxu0 0.0
    %3518 = vmatpush1.msra.mxu0 %v3501
    %3519 = vmatprep.subr.mxu0 0.0
    %3520 = vmatpush1.msra.mxu0 %v3502
    %3521 = vmatprep.subr.mxu0 0.0
    %3522 = vmatpush1.msra.mxu0 %v3503
    %3523 = vmatprep.subr.mxu0 0.0
    %3524 = vmatpush1.msra.mxu0 %v3504
    %3525 = vmatprep.subr.mxu0 0.0
    %3526 = vmatpush1.msra.mxu0 %v3505
    %3527 = vmatprep.subr.mxu0 0.0
    %3528 = vmatpush1.msra.mxu0 %v3506
    %3529 = vmatprep.subr.mxu0 0.0
    %3530 = vmatpush1.msra.mxu0 %v3507
    %3531 = vmatprep.subr.mxu0 0.0
    %3532 = vmatpush1.msra.mxu0 %v3508
    %3533 = vmatprep.subr.mxu0 0.0
    %3534 = vmatpush1.msra.mxu0 %v3509
    %3535 = vmatprep.subr.mxu0 0.0
    %3536 = vmatpush1.msra.mxu0 %v3510
    %3537 = vmatprep.subr.mxu0 0.0
    %3538 = vmatpush1.msra.mxu0 %v3511
    %3539 = vmatprep.subr.mxu0 0.0
    %3540 = vmatpush1.msra.mxu0 %v3512
    %3541 = vmatprep.subr.mxu0 0.0
    %3542 = vmatpush1.msra.mxu0 %v3513
    %3543 = vmatprep.subr.mxu0 0.0
    %3544 = vmatpush1.msra.mxu0 %v3514
    %3545 = vmatprep.subr.mxu0 0.0
    %3546 = vmatpush1.msra.mxu0 %v3515
    %3547 = vmatprep.subr.mxu0 0.0
    %3548 = vmatpush1.msra.mxu0 %v3516
    %3549 = vmatprep.subr.mxu0 0.0
    %3550 = vmatpush1.msra.mxu0 0.0
    %3551 = vmatprep.subr.mxu0 0.0
    %3552 = vmatpush1.msra.mxu0 0.0
    %3553 = vmatprep.subr.mxu0 0.0
    %3554 = vmatpush1.msra.mxu0 0.0
    %3555 = vmatprep.subr.mxu0 0.0
    %3556 = vmatpush1.msra.mxu0 0.0
    %3557 = vmatprep.subr.mxu0 0.0
    %3558 = vmatpush1.msra.mxu0 0.0
    %3559 = vmatprep.subr.mxu0 0.0
    %3560 = vmatpush1.msra.mxu0 0.0
    %3561 = vmatprep.subr.mxu0 0.0
    %3562 = vmatpush1.msra.mxu0 0.0
    %3563 = vmatprep.subr.mxu0 0.0
    %3564 = vmatpush1.msra.mxu0 0.0
    %3565 = vmatprep.subr.mxu0 0.0
    %3566 = vmatpush1.msra.mxu0 0.0
    %3567 = vmatprep.subr.mxu0 0.0
    %3568 = vmatpush1.msra.mxu0 0.0
    %3569 = vmatprep.subr.mxu0 0.0
    %3570 = vmatpush1.msra.mxu0 0.0
    %3571 = vmatprep.subr.mxu0 0.0
    %3572 = vmatpush1.msra.mxu0 0.0
    %3573 = vmatprep.subr.mxu0 0.0
    %3574 = vmatpush1.msra.mxu0 0.0
    %3575 = vmatprep.subr.mxu0 0.0
    %3576 = vmatpush1.msra.mxu0 0.0
    %3577 = vmatprep.subr.mxu0 0.0
    %3578 = vmatpush1.msra.mxu0 0.0
    %3579 = vmatprep.subr.mxu0 0.0
    %3580 = vmatpush1.msra.mxu0 0.0
    %3581 = vmatprep.mubr.f32.mxu0 0.0
    %3582 = vmatmul.mubr.f32.gmra.mrb[0].mxu0 %v2639
    %v3583 = vpop.f32.mrb[0].mxu0
    %v3584 = vadd.f32 0.0, %v3583
    %v3585 = vpop.f32.mrb[0].mxu0
    %3586 = vdwg.mxu0
    %s3587 = scalar_lea.vmem %s5, 80
    %v3588 = vld [vmem:[%s3587] sm:$0xff]
    %v3589 = vld [vmem:[%s3587 + $0x8] sm:$0xff]
    %v3591 = vsel %vm2818, %v3588, 0
    %v3594 = vsel %vm2818, %v3589, 0
    %3596 = vmatprep.subr.mxu0 0.0
    %3597 = vmatpush1.msra.mxu0 %v3584
    %3598 = vmatprep.subr.mxu0 0.0
    %3599 = vmatpush1.msra.mxu0 0.0
    %3600 = vmatprep.subr.mxu0 0.0
    %3601 = vmatpush1.msra.mxu0 0.0
    %3602 = vmatprep.subr.mxu0 0.0
    %3603 = vmatpush1.msra.mxu0 0.0
    %3604 = vmatprep.subr.mxu0 0.0
    %3605 = vmatpush1.msra.mxu0 0.0
    %3606 = vmatprep.subr.mxu0 0.0
    %3607 = vmatpush1.msra.mxu0 0.0
    %3608 = vmatprep.subr.mxu0 0.0
    %3609 = vmatpush1.msra.mxu0 0.0
    %3610 = vmatprep.subr.mxu0 0.0
    %3611 = vmatpush1.msra.mxu0 0.0
    %3612 = vmatprep.subr.mxu0 0.0
    %3613 = vmatpush1.msra.mxu0 0.0
    %3614 = vmatprep.subr.mxu0 0.0
    %3615 = vmatpush1.msra.mxu0 0.0
    %3616 = vmatprep.subr.mxu0 0.0
    %3617 = vmatpush1.msra.mxu0 0.0
    %3618 = vmatprep.subr.mxu0 0.0
    %3619 = vmatpush1.msra.mxu0 0.0
    %3620 = vmatprep.subr.mxu0 0.0
    %3621 = vmatpush1.msra.mxu0 0.0
    %3622 = vmatprep.subr.mxu0 0.0
    %3623 = vmatpush1.msra.mxu0 0.0
    %3624 = vmatprep.subr.mxu0 0.0
    %3625 = vmatpush1.msra.mxu0 0.0
    %3626 = vmatprep.subr.mxu0 0.0
    %3627 = vmatpush1.msra.mxu0 0.0
    %3628 = vmatprep.subr.mxu0 0.0
    %3629 = vmatpush1.msra.mxu0 0.0
    %3630 = vmatprep.subr.mxu0 0.0
    %3631 = vmatpush1.msra.mxu0 0.0
    %3632 = vmatprep.subr.mxu0 0.0
    %3633 = vmatpush1.msra.mxu0 0.0
    %3634 = vmatprep.subr.mxu0 0.0
    %3635 = vmatpush1.msra.mxu0 0.0
    %3636 = vmatprep.subr.mxu0 0.0
    %3637 = vmatpush1.msra.mxu0 0.0
    %3638 = vmatprep.subr.mxu0 0.0
    %3639 = vmatpush1.msra.mxu0 0.0
    %3640 = vmatprep.subr.mxu0 0.0
    %3641 = vmatpush1.msra.mxu0 0.0
    %3642 = vmatprep.subr.mxu0 0.0
    %3643 = vmatpush1.msra.mxu0 0.0
    %3644 = vmatprep.subr.mxu0 0.0
    %3645 = vmatpush1.msra.mxu0 0.0
    %3646 = vmatprep.subr.mxu0 0.0
    %3647 = vmatpush1.msra.mxu0 0.0
    %3648 = vmatprep.subr.mxu0 0.0
    %3649 = vmatpush1.msra.mxu0 0.0
    %3650 = vmatprep.subr.mxu0 0.0
    %3651 = vmatpush1.msra.mxu0 0.0
    %3652 = vmatprep.subr.mxu0 0.0
    %3653 = vmatpush1.msra.mxu0 0.0
    %3654 = vmatprep.subr.mxu0 0.0
    %3655 = vmatpush1.msra.mxu0 0.0
    %3656 = vmatprep.subr.mxu0 0.0
    %3657 = vmatpush1.msra.mxu0 0.0
    %3658 = vmatprep.subr.mxu0 0.0
    %3659 = vmatpush1.msra.mxu0 0.0
    %3660 = vmatprep.mubr.f32.mxu0 0.0
    %3661 = vmatmul.mubr.f32.gmra.mrb[0].mxu0 %v3591
    %v3662 = vpop.f32.mrb[0].mxu0
    %v3663 = vadd.f32 0.0, %v3662
    %v3664 = vpop.f32.mrb[0].mxu0
    %3665 = vmatprep.mubr.f32.mxu0 0.0
    %3666 = vmatmul.mubr.f32.gmra.mrb[0].mxu0 %v3594
    %v3667 = vpop.f32.mrb[0].mxu0
    %v3668 = vadd.f32 0.0, %v3667
    %v3669 = vpop.f32.mrb[0].mxu0
    %3670 = vdwg.mxu0
    %v3671 = vadd.f32 %v3498, %v3663
    %v3672 = vadd.f32 %v3499, %v3668
    %s3673 = scalar_lea.vmem %s4, 768
    %v3674 = vld [vmem:[%s3673] sm:$0xff]
    %v3675 = vld [vmem:[%s3673 + $0x8] sm:$0xff]
    %v3676 = vld [vmem:[%s3673 + $0x10] sm:$0xff]
    %v3677 = vld [vmem:[%s3673 + $0x18] sm:$0xff]
    %v3678 = vld [vmem:[%s3673 + $0x20] sm:$0xff]
    %v3679 = vld [vmem:[%s3673 + $0x28] sm:$0xff]
    %v3680 = vld [vmem:[%s3673 + $0x30] sm:$0xff]
    %v3681 = vld [vmem:[%s3673 + $0x38] sm:$0xff]
    %v3682 = vld [vmem:[%s3673 + $0x40] sm:$0xff]
    %v3683 = vld [vmem:[%s3673 + $0x48] sm:$0xff]
    %v3684 = vld [vmem:[%s3673 + $0x50] sm:$0xff]
    %v3685 = vld [vmem:[%s3673 + $0x58] sm:$0xff]
    %v3686 = vld [vmem:[%s3673 + $0x60] sm:$0xff]
    %v3687 = vld [vmem:[%s3673 + $0x68] sm:$0xff]
    %v3688 = vld [vmem:[%s3673 + $0x70] sm:$0xff]
    %v3689 = vld [vmem:[%s3673 + $0x78] sm:$0xff]
    %3690 = vmatprep.subr.mxu0 0.0
    %3691 = vmatpush1.msra.mxu0 %v3674
    %3692 = vmatprep.subr.mxu0 0.0
    %3693 = vmatpush1.msra.mxu0 %v3675
    %3694 = vmatprep.subr.mxu0 0.0
    %3695 = vmatpush1.msra.mxu0 %v3676
    %3696 = vmatprep.subr.mxu0 0.0
    %3697 = vmatpush1.msra.mxu0 %v3677
    %3698 = vmatprep.subr.mxu0 0.0
    %3699 = vmatpush1.msra.mxu0 %v3678
    %3700 = vmatprep.subr.mxu0 0.0
    %3701 = vmatpush1.msra.mxu0 %v3679
    %3702 = vmatprep.subr.mxu0 0.0
    %3703 = vmatpush1.msra.mxu0 %v3680
    %3704 = vmatprep.subr.mxu0 0.0
    %3705 = vmatpush1.msra.mxu0 %v3681
    %3706 = vmatprep.subr.mxu0 0.0
    %3707 = vmatpush1.msra.mxu0 %v3682
    %3708 = vmatprep.subr.mxu0 0.0
    %3709 = vmatpush1.msra.mxu0 %v3683
    %3710 = vmatprep.subr.mxu0 0.0
    %3711 = vmatpush1.msra.mxu0 %v3684
    %3712 = vmatprep.subr.mxu0 0.0
    %3713 = vmatpush1.msra.mxu0 %v3685
    %3714 = vmatprep.subr.mxu0 0.0
    %3715 = vmatpush1.msra.mxu0 %v3686
    %3716 = vmatprep.subr.mxu0 0.0
    %3717 = vmatpush1.msra.mxu0 %v3687
    %3718 = vmatprep.subr.mxu0 0.0
    %3719 = vmatpush1.msra.mxu0 %v3688
    %3720 = vmatprep.subr.mxu0 0.0
    %3721 = vmatpush1.msra.mxu0 %v3689
    %3722 = vmatprep.subr.mxu0 0.0
    %3723 = vmatpush1.msra.mxu0 0.0
    %3724 = vmatprep.subr.mxu0 0.0
    %3725 = vmatpush1.msra.mxu0 0.0
    %3726 = vmatprep.subr.mxu0 0.0
    %3727 = vmatpush1.msra.mxu0 0.0
    %3728 = vmatprep.subr.mxu0 0.0
    %3729 = vmatpush1.msra.mxu0 0.0
    %3730 = vmatprep.subr.mxu0 0.0
    %3731 = vmatpush1.msra.mxu0 0.0
    %3732 = vmatprep.subr.mxu0 0.0
    %3733 = vmatpush1.msra.mxu0 0.0
    %3734 = vmatprep.subr.mxu0 0.0
    %3735 = vmatpush1.msra.mxu0 0.0
    %3736 = vmatprep.subr.mxu0 0.0
    %3737 = vmatpush1.msra.mxu0 0.0
    %3738 = vmatprep.subr.mxu0 0.0
    %3739 = vmatpush1.msra.mxu0 0.0
    %3740 = vmatprep.subr.mxu0 0.0
    %3741 = vmatpush1.msra.mxu0 0.0
    %3742 = vmatprep.subr.mxu0 0.0
    %3743 = vmatpush1.msra.mxu0 0.0
    %3744 = vmatprep.subr.mxu0 0.0
    %3745 = vmatpush1.msra.mxu0 0.0
    %3746 = vmatprep.subr.mxu0 0.0
    %3747 = vmatpush1.msra.mxu0 0.0
    %3748 = vmatprep.subr.mxu0 0.0
    %3749 = vmatpush1.msra.mxu0 0.0
    %3750 = vmatprep.subr.mxu0 0.0
    %3751 = vmatpush1.msra.mxu0 0.0
    %3752 = vmatprep.subr.mxu0 0.0
    %3753 = vmatpush1.msra.mxu0 0.0
    %3754 = vmatprep.mubr.f32.mxu0 0.0
    %3755 = vmatmul.mubr.f32.gmra.mrb[0].mxu0 %v2639
    %v3756 = vpop.f32.mrb[0].mxu0
    %v3757 = vadd.f32 0.0, %v3756
    %v3758 = vpop.f32.mrb[0].mxu0
    %3759 = vdwg.mxu0
    %s3760 = scalar_lea.vmem %s5, 96
    %v3761 = vld [vmem:[%s3760] sm:$0xff]
    %v3762 = vld [vmem:[%s3760 + $0x8] sm:$0xff]
    %v3764 = vsel %vm2818, %v3761, 0
    %v3767 = vsel %vm2818, %v3762, 0
    %3769 = vmatprep.subr.mxu0 0.0
    %3770 = vmatpush1.msra.mxu0 %v3757
    %3771 = vmatprep.subr.mxu0 0.0
    %3772 = vmatpush1.msra.mxu0 0.0
    %3773 = vmatprep.subr.mxu0 0.0
    %3774 = vmatpush1.msra.mxu0 0.0
    %3775 = vmatprep.subr.mxu0 0.0
    %3776 = vmatpush1.msra.mxu0 0.0
    %3777 = vmatprep.subr.mxu0 0.0
    %3778 = vmatpush1.msra.mxu0 0.0
    %3779 = vmatprep.subr.mxu0 0.0
    %3780 = vmatpush1.msra.mxu0 0.0
    %3781 = vmatprep.subr.mxu0 0.0
    %3782 = vmatpush1.msra.mxu0 0.0
    %3783 = vmatprep.subr.mxu0 0.0
    %3784 = vmatpush1.msra.mxu0 0.0
    %3785 = vmatprep.subr.mxu0 0.0
    %3786 = vmatpush1.msra.mxu0 0.0
    %3787 = vmatprep.subr.mxu0 0.0
    %3788 = vmatpush1.msra.mxu0 0.0
    %3789 = vmatprep.subr.mxu0 0.0
    %3790 = vmatpush1.msra.mxu0 0.0
    %3791 = vmatprep.subr.mxu0 0.0
    %3792 = vmatpush1.msra.mxu0 0.0
    %3793 = vmatprep.subr.mxu0 0.0
    %3794 = vmatpush1.msra.mxu0 0.0
    %3795 = vmatprep.subr.mxu0 0.0
    %3796 = vmatpush1.msra.mxu0 0.0
    %3797 = vmatprep.subr.mxu0 0.0
    %3798 = vmatpush1.msra.mxu0 0.0
    %3799 = vmatprep.subr.mxu0 0.0
    %3800 = vmatpush1.msra.mxu0 0.0
    %3801 = vmatprep.subr.mxu0 0.0
    %3802 = vmatpush1.msra.mxu0 0.0
    %3803 = vmatprep.subr.mxu0 0.0
    %3804 = vmatpush1.msra.mxu0 0.0
    %3805 = vmatprep.subr.mxu0 0.0
    %3806 = vmatpush1.msra.mxu0 0.0
    %3807 = vmatprep.subr.mxu0 0.0
    %3808 = vmatpush1.msra.mxu0 0.0
    %3809 = vmatprep.subr.mxu0 0.0
    %3810 = vmatpush1.msra.mxu0 0.0
    %3811 = vmatprep.subr.mxu0 0.0
    %3812 = vmatpush1.msra.mxu0 0.0
    %3813 = vmatprep.subr.mxu0 0.0
    %3814 = vmatpush1.msra.mxu0 0.0
    %3815 = vmatprep.subr.mxu0 0.0
    %3816 = vmatpush1.msra.mxu0 0.0
    %3817 = vmatprep.subr.mxu0 0.0
    %3818 = vmatpush1.msra.mxu0 0.0
    %3819 = vmatprep.subr.mxu0 0.0
    %3820 = vmatpush1.msra.mxu0 0.0
    %3821 = vmatprep.subr.mxu0 0.0
    %3822 = vmatpush1.msra.mxu0 0.0
    %3823 = vmatprep.subr.mxu0 0.0
    %3824 = vmatpush1.msra.mxu0 0.0
    %3825 = vmatprep.subr.mxu0 0.0
    %3826 = vmatpush1.msra.mxu0 0.0
    %3827 = vmatprep.subr.mxu0 0.0
    %3828 = vmatpush1.msra.mxu0 0.0
    %3829 = vmatprep.subr.mxu0 0.0
    %3830 = vmatpush1.msra.mxu0 0.0
    %3831 = vmatprep.subr.mxu0 0.0
    %3832 = vmatpush1.msra.mxu0 0.0
    %3833 = vmatprep.mubr.f32.mxu0 0.0
    %3834 = vmatmul.mubr.f32.gmra.mrb[0].mxu0 %v3764
    %v3835 = vpop.f32.mrb[0].mxu0
    %v3836 = vadd.f32 0.0, %v3835
    %v3837 = vpop.f32.mrb[0].mxu0
    %3838 = vmatprep.mubr.f32.mxu0 0.0
    %3839 = vmatmul.mubr.f32.gmra.mrb[0].mxu0 %v3767
    %v3840 = vpop.f32.mrb[0].mxu0
    %v3841 = vadd.f32 0.0, %v3840
    %v3842 = vpop.f32.mrb[0].mxu0
    %3843 = vdwg.mxu0
    %v3844 = vadd.f32 %v3671, %v3836
    %v3845 = vadd.f32 %v3672, %v3841
    %s3846 = scalar_lea.vmem %s4, 896
    %v3847 = vld [vmem:[%s3846] sm:$0xff]
    %v3848 = vld [vmem:[%s3846 + $0x8] sm:$0xff]
    %v3849 = vld [vmem:[%s3846 + $0x10] sm:$0xff]
    %v3850 = vld [vmem:[%s3846 + $0x18] sm:$0xff]
    %v3851 = vld [vmem:[%s3846 + $0x20] sm:$0xff]
    %v3852 = vld [vmem:[%s3846 + $0x28] sm:$0xff]
    %v3853 = vld [vmem:[%s3846 + $0x30] sm:$0xff]
    %v3854 = vld [vmem:[%s3846 + $0x38] sm:$0xff]
    %v3855 = vld [vmem:[%s3846 + $0x40] sm:$0xff]
    %v3856 = vld [vmem:[%s3846 + $0x48] sm:$0xff]
    %v3857 = vld [vmem:[%s3846 + $0x50] sm:$0xff]
    %v3858 = vld [vmem:[%s3846 + $0x58] sm:$0xff]
    %v3859 = vld [vmem:[%s3846 + $0x60] sm:$0xff]
    %v3860 = vld [vmem:[%s3846 + $0x68] sm:$0xff]
    %v3861 = vld [vmem:[%s3846 + $0x70] sm:$0xff]
    %v3862 = vld [vmem:[%s3846 + $0x78] sm:$0xff]
    %3863 = vmatprep.subr.mxu0 0.0
    %3864 = vmatpush1.msra.mxu0 %v3847
    %3865 = vmatprep.subr.mxu0 0.0
    %3866 = vmatpush1.msra.mxu0 %v3848
    %3867 = vmatprep.subr.mxu0 0.0
    %3868 = vmatpush1.msra.mxu0 %v3849
    %3869 = vmatprep.subr.mxu0 0.0
    %3870 = vmatpush1.msra.mxu0 %v3850
    %3871 = vmatprep.subr.mxu0 0.0
    %3872 = vmatpush1.msra.mxu0 %v3851
    %3873 = vmatprep.subr.mxu0 0.0
    %3874 = vmatpush1.msra.mxu0 %v3852
    %3875 = vmatprep.subr.mxu0 0.0
    %3876 = vmatpush1.msra.mxu0 %v3853
    %3877 = vmatprep.subr.mxu0 0.0
    %3878 = vmatpush1.msra.mxu0 %v3854
    %3879 = vmatprep.subr.mxu0 0.0
    %3880 = vmatpush1.msra.mxu0 %v3855
    %3881 = vmatprep.subr.mxu0 0.0
    %3882 = vmatpush1.msra.mxu0 %v3856
    %3883 = vmatprep.subr.mxu0 0.0
    %3884 = vmatpush1.msra.mxu0 %v3857
    %3885 = vmatprep.subr.mxu0 0.0
    %3886 = vmatpush1.msra.mxu0 %v3858
    %3887 = vmatprep.subr.mxu0 0.0
    %3888 = vmatpush1.msra.mxu0 %v3859
    %3889 = vmatprep.subr.mxu0 0.0
    %3890 = vmatpush1.msra.mxu0 %v3860
    %3891 = vmatprep.subr.mxu0 0.0
    %3892 = vmatpush1.msra.mxu0 %v3861
    %3893 = vmatprep.subr.mxu0 0.0
    %3894 = vmatpush1.msra.mxu0 %v3862
    %3895 = vmatprep.subr.mxu0 0.0
    %3896 = vmatpush1.msra.mxu0 0.0
    %3897 = vmatprep.subr.mxu0 0.0
    %3898 = vmatpush1.msra.mxu0 0.0
    %3899 = vmatprep.subr.mxu0 0.0
    %3900 = vmatpush1.msra.mxu0 0.0
    %3901 = vmatprep.subr.mxu0 0.0
    %3902 = vmatpush1.msra.mxu0 0.0
    %3903 = vmatprep.subr.mxu0 0.0
    %3904 = vmatpush1.msra.mxu0 0.0
    %3905 = vmatprep.subr.mxu0 0.0
    %3906 = vmatpush1.msra.mxu0 0.0
    %3907 = vmatprep.subr.mxu0 0.0
    %3908 = vmatpush1.msra.mxu0 0.0
    %3909 = vmatprep.subr.mxu0 0.0
    %3910 = vmatpush1.msra.mxu0 0.0
    %3911 = vmatprep.subr.mxu0 0.0
    %3912 = vmatpush1.msra.mxu0 0.0
    %3913 = vmatprep.subr.mxu0 0.0
    %3914 = vmatpush1.msra.mxu0 0.0
    %3915 = vmatprep.subr.mxu0 0.0
    %3916 = vmatpush1.msra.mxu0 0.0
    %3917 = vmatprep.subr.mxu0 0.0
    %3918 = vmatpush1.msra.mxu0 0.0
    %3919 = vmatprep.subr.mxu0 0.0
    %3920 = vmatpush1.msra.mxu0 0.0
    %3921 = vmatprep.subr.mxu0 0.0
    %3922 = vmatpush1.msra.mxu0 0.0
    %3923 = vmatprep.subr.mxu0 0.0
    %3924 = vmatpush1.msra.mxu0 0.0
    %3925 = vmatprep.subr.mxu0 0.0
    %3926 = vmatpush1.msra.mxu0 0.0
    %3927 = vmatprep.mubr.f32.mxu0 0.0
    %3928 = vmatmul.mubr.f32.gmra.mrb[0].mxu0 %v2639
    %v3929 = vpop.f32.mrb[0].mxu0
    %v3930 = vadd.f32 0.0, %v3929
    %v3931 = vpop.f32.mrb[0].mxu0
    %3932 = vdwg.mxu0
    %s3933 = scalar_lea.vmem %s5, 112
    %v3934 = vld [vmem:[%s3933] sm:$0xff]
    %v3935 = vld [vmem:[%s3933 + $0x8] sm:$0xff]
    %v3937 = vsel %vm2818, %v3934, 0
    %v3940 = vsel %vm2818, %v3935, 0
    %3942 = vmatprep.subr.mxu0 0.0
    %3943 = vmatpush1.msra.mxu0 %v3930
    %3944 = vmatprep.subr.mxu0 0.0
    %3945 = vmatpush1.msra.mxu0 0.0
    %3946 = vmatprep.subr.mxu0 0.0
    %3947 = vmatpush1.msra.mxu0 0.0
    %3948 = vmatprep.subr.mxu0 0.0
    %3949 = vmatpush1.msra.mxu0 0.0
    %3950 = vmatprep.subr.mxu0 0.0
    %3951 = vmatpush1.msra.mxu0 0.0
    %3952 = vmatprep.subr.mxu0 0.0
    %3953 = vmatpush1.msra.mxu0 0.0
    %3954 = vmatprep.subr.mxu0 0.0
    %3955 = vmatpush1.msra.mxu0 0.0
    %3956 = vmatprep.subr.mxu0 0.0
    %3957 = vmatpush1.msra.mxu0 0.0
    %3958 = vmatprep.subr.mxu0 0.0
    %3959 = vmatpush1.msra.mxu0 0.0
    %3960 = vmatprep.subr.mxu0 0.0
    %3961 = vmatpush1.msra.mxu0 0.0
    %3962 = vmatprep.subr.mxu0 0.0
    %3963 = vmatpush1.msra.mxu0 0.0
    %3964 = vmatprep.subr.mxu0 0.0
    %3965 = vmatpush1.msra.mxu0 0.0
    %3966 = vmatprep.subr.mxu0 0.0
    %3967 = vmatpush1.msra.mxu0 0.0
    %3968 = vmatprep.subr.mxu0 0.0
    %3969 = vmatpush1.msra.mxu0 0.0
    %3970 = vmatprep.subr.mxu0 0.0
    %3971 = vmatpush1.msra.mxu0 0.0
    %3972 = vmatprep.subr.mxu0 0.0
    %3973 = vmatpush1.msra.mxu0 0.0
    %3974 = vmatprep.subr.mxu0 0.0
    %3975 = vmatpush1.msra.mxu0 0.0
    %3976 = vmatprep.subr.mxu0 0.0
    %3977 = vmatpush1.msra.mxu0 0.0
    %3978 = vmatprep.subr.mxu0 0.0
    %3979 = vmatpush1.msra.mxu0 0.0
    %3980 = vmatprep.subr.mxu0 0.0
    %3981 = vmatpush1.msra.mxu0 0.0
    %3982 = vmatprep.subr.mxu0 0.0
    %3983 = vmatpush1.msra.mxu0 0.0
    %3984 = vmatprep.subr.mxu0 0.0
    %3985 = vmatpush1.msra.mxu0 0.0
    %3986 = vmatprep.subr.mxu0 0.0
    %3987 = vmatpush1.msra.mxu0 0.0
    %3988 = vmatprep.subr.mxu0 0.0
    %3989 = vmatpush1.msra.mxu0 0.0
    %3990 = vmatprep.subr.mxu0 0.0
    %3991 = vmatpush1.msra.mxu0 0.0
    %3992 = vmatprep.subr.mxu0 0.0
    %3993 = vmatpush1.msra.mxu0 0.0
    %3994 = vmatprep.subr.mxu0 0.0
    %3995 = vmatpush1.msra.mxu0 0.0
    %3996 = vmatprep.subr.mxu0 0.0
    %3997 = vmatpush1.msra.mxu0 0.0
    %3998 = vmatprep.subr.mxu0 0.0
    %3999 = vmatpush1.msra.mxu0 0.0
    %4000 = vmatprep.subr.mxu0 0.0
    %4001 = vmatpush1.msra.mxu0 0.0
    %4002 = vmatprep.subr.mxu0 0.0
    %4003 = vmatpush1.msra.mxu0 0.0
    %4004 = vmatprep.subr.mxu0 0.0
    %4005 = vmatpush1.msra.mxu0 0.0
    %4006 = vmatprep.mubr.f32.mxu0 0.0
    %4007 = vmatmul.mubr.f32.gmra.mrb[0].mxu0 %v3937
    %v4008 = vpop.f32.mrb[0].mxu0
    %v4009 = vadd.f32 0.0, %v4008
    %v4010 = vpop.f32.mrb[0].mxu0
    %4011 = vmatprep.mubr.f32.mxu0 0.0
    %4012 = vmatmul.mubr.f32.gmra.mrb[0].mxu0 %v3940
    %v4013 = vpop.f32.mrb[0].mxu0
    %v4014 = vadd.f32 0.0, %v4013
    %v4015 = vpop.f32.mrb[0].mxu0
    %4016 = vdwg.mxu0
    %v4017 = vadd.f32 %v3844, %v4009
    %v4018 = vadd.f32 %v3845, %v4014
    %s4019 = scalar_lea.vmem %s4, 1024
    %v4020 = vld [vmem:[%s4019] sm:$0xff]
    %v4021 = vld [vmem:[%s4019 + $0x8] sm:$0xff]
    %v4022 = vld [vmem:[%s4019 + $0x10] sm:$0xff]
    %v4023 = vld [vmem:[%s4019 + $0x18] sm:$0xff]
    %v4024 = vld [vmem:[%s4019 + $0x20] sm:$0xff]
    %v4025 = vld [vmem:[%s4019 + $0x28] sm:$0xff]
    %v4026 = vld [vmem:[%s4019 + $0x30] sm:$0xff]
    %v4027 = vld [vmem:[%s4019 + $0x38] sm:$0xff]
    %v4028 = vld [vmem:[%s4019 + $0x40] sm:$0xff]
    %v4029 = vld [vmem:[%s4019 + $0x48] sm:$0xff]
    %v4030 = vld [vmem:[%s4019 + $0x50] sm:$0xff]
    %v4031 = vld [vmem:[%s4019 + $0x58] sm:$0xff]
    %v4032 = vld [vmem:[%s4019 + $0x60] sm:$0xff]
    %v4033 = vld [vmem:[%s4019 + $0x68] sm:$0xff]
    %v4034 = vld [vmem:[%s4019 + $0x70] sm:$0xff]
    %v4035 = vld [vmem:[%s4019 + $0x78] sm:$0xff]
    %4036 = vmatprep.subr.mxu0 0.0
    %4037 = vmatpush1.msra.mxu0 %v4020
    %4038 = vmatprep.subr.mxu0 0.0
    %4039 = vmatpush1.msra.mxu0 %v4021
    %4040 = vmatprep.subr.mxu0 0.0
    %4041 = vmatpush1.msra.mxu0 %v4022
    %4042 = vmatprep.subr.mxu0 0.0
    %4043 = vmatpush1.msra.mxu0 %v4023
    %4044 = vmatprep.subr.mxu0 0.0
    %4045 = vmatpush1.msra.mxu0 %v4024
    %4046 = vmatprep.subr.mxu0 0.0
    %4047 = vmatpush1.msra.mxu0 %v4025
    %4048 = vmatprep.subr.mxu0 0.0
    %4049 = vmatpush1.msra.mxu0 %v4026
    %4050 = vmatprep.subr.mxu0 0.0
    %4051 = vmatpush1.msra.mxu0 %v4027
    %4052 = vmatprep.subr.mxu0 0.0
    %4053 = vmatpush1.msra.mxu0 %v4028
    %4054 = vmatprep.subr.mxu0 0.0
    %4055 = vmatpush1.msra.mxu0 %v4029
    %4056 = vmatprep.subr.mxu0 0.0
    %4057 = vmatpush1.msra.mxu0 %v4030
    %4058 = vmatprep.subr.mxu0 0.0
    %4059 = vmatpush1.msra.mxu0 %v4031
    %4060 = vmatprep.subr.mxu0 0.0
    %4061 = vmatpush1.msra.mxu0 %v4032
    %4062 = vmatprep.subr.mxu0 0.0
    %4063 = vmatpush1.msra.mxu0 %v4033
    %4064 = vmatprep.subr.mxu0 0.0
    %4065 = vmatpush1.msra.mxu0 %v4034
    %4066 = vmatprep.subr.mxu0 0.0
    %4067 = vmatpush1.msra.mxu0 %v4035
    %4068 = vmatprep.subr.mxu0 0.0
    %4069 = vmatpush1.msra.mxu0 0.0
    %4070 = vmatprep.subr.mxu0 0.0
    %4071 = vmatpush1.msra.mxu0 0.0
    %4072 = vmatprep.subr.mxu0 0.0
    %4073 = vmatpush1.msra.mxu0 0.0
    %4074 = vmatprep.subr.mxu0 0.0
    %4075 = vmatpush1.msra.mxu0 0.0
    %4076 = vmatprep.subr.mxu0 0.0
    %4077 = vmatpush1.msra.mxu0 0.0
    %4078 = vmatprep.subr.mxu0 0.0
    %4079 = vmatpush1.msra.mxu0 0.0
    %4080 = vmatprep.subr.mxu0 0.0
    %4081 = vmatpush1.msra.mxu0 0.0
    %4082 = vmatprep.subr.mxu0 0.0
    %4083 = vmatpush1.msra.mxu0 0.0
    %4084 = vmatprep.subr.mxu0 0.0
    %4085 = vmatpush1.msra.mxu0 0.0
    %4086 = vmatprep.subr.mxu0 0.0
    %4087 = vmatpush1.msra.mxu0 0.0
    %4088 = vmatprep.subr.mxu0 0.0
    %4089 = vmatpush1.msra.mxu0 0.0
    %4090 = vmatprep.subr.mxu0 0.0
    %4091 = vmatpush1.msra.mxu0 0.0
    %4092 = vmatprep.subr.mxu0 0.0
    %4093 = vmatpush1.msra.mxu0 0.0
    %4094 = vmatprep.subr.mxu0 0.0
    %4095 = vmatpush1.msra.mxu0 0.0
    %4096 = vmatprep.subr.mxu0 0.0
    %4097 = vmatpush1.msra.mxu0 0.0
    %4098 = vmatprep.subr.mxu0 0.0
    %4099 = vmatpush1.msra.mxu0 0.0
    %4100 = vmatprep.mubr.f32.mxu0 0.0
    %4101 = vmatmul.mubr.f32.gmra.mrb[0].mxu0 %v2639
    %v4102 = vpop.f32.mrb[0].mxu0
    %v4103 = vadd.f32 0.0, %v4102
    %v4104 = vpop.f32.mrb[0].mxu0
    %4105 = vdwg.mxu0
    %s4106 = scalar_lea.vmem %s5, 128
    %v4107 = vld [vmem:[%s4106] sm:$0xff]
    %v4108 = vld [vmem:[%s4106 + $0x8] sm:$0xff]
    %v4110 = vsel %vm2818, %v4107, 0
    %v4113 = vsel %vm2818, %v4108, 0
    %4115 = vmatprep.subr.mxu0 0.0
    %4116 = vmatpush1.msra.mxu0 %v4103
    %4117 = vmatprep.subr.mxu0 0.0
    %4118 = vmatpush1.msra.mxu0 0.0
    %4119 = vmatprep.subr.mxu0 0.0
    %4120 = vmatpush1.msra.mxu0 0.0
    %4121 = vmatprep.subr.mxu0 0.0
    %4122 = vmatpush1.msra.mxu0 0.0
    %4123 = vmatprep.subr.mxu0 0.0
    %4124 = vmatpush1.msra.mxu0 0.0
    %4125 = vmatprep.subr.mxu0 0.0
    %4126 = vmatpush1.msra.mxu0 0.0
    %4127 = vmatprep.subr.mxu0 0.0
    %4128 = vmatpush1.msra.mxu0 0.0
    %4129 = vmatprep.subr.mxu0 0.0
    %4130 = vmatpush1.msra.mxu0 0.0
    %4131 = vmatprep.subr.mxu0 0.0
    %4132 = vmatpush1.msra.mxu0 0.0
    %4133 = vmatprep.subr.mxu0 0.0
    %4134 = vmatpush1.msra.mxu0 0.0
    %4135 = vmatprep.subr.mxu0 0.0
    %4136 = vmatpush1.msra.mxu0 0.0
    %4137 = vmatprep.subr.mxu0 0.0
    %4138 = vmatpush1.msra.mxu0 0.0
    %4139 = vmatprep.subr.mxu0 0.0
    %4140 = vmatpush1.msra.mxu0 0.0
    %4141 = vmatprep.subr.mxu0 0.0
    %4142 = vmatpush1.msra.mxu0 0.0
    %4143 = vmatprep.subr.mxu0 0.0
    %4144 = vmatpush1.msra.mxu0 0.0
    %4145 = vmatprep.subr.mxu0 0.0
    %4146 = vmatpush1.msra.mxu0 0.0
    %4147 = vmatprep.subr.mxu0 0.0
    %4148 = vmatpush1.msra.mxu0 0.0
    %4149 = vmatprep.subr.mxu0 0.0
    %4150 = vmatpush1.msra.mxu0 0.0
    %4151 = vmatprep.subr.mxu0 0.0
    %4152 = vmatpush1.msra.mxu0 0.0
    %4153 = vmatprep.subr.mxu0 0.0
    %4154 = vmatpush1.msra.mxu0 0.0
    %4155 = vmatprep.subr.mxu0 0.0
    %4156 = vmatpush1.msra.mxu0 0.0
    %4157 = vmatprep.subr.mxu0 0.0
    %4158 = vmatpush1.msra.mxu0 0.0
    %4159 = vmatprep.subr.mxu0 0.0
    %4160 = vmatpush1.msra.mxu0 0.0
    %4161 = vmatprep.subr.mxu0 0.0
    %4162 = vmatpush1.msra.mxu0 0.0
    %4163 = vmatprep.subr.mxu0 0.0
    %4164 = vmatpush1.msra.mxu0 0.0
    %4165 = vmatprep.subr.mxu0 0.0
    %4166 = vmatpush1.msra.mxu0 0.0
    %4167 = vmatprep.subr.mxu0 0.0
    %4168 = vmatpush1.msra.mxu0 0.0
    %4169 = vmatprep.subr.mxu0 0.0
    %4170 = vmatpush1.msra.mxu0 0.0
    %4171 = vmatprep.subr.mxu0 0.0
    %4172 = vmatpush1.msra.mxu0 0.0
    %4173 = vmatprep.subr.mxu0 0.0
    %4174 = vmatpush1.msra.mxu0 0.0
    %4175 = vmatprep.subr.mxu0 0.0
    %4176 = vmatpush1.msra.mxu0 0.0
    %4177 = vmatprep.subr.mxu0 0.0
    %4178 = vmatpush1.msra.mxu0 0.0
    %4179 = vmatprep.mubr.f32.mxu0 0.0
    %4180 = vmatmul.mubr.f32.gmra.mrb[0].mxu0 %v4110
    %v4181 = vpop.f32.mrb[0].mxu0
    %v4182 = vadd.f32 0.0, %v4181
    %v4183 = vpop.f32.mrb[0].mxu0
    %4184 = vmatprep.mubr.f32.mxu0 0.0
    %4185 = vmatmul.mubr.f32.gmra.mrb[0].mxu0 %v4113
    %v4186 = vpop.f32.mrb[0].mxu0
    %v4187 = vadd.f32 0.0, %v4186
    %v4188 = vpop.f32.mrb[0].mxu0
    %4189 = vdwg.mxu0
    %v4190 = vadd.f32 %v4017, %v4182
    %v4191 = vadd.f32 %v4018, %v4187
    %v4192 = vld [vmem:[%s6] sm:$0xff]
    %v4193 = vld [vmem:[%s6 + $0x8] sm:$0xff]
    %4195 = vset.pattern.permute.xlu0 0
    %4196 = vperm.xlu0 %4195, %v4192
    %v4197 = vpop.permute.xlu0 %4196
    %4200 = vset.pattern.permute.xlu0 0
    %4201 = vperm.xlu0 %4200, %v4193
    %v4202 = vpop.permute.xlu0 %4201
    %v4204 = vadd.f32 %v4190, %v4197
    %v4205 = vadd.f32 %v4191, %v4202
    %v4206 = vmax.f32 %v4204, 0.0
    %v4207 = vmax.f32 %v4205, 0.0
    %v4208 = vld [vmem:[%s7] sm:$0xff]
    %v4209 = vld [vmem:[%s7 + $0x8] sm:$0xff]
    %v4210 = vld [vmem:[%s7 + $0x10] sm:$0xff]
    %v4211 = vld [vmem:[%s7 + $0x18] sm:$0xff]
    %vm4212 = vcmask 261120
    %v4214 = vsel %vm4212, %v4206, 0
    %v4217 = vsel %vm4212, %v4207, 0
    %4219 = vmatprep.subr.mxu0 0.0
    %4220 = vmatpush1.msra.mxu0 %v4208
    %4221 = vmatprep.subr.mxu0 0.0
    %4222 = vmatpush1.msra.mxu0 %v4209
    %4223 = vmatprep.subr.mxu0 0.0
    %4224 = vmatpush1.msra.mxu0 %v4210
    %4225 = vmatprep.subr.mxu0 0.0
    %4226 = vmatpush1.msra.mxu0 %v4211
    %4227 = vmatprep.subr.mxu0 0.0
    %4228 = vmatpush1.msra.mxu0 0.0
    %4229 = vmatprep.subr.mxu0 0.0
    %4230 = vmatpush1.msra.mxu0 0.0
    %4231 = vmatprep.subr.mxu0 0.0
    %4232 = vmatpush1.msra.mxu0 0.0
    %4233 = vmatprep.subr.mxu0 0.0
    %4234 = vmatpush1.msra.mxu0 0.0
    %4235 = vmatprep.subr.mxu0 0.0
    %4236 = vmatpush1.msra.mxu0 0.0
    %4237 = vmatprep.subr.mxu0 0.0
    %4238 = vmatpush1.msra.mxu0 0.0
    %4239 = vmatprep.subr.mxu0 0.0
    %4240 = vmatpush1.msra.mxu0 0.0
    %4241 = vmatprep.subr.mxu0 0.0
    %4242 = vmatpush1.msra.mxu0 0.0
    %4243 = vmatprep.subr.mxu0 0.0
    %4244 = vmatpush1.msra.mxu0 0.0
    %4245 = vmatprep.subr.mxu0 0.0
    %4246 = vmatpush1.msra.mxu0 0.0
    %4247 = vmatprep.subr.mxu0 0.0
    %4248 = vmatpush1.msra.mxu0 0.0
    %4249 = vmatprep.subr.mxu0 0.0
    %4250 = vmatpush1.msra.mxu0 0.0
    %4251 = vmatprep.subr.mxu0 0.0
    %4252 = vmatpush1.msra.mxu0 0.0
    %4253 = vmatprep.subr.mxu0 0.0
    %4254 = vmatpush1.msra.mxu0 0.0
    %4255 = vmatprep.subr.mxu0 0.0
    %4256 = vmatpush1.msra.mxu0 0.0
    %4257 = vmatprep.subr.mxu0 0.0
    %4258 = vmatpush1.msra.mxu0 0.0
    %4259 = vmatprep.subr.mxu0 0.0
    %4260 = vmatpush1.msra.mxu0 0.0
    %4261 = vmatprep.subr.mxu0 0.0
    %4262 = vmatpush1.msra.mxu0 0.0
    %4263 = vmatprep.subr.mxu0 0.0
    %4264 = vmatpush1.msra.mxu0 0.0
    %4265 = vmatprep.subr.mxu0 0.0
    %4266 = vmatpush1.msra.mxu0 0.0
    %4267 = vmatprep.subr.mxu0 0.0
    %4268 = vmatpush1.msra.mxu0 0.0
    %4269 = vmatprep.subr.mxu0 0.0
    %4270 = vmatpush1.msra.mxu0 0.0
    %4271 = vmatprep.subr.mxu0 0.0
    %4272 = vmatpush1.msra.mxu0 0.0
    %4273 = vmatprep.subr.mxu0 0.0
    %4274 = vmatpush1.msra.mxu0 0.0
    %4275 = vmatprep.subr.mxu0 0.0
    %4276 = vmatpush1.msra.mxu0 0.0
    %4277 = vmatprep.subr.mxu0 0.0
    %4278 = vmatpush1.msra.mxu0 0.0
    %4279 = vmatprep.subr.mxu0 0.0
    %4280 = vmatpush1.msra.mxu0 0.0
    %4281 = vmatprep.subr.mxu0 0.0
    %4282 = vmatpush1.msra.mxu0 0.0
    %4283 = vmatprep.mubr.f32.mxu0 0.0
    %4284 = vmatmul.mubr.f32.gmra.mrb[0].mxu0 %v4214
    %v4285 = vpop.f32.mrb[0].mxu0
    %v4286 = vadd.f32 0.0, %v4285
    %v4287 = vpop.f32.mrb[0].mxu0
    %4288 = vmatprep.mubr.f32.mxu0 0.0
    %4289 = vmatmul.mubr.f32.gmra.mrb[0].mxu0 %v4217
    %v4290 = vpop.f32.mrb[0].mxu0
    %v4291 = vadd.f32 0.0, %v4290
    %v4292 = vpop.f32.mrb[0].mxu0
    %4293 = vdwg.mxu0
    %v4294 = vld [vmem:[%s8] sm:$0xff]
    %v4295 = vld [vmem:[%s8 + $0x8] sm:$0xff]
    %v4296 = vld [vmem:[%s8 + $0x10] sm:$0xff]
    %v4297 = vld [vmem:[%s8 + $0x18] sm:$0xff]
    %s4298 = scalar_lea.vmem %s7, 32
    %v4299 = vld [vmem:[%s4298] sm:$0xff]
    %v4300 = vld [vmem:[%s4298 + $0x8] sm:$0xff]
    %v4301 = vld [vmem:[%s4298 + $0x10] sm:$0xff]
    %v4302 = vld [vmem:[%s4298 + $0x18] sm:$0xff]
    %4303 = vmatprep.subr.mxu0 0.0
    %4304 = vmatpush1.msra.mxu0 %v4299
    %4305 = vmatprep.subr.mxu0 0.0
    %4306 = vmatpush1.msra.mxu0 %v4300
    %4307 = vmatprep.subr.mxu0 0.0
    %4308 = vmatpush1.msra.mxu0 %v4301
    %4309 = vmatprep.subr.mxu0 0.0
    %4310 = vmatpush1.msra.mxu0 %v4302
    %4311 = vmatprep.subr.mxu0 0.0
    %4312 = vmatpush1.msra.mxu0 0.0
    %4313 = vmatprep.subr.mxu0 0.0
    %4314 = vmatpush1.msra.mxu0 0.0
    %4315 = vmatprep.subr.mxu0 0.0
    %4316 = vmatpush1.msra.mxu0 0.0
    %4317 = vmatprep.subr.mxu0 0.0
    %4318 = vmatpush1.msra.mxu0 0.0
    %4319 = vmatprep.subr.mxu0 0.0
    %4320 = vmatpush1.msra.mxu0 0.0
    %4321 = vmatprep.subr.mxu0 0.0
    %4322 = vmatpush1.msra.mxu0 0.0
    %4323 = vmatprep.subr.mxu0 0.0
    %4324 = vmatpush1.msra.mxu0 0.0
    %4325 = vmatprep.subr.mxu0 0.0
    %4326 = vmatpush1.msra.mxu0 0.0
    %4327 = vmatprep.subr.mxu0 0.0
    %4328 = vmatpush1.msra.mxu0 0.0
    %4329 = vmatprep.subr.mxu0 0.0
    %4330 = vmatpush1.msra.mxu0 0.0
    %4331 = vmatprep.subr.mxu0 0.0
    %4332 = vmatpush1.msra.mxu0 0.0
    %4333 = vmatprep.subr.mxu0 0.0
    %4334 = vmatpush1.msra.mxu0 0.0
    %4335 = vmatprep.subr.mxu0 0.0
    %4336 = vmatpush1.msra.mxu0 0.0
    %4337 = vmatprep.subr.mxu0 0.0
    %4338 = vmatpush1.msra.mxu0 0.0
    %4339 = vmatprep.subr.mxu0 0.0
    %4340 = vmatpush1.msra.mxu0 0.0
    %4341 = vmatprep.subr.mxu0 0.0
    %4342 = vmatpush1.msra.mxu0 0.0
    %4343 = vmatprep.subr.mxu0 0.0
    %4344 = vmatpush1.msra.mxu0 0.0
    %4345 = vmatprep.subr.mxu0 0.0
    %4346 = vmatpush1.msra.mxu0 0.0
    %4347 = vmatprep.subr.mxu0 0.0
    %4348 = vmatpush1.msra.mxu0 0.0
    %4349 = vmatprep.subr.mxu0 0.0
    %4350 = vmatpush1.msra.mxu0 0.0
    %4351 = vmatprep.subr.mxu0 0.0
    %4352 = vmatpush1.msra.mxu0 0.0
    %4353 = vmatprep.subr.mxu0 0.0
    %4354 = vmatpush1.msra.mxu0 0.0
    %4355 = vmatprep.subr.mxu0 0.0
    %4356 = vmatpush1.msra.mxu0 0.0
    %4357 = vmatprep.subr.mxu0 0.0
    %4358 = vmatpush1.msra.mxu0 0.0
    %4359 = vmatprep.subr.mxu0 0.0
    %4360 = vmatpush1.msra.mxu0 0.0
    %4361 = vmatprep.subr.mxu0 0.0
    %4362 = vmatpush1.msra.mxu0 0.0
    %4363 = vmatprep.subr.mxu0 0.0
    %4364 = vmatpush1.msra.mxu0 0.0
    %4365 = vmatprep.subr.mxu0 0.0
    %4366 = vmatpush1.msra.mxu0 0.0
    %4367 = vmatprep.mubr.f32.mxu0 0.0
    %4368 = vmatmul.mubr.f32.gmra.mrb[0].mxu0 %v4214
    %v4369 = vpop.f32.mrb[0].mxu0
    %v4370 = vadd.f32 0.0, %v4369
    %v4371 = vpop.f32.mrb[0].mxu0
    %4372 = vmatprep.mubr.f32.mxu0 0.0
    %4373 = vmatmul.mubr.f32.gmra.mrb[0].mxu0 %v4217
    %v4374 = vpop.f32.mrb[0].mxu0
    %v4375 = vadd.f32 0.0, %v4374
    %v4376 = vpop.f32.mrb[0].mxu0
    %4377 = vdwg.mxu0
    %s4378 = scalar_lea.vmem %s8, 32
    %v4379 = vld [vmem:[%s4378] sm:$0xff]
    %v4380 = vld [vmem:[%s4378 + $0x8] sm:$0xff]
    %v4381 = vld [vmem:[%s4378 + $0x10] sm:$0xff]
    %v4382 = vld [vmem:[%s4378 + $0x18] sm:$0xff]
    %vm4383 = vcmask 130048
    %v4385 = vsel %vm4383, %v4379, 0
    %v4388 = vsel %vm4383, %v4380, 0
    %v4391 = vsel %vm4383, %v4381, 0
    %v4394 = vsel %vm4383, %v4382, 0
    %4396 = vmatprep.subr.mxu0 0.0
    %4397 = vmatpush1.msra.mxu0 %v4370
    %4398 = vmatprep.subr.mxu0 0.0
    %4399 = vmatpush1.msra.mxu0 %v4375
    %4400 = vmatprep.subr.mxu0 0.0
    %4401 = vmatpush1.msra.mxu0 0.0
    %4402 = vmatprep.subr.mxu0 0.0
    %4403 = vmatpush1.msra.mxu0 0.0
    %4404 = vmatprep.subr.mxu0 0.0
    %4405 = vmatpush1.msra.mxu0 0.0
    %4406 = vmatprep.subr.mxu0 0.0
    %4407 = vmatpush1.msra.mxu0 0.0
    %4408 = vmatprep.subr.mxu0 0.0
    %4409 = vmatpush1.msra.mxu0 0.0
    %4410 = vmatprep.subr.mxu0 0.0
    %4411 = vmatpush1.msra.mxu0 0.0
    %4412 = vmatprep.subr.mxu0 0.0
    %4413 = vmatpush1.msra.mxu0 0.0
    %4414 = vmatprep.subr.mxu0 0.0
    %4415 = vmatpush1.msra.mxu0 0.0
    %4416 = vmatprep.subr.mxu0 0.0
    %4417 = vmatpush1.msra.mxu0 0.0
    %4418 = vmatprep.subr.mxu0 0.0
    %4419 = vmatpush1.msra.mxu0 0.0
    %4420 = vmatprep.subr.mxu0 0.0
    %4421 = vmatpush1.msra.mxu0 0.0
    %4422 = vmatprep.subr.mxu0 0.0
    %4423 = vmatpush1.msra.mxu0 0.0
    %4424 = vmatprep.subr.mxu0 0.0
    %4425 = vmatpush1.msra.mxu0 0.0
    %4426 = vmatprep.subr.mxu0 0.0
    %4427 = vmatpush1.msra.mxu0 0.0
    %4428 = vmatprep.subr.mxu0 0.0
    %4429 = vmatpush1.msra.mxu0 0.0
    %4430 = vmatprep.subr.mxu0 0.0
    %4431 = vmatpush1.msra.mxu0 0.0
    %4432 = vmatprep.subr.mxu0 0.0
    %4433 = vmatpush1.msra.mxu0 0.0
    %4434 = vmatprep.subr.mxu0 0.0
    %4435 = vmatpush1.msra.mxu0 0.0
    %4436 = vmatprep.subr.mxu0 0.0
    %4437 = vmatpush1.msra.mxu0 0.0
    %4438 = vmatprep.subr.mxu0 0.0
    %4439 = vmatpush1.msra.mxu0 0.0
    %4440 = vmatprep.subr.mxu0 0.0
    %4441 = vmatpush1.msra.mxu0 0.0
    %4442 = vmatprep.subr.mxu0 0.0
    %4443 = vmatpush1.msra.mxu0 0.0
    %4444 = vmatprep.subr.mxu0 0.0
    %4445 = vmatpush1.msra.mxu0 0.0
    %4446 = vmatprep.subr.mxu0 0.0
    %4447 = vmatpush1.msra.mxu0 0.0
    %4448 = vmatprep.subr.mxu0 0.0
    %4449 = vmatpush1.msra.mxu0 0.0
    %4450 = vmatprep.subr.mxu0 0.0
    %4451 = vmatpush1.msra.mxu0 0.0
    %4452 = vmatprep.subr.mxu0 0.0
    %4453 = vmatpush1.msra.mxu0 0.0
    %4454 = vmatprep.subr.mxu0 0.0
    %4455 = vmatpush1.msra.mxu0 0.0
    %4456 = vmatprep.subr.mxu0 0.0
    %4457 = vmatpush1.msra.mxu0 0.0
    %4458 = vmatprep.subr.mxu0 0.0
    %4459 = vmatpush1.msra.mxu0 0.0
    %4460 = vmatprep.mubr.f32.mxu0 0.0
    %4461 = vmatmul.mubr.f32.gmra.mrb[0].mxu0 %v4385
    %v4462 = vpop.f32.mrb[0].mxu0
    %v4463 = vadd.f32 0.0, %v4462
    %v4464 = vpop.f32.mrb[0].mxu0
    %4465 = vmatprep.mubr.f32.mxu0 0.0
    %4466 = vmatmul.mubr.f32.gmra.mrb[0].mxu0 %v4388
    %v4467 = vpop.f32.mrb[0].mxu0
    %v4468 = vadd.f32 0.0, %v4467
    %v4469 = vpop.f32.mrb[0].mxu0
    %4470 = vmatprep.mubr.f32.mxu0 0.0
    %4471 = vmatmul.mubr.f32.gmra.mrb[0].mxu0 %v4391
    %v4472 = vpop.f32.mrb[0].mxu0
    %v4473 = vadd.f32 0.0, %v4472
    %v4474 = vpop.f32.mrb[0].mxu0
    %4475 = vmatprep.mubr.f32.mxu0 0.0
    %4476 = vmatmul.mubr.f32.gmra.mrb[0].mxu0 %v4394
    %v4477 = vpop.f32.mrb[0].mxu0
    %v4478 = vadd.f32 0.0, %v4477
    %v4479 = vpop.f32.mrb[0].mxu0
    %4480 = vdwg.mxu0
    %v4482 = vsel %vm4383, %v4294, 0
    %v4485 = vsel %vm4383, %v4295, 0
    %v4488 = vsel %vm4383, %v4296, 0
    %v4491 = vsel %vm4383, %v4297, 0
    %4493 = vmatprep.subr.mxu0 0.0
    %4494 = vmatpush1.msra.mxu0 %v4286
    %4495 = vmatprep.subr.mxu0 0.0
    %4496 = vmatpush1.msra.mxu0 %v4291
    %4497 = vmatprep.subr.mxu0 0.0
    %4498 = vmatpush1.msra.mxu0 0.0
    %4499 = vmatprep.subr.mxu0 0.0
    %4500 = vmatpush1.msra.mxu0 0.0
    %4501 = vmatprep.subr.mxu0 0.0
    %4502 = vmatpush1.msra.mxu0 0.0
    %4503 = vmatprep.subr.mxu0 0.0
    %4504 = vmatpush1.msra.mxu0 0.0
    %4505 = vmatprep.subr.mxu0 0.0
    %4506 = vmatpush1.msra.mxu0 0.0
    %4507 = vmatprep.subr.mxu0 0.0
    %4508 = vmatpush1.msra.mxu0 0.0
    %4509 = vmatprep.subr.mxu0 0.0
    %4510 = vmatpush1.msra.mxu0 0.0
    %4511 = vmatprep.subr.mxu0 0.0
    %4512 = vmatpush1.msra.mxu0 0.0
    %4513 = vmatprep.subr.mxu0 0.0
    %4514 = vmatpush1.msra.mxu0 0.0
    %4515 = vmatprep.subr.mxu0 0.0
    %4516 = vmatpush1.msra.mxu0 0.0
    %4517 = vmatprep.subr.mxu0 0.0
    %4518 = vmatpush1.msra.mxu0 0.0
    %4519 = vmatprep.subr.mxu0 0.0
    %4520 = vmatpush1.msra.mxu0 0.0
    %4521 = vmatprep.subr.mxu0 0.0
    %4522 = vmatpush1.msra.mxu0 0.0
    %4523 = vmatprep.subr.mxu0 0.0
    %4524 = vmatpush1.msra.mxu0 0.0
    %4525 = vmatprep.subr.mxu0 0.0
    %4526 = vmatpush1.msra.mxu0 0.0
    %4527 = vmatprep.subr.mxu0 0.0
    %4528 = vmatpush1.msra.mxu0 0.0
    %4529 = vmatprep.subr.mxu0 0.0
    %4530 = vmatpush1.msra.mxu0 0.0
    %4531 = vmatprep.subr.mxu0 0.0
    %4532 = vmatpush1.msra.mxu0 0.0
    %4533 = vmatprep.subr.mxu0 0.0
    %4534 = vmatpush1.msra.mxu0 0.0
    %4535 = vmatprep.subr.mxu0 0.0
    %4536 = vmatpush1.msra.mxu0 0.0
    %4537 = vmatprep.subr.mxu0 0.0
    %4538 = vmatpush1.msra.mxu0 0.0
    %4539 = vmatprep.subr.mxu0 0.0
    %4540 = vmatpush1.msra.mxu0 0.0
    %4541 = vmatprep.subr.mxu0 0.0
    %4542 = vmatpush1.msra.mxu0 0.0
    %4543 = vmatprep.subr.mxu0 0.0
    %4544 = vmatpush1.msra.mxu0 0.0
    %4545 = vmatprep.subr.mxu0 0.0
    %4546 = vmatpush1.msra.mxu0 0.0
    %4547 = vmatprep.subr.mxu0 0.0
    %4548 = vmatpush1.msra.mxu0 0.0
    %4549 = vmatprep.subr.mxu0 0.0
    %4550 = vmatpush1.msra.mxu0 0.0
    %4551 = vmatprep.subr.mxu0 0.0
    %4552 = vmatpush1.msra.mxu0 0.0
    %4553 = vmatprep.subr.mxu0 0.0
    %4554 = vmatpush1.msra.mxu0 0.0
    %4555 = vmatprep.subr.mxu0 0.0
    %4556 = vmatpush1.msra.mxu0 0.0
    %4557 = vmatprep.mubr.f32.mxu0 0.0
    %4558 = vmatmul.mubr.f32.gmra.mrb[0].mxu0 %v4482
    %v4559 = vpop.f32.mrb[0].mxu0
    %v4560 = vadd.f32 %v4463, %v4559
    %v4561 = vpop.f32.mrb[0].mxu0
    %4562 = vmatprep.mubr.f32.mxu0 0.0
    %4563 = vmatmul.mubr.f32.gmra.mrb[0].mxu0 %v4485
    %v4564 = vpop.f32.mrb[0].mxu0
    %v4565 = vadd.f32 %v4468, %v4564
    %v4566 = vpop.f32.mrb[0].mxu0
    %4567 = vmatprep.mubr.f32.mxu0 0.0
    %4568 = vmatmul.mubr.f32.gmra.mrb[0].mxu0 %v4488
    %v4569 = vpop.f32.mrb[0].mxu0
    %v4570 = vadd.f32 %v4473, %v4569
    %v4571 = vpop.f32.mrb[0].mxu0
    %4572 = vmatprep.mubr.f32.mxu0 0.0
    %4573 = vmatmul.mubr.f32.gmra.mrb[0].mxu0 %v4491
    %v4574 = vpop.f32.mrb[0].mxu0
    %v4575 = vadd.f32 %v4478, %v4574
    %v4576 = vpop.f32.mrb[0].mxu0
    %4577 = vdwg.mxu0
    %s4578 = scalar_lea.vmem %s7, 64
    %v4579 = vld [vmem:[%s4578] sm:$0xff]
    %v4580 = vld [vmem:[%s4578 + $0x8] sm:$0xff]
    %v4581 = vld [vmem:[%s4578 + $0x10] sm:$0xff]
    %v4582 = vld [vmem:[%s4578 + $0x18] sm:$0xff]
    %4583 = vmatprep.subr.mxu0 0.0
    %4584 = vmatpush1.msra.mxu0 %v4579
    %4585 = vmatprep.subr.mxu0 0.0
    %4586 = vmatpush1.msra.mxu0 %v4580
    %4587 = vmatprep.subr.mxu0 0.0
    %4588 = vmatpush1.msra.mxu0 %v4581
    %4589 = vmatprep.subr.mxu0 0.0
    %4590 = vmatpush1.msra.mxu0 %v4582
    %4591 = vmatprep.subr.mxu0 0.0
    %4592 = vmatpush1.msra.mxu0 0.0
    %4593 = vmatprep.subr.mxu0 0.0
    %4594 = vmatpush1.msra.mxu0 0.0
    %4595 = vmatprep.subr.mxu0 0.0
    %4596 = vmatpush1.msra.mxu0 0.0
    %4597 = vmatprep.subr.mxu0 0.0
    %4598 = vmatpush1.msra.mxu0 0.0
    %4599 = vmatprep.subr.mxu0 0.0
    %4600 = vmatpush1.msra.mxu0 0.0
    %4601 = vmatprep.subr.mxu0 0.0
    %4602 = vmatpush1.msra.mxu0 0.0
    %4603 = vmatprep.subr.mxu0 0.0
    %4604 = vmatpush1.msra.mxu0 0.0
    %4605 = vmatprep.subr.mxu0 0.0
    %4606 = vmatpush1.msra.mxu0 0.0
    %4607 = vmatprep.subr.mxu0 0.0
    %4608 = vmatpush1.msra.mxu0 0.0
    %4609 = vmatprep.subr.mxu0 0.0
    %4610 = vmatpush1.msra.mxu0 0.0
    %4611 = vmatprep.subr.mxu0 0.0
    %4612 = vmatpush1.msra.mxu0 0.0
    %4613 = vmatprep.subr.mxu0 0.0
    %4614 = vmatpush1.msra.mxu0 0.0
    %4615 = vmatprep.subr.mxu0 0.0
    %4616 = vmatpush1.msra.mxu0 0.0
    %4617 = vmatprep.subr.mxu0 0.0
    %4618 = vmatpush1.msra.mxu0 0.0
    %4619 = vmatprep.subr.mxu0 0.0
    %4620 = vmatpush1.msra.mxu0 0.0
    %4621 = vmatprep.subr.mxu0 0.0
    %4622 = vmatpush1.msra.mxu0 0.0
    %4623 = vmatprep.subr.mxu0 0.0
    %4624 = vmatpush1.msra.mxu0 0.0
    %4625 = vmatprep.subr.mxu0 0.0
    %4626 = vmatpush1.msra.mxu0 0.0
    %4627 = vmatprep.subr.mxu0 0.0
    %4628 = vmatpush1.msra.mxu0 0.0
    %4629 = vmatprep.subr.mxu0 0.0
    %4630 = vmatpush1.msra.mxu0 0.0
    %4631 = vmatprep.subr.mxu0 0.0
    %4632 = vmatpush1.msra.mxu0 0.0
    %4633 = vmatprep.subr.mxu0 0.0
    %4634 = vmatpush1.msra.mxu0 0.0
    %4635 = vmatprep.subr.mxu0 0.0
    %4636 = vmatpush1.msra.mxu0 0.0
    %4637 = vmatprep.subr.mxu0 0.0
    %4638 = vmatpush1.msra.mxu0 0.0
    %4639 = vmatprep.subr.mxu0 0.0
    %4640 = vmatpush1.msra.mxu0 0.0
    %4641 = vmatprep.subr.mxu0 0.0
    %4642 = vmatpush1.msra.mxu0 0.0
    %4643 = vmatprep.subr.mxu0 0.0
    %4644 = vmatpush1.msra.mxu0 0.0
    %4645 = vmatprep.subr.mxu0 0.0
    %4646 = vmatpush1.msra.mxu0 0.0
    %4647 = vmatprep.mubr.f32.mxu0 0.0
    %4648 = vmatmul.mubr.f32.gmra.mrb[0].mxu0 %v4214
    %v4649 = vpop.f32.mrb[0].mxu0
    %v4650 = vadd.f32 0.0, %v4649
    %v4651 = vpop.f32.mrb[0].mxu0
    %4652 = vmatprep.mubr.f32.mxu0 0.0
    %4653 = vmatmul.mubr.f32.gmra.mrb[0].mxu0 %v4217
    %v4654 = vpop.f32.mrb[0].mxu0
    %v4655 = vadd.f32 0.0, %v4654
    %v4656 = vpop.f32.mrb[0].mxu0
    %4657 = vdwg.mxu0
    %s4658 = scalar_lea.vmem %s8, 64
    %v4659 = vld [vmem:[%s4658] sm:$0xff]
    %v4660 = vld [vmem:[%s4658 + $0x8] sm:$0xff]
    %v4661 = vld [vmem:[%s4658 + $0x10] sm:$0xff]
    %v4662 = vld [vmem:[%s4658 + $0x18] sm:$0xff]
    %v4664 = vsel %vm4383, %v4659, 0
    %v4667 = vsel %vm4383, %v4660, 0
    %v4670 = vsel %vm4383, %v4661, 0
    %v4673 = vsel %vm4383, %v4662, 0
    %4675 = vmatprep.subr.mxu0 0.0
    %4676 = vmatpush1.msra.mxu0 %v4650
    %4677 = vmatprep.subr.mxu0 0.0
    %4678 = vmatpush1.msra.mxu0 %v4655
    %4679 = vmatprep.subr.mxu0 0.0
    %4680 = vmatpush1.msra.mxu0 0.0
    %4681 = vmatprep.subr.mxu0 0.0
    %4682 = vmatpush1.msra.mxu0 0.0
    %4683 = vmatprep.subr.mxu0 0.0
    %4684 = vmatpush1.msra.mxu0 0.0
    %4685 = vmatprep.subr.mxu0 0.0
    %4686 = vmatpush1.msra.mxu0 0.0
    %4687 = vmatprep.subr.mxu0 0.0
    %4688 = vmatpush1.msra.mxu0 0.0
    %4689 = vmatprep.subr.mxu0 0.0
    %4690 = vmatpush1.msra.mxu0 0.0
    %4691 = vmatprep.subr.mxu0 0.0
    %4692 = vmatpush1.msra.mxu0 0.0
    %4693 = vmatprep.subr.mxu0 0.0
    %4694 = vmatpush1.msra.mxu0 0.0
    %4695 = vmatprep.subr.mxu0 0.0
    %4696 = vmatpush1.msra.mxu0 0.0
    %4697 = vmatprep.subr.mxu0 0.0
    %4698 = vmatpush1.msra.mxu0 0.0
    %4699 = vmatprep.subr.mxu0 0.0
    %4700 = vmatpush1.msra.mxu0 0.0
    %4701 = vmatprep.subr.mxu0 0.0
    %4702 = vmatpush1.msra.mxu0 0.0
    %4703 = vmatprep.subr.mxu0 0.0
    %4704 = vmatpush1.msra.mxu0 0.0
    %4705 = vmatprep.subr.mxu0 0.0
    %4706 = vmatpush1.msra.mxu0 0.0
    %4707 = vmatprep.subr.mxu0 0.0
    %4708 = vmatpush1.msra.mxu0 0.0
    %4709 = vmatprep.subr.mxu0 0.0
    %4710 = vmatpush1.msra.mxu0 0.0
    %4711 = vmatprep.subr.mxu0 0.0
    %4712 = vmatpush1.msra.mxu0 0.0
    %4713 = vmatprep.subr.mxu0 0.0
    %4714 = vmatpush1.msra.mxu0 0.0
    %4715 = vmatprep.subr.mxu0 0.0
    %4716 = vmatpush1.msra.mxu0 0.0
    %4717 = vmatprep.subr.mxu0 0.0
    %4718 = vmatpush1.msra.mxu0 0.0
    %4719 = vmatprep.subr.mxu0 0.0
    %4720 = vmatpush1.msra.mxu0 0.0
    %4721 = vmatprep.subr.mxu0 0.0
    %4722 = vmatpush1.msra.mxu0 0.0
    %4723 = vmatprep.subr.mxu0 0.0
    %4724 = vmatpush1.msra.mxu0 0.0
    %4725 = vmatprep.subr.mxu0 0.0
    %4726 = vmatpush1.msra.mxu0 0.0
    %4727 = vmatprep.subr.mxu0 0.0
    %4728 = vmatpush1.msra.mxu0 0.0
    %4729 = vmatprep.subr.mxu0 0.0
    %4730 = vmatpush1.msra.mxu0 0.0
    %4731 = vmatprep.subr.mxu0 0.0
    %4732 = vmatpush1.msra.mxu0 0.0
    %4733 = vmatprep.subr.mxu0 0.0
    %4734 = vmatpush1.msra.mxu0 0.0
    %4735 = vmatprep.subr.mxu0 0.0
    %4736 = vmatpush1.msra.mxu0 0.0
    %4737 = vmatprep.subr.mxu0 0.0
    %4738 = vmatpush1.msra.mxu0 0.0
    %4739 = vmatprep.mubr.f32.mxu0 0.0
    %4740 = vmatmul.mubr.f32.gmra.mrb[0].mxu0 %v4664
    %v4741 = vpop.f32.mrb[0].mxu0
    %v4742 = vadd.f32 0.0, %v4741
    %v4743 = vpop.f32.mrb[0].mxu0
    %4744 = vmatprep.mubr.f32.mxu0 0.0
    %4745 = vmatmul.mubr.f32.gmra.mrb[0].mxu0 %v4667
    %v4746 = vpop.f32.mrb[0].mxu0
    %v4747 = vadd.f32 0.0, %v4746
    %v4748 = vpop.f32.mrb[0].mxu0
    %4749 = vmatprep.mubr.f32.mxu0 0.0
    %4750 = vmatmul.mubr.f32.gmra.mrb[0].mxu0 %v4670
    %v4751 = vpop.f32.mrb[0].mxu0
    %v4752 = vadd.f32 0.0, %v4751
    %v4753 = vpop.f32.mrb[0].mxu0
    %4754 = vmatprep.mubr.f32.mxu0 0.0
    %4755 = vmatmul.mubr.f32.gmra.mrb[0].mxu0 %v4673
    %v4756 = vpop.f32.mrb[0].mxu0
    %v4757 = vadd.f32 0.0, %v4756
    %v4758 = vpop.f32.mrb[0].mxu0
    %4759 = vdwg.mxu0
    %v4760 = vadd.f32 %v4560, %v4742
    %v4761 = vadd.f32 %v4565, %v4747
    %v4762 = vadd.f32 %v4570, %v4752
    %v4763 = vadd.f32 %v4575, %v4757
    %s4764 = scalar_lea.vmem %s7, 96
    %v4765 = vld [vmem:[%s4764] sm:$0xff]
    %v4766 = vld [vmem:[%s4764 + $0x8] sm:$0xff]
    %v4767 = vld [vmem:[%s4764 + $0x10] sm:$0xff]
    %v4768 = vld [vmem:[%s4764 + $0x18] sm:$0xff]
    %4769 = vmatprep.subr.mxu0 0.0
    %4770 = vmatpush1.msra.mxu0 %v4765
    %4771 = vmatprep.subr.mxu0 0.0
    %4772 = vmatpush1.msra.mxu0 %v4766
    %4773 = vmatprep.subr.mxu0 0.0
    %4774 = vmatpush1.msra.mxu0 %v4767
    %4775 = vmatprep.subr.mxu0 0.0
    %4776 = vmatpush1.msra.mxu0 %v4768
    %4777 = vmatprep.subr.mxu0 0.0
    %4778 = vmatpush1.msra.mxu0 0.0
    %4779 = vmatprep.subr.mxu0 0.0
    %4780 = vmatpush1.msra.mxu0 0.0
    %4781 = vmatprep.subr.mxu0 0.0
    %4782 = vmatpush1.msra.mxu0 0.0
    %4783 = vmatprep.subr.mxu0 0.0
    %4784 = vmatpush1.msra.mxu0 0.0
    %4785 = vmatprep.subr.mxu0 0.0
    %4786 = vmatpush1.msra.mxu0 0.0
    %4787 = vmatprep.subr.mxu0 0.0
    %4788 = vmatpush1.msra.mxu0 0.0
    %4789 = vmatprep.subr.mxu0 0.0
    %4790 = vmatpush1.msra.mxu0 0.0
    %4791 = vmatprep.subr.mxu0 0.0
    %4792 = vmatpush1.msra.mxu0 0.0
    %4793 = vmatprep.subr.mxu0 0.0
    %4794 = vmatpush1.msra.mxu0 0.0
    %4795 = vmatprep.subr.mxu0 0.0
    %4796 = vmatpush1.msra.mxu0 0.0
    %4797 = vmatprep.subr.mxu0 0.0
    %4798 = vmatpush1.msra.mxu0 0.0
    %4799 = vmatprep.subr.mxu0 0.0
    %4800 = vmatpush1.msra.mxu0 0.0
    %4801 = vmatprep.subr.mxu0 0.0
    %4802 = vmatpush1.msra.mxu0 0.0
    %4803 = vmatprep.subr.mxu0 0.0
    %4804 = vmatpush1.msra.mxu0 0.0
    %4805 = vmatprep.subr.mxu0 0.0
    %4806 = vmatpush1.msra.mxu0 0.0
    %4807 = vmatprep.subr.mxu0 0.0
    %4808 = vmatpush1.msra.mxu0 0.0
    %4809 = vmatprep.subr.mxu0 0.0
    %4810 = vmatpush1.msra.mxu0 0.0
    %4811 = vmatprep.subr.mxu0 0.0
    %4812 = vmatpush1.msra.mxu0 0.0
    %4813 = vmatprep.subr.mxu0 0.0
    %4814 = vmatpush1.msra.mxu0 0.0
    %4815 = vmatprep.subr.mxu0 0.0
    %4816 = vmatpush1.msra.mxu0 0.0
    %4817 = vmatprep.subr.mxu0 0.0
    %4818 = vmatpush1.msra.mxu0 0.0
    %4819 = vmatprep.subr.mxu0 0.0
    %4820 = vmatpush1.msra.mxu0 0.0
    %4821 = vmatprep.subr.mxu0 0.0
    %4822 = vmatpush1.msra.mxu0 0.0
    %4823 = vmatprep.subr.mxu0 0.0
    %4824 = vmatpush1.msra.mxu0 0.0
    %4825 = vmatprep.subr.mxu0 0.0
    %4826 = vmatpush1.msra.mxu0 0.0
    %4827 = vmatprep.subr.mxu0 0.0
    %4828 = vmatpush1.msra.mxu0 0.0
    %4829 = vmatprep.subr.mxu0 0.0
    %4830 = vmatpush1.msra.mxu0 0.0
    %4831 = vmatprep.subr.mxu0 0.0
    %4832 = vmatpush1.msra.mxu0 0.0
    %4833 = vmatprep.mubr.f32.mxu0 0.0
    %4834 = vmatmul.mubr.f32.gmra.mrb[0].mxu0 %v4214
    %v4835 = vpop.f32.mrb[0].mxu0
    %v4836 = vadd.f32 0.0, %v4835
    %v4837 = vpop.f32.mrb[0].mxu0
    %4838 = vmatprep.mubr.f32.mxu0 0.0
    %4839 = vmatmul.mubr.f32.gmra.mrb[0].mxu0 %v4217
    %v4840 = vpop.f32.mrb[0].mxu0
    %v4841 = vadd.f32 0.0, %v4840
    %v4842 = vpop.f32.mrb[0].mxu0
    %4843 = vdwg.mxu0
    %s4844 = scalar_lea.vmem %s8, 96
    %v4845 = vld [vmem:[%s4844] sm:$0xff]
    %v4846 = vld [vmem:[%s4844 + $0x8] sm:$0xff]
    %v4847 = vld [vmem:[%s4844 + $0x10] sm:$0xff]
    %v4848 = vld [vmem:[%s4844 + $0x18] sm:$0xff]
    %v4850 = vsel %vm4383, %v4845, 0
    %v4853 = vsel %vm4383, %v4846, 0
    %v4856 = vsel %vm4383, %v4847, 0
    %v4859 = vsel %vm4383, %v4848, 0
    %4861 = vmatprep.subr.mxu0 0.0
    %4862 = vmatpush1.msra.mxu0 %v4836
    %4863 = vmatprep.subr.mxu0 0.0
    %4864 = vmatpush1.msra.mxu0 %v4841
    %4865 = vmatprep.subr.mxu0 0.0
    %4866 = vmatpush1.msra.mxu0 0.0
    %4867 = vmatprep.subr.mxu0 0.0
    %4868 = vmatpush1.msra.mxu0 0.0
    %4869 = vmatprep.subr.mxu0 0.0
    %4870 = vmatpush1.msra.mxu0 0.0
    %4871 = vmatprep.subr.mxu0 0.0
    %4872 = vmatpush1.msra.mxu0 0.0
    %4873 = vmatprep.subr.mxu0 0.0
    %4874 = vmatpush1.msra.mxu0 0.0
    %4875 = vmatprep.subr.mxu0 0.0
    %4876 = vmatpush1.msra.mxu0 0.0
    %4877 = vmatprep.subr.mxu0 0.0
    %4878 = vmatpush1.msra.mxu0 0.0
    %4879 = vmatprep.subr.mxu0 0.0
    %4880 = vmatpush1.msra.mxu0 0.0
    %4881 = vmatprep.subr.mxu0 0.0
    %4882 = vmatpush1.msra.mxu0 0.0
    %4883 = vmatprep.subr.mxu0 0.0
    %4884 = vmatpush1.msra.mxu0 0.0
    %4885 = vmatprep.subr.mxu0 0.0
    %4886 = vmatpush1.msra.mxu0 0.0
    %4887 = vmatprep.subr.mxu0 0.0
    %4888 = vmatpush1.msra.mxu0 0.0
    %4889 = vmatprep.subr.mxu0 0.0
    %4890 = vmatpush1.msra.mxu0 0.0
    %4891 = vmatprep.subr.mxu0 0.0
    %4892 = vmatpush1.msra.mxu0 0.0
    %4893 = vmatprep.subr.mxu0 0.0
    %4894 = vmatpush1.msra.mxu0 0.0
    %4895 = vmatprep.subr.mxu0 0.0
    %4896 = vmatpush1.msra.mxu0 0.0
    %4897 = vmatprep.subr.mxu0 0.0
    %4898 = vmatpush1.msra.mxu0 0.0
    %4899 = vmatprep.subr.mxu0 0.0
    %4900 = vmatpush1.msra.mxu0 0.0
    %4901 = vmatprep.subr.mxu0 0.0
    %4902 = vmatpush1.msra.mxu0 0.0
    %4903 = vmatprep.subr.mxu0 0.0
    %4904 = vmatpush1.msra.mxu0 0.0
    %4905 = vmatprep.subr.mxu0 0.0
    %4906 = vmatpush1.msra.mxu0 0.0
    %4907 = vmatprep.subr.mxu0 0.0
    %4908 = vmatpush1.msra.mxu0 0.0
    %4909 = vmatprep.subr.mxu0 0.0
    %4910 = vmatpush1.msra.mxu0 0.0
    %4911 = vmatprep.subr.mxu0 0.0
    %4912 = vmatpush1.msra.mxu0 0.0
    %4913 = vmatprep.subr.mxu0 0.0
    %4914 = vmatpush1.msra.mxu0 0.0
    %4915 = vmatprep.subr.mxu0 0.0
    %4916 = vmatpush1.msra.mxu0 0.0
    %4917 = vmatprep.subr.mxu0 0.0
    %4918 = vmatpush1.msra.mxu0 0.0
    %4919 = vmatprep.subr.mxu0 0.0
    %4920 = vmatpush1.msra.mxu0 0.0
    %4921 = vmatprep.subr.mxu0 0.0
    %4922 = vmatpush1.msra.mxu0 0.0
    %4923 = vmatprep.subr.mxu0 0.0
    %4924 = vmatpush1.msra.mxu0 0.0
    %4925 = vmatprep.mubr.f32.mxu0 0.0
    %4926 = vmatmul.mubr.f32.gmra.mrb[0].mxu0 %v4850
    %v4927 = vpop.f32.mrb[0].mxu0
    %v4928 = vadd.f32 0.0, %v4927
    %v4929 = vpop.f32.mrb[0].mxu0
    %4930 = vmatprep.mubr.f32.mxu0 0.0
    %4931 = vmatmul.mubr.f32.gmra.mrb[0].mxu0 %v4853
    %v4932 = vpop.f32.mrb[0].mxu0
    %v4933 = vadd.f32 0.0, %v4932
    %v4934 = vpop.f32.mrb[0].mxu0
    %4935 = vmatprep.mubr.f32.mxu0 0.0
    %4936 = vmatmul.mubr.f32.gmra.mrb[0].mxu0 %v4856
    %v4937 = vpop.f32.mrb[0].mxu0
    %v4938 = vadd.f32 0.0, %v4937
    %v4939 = vpop.f32.mrb[0].mxu0
    %4940 = vmatprep.mubr.f32.mxu0 0.0
    %4941 = vmatmul.mubr.f32.gmra.mrb[0].mxu0 %v4859
    %v4942 = vpop.f32.mrb[0].mxu0
    %v4943 = vadd.f32 0.0, %v4942
    %v4944 = vpop.f32.mrb[0].mxu0
    %4945 = vdwg.mxu0
    %v4946 = vadd.f32 %v4760, %v4928
    %v4947 = vadd.f32 %v4761, %v4933
    %v4948 = vadd.f32 %v4762, %v4938
    %v4949 = vadd.f32 %v4763, %v4943
    %s4950 = scalar_lea.vmem %s7, 128
    %v4951 = vld [vmem:[%s4950] sm:$0xff]
    %v4952 = vld [vmem:[%s4950 + $0x8] sm:$0xff]
    %v4953 = vld [vmem:[%s4950 + $0x10] sm:$0xff]
    %v4954 = vld [vmem:[%s4950 + $0x18] sm:$0xff]
    %4955 = vmatprep.subr.mxu0 0.0
    %4956 = vmatpush1.msra.mxu0 %v4951
    %4957 = vmatprep.subr.mxu0 0.0
    %4958 = vmatpush1.msra.mxu0 %v4952
    %4959 = vmatprep.subr.mxu0 0.0
    %4960 = vmatpush1.msra.mxu0 %v4953
    %4961 = vmatprep.subr.mxu0 0.0
    %4962 = vmatpush1.msra.mxu0 %v4954
    %4963 = vmatprep.subr.mxu0 0.0
    %4964 = vmatpush1.msra.mxu0 0.0
    %4965 = vmatprep.subr.mxu0 0.0
    %4966 = vmatpush1.msra.mxu0 0.0
    %4967 = vmatprep.subr.mxu0 0.0
    %4968 = vmatpush1.msra.mxu0 0.0
    %4969 = vmatprep.subr.mxu0 0.0
    %4970 = vmatpush1.msra.mxu0 0.0
    %4971 = vmatprep.subr.mxu0 0.0
    %4972 = vmatpush1.msra.mxu0 0.0
    %4973 = vmatprep.subr.mxu0 0.0
    %4974 = vmatpush1.msra.mxu0 0.0
    %4975 = vmatprep.subr.mxu0 0.0
    %4976 = vmatpush1.msra.mxu0 0.0
    %4977 = vmatprep.subr.mxu0 0.0
    %4978 = vmatpush1.msra.mxu0 0.0
    %4979 = vmatprep.subr.mxu0 0.0
    %4980 = vmatpush1.msra.mxu0 0.0
    %4981 = vmatprep.subr.mxu0 0.0
    %4982 = vmatpush1.msra.mxu0 0.0
    %4983 = vmatprep.subr.mxu0 0.0
    %4984 = vmatpush1.msra.mxu0 0.0
    %4985 = vmatprep.subr.mxu0 0.0
    %4986 = vmatpush1.msra.mxu0 0.0
    %4987 = vmatprep.subr.mxu0 0.0
    %4988 = vmatpush1.msra.mxu0 0.0
    %4989 = vmatprep.subr.mxu0 0.0
    %4990 = vmatpush1.msra.mxu0 0.0
    %4991 = vmatprep.subr.mxu0 0.0
    %4992 = vmatpush1.msra.mxu0 0.0
    %4993 = vmatprep.subr.mxu0 0.0
    %4994 = vmatpush1.msra.mxu0 0.0
    %4995 = vmatprep.subr.mxu0 0.0
    %4996 = vmatpush1.msra.mxu0 0.0
    %4997 = vmatprep.subr.mxu0 0.0
    %4998 = vmatpush1.msra.mxu0 0.0
    %4999 = vmatprep.subr.mxu0 0.0
    %5000 = vmatpush1.msra.mxu0 0.0
    %5001 = vmatprep.subr.mxu0 0.0
    %5002 = vmatpush1.msra.mxu0 0.0
    %5003 = vmatprep.subr.mxu0 0.0
    %5004 = vmatpush1.msra.mxu0 0.0
    %5005 = vmatprep.subr.mxu0 0.0
    %5006 = vmatpush1.msra.mxu0 0.0
    %5007 = vmatprep.subr.mxu0 0.0
    %5008 = vmatpush1.msra.mxu0 0.0
    %5009 = vmatprep.subr.mxu0 0.0
    %5010 = vmatpush1.msra.mxu0 0.0
    %5011 = vmatprep.subr.mxu0 0.0
    %5012 = vmatpush1.msra.mxu0 0.0
    %5013 = vmatprep.subr.mxu0 0.0
    %5014 = vmatpush1.msra.mxu0 0.0
    %5015 = vmatprep.subr.mxu0 0.0
    %5016 = vmatpush1.msra.mxu0 0.0
    %5017 = vmatprep.subr.mxu0 0.0
    %5018 = vmatpush1.msra.mxu0 0.0
    %5019 = vmatprep.mubr.f32.mxu0 0.0
    %5020 = vmatmul.mubr.f32.gmra.mrb[0].mxu0 %v4214
    %v5021 = vpop.f32.mrb[0].mxu0
    %v5022 = vadd.f32 0.0, %v5021
    %v5023 = vpop.f32.mrb[0].mxu0
    %5024 = vmatprep.mubr.f32.mxu0 0.0
    %5025 = vmatmul.mubr.f32.gmra.mrb[0].mxu0 %v4217
    %v5026 = vpop.f32.mrb[0].mxu0
    %v5027 = vadd.f32 0.0, %v5026
    %v5028 = vpop.f32.mrb[0].mxu0
    %5029 = vdwg.mxu0
    %s5030 = scalar_lea.vmem %s8, 128
    %v5031 = vld [vmem:[%s5030] sm:$0xff]
    %v5032 = vld [vmem:[%s5030 + $0x8] sm:$0xff]
    %v5033 = vld [vmem:[%s5030 + $0x10] sm:$0xff]
    %v5034 = vld [vmem:[%s5030 + $0x18] sm:$0xff]
    %v5036 = vsel %vm4383, %v5031, 0
    %v5039 = vsel %vm4383, %v5032, 0
    %v5042 = vsel %vm4383, %v5033, 0
    %v5045 = vsel %vm4383, %v5034, 0
    %5047 = vmatprep.subr.mxu0 0.0
    %5048 = vmatpush1.msra.mxu0 %v5022
    %5049 = vmatprep.subr.mxu0 0.0
    %5050 = vmatpush1.msra.mxu0 %v5027
    %5051 = vmatprep.subr.mxu0 0.0
    %5052 = vmatpush1.msra.mxu0 0.0
    %5053 = vmatprep.subr.mxu0 0.0
    %5054 = vmatpush1.msra.mxu0 0.0
    %5055 = vmatprep.subr.mxu0 0.0
    %5056 = vmatpush1.msra.mxu0 0.0
    %5057 = vmatprep.subr.mxu0 0.0
    %5058 = vmatpush1.msra.mxu0 0.0
    %5059 = vmatprep.subr.mxu0 0.0
    %5060 = vmatpush1.msra.mxu0 0.0
    %5061 = vmatprep.subr.mxu0 0.0
    %5062 = vmatpush1.msra.mxu0 0.0
    %5063 = vmatprep.subr.mxu0 0.0
    %5064 = vmatpush1.msra.mxu0 0.0
    %5065 = vmatprep.subr.mxu0 0.0
    %5066 = vmatpush1.msra.mxu0 0.0
    %5067 = vmatprep.subr.mxu0 0.0
    %5068 = vmatpush1.msra.mxu0 0.0
    %5069 = vmatprep.subr.mxu0 0.0
    %5070 = vmatpush1.msra.mxu0 0.0
    %5071 = vmatprep.subr.mxu0 0.0
    %5072 = vmatpush1.msra.mxu0 0.0
    %5073 = vmatprep.subr.mxu0 0.0
    %5074 = vmatpush1.msra.mxu0 0.0
    %5075 = vmatprep.subr.mxu0 0.0
    %5076 = vmatpush1.msra.mxu0 0.0
    %5077 = vmatprep.subr.mxu0 0.0
    %5078 = vmatpush1.msra.mxu0 0.0
    %5079 = vmatprep.subr.mxu0 0.0
    %5080 = vmatpush1.msra.mxu0 0.0
    %5081 = vmatprep.subr.mxu0 0.0
    %5082 = vmatpush1.msra.mxu0 0.0
    %5083 = vmatprep.subr.mxu0 0.0
    %5084 = vmatpush1.msra.mxu0 0.0
    %5085 = vmatprep.subr.mxu0 0.0
    %5086 = vmatpush1.msra.mxu0 0.0
    %5087 = vmatprep.subr.mxu0 0.0
    %5088 = vmatpush1.msra.mxu0 0.0
    %5089 = vmatprep.subr.mxu0 0.0
    %5090 = vmatpush1.msra.mxu0 0.0
    %5091 = vmatprep.subr.mxu0 0.0
    %5092 = vmatpush1.msra.mxu0 0.0
    %5093 = vmatprep.subr.mxu0 0.0
    %5094 = vmatpush1.msra.mxu0 0.0
    %5095 = vmatprep.subr.mxu0 0.0
    %5096 = vmatpush1.msra.mxu0 0.0
    %5097 = vmatprep.subr.mxu0 0.0
    %5098 = vmatpush1.msra.mxu0 0.0
    %5099 = vmatprep.subr.mxu0 0.0
    %5100 = vmatpush1.msra.mxu0 0.0
    %5101 = vmatprep.subr.mxu0 0.0
    %5102 = vmatpush1.msra.mxu0 0.0
    %5103 = vmatprep.subr.mxu0 0.0
    %5104 = vmatpush1.msra.mxu0 0.0
    %5105 = vmatprep.subr.mxu0 0.0
    %5106 = vmatpush1.msra.mxu0 0.0
    %5107 = vmatprep.subr.mxu0 0.0
    %5108 = vmatpush1.msra.mxu0 0.0
    %5109 = vmatprep.subr.mxu0 0.0
    %5110 = vmatpush1.msra.mxu0 0.0
    %5111 = vmatprep.mubr.f32.mxu0 0.0
    %5112 = vmatmul.mubr.f32.gmra.mrb[0].mxu0 %v5036
    %v5113 = vpop.f32.mrb[0].mxu0
    %v5114 = vadd.f32 0.0, %v5113
    %v5115 = vpop.f32.mrb[0].mxu0
    %5116 = vmatprep.mubr.f32.mxu0 0.0
    %5117 = vmatmul.mubr.f32.gmra.mrb[0].mxu0 %v5039
    %v5118 = vpop.f32.mrb[0].mxu0
    %v5119 = vadd.f32 0.0, %v5118
    %v5120 = vpop.f32.mrb[0].mxu0
    %5121 = vmatprep.mubr.f32.mxu0 0.0
    %5122 = vmatmul.mubr.f32.gmra.mrb[0].mxu0 %v5042
    %v5123 = vpop.f32.mrb[0].mxu0
    %v5124 = vadd.f32 0.0, %v5123
    %v5125 = vpop.f32.mrb[0].mxu0
    %5126 = vmatprep.mubr.f32.mxu0 0.0
    %5127 = vmatmul.mubr.f32.gmra.mrb[0].mxu0 %v5045
    %v5128 = vpop.f32.mrb[0].mxu0
    %v5129 = vadd.f32 0.0, %v5128
    %v5130 = vpop.f32.mrb[0].mxu0
    %5131 = vdwg.mxu0
    %v5132 = vadd.f32 %v4946, %v5114
    %v5133 = vadd.f32 %v4947, %v5119
    %v5134 = vadd.f32 %v4948, %v5124
    %v5135 = vadd.f32 %v4949, %v5129
    %s5136 = scalar_lea.vmem %s7, 160
    %v5137 = vld [vmem:[%s5136] sm:$0xff]
    %v5138 = vld [vmem:[%s5136 + $0x8] sm:$0xff]
    %v5139 = vld [vmem:[%s5136 + $0x10] sm:$0xff]
    %v5140 = vld [vmem:[%s5136 + $0x18] sm:$0xff]
    %5141 = vmatprep.subr.mxu0 0.0
    %5142 = vmatpush1.msra.mxu0 %v5137
    %5143 = vmatprep.subr.mxu0 0.0
    %5144 = vmatpush1.msra.mxu0 %v5138
    %5145 = vmatprep.subr.mxu0 0.0
    %5146 = vmatpush1.msra.mxu0 %v5139
    %5147 = vmatprep.subr.mxu0 0.0
    %5148 = vmatpush1.msra.mxu0 %v5140
    %5149 = vmatprep.subr.mxu0 0.0
    %5150 = vmatpush1.msra.mxu0 0.0
    %5151 = vmatprep.subr.mxu0 0.0
    %5152 = vmatpush1.msra.mxu0 0.0
    %5153 = vmatprep.subr.mxu0 0.0
    %5154 = vmatpush1.msra.mxu0 0.0
    %5155 = vmatprep.subr.mxu0 0.0
    %5156 = vmatpush1.msra.mxu0 0.0
    %5157 = vmatprep.subr.mxu0 0.0
    %5158 = vmatpush1.msra.mxu0 0.0
    %5159 = vmatprep.subr.mxu0 0.0
    %5160 = vmatpush1.msra.mxu0 0.0
    %5161 = vmatprep.subr.mxu0 0.0
    %5162 = vmatpush1.msra.mxu0 0.0
    %5163 = vmatprep.subr.mxu0 0.0
    %5164 = vmatpush1.msra.mxu0 0.0
    %5165 = vmatprep.subr.mxu0 0.0
    %5166 = vmatpush1.msra.mxu0 0.0
    %5167 = vmatprep.subr.mxu0 0.0
    %5168 = vmatpush1.msra.mxu0 0.0
    %5169 = vmatprep.subr.mxu0 0.0
    %5170 = vmatpush1.msra.mxu0 0.0
    %5171 = vmatprep.subr.mxu0 0.0
    %5172 = vmatpush1.msra.mxu0 0.0
    %5173 = vmatprep.subr.mxu0 0.0
    %5174 = vmatpush1.msra.mxu0 0.0
    %5175 = vmatprep.subr.mxu0 0.0
    %5176 = vmatpush1.msra.mxu0 0.0
    %5177 = vmatprep.subr.mxu0 0.0
    %5178 = vmatpush1.msra.mxu0 0.0
    %5179 = vmatprep.subr.mxu0 0.0
    %5180 = vmatpush1.msra.mxu0 0.0
    %5181 = vmatprep.subr.mxu0 0.0
    %5182 = vmatpush1.msra.mxu0 0.0
    %5183 = vmatprep.subr.mxu0 0.0
    %5184 = vmatpush1.msra.mxu0 0.0
    %5185 = vmatprep.subr.mxu0 0.0
    %5186 = vmatpush1.msra.mxu0 0.0
    %5187 = vmatprep.subr.mxu0 0.0
    %5188 = vmatpush1.msra.mxu0 0.0
    %5189 = vmatprep.subr.mxu0 0.0
    %5190 = vmatpush1.msra.mxu0 0.0
    %5191 = vmatprep.subr.mxu0 0.0
    %5192 = vmatpush1.msra.mxu0 0.0
    %5193 = vmatprep.subr.mxu0 0.0
    %5194 = vmatpush1.msra.mxu0 0.0
    %5195 = vmatprep.subr.mxu0 0.0
    %5196 = vmatpush1.msra.mxu0 0.0
    %5197 = vmatprep.subr.mxu0 0.0
    %5198 = vmatpush1.msra.mxu0 0.0
    %5199 = vmatprep.subr.mxu0 0.0
    %5200 = vmatpush1.msra.mxu0 0.0
    %5201 = vmatprep.subr.mxu0 0.0
    %5202 = vmatpush1.msra.mxu0 0.0
    %5203 = vmatprep.subr.mxu0 0.0
    %5204 = vmatpush1.msra.mxu0 0.0
    %5205 = vmatprep.mubr.f32.mxu0 0.0
    %5206 = vmatmul.mubr.f32.gmra.mrb[0].mxu0 %v4214
    %v5207 = vpop.f32.mrb[0].mxu0
    %v5208 = vadd.f32 0.0, %v5207
    %v5209 = vpop.f32.mrb[0].mxu0
    %5210 = vmatprep.mubr.f32.mxu0 0.0
    %5211 = vmatmul.mubr.f32.gmra.mrb[0].mxu0 %v4217
    %v5212 = vpop.f32.mrb[0].mxu0
    %v5213 = vadd.f32 0.0, %v5212
    %v5214 = vpop.f32.mrb[0].mxu0
    %5215 = vdwg.mxu0
    %s5216 = scalar_lea.vmem %s8, 160
    %v5217 = vld [vmem:[%s5216] sm:$0xff]
    %v5218 = vld [vmem:[%s5216 + $0x8] sm:$0xff]
    %v5219 = vld [vmem:[%s5216 + $0x10] sm:$0xff]
    %v5220 = vld [vmem:[%s5216 + $0x18] sm:$0xff]
    %v5222 = vsel %vm4383, %v5217, 0
    %v5225 = vsel %vm4383, %v5218, 0
    %v5228 = vsel %vm4383, %v5219, 0
    %v5231 = vsel %vm4383, %v5220, 0
    %5233 = vmatprep.subr.mxu0 0.0
    %5234 = vmatpush1.msra.mxu0 %v5208
    %5235 = vmatprep.subr.mxu0 0.0
    %5236 = vmatpush1.msra.mxu0 %v5213
    %5237 = vmatprep.subr.mxu0 0.0
    %5238 = vmatpush1.msra.mxu0 0.0
    %5239 = vmatprep.subr.mxu0 0.0
    %5240 = vmatpush1.msra.mxu0 0.0
    %5241 = vmatprep.subr.mxu0 0.0
    %5242 = vmatpush1.msra.mxu0 0.0
    %5243 = vmatprep.subr.mxu0 0.0
    %5244 = vmatpush1.msra.mxu0 0.0
    %5245 = vmatprep.subr.mxu0 0.0
    %5246 = vmatpush1.msra.mxu0 0.0
    %5247 = vmatprep.subr.mxu0 0.0
    %5248 = vmatpush1.msra.mxu0 0.0
    %5249 = vmatprep.subr.mxu0 0.0
    %5250 = vmatpush1.msra.mxu0 0.0
    %5251 = vmatprep.subr.mxu0 0.0
    %5252 = vmatpush1.msra.mxu0 0.0
    %5253 = vmatprep.subr.mxu0 0.0
    %5254 = vmatpush1.msra.mxu0 0.0
    %5255 = vmatprep.subr.mxu0 0.0
    %5256 = vmatpush1.msra.mxu0 0.0
    %5257 = vmatprep.subr.mxu0 0.0
    %5258 = vmatpush1.msra.mxu0 0.0
    %5259 = vmatprep.subr.mxu0 0.0
    %5260 = vmatpush1.msra.mxu0 0.0
    %5261 = vmatprep.subr.mxu0 0.0
    %5262 = vmatpush1.msra.mxu0 0.0
    %5263 = vmatprep.subr.mxu0 0.0
    %5264 = vmatpush1.msra.mxu0 0.0
    %5265 = vmatprep.subr.mxu0 0.0
    %5266 = vmatpush1.msra.mxu0 0.0
    %5267 = vmatprep.subr.mxu0 0.0
    %5268 = vmatpush1.msra.mxu0 0.0
    %5269 = vmatprep.subr.mxu0 0.0
    %5270 = vmatpush1.msra.mxu0 0.0
    %5271 = vmatprep.subr.mxu0 0.0
    %5272 = vmatpush1.msra.mxu0 0.0
    %5273 = vmatprep.subr.mxu0 0.0
    %5274 = vmatpush1.msra.mxu0 0.0
    %5275 = vmatprep.subr.mxu0 0.0
    %5276 = vmatpush1.msra.mxu0 0.0
    %5277 = vmatprep.subr.mxu0 0.0
    %5278 = vmatpush1.msra.mxu0 0.0
    %5279 = vmatprep.subr.mxu0 0.0
    %5280 = vmatpush1.msra.mxu0 0.0
    %5281 = vmatprep.subr.mxu0 0.0
    %5282 = vmatpush1.msra.mxu0 0.0
    %5283 = vmatprep.subr.mxu0 0.0
    %5284 = vmatpush1.msra.mxu0 0.0
    %5285 = vmatprep.subr.mxu0 0.0
    %5286 = vmatpush1.msra.mxu0 0.0
    %5287 = vmatprep.subr.mxu0 0.0
    %5288 = vmatpush1.msra.mxu0 0.0
    %5289 = vmatprep.subr.mxu0 0.0
    %5290 = vmatpush1.msra.mxu0 0.0
    %5291 = vmatprep.subr.mxu0 0.0
    %5292 = vmatpush1.msra.mxu0 0.0
    %5293 = vmatprep.subr.mxu0 0.0
    %5294 = vmatpush1.msra.mxu0 0.0
    %5295 = vmatprep.subr.mxu0 0.0
    %5296 = vmatpush1.msra.mxu0 0.0
    %5297 = vmatprep.mubr.f32.mxu0 0.0
    %5298 = vmatmul.mubr.f32.gmra.mrb[0].mxu0 %v5222
    %v5299 = vpop.f32.mrb[0].mxu0
    %v5300 = vadd.f32 0.0, %v5299
    %v5301 = vpop.f32.mrb[0].mxu0
    %5302 = vmatprep.mubr.f32.mxu0 0.0
    %5303 = vmatmul.mubr.f32.gmra.mrb[0].mxu0 %v5225
    %v5304 = vpop.f32.mrb[0].mxu0
    %v5305 = vadd.f32 0.0, %v5304
    %v5306 = vpop.f32.mrb[0].mxu0
    %5307 = vmatprep.mubr.f32.mxu0 0.0
    %5308 = vmatmul.mubr.f32.gmra.mrb[0].mxu0 %v5228
    %v5309 = vpop.f32.mrb[0].mxu0
    %v5310 = vadd.f32 0.0, %v5309
    %v5311 = vpop.f32.mrb[0].mxu0
    %5312 = vmatprep.mubr.f32.mxu0 0.0
    %5313 = vmatmul.mubr.f32.gmra.mrb[0].mxu0 %v5231
    %v5314 = vpop.f32.mrb[0].mxu0
    %v5315 = vadd.f32 0.0, %v5314
    %v5316 = vpop.f32.mrb[0].mxu0
    %5317 = vdwg.mxu0
    %v5318 = vadd.f32 %v5132, %v5300
    %v5319 = vadd.f32 %v5133, %v5305
    %v5320 = vadd.f32 %v5134, %v5310
    %v5321 = vadd.f32 %v5135, %v5315
    %s5322 = scalar_lea.vmem %s7, 192
    %v5323 = vld [vmem:[%s5322] sm:$0xff]
    %v5324 = vld [vmem:[%s5322 + $0x8] sm:$0xff]
    %v5325 = vld [vmem:[%s5322 + $0x10] sm:$0xff]
    %v5326 = vld [vmem:[%s5322 + $0x18] sm:$0xff]
    %5327 = vmatprep.subr.mxu0 0.0
    %5328 = vmatpush1.msra.mxu0 %v5323
    %5329 = vmatprep.subr.mxu0 0.0
    %5330 = vmatpush1.msra.mxu0 %v5324
    %5331 = vmatprep.subr.mxu0 0.0
    %5332 = vmatpush1.msra.mxu0 %v5325
    %5333 = vmatprep.subr.mxu0 0.0
    %5334 = vmatpush1.msra.mxu0 %v5326
    %5335 = vmatprep.subr.mxu0 0.0
    %5336 = vmatpush1.msra.mxu0 0.0
    %5337 = vmatprep.subr.mxu0 0.0
    %5338 = vmatpush1.msra.mxu0 0.0
    %5339 = vmatprep.subr.mxu0 0.0
    %5340 = vmatpush1.msra.mxu0 0.0
    %5341 = vmatprep.subr.mxu0 0.0
    %5342 = vmatpush1.msra.mxu0 0.0
    %5343 = vmatprep.subr.mxu0 0.0
    %5344 = vmatpush1.msra.mxu0 0.0
    %5345 = vmatprep.subr.mxu0 0.0
    %5346 = vmatpush1.msra.mxu0 0.0
    %5347 = vmatprep.subr.mxu0 0.0
    %5348 = vmatpush1.msra.mxu0 0.0
    %5349 = vmatprep.subr.mxu0 0.0
    %5350 = vmatpush1.msra.mxu0 0.0
    %5351 = vmatprep.subr.mxu0 0.0
    %5352 = vmatpush1.msra.mxu0 0.0
    %5353 = vmatprep.subr.mxu0 0.0
    %5354 = vmatpush1.msra.mxu0 0.0
    %5355 = vmatprep.subr.mxu0 0.0
    %5356 = vmatpush1.msra.mxu0 0.0
    %5357 = vmatprep.subr.mxu0 0.0
    %5358 = vmatpush1.msra.mxu0 0.0
    %5359 = vmatprep.subr.mxu0 0.0
    %5360 = vmatpush1.msra.mxu0 0.0
    %5361 = vmatprep.subr.mxu0 0.0
    %5362 = vmatpush1.msra.mxu0 0.0
    %5363 = vmatprep.subr.mxu0 0.0
    %5364 = vmatpush1.msra.mxu0 0.0
    %5365 = vmatprep.subr.mxu0 0.0
    %5366 = vmatpush1.msra.mxu0 0.0
    %5367 = vmatprep.subr.mxu0 0.0
    %5368 = vmatpush1.msra.mxu0 0.0
    %5369 = vmatprep.subr.mxu0 0.0
    %5370 = vmatpush1.msra.mxu0 0.0
    %5371 = vmatprep.subr.mxu0 0.0
    %5372 = vmatpush1.msra.mxu0 0.0
    %5373 = vmatprep.subr.mxu0 0.0
    %5374 = vmatpush1.msra.mxu0 0.0
    %5375 = vmatprep.subr.mxu0 0.0
    %5376 = vmatpush1.msra.mxu0 0.0
    %5377 = vmatprep.subr.mxu0 0.0
    %5378 = vmatpush1.msra.mxu0 0.0
    %5379 = vmatprep.subr.mxu0 0.0
    %5380 = vmatpush1.msra.mxu0 0.0
    %5381 = vmatprep.subr.mxu0 0.0
    %5382 = vmatpush1.msra.mxu0 0.0
    %5383 = vmatprep.subr.mxu0 0.0
    %5384 = vmatpush1.msra.mxu0 0.0
    %5385 = vmatprep.subr.mxu0 0.0
    %5386 = vmatpush1.msra.mxu0 0.0
    %5387 = vmatprep.subr.mxu0 0.0
    %5388 = vmatpush1.msra.mxu0 0.0
    %5389 = vmatprep.subr.mxu0 0.0
    %5390 = vmatpush1.msra.mxu0 0.0
    %5391 = vmatprep.mubr.f32.mxu0 0.0
    %5392 = vmatmul.mubr.f32.gmra.mrb[0].mxu0 %v4214
    %v5393 = vpop.f32.mrb[0].mxu0
    %v5394 = vadd.f32 0.0, %v5393
    %v5395 = vpop.f32.mrb[0].mxu0
    %5396 = vmatprep.mubr.f32.mxu0 0.0
    %5397 = vmatmul.mubr.f32.gmra.mrb[0].mxu0 %v4217
    %v5398 = vpop.f32.mrb[0].mxu0
    %v5399 = vadd.f32 0.0, %v5398
    %v5400 = vpop.f32.mrb[0].mxu0
    %5401 = vdwg.mxu0
    %s5402 = scalar_lea.vmem %s8, 192
    %v5403 = vld [vmem:[%s5402] sm:$0xff]
    %v5404 = vld [vmem:[%s5402 + $0x8] sm:$0xff]
    %v5405 = vld [vmem:[%s5402 + $0x10] sm:$0xff]
    %v5406 = vld [vmem:[%s5402 + $0x18] sm:$0xff]
    %v5408 = vsel %vm4383, %v5403, 0
    %v5411 = vsel %vm4383, %v5404, 0
    %v5414 = vsel %vm4383, %v5405, 0
    %v5417 = vsel %vm4383, %v5406, 0
    %5419 = vmatprep.subr.mxu0 0.0
    %5420 = vmatpush1.msra.mxu0 %v5394
    %5421 = vmatprep.subr.mxu0 0.0
    %5422 = vmatpush1.msra.mxu0 %v5399
    %5423 = vmatprep.subr.mxu0 0.0
    %5424 = vmatpush1.msra.mxu0 0.0
    %5425 = vmatprep.subr.mxu0 0.0
    %5426 = vmatpush1.msra.mxu0 0.0
    %5427 = vmatprep.subr.mxu0 0.0
    %5428 = vmatpush1.msra.mxu0 0.0
    %5429 = vmatprep.subr.mxu0 0.0
    %5430 = vmatpush1.msra.mxu0 0.0
    %5431 = vmatprep.subr.mxu0 0.0
    %5432 = vmatpush1.msra.mxu0 0.0
    %5433 = vmatprep.subr.mxu0 0.0
    %5434 = vmatpush1.msra.mxu0 0.0
    %5435 = vmatprep.subr.mxu0 0.0
    %5436 = vmatpush1.msra.mxu0 0.0
    %5437 = vmatprep.subr.mxu0 0.0
    %5438 = vmatpush1.msra.mxu0 0.0
    %5439 = vmatprep.subr.mxu0 0.0
    %5440 = vmatpush1.msra.mxu0 0.0
    %5441 = vmatprep.subr.mxu0 0.0
    %5442 = vmatpush1.msra.mxu0 0.0
    %5443 = vmatprep.subr.mxu0 0.0
    %5444 = vmatpush1.msra.mxu0 0.0
    %5445 = vmatprep.subr.mxu0 0.0
    %5446 = vmatpush1.msra.mxu0 0.0
    %5447 = vmatprep.subr.mxu0 0.0
    %5448 = vmatpush1.msra.mxu0 0.0
    %5449 = vmatprep.subr.mxu0 0.0
    %5450 = vmatpush1.msra.mxu0 0.0
    %5451 = vmatprep.subr.mxu0 0.0
    %5452 = vmatpush1.msra.mxu0 0.0
    %5453 = vmatprep.subr.mxu0 0.0
    %5454 = vmatpush1.msra.mxu0 0.0
    %5455 = vmatprep.subr.mxu0 0.0
    %5456 = vmatpush1.msra.mxu0 0.0
    %5457 = vmatprep.subr.mxu0 0.0
    %5458 = vmatpush1.msra.mxu0 0.0
    %5459 = vmatprep.subr.mxu0 0.0
    %5460 = vmatpush1.msra.mxu0 0.0
    %5461 = vmatprep.subr.mxu0 0.0
    %5462 = vmatpush1.msra.mxu0 0.0
    %5463 = vmatprep.subr.mxu0 0.0
    %5464 = vmatpush1.msra.mxu0 0.0
    %5465 = vmatprep.subr.mxu0 0.0
    %5466 = vmatpush1.msra.mxu0 0.0
    %5467 = vmatprep.subr.mxu0 0.0
    %5468 = vmatpush1.msra.mxu0 0.0
    %5469 = vmatprep.subr.mxu0 0.0
    %5470 = vmatpush1.msra.mxu0 0.0
    %5471 = vmatprep.subr.mxu0 0.0
    %5472 = vmatpush1.msra.mxu0 0.0
    %5473 = vmatprep.subr.mxu0 0.0
    %5474 = vmatpush1.msra.mxu0 0.0
    %5475 = vmatprep.subr.mxu0 0.0
    %5476 = vmatpush1.msra.mxu0 0.0
    %5477 = vmatprep.subr.mxu0 0.0
    %5478 = vmatpush1.msra.mxu0 0.0
    %5479 = vmatprep.subr.mxu0 0.0
    %5480 = vmatpush1.msra.mxu0 0.0
    %5481 = vmatprep.subr.mxu0 0.0
    %5482 = vmatpush1.msra.mxu0 0.0
    %5483 = vmatprep.mubr.f32.mxu0 0.0
    %5484 = vmatmul.mubr.f32.gmra.mrb[0].mxu0 %v5408
    %v5485 = vpop.f32.mrb[0].mxu0
    %v5486 = vadd.f32 0.0, %v5485
    %v5487 = vpop.f32.mrb[0].mxu0
    %5488 = vmatprep.mubr.f32.mxu0 0.0
    %5489 = vmatmul.mubr.f32.gmra.mrb[0].mxu0 %v5411
    %v5490 = vpop.f32.mrb[0].mxu0
    %v5491 = vadd.f32 0.0, %v5490
    %v5492 = vpop.f32.mrb[0].mxu0
    %5493 = vmatprep.mubr.f32.mxu0 0.0
    %5494 = vmatmul.mubr.f32.gmra.mrb[0].mxu0 %v5414
    %v5495 = vpop.f32.mrb[0].mxu0
    %v5496 = vadd.f32 0.0, %v5495
    %v5497 = vpop.f32.mrb[0].mxu0
    %5498 = vmatprep.mubr.f32.mxu0 0.0
    %5499 = vmatmul.mubr.f32.gmra.mrb[0].mxu0 %v5417
    %v5500 = vpop.f32.mrb[0].mxu0
    %v5501 = vadd.f32 0.0, %v5500
    %v5502 = vpop.f32.mrb[0].mxu0
    %5503 = vdwg.mxu0
    %v5504 = vadd.f32 %v5318, %v5486
    %v5505 = vadd.f32 %v5319, %v5491
    %v5506 = vadd.f32 %v5320, %v5496
    %v5507 = vadd.f32 %v5321, %v5501
    %s5508 = scalar_lea.vmem %s7, 224
    %v5509 = vld [vmem:[%s5508] sm:$0xff]
    %v5510 = vld [vmem:[%s5508 + $0x8] sm:$0xff]
    %v5511 = vld [vmem:[%s5508 + $0x10] sm:$0xff]
    %v5512 = vld [vmem:[%s5508 + $0x18] sm:$0xff]
    %5513 = vmatprep.subr.mxu0 0.0
    %5514 = vmatpush1.msra.mxu0 %v5509
    %5515 = vmatprep.subr.mxu0 0.0
    %5516 = vmatpush1.msra.mxu0 %v5510
    %5517 = vmatprep.subr.mxu0 0.0
    %5518 = vmatpush1.msra.mxu0 %v5511
    %5519 = vmatprep.subr.mxu0 0.0
    %5520 = vmatpush1.msra.mxu0 %v5512
    %5521 = vmatprep.subr.mxu0 0.0
    %5522 = vmatpush1.msra.mxu0 0.0
    %5523 = vmatprep.subr.mxu0 0.0
    %5524 = vmatpush1.msra.mxu0 0.0
    %5525 = vmatprep.subr.mxu0 0.0
    %5526 = vmatpush1.msra.mxu0 0.0
    %5527 = vmatprep.subr.mxu0 0.0
    %5528 = vmatpush1.msra.mxu0 0.0
    %5529 = vmatprep.subr.mxu0 0.0
    %5530 = vmatpush1.msra.mxu0 0.0
    %5531 = vmatprep.subr.mxu0 0.0
    %5532 = vmatpush1.msra.mxu0 0.0
    %5533 = vmatprep.subr.mxu0 0.0
    %5534 = vmatpush1.msra.mxu0 0.0
    %5535 = vmatprep.subr.mxu0 0.0
    %5536 = vmatpush1.msra.mxu0 0.0
    %5537 = vmatprep.subr.mxu0 0.0
    %5538 = vmatpush1.msra.mxu0 0.0
    %5539 = vmatprep.subr.mxu0 0.0
    %5540 = vmatpush1.msra.mxu0 0.0
    %5541 = vmatprep.subr.mxu0 0.0
    %5542 = vmatpush1.msra.mxu0 0.0
    %5543 = vmatprep.subr.mxu0 0.0
    %5544 = vmatpush1.msra.mxu0 0.0
    %5545 = vmatprep.subr.mxu0 0.0
    %5546 = vmatpush1.msra.mxu0 0.0
    %5547 = vmatprep.subr.mxu0 0.0
    %5548 = vmatpush1.msra.mxu0 0.0
    %5549 = vmatprep.subr.mxu0 0.0
    %5550 = vmatpush1.msra.mxu0 0.0
    %5551 = vmatprep.subr.mxu0 0.0
    %5552 = vmatpush1.msra.mxu0 0.0
    %5553 = vmatprep.subr.mxu0 0.0
    %5554 = vmatpush1.msra.mxu0 0.0
    %5555 = vmatprep.subr.mxu0 0.0
    %5556 = vmatpush1.msra.mxu0 0.0
    %5557 = vmatprep.subr.mxu0 0.0
    %5558 = vmatpush1.msra.mxu0 0.0
    %5559 = vmatprep.subr.mxu0 0.0
    %5560 = vmatpush1.msra.mxu0 0.0
    %5561 = vmatprep.subr.mxu0 0.0
    %5562 = vmatpush1.msra.mxu0 0.0
    %5563 = vmatprep.subr.mxu0 0.0
    %5564 = vmatpush1.msra.mxu0 0.0
    %5565 = vmatprep.subr.mxu0 0.0
    %5566 = vmatpush1.msra.mxu0 0.0
    %5567 = vmatprep.subr.mxu0 0.0
    %5568 = vmatpush1.msra.mxu0 0.0
    %5569 = vmatprep.subr.mxu0 0.0
    %5570 = vmatpush1.msra.mxu0 0.0
    %5571 = vmatprep.subr.mxu0 0.0
    %5572 = vmatpush1.msra.mxu0 0.0
    %5573 = vmatprep.subr.mxu0 0.0
    %5574 = vmatpush1.msra.mxu0 0.0
    %5575 = vmatprep.subr.mxu0 0.0
    %5576 = vmatpush1.msra.mxu0 0.0
    %5577 = vmatprep.mubr.f32.mxu0 0.0
    %5578 = vmatmul.mubr.f32.gmra.mrb[0].mxu0 %v4214
    %v5579 = vpop.f32.mrb[0].mxu0
    %v5580 = vadd.f32 0.0, %v5579
    %v5581 = vpop.f32.mrb[0].mxu0
    %5582 = vmatprep.mubr.f32.mxu0 0.0
    %5583 = vmatmul.mubr.f32.gmra.mrb[0].mxu0 %v4217
    %v5584 = vpop.f32.mrb[0].mxu0
    %v5585 = vadd.f32 0.0, %v5584
    %v5586 = vpop.f32.mrb[0].mxu0
    %5587 = vdwg.mxu0
    %s5588 = scalar_lea.vmem %s8, 224
    %v5589 = vld [vmem:[%s5588] sm:$0xff]
    %v5590 = vld [vmem:[%s5588 + $0x8] sm:$0xff]
    %v5591 = vld [vmem:[%s5588 + $0x10] sm:$0xff]
    %v5592 = vld [vmem:[%s5588 + $0x18] sm:$0xff]
    %v5594 = vsel %vm4383, %v5589, 0
    %v5597 = vsel %vm4383, %v5590, 0
    %v5600 = vsel %vm4383, %v5591, 0
    %v5603 = vsel %vm4383, %v5592, 0
    %5605 = vmatprep.subr.mxu0 0.0
    %5606 = vmatpush1.msra.mxu0 %v5580
    %5607 = vmatprep.subr.mxu0 0.0
    %5608 = vmatpush1.msra.mxu0 %v5585
    %5609 = vmatprep.subr.mxu0 0.0
    %5610 = vmatpush1.msra.mxu0 0.0
    %5611 = vmatprep.subr.mxu0 0.0
    %5612 = vmatpush1.msra.mxu0 0.0
    %5613 = vmatprep.subr.mxu0 0.0
    %5614 = vmatpush1.msra.mxu0 0.0
    %5615 = vmatprep.subr.mxu0 0.0
    %5616 = vmatpush1.msra.mxu0 0.0
    %5617 = vmatprep.subr.mxu0 0.0
    %5618 = vmatpush1.msra.mxu0 0.0
    %5619 = vmatprep.subr.mxu0 0.0
    %5620 = vmatpush1.msra.mxu0 0.0
    %5621 = vmatprep.subr.mxu0 0.0
    %5622 = vmatpush1.msra.mxu0 0.0
    %5623 = vmatprep.subr.mxu0 0.0
    %5624 = vmatpush1.msra.mxu0 0.0
    %5625 = vmatprep.subr.mxu0 0.0
    %5626 = vmatpush1.msra.mxu0 0.0
    %5627 = vmatprep.subr.mxu0 0.0
    %5628 = vmatpush1.msra.mxu0 0.0
    %5629 = vmatprep.subr.mxu0 0.0
    %5630 = vmatpush1.msra.mxu0 0.0
    %5631 = vmatprep.subr.mxu0 0.0
    %5632 = vmatpush1.msra.mxu0 0.0
    %5633 = vmatprep.subr.mxu0 0.0
    %5634 = vmatpush1.msra.mxu0 0.0
    %5635 = vmatprep.subr.mxu0 0.0
    %5636 = vmatpush1.msra.mxu0 0.0
    %5637 = vmatprep.subr.mxu0 0.0
    %5638 = vmatpush1.msra.mxu0 0.0
    %5639 = vmatprep.subr.mxu0 0.0
    %5640 = vmatpush1.msra.mxu0 0.0
    %5641 = vmatprep.subr.mxu0 0.0
    %5642 = vmatpush1.msra.mxu0 0.0
    %5643 = vmatprep.subr.mxu0 0.0
    %5644 = vmatpush1.msra.mxu0 0.0
    %5645 = vmatprep.subr.mxu0 0.0
    %5646 = vmatpush1.msra.mxu0 0.0
    %5647 = vmatprep.subr.mxu0 0.0
    %5648 = vmatpush1.msra.mxu0 0.0
    %5649 = vmatprep.subr.mxu0 0.0
    %5650 = vmatpush1.msra.mxu0 0.0
    %5651 = vmatprep.subr.mxu0 0.0
    %5652 = vmatpush1.msra.mxu0 0.0
    %5653 = vmatprep.subr.mxu0 0.0
    %5654 = vmatpush1.msra.mxu0 0.0
    %5655 = vmatprep.subr.mxu0 0.0
    %5656 = vmatpush1.msra.mxu0 0.0
    %5657 = vmatprep.subr.mxu0 0.0
    %5658 = vmatpush1.msra.mxu0 0.0
    %5659 = vmatprep.subr.mxu0 0.0
    %5660 = vmatpush1.msra.mxu0 0.0
    %5661 = vmatprep.subr.mxu0 0.0
    %5662 = vmatpush1.msra.mxu0 0.0
    %5663 = vmatprep.subr.mxu0 0.0
    %5664 = vmatpush1.msra.mxu0 0.0
    %5665 = vmatprep.subr.mxu0 0.0
    %5666 = vmatpush1.msra.mxu0 0.0
    %5667 = vmatprep.subr.mxu0 0.0
    %5668 = vmatpush1.msra.mxu0 0.0
    %5669 = vmatprep.mubr.f32.mxu0 0.0
    %5670 = vmatmul.mubr.f32.gmra.mrb[0].mxu0 %v5594
    %v5671 = vpop.f32.mrb[0].mxu0
    %v5672 = vadd.f32 0.0, %v5671
    %v5673 = vpop.f32.mrb[0].mxu0
    %5674 = vmatprep.mubr.f32.mxu0 0.0
    %5675 = vmatmul.mubr.f32.gmra.mrb[0].mxu0 %v5597
    %v5676 = vpop.f32.mrb[0].mxu0
    %v5677 = vadd.f32 0.0, %v5676
    %v5678 = vpop.f32.mrb[0].mxu0
    %5679 = vmatprep.mubr.f32.mxu0 0.0
    %5680 = vmatmul.mubr.f32.gmra.mrb[0].mxu0 %v5600
    %v5681 = vpop.f32.mrb[0].mxu0
    %v5682 = vadd.f32 0.0, %v5681
    %v5683 = vpop.f32.mrb[0].mxu0
    %5684 = vmatprep.mubr.f32.mxu0 0.0
    %5685 = vmatmul.mubr.f32.gmra.mrb[0].mxu0 %v5603
    %v5686 = vpop.f32.mrb[0].mxu0
    %v5687 = vadd.f32 0.0, %v5686
    %v5688 = vpop.f32.mrb[0].mxu0
    %5689 = vdwg.mxu0
    %v5690 = vadd.f32 %v5504, %v5672
    %v5691 = vadd.f32 %v5505, %v5677
    %v5692 = vadd.f32 %v5506, %v5682
    %v5693 = vadd.f32 %v5507, %v5687
    %s5694 = scalar_lea.vmem %s7, 256
    %v5695 = vld [vmem:[%s5694] sm:$0xff]
    %v5696 = vld [vmem:[%s5694 + $0x8] sm:$0xff]
    %v5697 = vld [vmem:[%s5694 + $0x10] sm:$0xff]
    %v5698 = vld [vmem:[%s5694 + $0x18] sm:$0xff]
    %5699 = vmatprep.subr.mxu0 0.0
    %5700 = vmatpush1.msra.mxu0 %v5695
    %5701 = vmatprep.subr.mxu0 0.0
    %5702 = vmatpush1.msra.mxu0 %v5696
    %5703 = vmatprep.subr.mxu0 0.0
    %5704 = vmatpush1.msra.mxu0 %v5697
    %5705 = vmatprep.subr.mxu0 0.0
    %5706 = vmatpush1.msra.mxu0 %v5698
    %5707 = vmatprep.subr.mxu0 0.0
    %5708 = vmatpush1.msra.mxu0 0.0
    %5709 = vmatprep.subr.mxu0 0.0
    %5710 = vmatpush1.msra.mxu0 0.0
    %5711 = vmatprep.subr.mxu0 0.0
    %5712 = vmatpush1.msra.mxu0 0.0
    %5713 = vmatprep.subr.mxu0 0.0
    %5714 = vmatpush1.msra.mxu0 0.0
    %5715 = vmatprep.subr.mxu0 0.0
    %5716 = vmatpush1.msra.mxu0 0.0
    %5717 = vmatprep.subr.mxu0 0.0
    %5718 = vmatpush1.msra.mxu0 0.0
    %5719 = vmatprep.subr.mxu0 0.0
    %5720 = vmatpush1.msra.mxu0 0.0
    %5721 = vmatprep.subr.mxu0 0.0
    %5722 = vmatpush1.msra.mxu0 0.0
    %5723 = vmatprep.subr.mxu0 0.0
    %5724 = vmatpush1.msra.mxu0 0.0
    %5725 = vmatprep.subr.mxu0 0.0
    %5726 = vmatpush1.msra.mxu0 0.0
    %5727 = vmatprep.subr.mxu0 0.0
    %5728 = vmatpush1.msra.mxu0 0.0
    %5729 = vmatprep.subr.mxu0 0.0
    %5730 = vmatpush1.msra.mxu0 0.0
    %5731 = vmatprep.subr.mxu0 0.0
    %5732 = vmatpush1.msra.mxu0 0.0
    %5733 = vmatprep.subr.mxu0 0.0
    %5734 = vmatpush1.msra.mxu0 0.0
    %5735 = vmatprep.subr.mxu0 0.0
    %5736 = vmatpush1.msra.mxu0 0.0
    %5737 = vmatprep.subr.mxu0 0.0
    %5738 = vmatpush1.msra.mxu0 0.0
    %5739 = vmatprep.subr.mxu0 0.0
    %5740 = vmatpush1.msra.mxu0 0.0
    %5741 = vmatprep.subr.mxu0 0.0
    %5742 = vmatpush1.msra.mxu0 0.0
    %5743 = vmatprep.subr.mxu0 0.0
    %5744 = vmatpush1.msra.mxu0 0.0
    %5745 = vmatprep.subr.mxu0 0.0
    %5746 = vmatpush1.msra.mxu0 0.0
    %5747 = vmatprep.subr.mxu0 0.0
    %5748 = vmatpush1.msra.mxu0 0.0
    %5749 = vmatprep.subr.mxu0 0.0
    %5750 = vmatpush1.msra.mxu0 0.0
    %5751 = vmatprep.subr.mxu0 0.0
    %5752 = vmatpush1.msra.mxu0 0.0
    %5753 = vmatprep.subr.mxu0 0.0
    %5754 = vmatpush1.msra.mxu0 0.0
    %5755 = vmatprep.subr.mxu0 0.0
    %5756 = vmatpush1.msra.mxu0 0.0
    %5757 = vmatprep.subr.mxu0 0.0
    %5758 = vmatpush1.msra.mxu0 0.0
    %5759 = vmatprep.subr.mxu0 0.0
    %5760 = vmatpush1.msra.mxu0 0.0
    %5761 = vmatprep.subr.mxu0 0.0
    %5762 = vmatpush1.msra.mxu0 0.0
    %5763 = vmatprep.mubr.f32.mxu0 0.0
    %5764 = vmatmul.mubr.f32.gmra.mrb[0].mxu0 %v4214
    %v5765 = vpop.f32.mrb[0].mxu0
    %v5766 = vadd.f32 0.0, %v5765
    %v5767 = vpop.f32.mrb[0].mxu0
    %5768 = vmatprep.mubr.f32.mxu0 0.0
    %5769 = vmatmul.mubr.f32.gmra.mrb[0].mxu0 %v4217
    %v5770 = vpop.f32.mrb[0].mxu0
    %v5771 = vadd.f32 0.0, %v5770
    %v5772 = vpop.f32.mrb[0].mxu0
    %5773 = vdwg.mxu0
    %s5774 = scalar_lea.vmem %s8, 256
    %v5775 = vld [vmem:[%s5774] sm:$0xff]
    %v5776 = vld [vmem:[%s5774 + $0x8] sm:$0xff]
    %v5777 = vld [vmem:[%s5774 + $0x10] sm:$0xff]
    %v5778 = vld [vmem:[%s5774 + $0x18] sm:$0xff]
    %v5780 = vsel %vm4383, %v5775, 0
    %v5783 = vsel %vm4383, %v5776, 0
    %v5786 = vsel %vm4383, %v5777, 0
    %v5789 = vsel %vm4383, %v5778, 0
    %5791 = vmatprep.subr.mxu0 0.0
    %5792 = vmatpush1.msra.mxu0 %v5766
    %5793 = vmatprep.subr.mxu0 0.0
    %5794 = vmatpush1.msra.mxu0 %v5771
    %5795 = vmatprep.subr.mxu0 0.0
    %5796 = vmatpush1.msra.mxu0 0.0
    %5797 = vmatprep.subr.mxu0 0.0
    %5798 = vmatpush1.msra.mxu0 0.0
    %5799 = vmatprep.subr.mxu0 0.0
    %5800 = vmatpush1.msra.mxu0 0.0
    %5801 = vmatprep.subr.mxu0 0.0
    %5802 = vmatpush1.msra.mxu0 0.0
    %5803 = vmatprep.subr.mxu0 0.0
    %5804 = vmatpush1.msra.mxu0 0.0
    %5805 = vmatprep.subr.mxu0 0.0
    %5806 = vmatpush1.msra.mxu0 0.0
    %5807 = vmatprep.subr.mxu0 0.0
    %5808 = vmatpush1.msra.mxu0 0.0
    %5809 = vmatprep.subr.mxu0 0.0
    %5810 = vmatpush1.msra.mxu0 0.0
    %5811 = vmatprep.subr.mxu0 0.0
    %5812 = vmatpush1.msra.mxu0 0.0
    %5813 = vmatprep.subr.mxu0 0.0
    %5814 = vmatpush1.msra.mxu0 0.0
    %5815 = vmatprep.subr.mxu0 0.0
    %5816 = vmatpush1.msra.mxu0 0.0
    %5817 = vmatprep.subr.mxu0 0.0
    %5818 = vmatpush1.msra.mxu0 0.0
    %5819 = vmatprep.subr.mxu0 0.0
    %5820 = vmatpush1.msra.mxu0 0.0
    %5821 = vmatprep.subr.mxu0 0.0
    %5822 = vmatpush1.msra.mxu0 0.0
    %5823 = vmatprep.subr.mxu0 0.0
    %5824 = vmatpush1.msra.mxu0 0.0
    %5825 = vmatprep.subr.mxu0 0.0
    %5826 = vmatpush1.msra.mxu0 0.0
    %5827 = vmatprep.subr.mxu0 0.0
    %5828 = vmatpush1.msra.mxu0 0.0
    %5829 = vmatprep.subr.mxu0 0.0
    %5830 = vmatpush1.msra.mxu0 0.0
    %5831 = vmatprep.subr.mxu0 0.0
    %5832 = vmatpush1.msra.mxu0 0.0
    %5833 = vmatprep.subr.mxu0 0.0
    %5834 = vmatpush1.msra.mxu0 0.0
    %5835 = vmatprep.subr.mxu0 0.0
    %5836 = vmatpush1.msra.mxu0 0.0
    %5837 = vmatprep.subr.mxu0 0.0
    %5838 = vmatpush1.msra.mxu0 0.0
    %5839 = vmatprep.subr.mxu0 0.0
    %5840 = vmatpush1.msra.mxu0 0.0
    %5841 = vmatprep.subr.mxu0 0.0
    %5842 = vmatpush1.msra.mxu0 0.0
    %5843 = vmatprep.subr.mxu0 0.0
    %5844 = vmatpush1.msra.mxu0 0.0
    %5845 = vmatprep.subr.mxu0 0.0
    %5846 = vmatpush1.msra.mxu0 0.0
    %5847 = vmatprep.subr.mxu0 0.0
    %5848 = vmatpush1.msra.mxu0 0.0
    %5849 = vmatprep.subr.mxu0 0.0
    %5850 = vmatpush1.msra.mxu0 0.0
    %5851 = vmatprep.subr.mxu0 0.0
    %5852 = vmatpush1.msra.mxu0 0.0
    %5853 = vmatprep.subr.mxu0 0.0
    %5854 = vmatpush1.msra.mxu0 0.0
    %5855 = vmatprep.mubr.f32.mxu0 0.0
    %5856 = vmatmul.mubr.f32.gmra.mrb[0].mxu0 %v5780
    %v5857 = vpop.f32.mrb[0].mxu0
    %v5858 = vadd.f32 0.0, %v5857
    %v5859 = vpop.f32.mrb[0].mxu0
    %5860 = vmatprep.mubr.f32.mxu0 0.0
    %5861 = vmatmul.mubr.f32.gmra.mrb[0].mxu0 %v5783
    %v5862 = vpop.f32.mrb[0].mxu0
    %v5863 = vadd.f32 0.0, %v5862
    %v5864 = vpop.f32.mrb[0].mxu0
    %5865 = vmatprep.mubr.f32.mxu0 0.0
    %5866 = vmatmul.mubr.f32.gmra.mrb[0].mxu0 %v5786
    %v5867 = vpop.f32.mrb[0].mxu0
    %v5868 = vadd.f32 0.0, %v5867
    %v5869 = vpop.f32.mrb[0].mxu0
    %5870 = vmatprep.mubr.f32.mxu0 0.0
    %5871 = vmatmul.mubr.f32.gmra.mrb[0].mxu0 %v5789
    %v5872 = vpop.f32.mrb[0].mxu0
    %v5873 = vadd.f32 0.0, %v5872
    %v5874 = vpop.f32.mrb[0].mxu0
    %5875 = vdwg.mxu0
    %v5876 = vadd.f32 %v5690, %v5858
    %v5877 = vadd.f32 %v5691, %v5863
    %v5878 = vadd.f32 %v5692, %v5868
    %v5879 = vadd.f32 %v5693, %v5873
    %s5880 = scalar_lea.vmem %s7, 288
    %v5881 = vld [vmem:[%s5880] sm:$0xff]
    %v5882 = vld [vmem:[%s5880 + $0x8] sm:$0xff]
    %v5883 = vld [vmem:[%s5880 + $0x10] sm:$0xff]
    %v5884 = vld [vmem:[%s5880 + $0x18] sm:$0xff]
    %5885 = vmatprep.subr.mxu0 0.0
    %5886 = vmatpush1.msra.mxu0 %v5881
    %5887 = vmatprep.subr.mxu0 0.0
    %5888 = vmatpush1.msra.mxu0 %v5882
    %5889 = vmatprep.subr.mxu0 0.0
    %5890 = vmatpush1.msra.mxu0 %v5883
    %5891 = vmatprep.subr.mxu0 0.0
    %5892 = vmatpush1.msra.mxu0 %v5884
    %5893 = vmatprep.subr.mxu0 0.0
    %5894 = vmatpush1.msra.mxu0 0.0
    %5895 = vmatprep.subr.mxu0 0.0
    %5896 = vmatpush1.msra.mxu0 0.0
    %5897 = vmatprep.subr.mxu0 0.0
    %5898 = vmatpush1.msra.mxu0 0.0
    %5899 = vmatprep.subr.mxu0 0.0
    %5900 = vmatpush1.msra.mxu0 0.0
    %5901 = vmatprep.subr.mxu0 0.0
    %5902 = vmatpush1.msra.mxu0 0.0
    %5903 = vmatprep.subr.mxu0 0.0
    %5904 = vmatpush1.msra.mxu0 0.0
    %5905 = vmatprep.subr.mxu0 0.0
    %5906 = vmatpush1.msra.mxu0 0.0
    %5907 = vmatprep.subr.mxu0 0.0
    %5908 = vmatpush1.msra.mxu0 0.0
    %5909 = vmatprep.subr.mxu0 0.0
    %5910 = vmatpush1.msra.mxu0 0.0
    %5911 = vmatprep.subr.mxu0 0.0
    %5912 = vmatpush1.msra.mxu0 0.0
    %5913 = vmatprep.subr.mxu0 0.0
    %5914 = vmatpush1.msra.mxu0 0.0
    %5915 = vmatprep.subr.mxu0 0.0
    %5916 = vmatpush1.msra.mxu0 0.0
    %5917 = vmatprep.subr.mxu0 0.0
    %5918 = vmatpush1.msra.mxu0 0.0
    %5919 = vmatprep.subr.mxu0 0.0
    %5920 = vmatpush1.msra.mxu0 0.0
    %5921 = vmatprep.subr.mxu0 0.0
    %5922 = vmatpush1.msra.mxu0 0.0
    %5923 = vmatprep.subr.mxu0 0.0
    %5924 = vmatpush1.msra.mxu0 0.0
    %5925 = vmatprep.subr.mxu0 0.0
    %5926 = vmatpush1.msra.mxu0 0.0
    %5927 = vmatprep.subr.mxu0 0.0
    %5928 = vmatpush1.msra.mxu0 0.0
    %5929 = vmatprep.subr.mxu0 0.0
    %5930 = vmatpush1.msra.mxu0 0.0
    %5931 = vmatprep.subr.mxu0 0.0
    %5932 = vmatpush1.msra.mxu0 0.0
    %5933 = vmatprep.subr.mxu0 0.0
    %5934 = vmatpush1.msra.mxu0 0.0
    %5935 = vmatprep.subr.mxu0 0.0
    %5936 = vmatpush1.msra.mxu0 0.0
    %5937 = vmatprep.subr.mxu0 0.0
    %5938 = vmatpush1.msra.mxu0 0.0
    %5939 = vmatprep.subr.mxu0 0.0
    %5940 = vmatpush1.msra.mxu0 0.0
    %5941 = vmatprep.subr.mxu0 0.0
    %5942 = vmatpush1.msra.mxu0 0.0
    %5943 = vmatprep.subr.mxu0 0.0
    %5944 = vmatpush1.msra.mxu0 0.0
    %5945 = vmatprep.subr.mxu0 0.0
    %5946 = vmatpush1.msra.mxu0 0.0
    %5947 = vmatprep.subr.mxu0 0.0
    %5948 = vmatpush1.msra.mxu0 0.0
    %5949 = vmatprep.mubr.f32.mxu0 0.0
    %5950 = vmatmul.mubr.f32.gmra.mrb[0].mxu0 %v4214
    %v5951 = vpop.f32.mrb[0].mxu0
    %v5952 = vadd.f32 0.0, %v5951
    %v5953 = vpop.f32.mrb[0].mxu0
    %5954 = vmatprep.mubr.f32.mxu0 0.0
    %5955 = vmatmul.mubr.f32.gmra.mrb[0].mxu0 %v4217
    %v5956 = vpop.f32.mrb[0].mxu0
    %v5957 = vadd.f32 0.0, %v5956
    %v5958 = vpop.f32.mrb[0].mxu0
    %5959 = vdwg.mxu0
    %s5960 = scalar_lea.vmem %s8, 288
    %v5961 = vld [vmem:[%s5960] sm:$0xff]
    %v5962 = vld [vmem:[%s5960 + $0x8] sm:$0xff]
    %v5963 = vld [vmem:[%s5960 + $0x10] sm:$0xff]
    %v5964 = vld [vmem:[%s5960 + $0x18] sm:$0xff]
    %v5966 = vsel %vm4383, %v5961, 0
    %v5969 = vsel %vm4383, %v5962, 0
    %v5972 = vsel %vm4383, %v5963, 0
    %v5975 = vsel %vm4383, %v5964, 0
    %5977 = vmatprep.subr.mxu0 0.0
    %5978 = vmatpush1.msra.mxu0 %v5952
    %5979 = vmatprep.subr.mxu0 0.0
    %5980 = vmatpush1.msra.mxu0 %v5957
    %5981 = vmatprep.subr.mxu0 0.0
    %5982 = vmatpush1.msra.mxu0 0.0
    %5983 = vmatprep.subr.mxu0 0.0
    %5984 = vmatpush1.msra.mxu0 0.0
    %5985 = vmatprep.subr.mxu0 0.0
    %5986 = vmatpush1.msra.mxu0 0.0
    %5987 = vmatprep.subr.mxu0 0.0
    %5988 = vmatpush1.msra.mxu0 0.0
    %5989 = vmatprep.subr.mxu0 0.0
    %5990 = vmatpush1.msra.mxu0 0.0
    %5991 = vmatprep.subr.mxu0 0.0
    %5992 = vmatpush1.msra.mxu0 0.0
    %5993 = vmatprep.subr.mxu0 0.0
    %5994 = vmatpush1.msra.mxu0 0.0
    %5995 = vmatprep.subr.mxu0 0.0
    %5996 = vmatpush1.msra.mxu0 0.0
    %5997 = vmatprep.subr.mxu0 0.0
    %5998 = vmatpush1.msra.mxu0 0.0
    %5999 = vmatprep.subr.mxu0 0.0
    %6000 = vmatpush1.msra.mxu0 0.0
    %6001 = vmatprep.subr.mxu0 0.0
    %6002 = vmatpush1.msra.mxu0 0.0
    %6003 = vmatprep.subr.mxu0 0.0
    %6004 = vmatpush1.msra.mxu0 0.0
    %6005 = vmatprep.subr.mxu0 0.0
    %6006 = vmatpush1.msra.mxu0 0.0
    %6007 = vmatprep.subr.mxu0 0.0
    %6008 = vmatpush1.msra.mxu0 0.0
    %6009 = vmatprep.subr.mxu0 0.0
    %6010 = vmatpush1.msra.mxu0 0.0
    %6011 = vmatprep.subr.mxu0 0.0
    %6012 = vmatpush1.msra.mxu0 0.0
    %6013 = vmatprep.subr.mxu0 0.0
    %6014 = vmatpush1.msra.mxu0 0.0
    %6015 = vmatprep.subr.mxu0 0.0
    %6016 = vmatpush1.msra.mxu0 0.0
    %6017 = vmatprep.subr.mxu0 0.0
    %6018 = vmatpush1.msra.mxu0 0.0
    %6019 = vmatprep.subr.mxu0 0.0
    %6020 = vmatpush1.msra.mxu0 0.0
    %6021 = vmatprep.subr.mxu0 0.0
    %6022 = vmatpush1.msra.mxu0 0.0
    %6023 = vmatprep.subr.mxu0 0.0
    %6024 = vmatpush1.msra.mxu0 0.0
    %6025 = vmatprep.subr.mxu0 0.0
    %6026 = vmatpush1.msra.mxu0 0.0
    %6027 = vmatprep.subr.mxu0 0.0
    %6028 = vmatpush1.msra.mxu0 0.0
    %6029 = vmatprep.subr.mxu0 0.0
    %6030 = vmatpush1.msra.mxu0 0.0
    %6031 = vmatprep.subr.mxu0 0.0
    %6032 = vmatpush1.msra.mxu0 0.0
    %6033 = vmatprep.subr.mxu0 0.0
    %6034 = vmatpush1.msra.mxu0 0.0
    %6035 = vmatprep.subr.mxu0 0.0
    %6036 = vmatpush1.msra.mxu0 0.0
    %6037 = vmatprep.subr.mxu0 0.0
    %6038 = vmatpush1.msra.mxu0 0.0
    %6039 = vmatprep.subr.mxu0 0.0
    %6040 = vmatpush1.msra.mxu0 0.0
    %6041 = vmatprep.mubr.f32.mxu0 0.0
    %6042 = vmatmul.mubr.f32.gmra.mrb[0].mxu0 %v5966
    %v6043 = vpop.f32.mrb[0].mxu0
    %v6044 = vadd.f32 0.0, %v6043
    %v6045 = vpop.f32.mrb[0].mxu0
    %6046 = vmatprep.mubr.f32.mxu0 0.0
    %6047 = vmatmul.mubr.f32.gmra.mrb[0].mxu0 %v5969
    %v6048 = vpop.f32.mrb[0].mxu0
    %v6049 = vadd.f32 0.0, %v6048
    %v6050 = vpop.f32.mrb[0].mxu0
    %6051 = vmatprep.mubr.f32.mxu0 0.0
    %6052 = vmatmul.mubr.f32.gmra.mrb[0].mxu0 %v5972
    %v6053 = vpop.f32.mrb[0].mxu0
    %v6054 = vadd.f32 0.0, %v6053
    %v6055 = vpop.f32.mrb[0].mxu0
    %6056 = vmatprep.mubr.f32.mxu0 0.0
    %6057 = vmatmul.mubr.f32.gmra.mrb[0].mxu0 %v5975
    %v6058 = vpop.f32.mrb[0].mxu0
    %v6059 = vadd.f32 0.0, %v6058
    %v6060 = vpop.f32.mrb[0].mxu0
    %6061 = vdwg.mxu0
    %v6062 = vadd.f32 %v5876, %v6044
    %v6063 = vadd.f32 %v5877, %v6049
    %v6064 = vadd.f32 %v5878, %v6054
    %v6065 = vadd.f32 %v5879, %v6059
    %s6066 = scalar_lea.vmem %s7, 320
    %v6067 = vld [vmem:[%s6066] sm:$0xff]
    %v6068 = vld [vmem:[%s6066 + $0x8] sm:$0xff]
    %v6069 = vld [vmem:[%s6066 + $0x10] sm:$0xff]
    %v6070 = vld [vmem:[%s6066 + $0x18] sm:$0xff]
    %6071 = vmatprep.subr.mxu0 0.0
    %6072 = vmatpush1.msra.mxu0 %v6067
    %6073 = vmatprep.subr.mxu0 0.0
    %6074 = vmatpush1.msra.mxu0 %v6068
    %6075 = vmatprep.subr.mxu0 0.0
    %6076 = vmatpush1.msra.mxu0 %v6069
    %6077 = vmatprep.subr.mxu0 0.0
    %6078 = vmatpush1.msra.mxu0 %v6070
    %6079 = vmatprep.subr.mxu0 0.0
    %6080 = vmatpush1.msra.mxu0 0.0
    %6081 = vmatprep.subr.mxu0 0.0
    %6082 = vmatpush1.msra.mxu0 0.0
    %6083 = vmatprep.subr.mxu0 0.0
    %6084 = vmatpush1.msra.mxu0 0.0
    %6085 = vmatprep.subr.mxu0 0.0
    %6086 = vmatpush1.msra.mxu0 0.0
    %6087 = vmatprep.subr.mxu0 0.0
    %6088 = vmatpush1.msra.mxu0 0.0
    %6089 = vmatprep.subr.mxu0 0.0
    %6090 = vmatpush1.msra.mxu0 0.0
    %6091 = vmatprep.subr.mxu0 0.0
    %6092 = vmatpush1.msra.mxu0 0.0
    %6093 = vmatprep.subr.mxu0 0.0
    %6094 = vmatpush1.msra.mxu0 0.0
    %6095 = vmatprep.subr.mxu0 0.0
    %6096 = vmatpush1.msra.mxu0 0.0
    %6097 = vmatprep.subr.mxu0 0.0
    %6098 = vmatpush1.msra.mxu0 0.0
    %6099 = vmatprep.subr.mxu0 0.0
    %6100 = vmatpush1.msra.mxu0 0.0
    %6101 = vmatprep.subr.mxu0 0.0
    %6102 = vmatpush1.msra.mxu0 0.0
    %6103 = vmatprep.subr.mxu0 0.0
    %6104 = vmatpush1.msra.mxu0 0.0
    %6105 = vmatprep.subr.mxu0 0.0
    %6106 = vmatpush1.msra.mxu0 0.0
    %6107 = vmatprep.subr.mxu0 0.0
    %6108 = vmatpush1.msra.mxu0 0.0
    %6109 = vmatprep.subr.mxu0 0.0
    %6110 = vmatpush1.msra.mxu0 0.0
    %6111 = vmatprep.subr.mxu0 0.0
    %6112 = vmatpush1.msra.mxu0 0.0
    %6113 = vmatprep.subr.mxu0 0.0
    %6114 = vmatpush1.msra.mxu0 0.0
    %6115 = vmatprep.subr.mxu0 0.0
    %6116 = vmatpush1.msra.mxu0 0.0
    %6117 = vmatprep.subr.mxu0 0.0
    %6118 = vmatpush1.msra.mxu0 0.0
    %6119 = vmatprep.subr.mxu0 0.0
    %6120 = vmatpush1.msra.mxu0 0.0
    %6121 = vmatprep.subr.mxu0 0.0
    %6122 = vmatpush1.msra.mxu0 0.0
    %6123 = vmatprep.subr.mxu0 0.0
    %6124 = vmatpush1.msra.mxu0 0.0
    %6125 = vmatprep.subr.mxu0 0.0
    %6126 = vmatpush1.msra.mxu0 0.0
    %6127 = vmatprep.subr.mxu0 0.0
    %6128 = vmatpush1.msra.mxu0 0.0
    %6129 = vmatprep.subr.mxu0 0.0
    %6130 = vmatpush1.msra.mxu0 0.0
    %6131 = vmatprep.subr.mxu0 0.0
    %6132 = vmatpush1.msra.mxu0 0.0
    %6133 = vmatprep.subr.mxu0 0.0
    %6134 = vmatpush1.msra.mxu0 0.0
    %6135 = vmatprep.mubr.f32.mxu0 0.0
    %6136 = vmatmul.mubr.f32.gmra.mrb[0].mxu0 %v4214
    %v6137 = vpop.f32.mrb[0].mxu0
    %v6138 = vadd.f32 0.0, %v6137
    %v6139 = vpop.f32.mrb[0].mxu0
    %6140 = vmatprep.mubr.f32.mxu0 0.0
    %6141 = vmatmul.mubr.f32.gmra.mrb[0].mxu0 %v4217
    %v6142 = vpop.f32.mrb[0].mxu0
    %v6143 = vadd.f32 0.0, %v6142
    %v6144 = vpop.f32.mrb[0].mxu0
    %6145 = vdwg.mxu0
    %s6146 = scalar_lea.vmem %s8, 320
    %v6147 = vld [vmem:[%s6146] sm:$0xff]
    %v6148 = vld [vmem:[%s6146 + $0x8] sm:$0xff]
    %v6149 = vld [vmem:[%s6146 + $0x10] sm:$0xff]
    %v6150 = vld [vmem:[%s6146 + $0x18] sm:$0xff]
    %v6152 = vsel %vm4383, %v6147, 0
    %v6155 = vsel %vm4383, %v6148, 0
    %v6158 = vsel %vm4383, %v6149, 0
    %v6161 = vsel %vm4383, %v6150, 0
    %6163 = vmatprep.subr.mxu0 0.0
    %6164 = vmatpush1.msra.mxu0 %v6138
    %6165 = vmatprep.subr.mxu0 0.0
    %6166 = vmatpush1.msra.mxu0 %v6143
    %6167 = vmatprep.subr.mxu0 0.0
    %6168 = vmatpush1.msra.mxu0 0.0
    %6169 = vmatprep.subr.mxu0 0.0
    %6170 = vmatpush1.msra.mxu0 0.0
    %6171 = vmatprep.subr.mxu0 0.0
    %6172 = vmatpush1.msra.mxu0 0.0
    %6173 = vmatprep.subr.mxu0 0.0
    %6174 = vmatpush1.msra.mxu0 0.0
    %6175 = vmatprep.subr.mxu0 0.0
    %6176 = vmatpush1.msra.mxu0 0.0
    %6177 = vmatprep.subr.mxu0 0.0
    %6178 = vmatpush1.msra.mxu0 0.0
    %6179 = vmatprep.subr.mxu0 0.0
    %6180 = vmatpush1.msra.mxu0 0.0
    %6181 = vmatprep.subr.mxu0 0.0
    %6182 = vmatpush1.msra.mxu0 0.0
    %6183 = vmatprep.subr.mxu0 0.0
    %6184 = vmatpush1.msra.mxu0 0.0
    %6185 = vmatprep.subr.mxu0 0.0
    %6186 = vmatpush1.msra.mxu0 0.0
    %6187 = vmatprep.subr.mxu0 0.0
    %6188 = vmatpush1.msra.mxu0 0.0
    %6189 = vmatprep.subr.mxu0 0.0
    %6190 = vmatpush1.msra.mxu0 0.0
    %6191 = vmatprep.subr.mxu0 0.0
    %6192 = vmatpush1.msra.mxu0 0.0
    %6193 = vmatprep.subr.mxu0 0.0
    %6194 = vmatpush1.msra.mxu0 0.0
    %6195 = vmatprep.subr.mxu0 0.0
    %6196 = vmatpush1.msra.mxu0 0.0
    %6197 = vmatprep.subr.mxu0 0.0
    %6198 = vmatpush1.msra.mxu0 0.0
    %6199 = vmatprep.subr.mxu0 0.0
    %6200 = vmatpush1.msra.mxu0 0.0
    %6201 = vmatprep.subr.mxu0 0.0
    %6202 = vmatpush1.msra.mxu0 0.0
    %6203 = vmatprep.subr.mxu0 0.0
    %6204 = vmatpush1.msra.mxu0 0.0
    %6205 = vmatprep.subr.mxu0 0.0
    %6206 = vmatpush1.msra.mxu0 0.0
    %6207 = vmatprep.subr.mxu0 0.0
    %6208 = vmatpush1.msra.mxu0 0.0
    %6209 = vmatprep.subr.mxu0 0.0
    %6210 = vmatpush1.msra.mxu0 0.0
    %6211 = vmatprep.subr.mxu0 0.0
    %6212 = vmatpush1.msra.mxu0 0.0
    %6213 = vmatprep.subr.mxu0 0.0
    %6214 = vmatpush1.msra.mxu0 0.0
    %6215 = vmatprep.subr.mxu0 0.0
    %6216 = vmatpush1.msra.mxu0 0.0
    %6217 = vmatprep.subr.mxu0 0.0
    %6218 = vmatpush1.msra.mxu0 0.0
    %6219 = vmatprep.subr.mxu0 0.0
    %6220 = vmatpush1.msra.mxu0 0.0
    %6221 = vmatprep.subr.mxu0 0.0
    %6222 = vmatpush1.msra.mxu0 0.0
    %6223 = vmatprep.subr.mxu0 0.0
    %6224 = vmatpush1.msra.mxu0 0.0
    %6225 = vmatprep.subr.mxu0 0.0
    %6226 = vmatpush1.msra.mxu0 0.0
    %6227 = vmatprep.mubr.f32.mxu0 0.0
    %6228 = vmatmul.mubr.f32.gmra.mrb[0].mxu0 %v6152
    %v6229 = vpop.f32.mrb[0].mxu0
    %v6230 = vadd.f32 0.0, %v6229
    %v6231 = vpop.f32.mrb[0].mxu0
    %6232 = vmatprep.mubr.f32.mxu0 0.0
    %6233 = vmatmul.mubr.f32.gmra.mrb[0].mxu0 %v6155
    %v6234 = vpop.f32.mrb[0].mxu0
    %v6235 = vadd.f32 0.0, %v6234
    %v6236 = vpop.f32.mrb[0].mxu0
    %6237 = vmatprep.mubr.f32.mxu0 0.0
    %6238 = vmatmul.mubr.f32.gmra.mrb[0].mxu0 %v6158
    %v6239 = vpop.f32.mrb[0].mxu0
    %v6240 = vadd.f32 0.0, %v6239
    %v6241 = vpop.f32.mrb[0].mxu0
    %6242 = vmatprep.mubr.f32.mxu0 0.0
    %6243 = vmatmul.mubr.f32.gmra.mrb[0].mxu0 %v6161
    %v6244 = vpop.f32.mrb[0].mxu0
    %v6245 = vadd.f32 0.0, %v6244
    %v6246 = vpop.f32.mrb[0].mxu0
    %6247 = vdwg.mxu0
    %v6248 = vadd.f32 %v6062, %v6230
    %v6249 = vadd.f32 %v6063, %v6235
    %v6250 = vadd.f32 %v6064, %v6240
    %v6251 = vadd.f32 %v6065, %v6245
    %s6252 = scalar_lea.vmem %s7, 352
    %v6253 = vld [vmem:[%s6252] sm:$0xff]
    %v6254 = vld [vmem:[%s6252 + $0x8] sm:$0xff]
    %v6255 = vld [vmem:[%s6252 + $0x10] sm:$0xff]
    %v6256 = vld [vmem:[%s6252 + $0x18] sm:$0xff]
    %6257 = vmatprep.subr.mxu0 0.0
    %6258 = vmatpush1.msra.mxu0 %v6253
    %6259 = vmatprep.subr.mxu0 0.0
    %6260 = vmatpush1.msra.mxu0 %v6254
    %6261 = vmatprep.subr.mxu0 0.0
    %6262 = vmatpush1.msra.mxu0 %v6255
    %6263 = vmatprep.subr.mxu0 0.0
    %6264 = vmatpush1.msra.mxu0 %v6256
    %6265 = vmatprep.subr.mxu0 0.0
    %6266 = vmatpush1.msra.mxu0 0.0
    %6267 = vmatprep.subr.mxu0 0.0
    %6268 = vmatpush1.msra.mxu0 0.0
    %6269 = vmatprep.subr.mxu0 0.0
    %6270 = vmatpush1.msra.mxu0 0.0
    %6271 = vmatprep.subr.mxu0 0.0
    %6272 = vmatpush1.msra.mxu0 0.0
    %6273 = vmatprep.subr.mxu0 0.0
    %6274 = vmatpush1.msra.mxu0 0.0
    %6275 = vmatprep.subr.mxu0 0.0
    %6276 = vmatpush1.msra.mxu0 0.0
    %6277 = vmatprep.subr.mxu0 0.0
    %6278 = vmatpush1.msra.mxu0 0.0
    %6279 = vmatprep.subr.mxu0 0.0
    %6280 = vmatpush1.msra.mxu0 0.0
    %6281 = vmatprep.subr.mxu0 0.0
    %6282 = vmatpush1.msra.mxu0 0.0
    %6283 = vmatprep.subr.mxu0 0.0
    %6284 = vmatpush1.msra.mxu0 0.0
    %6285 = vmatprep.subr.mxu0 0.0
    %6286 = vmatpush1.msra.mxu0 0.0
    %6287 = vmatprep.subr.mxu0 0.0
    %6288 = vmatpush1.msra.mxu0 0.0
    %6289 = vmatprep.subr.mxu0 0.0
    %6290 = vmatpush1.msra.mxu0 0.0
    %6291 = vmatprep.subr.mxu0 0.0
    %6292 = vmatpush1.msra.mxu0 0.0
    %6293 = vmatprep.subr.mxu0 0.0
    %6294 = vmatpush1.msra.mxu0 0.0
    %6295 = vmatprep.subr.mxu0 0.0
    %6296 = vmatpush1.msra.mxu0 0.0
    %6297 = vmatprep.subr.mxu0 0.0
    %6298 = vmatpush1.msra.mxu0 0.0
    %6299 = vmatprep.subr.mxu0 0.0
    %6300 = vmatpush1.msra.mxu0 0.0
    %6301 = vmatprep.subr.mxu0 0.0
    %6302 = vmatpush1.msra.mxu0 0.0
    %6303 = vmatprep.subr.mxu0 0.0
    %6304 = vmatpush1.msra.mxu0 0.0
    %6305 = vmatprep.subr.mxu0 0.0
    %6306 = vmatpush1.msra.mxu0 0.0
    %6307 = vmatprep.subr.mxu0 0.0
    %6308 = vmatpush1.msra.mxu0 0.0
    %6309 = vmatprep.subr.mxu0 0.0
    %6310 = vmatpush1.msra.mxu0 0.0
    %6311 = vmatprep.subr.mxu0 0.0
    %6312 = vmatpush1.msra.mxu0 0.0
    %6313 = vmatprep.subr.mxu0 0.0
    %6314 = vmatpush1.msra.mxu0 0.0
    %6315 = vmatprep.subr.mxu0 0.0
    %6316 = vmatpush1.msra.mxu0 0.0
    %6317 = vmatprep.subr.mxu0 0.0
    %6318 = vmatpush1.msra.mxu0 0.0
    %6319 = vmatprep.subr.mxu0 0.0
    %6320 = vmatpush1.msra.mxu0 0.0
    %6321 = vmatprep.mubr.f32.mxu0 0.0
    %6322 = vmatmul.mubr.f32.gmra.mrb[0].mxu0 %v4214
    %v6323 = vpop.f32.mrb[0].mxu0
    %v6324 = vadd.f32 0.0, %v6323
    %v6325 = vpop.f32.mrb[0].mxu0
    %6326 = vmatprep.mubr.f32.mxu0 0.0
    %6327 = vmatmul.mubr.f32.gmra.mrb[0].mxu0 %v4217
    %v6328 = vpop.f32.mrb[0].mxu0
    %v6329 = vadd.f32 0.0, %v6328
    %v6330 = vpop.f32.mrb[0].mxu0
    %6331 = vdwg.mxu0
    %s6332 = scalar_lea.vmem %s8, 352
    %v6333 = vld [vmem:[%s6332] sm:$0xff]
    %v6334 = vld [vmem:[%s6332 + $0x8] sm:$0xff]
    %v6335 = vld [vmem:[%s6332 + $0x10] sm:$0xff]
    %v6336 = vld [vmem:[%s6332 + $0x18] sm:$0xff]
    %v6338 = vsel %vm4383, %v6333, 0
    %v6341 = vsel %vm4383, %v6334, 0
    %v6344 = vsel %vm4383, %v6335, 0
    %v6347 = vsel %vm4383, %v6336, 0
    %6349 = vmatprep.subr.mxu0 0.0
    %6350 = vmatpush1.msra.mxu0 %v6324
    %6351 = vmatprep.subr.mxu0 0.0
    %6352 = vmatpush1.msra.mxu0 %v6329
    %6353 = vmatprep.subr.mxu0 0.0
    %6354 = vmatpush1.msra.mxu0 0.0
    %6355 = vmatprep.subr.mxu0 0.0
    %6356 = vmatpush1.msra.mxu0 0.0
    %6357 = vmatprep.subr.mxu0 0.0
    %6358 = vmatpush1.msra.mxu0 0.0
    %6359 = vmatprep.subr.mxu0 0.0
    %6360 = vmatpush1.msra.mxu0 0.0
    %6361 = vmatprep.subr.mxu0 0.0
    %6362 = vmatpush1.msra.mxu0 0.0
    %6363 = vmatprep.subr.mxu0 0.0
    %6364 = vmatpush1.msra.mxu0 0.0
    %6365 = vmatprep.subr.mxu0 0.0
    %6366 = vmatpush1.msra.mxu0 0.0
    %6367 = vmatprep.subr.mxu0 0.0
    %6368 = vmatpush1.msra.mxu0 0.0
    %6369 = vmatprep.subr.mxu0 0.0
    %6370 = vmatpush1.msra.mxu0 0.0
    %6371 = vmatprep.subr.mxu0 0.0
    %6372 = vmatpush1.msra.mxu0 0.0
    %6373 = vmatprep.subr.mxu0 0.0
    %6374 = vmatpush1.msra.mxu0 0.0
    %6375 = vmatprep.subr.mxu0 0.0
    %6376 = vmatpush1.msra.mxu0 0.0
    %6377 = vmatprep.subr.mxu0 0.0
    %6378 = vmatpush1.msra.mxu0 0.0
    %6379 = vmatprep.subr.mxu0 0.0
    %6380 = vmatpush1.msra.mxu0 0.0
    %6381 = vmatprep.subr.mxu0 0.0
    %6382 = vmatpush1.msra.mxu0 0.0
    %6383 = vmatprep.subr.mxu0 0.0
    %6384 = vmatpush1.msra.mxu0 0.0
    %6385 = vmatprep.subr.mxu0 0.0
    %6386 = vmatpush1.msra.mxu0 0.0
    %6387 = vmatprep.subr.mxu0 0.0
    %6388 = vmatpush1.msra.mxu0 0.0
    %6389 = vmatprep.subr.mxu0 0.0
    %6390 = vmatpush1.msra.mxu0 0.0
    %6391 = vmatprep.subr.mxu0 0.0
    %6392 = vmatpush1.msra.mxu0 0.0
    %6393 = vmatprep.subr.mxu0 0.0
    %6394 = vmatpush1.msra.mxu0 0.0
    %6395 = vmatprep.subr.mxu0 0.0
    %6396 = vmatpush1.msra.mxu0 0.0
    %6397 = vmatprep.subr.mxu0 0.0
    %6398 = vmatpush1.msra.mxu0 0.0
    %6399 = vmatprep.subr.mxu0 0.0
    %6400 = vmatpush1.msra.mxu0 0.0
    %6401 = vmatprep.subr.mxu0 0.0
    %6402 = vmatpush1.msra.mxu0 0.0
    %6403 = vmatprep.subr.mxu0 0.0
    %6404 = vmatpush1.msra.mxu0 0.0
    %6405 = vmatprep.subr.mxu0 0.0
    %6406 = vmatpush1.msra.mxu0 0.0
    %6407 = vmatprep.subr.mxu0 0.0
    %6408 = vmatpush1.msra.mxu0 0.0
    %6409 = vmatprep.subr.mxu0 0.0
    %6410 = vmatpush1.msra.mxu0 0.0
    %6411 = vmatprep.subr.mxu0 0.0
    %6412 = vmatpush1.msra.mxu0 0.0
    %6413 = vmatprep.mubr.f32.mxu0 0.0
    %6414 = vmatmul.mubr.f32.gmra.mrb[0].mxu0 %v6338
    %v6415 = vpop.f32.mrb[0].mxu0
    %v6416 = vadd.f32 0.0, %v6415
    %v6417 = vpop.f32.mrb[0].mxu0
    %6418 = vmatprep.mubr.f32.mxu0 0.0
    %6419 = vmatmul.mubr.f32.gmra.mrb[0].mxu0 %v6341
    %v6420 = vpop.f32.mrb[0].mxu0
    %v6421 = vadd.f32 0.0, %v6420
    %v6422 = vpop.f32.mrb[0].mxu0
    %6423 = vmatprep.mubr.f32.mxu0 0.0
    %6424 = vmatmul.mubr.f32.gmra.mrb[0].mxu0 %v6344
    %v6425 = vpop.f32.mrb[0].mxu0
    %v6426 = vadd.f32 0.0, %v6425
    %v6427 = vpop.f32.mrb[0].mxu0
    %6428 = vmatprep.mubr.f32.mxu0 0.0
    %6429 = vmatmul.mubr.f32.gmra.mrb[0].mxu0 %v6347
    %v6430 = vpop.f32.mrb[0].mxu0
    %v6431 = vadd.f32 0.0, %v6430
    %v6432 = vpop.f32.mrb[0].mxu0
    %6433 = vdwg.mxu0
    %v6434 = vadd.f32 %v6248, %v6416
    %v6435 = vadd.f32 %v6249, %v6421
    %v6436 = vadd.f32 %v6250, %v6426
    %v6437 = vadd.f32 %v6251, %v6431
    %s6438 = scalar_lea.vmem %s7, 384
    %v6439 = vld [vmem:[%s6438] sm:$0xff]
    %v6440 = vld [vmem:[%s6438 + $0x8] sm:$0xff]
    %v6441 = vld [vmem:[%s6438 + $0x10] sm:$0xff]
    %v6442 = vld [vmem:[%s6438 + $0x18] sm:$0xff]
    %6443 = vmatprep.subr.mxu0 0.0
    %6444 = vmatpush1.msra.mxu0 %v6439
    %6445 = vmatprep.subr.mxu0 0.0
    %6446 = vmatpush1.msra.mxu0 %v6440
    %6447 = vmatprep.subr.mxu0 0.0
    %6448 = vmatpush1.msra.mxu0 %v6441
    %6449 = vmatprep.subr.mxu0 0.0
    %6450 = vmatpush1.msra.mxu0 %v6442
    %6451 = vmatprep.subr.mxu0 0.0
    %6452 = vmatpush1.msra.mxu0 0.0
    %6453 = vmatprep.subr.mxu0 0.0
    %6454 = vmatpush1.msra.mxu0 0.0
    %6455 = vmatprep.subr.mxu0 0.0
    %6456 = vmatpush1.msra.mxu0 0.0
    %6457 = vmatprep.subr.mxu0 0.0
    %6458 = vmatpush1.msra.mxu0 0.0
    %6459 = vmatprep.subr.mxu0 0.0
    %6460 = vmatpush1.msra.mxu0 0.0
    %6461 = vmatprep.subr.mxu0 0.0
    %6462 = vmatpush1.msra.mxu0 0.0
    %6463 = vmatprep.subr.mxu0 0.0
    %6464 = vmatpush1.msra.mxu0 0.0
    %6465 = vmatprep.subr.mxu0 0.0
    %6466 = vmatpush1.msra.mxu0 0.0
    %6467 = vmatprep.subr.mxu0 0.0
    %6468 = vmatpush1.msra.mxu0 0.0
    %6469 = vmatprep.subr.mxu0 0.0
    %6470 = vmatpush1.msra.mxu0 0.0
    %6471 = vmatprep.subr.mxu0 0.0
    %6472 = vmatpush1.msra.mxu0 0.0
    %6473 = vmatprep.subr.mxu0 0.0
    %6474 = vmatpush1.msra.mxu0 0.0
    %6475 = vmatprep.subr.mxu0 0.0
    %6476 = vmatpush1.msra.mxu0 0.0
    %6477 = vmatprep.subr.mxu0 0.0
    %6478 = vmatpush1.msra.mxu0 0.0
    %6479 = vmatprep.subr.mxu0 0.0
    %6480 = vmatpush1.msra.mxu0 0.0
    %6481 = vmatprep.subr.mxu0 0.0
    %6482 = vmatpush1.msra.mxu0 0.0
    %6483 = vmatprep.subr.mxu0 0.0
    %6484 = vmatpush1.msra.mxu0 0.0
    %6485 = vmatprep.subr.mxu0 0.0
    %6486 = vmatpush1.msra.mxu0 0.0
    %6487 = vmatprep.subr.mxu0 0.0
    %6488 = vmatpush1.msra.mxu0 0.0
    %6489 = vmatprep.subr.mxu0 0.0
    %6490 = vmatpush1.msra.mxu0 0.0
    %6491 = vmatprep.subr.mxu0 0.0
    %6492 = vmatpush1.msra.mxu0 0.0
    %6493 = vmatprep.subr.mxu0 0.0
    %6494 = vmatpush1.msra.mxu0 0.0
    %6495 = vmatprep.subr.mxu0 0.0
    %6496 = vmatpush1.msra.mxu0 0.0
    %6497 = vmatprep.subr.mxu0 0.0
    %6498 = vmatpush1.msra.mxu0 0.0
    %6499 = vmatprep.subr.mxu0 0.0
    %6500 = vmatpush1.msra.mxu0 0.0
    %6501 = vmatprep.subr.mxu0 0.0
    %6502 = vmatpush1.msra.mxu0 0.0
    %6503 = vmatprep.subr.mxu0 0.0
    %6504 = vmatpush1.msra.mxu0 0.0
    %6505 = vmatprep.subr.mxu0 0.0
    %6506 = vmatpush1.msra.mxu0 0.0
    %6507 = vmatprep.mubr.f32.mxu0 0.0
    %6508 = vmatmul.mubr.f32.gmra.mrb[0].mxu0 %v4214
    %v6509 = vpop.f32.mrb[0].mxu0
    %v6510 = vadd.f32 0.0, %v6509
    %v6511 = vpop.f32.mrb[0].mxu0
    %6512 = vmatprep.mubr.f32.mxu0 0.0
    %6513 = vmatmul.mubr.f32.gmra.mrb[0].mxu0 %v4217
    %v6514 = vpop.f32.mrb[0].mxu0
    %v6515 = vadd.f32 0.0, %v6514
    %v6516 = vpop.f32.mrb[0].mxu0
    %6517 = vdwg.mxu0
    %s6518 = scalar_lea.vmem %s8, 384
    %v6519 = vld [vmem:[%s6518] sm:$0xff]
    %v6520 = vld [vmem:[%s6518 + $0x8] sm:$0xff]
    %v6521 = vld [vmem:[%s6518 + $0x10] sm:$0xff]
    %v6522 = vld [vmem:[%s6518 + $0x18] sm:$0xff]
    %v6524 = vsel %vm4383, %v6519, 0
    %v6527 = vsel %vm4383, %v6520, 0
    %v6530 = vsel %vm4383, %v6521, 0
    %v6533 = vsel %vm4383, %v6522, 0
    %6535 = vmatprep.subr.mxu0 0.0
    %6536 = vmatpush1.msra.mxu0 %v6510
    %6537 = vmatprep.subr.mxu0 0.0
    %6538 = vmatpush1.msra.mxu0 %v6515
    %6539 = vmatprep.subr.mxu0 0.0
    %6540 = vmatpush1.msra.mxu0 0.0
    %6541 = vmatprep.subr.mxu0 0.0
    %6542 = vmatpush1.msra.mxu0 0.0
    %6543 = vmatprep.subr.mxu0 0.0
    %6544 = vmatpush1.msra.mxu0 0.0
    %6545 = vmatprep.subr.mxu0 0.0
    %6546 = vmatpush1.msra.mxu0 0.0
    %6547 = vmatprep.subr.mxu0 0.0
    %6548 = vmatpush1.msra.mxu0 0.0
    %6549 = vmatprep.subr.mxu0 0.0
    %6550 = vmatpush1.msra.mxu0 0.0
    %6551 = vmatprep.subr.mxu0 0.0
    %6552 = vmatpush1.msra.mxu0 0.0
    %6553 = vmatprep.subr.mxu0 0.0
    %6554 = vmatpush1.msra.mxu0 0.0
    %6555 = vmatprep.subr.mxu0 0.0
    %6556 = vmatpush1.msra.mxu0 0.0
    %6557 = vmatprep.subr.mxu0 0.0
    %6558 = vmatpush1.msra.mxu0 0.0
    %6559 = vmatprep.subr.mxu0 0.0
    %6560 = vmatpush1.msra.mxu0 0.0
    %6561 = vmatprep.subr.mxu0 0.0
    %6562 = vmatpush1.msra.mxu0 0.0
    %6563 = vmatprep.subr.mxu0 0.0
    %6564 = vmatpush1.msra.mxu0 0.0
    %6565 = vmatprep.subr.mxu0 0.0
    %6566 = vmatpush1.msra.mxu0 0.0
    %6567 = vmatprep.subr.mxu0 0.0
    %6568 = vmatpush1.msra.mxu0 0.0
    %6569 = vmatprep.subr.mxu0 0.0
    %6570 = vmatpush1.msra.mxu0 0.0
    %6571 = vmatprep.subr.mxu0 0.0
    %6572 = vmatpush1.msra.mxu0 0.0
    %6573 = vmatprep.subr.mxu0 0.0
    %6574 = vmatpush1.msra.mxu0 0.0
    %6575 = vmatprep.subr.mxu0 0.0
    %6576 = vmatpush1.msra.mxu0 0.0
    %6577 = vmatprep.subr.mxu0 0.0
    %6578 = vmatpush1.msra.mxu0 0.0
    %6579 = vmatprep.subr.mxu0 0.0
    %6580 = vmatpush1.msra.mxu0 0.0
    %6581 = vmatprep.subr.mxu0 0.0
    %6582 = vmatpush1.msra.mxu0 0.0
    %6583 = vmatprep.subr.mxu0 0.0
    %6584 = vmatpush1.msra.mxu0 0.0
    %6585 = vmatprep.subr.mxu0 0.0
    %6586 = vmatpush1.msra.mxu0 0.0
    %6587 = vmatprep.subr.mxu0 0.0
    %6588 = vmatpush1.msra.mxu0 0.0
    %6589 = vmatprep.subr.mxu0 0.0
    %6590 = vmatpush1.msra.mxu0 0.0
    %6591 = vmatprep.subr.mxu0 0.0
    %6592 = vmatpush1.msra.mxu0 0.0
    %6593 = vmatprep.subr.mxu0 0.0
    %6594 = vmatpush1.msra.mxu0 0.0
    %6595 = vmatprep.subr.mxu0 0.0
    %6596 = vmatpush1.msra.mxu0 0.0
    %6597 = vmatprep.subr.mxu0 0.0
    %6598 = vmatpush1.msra.mxu0 0.0
    %6599 = vmatprep.mubr.f32.mxu0 0.0
    %6600 = vmatmul.mubr.f32.gmra.mrb[0].mxu0 %v6524
    %v6601 = vpop.f32.mrb[0].mxu0
    %v6602 = vadd.f32 0.0, %v6601
    %v6603 = vpop.f32.mrb[0].mxu0
    %6604 = vmatprep.mubr.f32.mxu0 0.0
    %6605 = vmatmul.mubr.f32.gmra.mrb[0].mxu0 %v6527
    %v6606 = vpop.f32.mrb[0].mxu0
    %v6607 = vadd.f32 0.0, %v6606
    %v6608 = vpop.f32.mrb[0].mxu0
    %6609 = vmatprep.mubr.f32.mxu0 0.0
    %6610 = vmatmul.mubr.f32.gmra.mrb[0].mxu0 %v6530
    %v6611 = vpop.f32.mrb[0].mxu0
    %v6612 = vadd.f32 0.0, %v6611
    %v6613 = vpop.f32.mrb[0].mxu0
    %6614 = vmatprep.mubr.f32.mxu0 0.0
    %6615 = vmatmul.mubr.f32.gmra.mrb[0].mxu0 %v6533
    %v6616 = vpop.f32.mrb[0].mxu0
    %v6617 = vadd.f32 0.0, %v6616
    %v6618 = vpop.f32.mrb[0].mxu0
    %6619 = vdwg.mxu0
    %v6620 = vadd.f32 %v6434, %v6602
    %v6621 = vadd.f32 %v6435, %v6607
    %v6622 = vadd.f32 %v6436, %v6612
    %v6623 = vadd.f32 %v6437, %v6617
    %s6624 = scalar_lea.vmem %s7, 416
    %v6625 = vld [vmem:[%s6624] sm:$0xff]
    %v6626 = vld [vmem:[%s6624 + $0x8] sm:$0xff]
    %v6627 = vld [vmem:[%s6624 + $0x10] sm:$0xff]
    %v6628 = vld [vmem:[%s6624 + $0x18] sm:$0xff]
    %6629 = vmatprep.subr.mxu0 0.0
    %6630 = vmatpush1.msra.mxu0 %v6625
    %6631 = vmatprep.subr.mxu0 0.0
    %6632 = vmatpush1.msra.mxu0 %v6626
    %6633 = vmatprep.subr.mxu0 0.0
    %6634 = vmatpush1.msra.mxu0 %v6627
    %6635 = vmatprep.subr.mxu0 0.0
    %6636 = vmatpush1.msra.mxu0 %v6628
    %6637 = vmatprep.subr.mxu0 0.0
    %6638 = vmatpush1.msra.mxu0 0.0
    %6639 = vmatprep.subr.mxu0 0.0
    %6640 = vmatpush1.msra.mxu0 0.0
    %6641 = vmatprep.subr.mxu0 0.0
    %6642 = vmatpush1.msra.mxu0 0.0
    %6643 = vmatprep.subr.mxu0 0.0
    %6644 = vmatpush1.msra.mxu0 0.0
    %6645 = vmatprep.subr.mxu0 0.0
    %6646 = vmatpush1.msra.mxu0 0.0
    %6647 = vmatprep.subr.mxu0 0.0
    %6648 = vmatpush1.msra.mxu0 0.0
    %6649 = vmatprep.subr.mxu0 0.0
    %6650 = vmatpush1.msra.mxu0 0.0
    %6651 = vmatprep.subr.mxu0 0.0
    %6652 = vmatpush1.msra.mxu0 0.0
    %6653 = vmatprep.subr.mxu0 0.0
    %6654 = vmatpush1.msra.mxu0 0.0
    %6655 = vmatprep.subr.mxu0 0.0
    %6656 = vmatpush1.msra.mxu0 0.0
    %6657 = vmatprep.subr.mxu0 0.0
    %6658 = vmatpush1.msra.mxu0 0.0
    %6659 = vmatprep.subr.mxu0 0.0
    %6660 = vmatpush1.msra.mxu0 0.0
    %6661 = vmatprep.subr.mxu0 0.0
    %6662 = vmatpush1.msra.mxu0 0.0
    %6663 = vmatprep.subr.mxu0 0.0
    %6664 = vmatpush1.msra.mxu0 0.0
    %6665 = vmatprep.subr.mxu0 0.0
    %6666 = vmatpush1.msra.mxu0 0.0
    %6667 = vmatprep.subr.mxu0 0.0
    %6668 = vmatpush1.msra.mxu0 0.0
    %6669 = vmatprep.subr.mxu0 0.0
    %6670 = vmatpush1.msra.mxu0 0.0
    %6671 = vmatprep.subr.mxu0 0.0
    %6672 = vmatpush1.msra.mxu0 0.0
    %6673 = vmatprep.subr.mxu0 0.0
    %6674 = vmatpush1.msra.mxu0 0.0
    %6675 = vmatprep.subr.mxu0 0.0
    %6676 = vmatpush1.msra.mxu0 0.0
    %6677 = vmatprep.subr.mxu0 0.0
    %6678 = vmatpush1.msra.mxu0 0.0
    %6679 = vmatprep.subr.mxu0 0.0
    %6680 = vmatpush1.msra.mxu0 0.0
    %6681 = vmatprep.subr.mxu0 0.0
    %6682 = vmatpush1.msra.mxu0 0.0
    %6683 = vmatprep.subr.mxu0 0.0
    %6684 = vmatpush1.msra.mxu0 0.0
    %6685 = vmatprep.subr.mxu0 0.0
    %6686 = vmatpush1.msra.mxu0 0.0
    %6687 = vmatprep.subr.mxu0 0.0
    %6688 = vmatpush1.msra.mxu0 0.0
    %6689 = vmatprep.subr.mxu0 0.0
    %6690 = vmatpush1.msra.mxu0 0.0
    %6691 = vmatprep.subr.mxu0 0.0
    %6692 = vmatpush1.msra.mxu0 0.0
    %6693 = vmatprep.mubr.f32.mxu0 0.0
    %6694 = vmatmul.mubr.f32.gmra.mrb[0].mxu0 %v4214
    %v6695 = vpop.f32.mrb[0].mxu0
    %v6696 = vadd.f32 0.0, %v6695
    %v6697 = vpop.f32.mrb[0].mxu0
    %6698 = vmatprep.mubr.f32.mxu0 0.0
    %6699 = vmatmul.mubr.f32.gmra.mrb[0].mxu0 %v4217
    %v6700 = vpop.f32.mrb[0].mxu0
    %v6701 = vadd.f32 0.0, %v6700
    %v6702 = vpop.f32.mrb[0].mxu0
    %6703 = vdwg.mxu0
    %s6704 = scalar_lea.vmem %s8, 416
    %v6705 = vld [vmem:[%s6704] sm:$0xff]
    %v6706 = vld [vmem:[%s6704 + $0x8] sm:$0xff]
    %v6707 = vld [vmem:[%s6704 + $0x10] sm:$0xff]
    %v6708 = vld [vmem:[%s6704 + $0x18] sm:$0xff]
    %v6710 = vsel %vm4383, %v6705, 0
    %v6713 = vsel %vm4383, %v6706, 0
    %v6716 = vsel %vm4383, %v6707, 0
    %v6719 = vsel %vm4383, %v6708, 0
    %6721 = vmatprep.subr.mxu0 0.0
    %6722 = vmatpush1.msra.mxu0 %v6696
    %6723 = vmatprep.subr.mxu0 0.0
    %6724 = vmatpush1.msra.mxu0 %v6701
    %6725 = vmatprep.subr.mxu0 0.0
    %6726 = vmatpush1.msra.mxu0 0.0
    %6727 = vmatprep.subr.mxu0 0.0
    %6728 = vmatpush1.msra.mxu0 0.0
    %6729 = vmatprep.subr.mxu0 0.0
    %6730 = vmatpush1.msra.mxu0 0.0
    %6731 = vmatprep.subr.mxu0 0.0
    %6732 = vmatpush1.msra.mxu0 0.0
    %6733 = vmatprep.subr.mxu0 0.0
    %6734 = vmatpush1.msra.mxu0 0.0
    %6735 = vmatprep.subr.mxu0 0.0
    %6736 = vmatpush1.msra.mxu0 0.0
    %6737 = vmatprep.subr.mxu0 0.0
    %6738 = vmatpush1.msra.mxu0 0.0
    %6739 = vmatprep.subr.mxu0 0.0
    %6740 = vmatpush1.msra.mxu0 0.0
    %6741 = vmatprep.subr.mxu0 0.0
    %6742 = vmatpush1.msra.mxu0 0.0
    %6743 = vmatprep.subr.mxu0 0.0
    %6744 = vmatpush1.msra.mxu0 0.0
    %6745 = vmatprep.subr.mxu0 0.0
    %6746 = vmatpush1.msra.mxu0 0.0
    %6747 = vmatprep.subr.mxu0 0.0
    %6748 = vmatpush1.msra.mxu0 0.0
    %6749 = vmatprep.subr.mxu0 0.0
    %6750 = vmatpush1.msra.mxu0 0.0
    %6751 = vmatprep.subr.mxu0 0.0
    %6752 = vmatpush1.msra.mxu0 0.0
    %6753 = vmatprep.subr.mxu0 0.0
    %6754 = vmatpush1.msra.mxu0 0.0
    %6755 = vmatprep.subr.mxu0 0.0
    %6756 = vmatpush1.msra.mxu0 0.0
    %6757 = vmatprep.subr.mxu0 0.0
    %6758 = vmatpush1.msra.mxu0 0.0
    %6759 = vmatprep.subr.mxu0 0.0
    %6760 = vmatpush1.msra.mxu0 0.0
    %6761 = vmatprep.subr.mxu0 0.0
    %6762 = vmatpush1.msra.mxu0 0.0
    %6763 = vmatprep.subr.mxu0 0.0
    %6764 = vmatpush1.msra.mxu0 0.0
    %6765 = vmatprep.subr.mxu0 0.0
    %6766 = vmatpush1.msra.mxu0 0.0
    %6767 = vmatprep.subr.mxu0 0.0
    %6768 = vmatpush1.msra.mxu0 0.0
    %6769 = vmatprep.subr.mxu0 0.0
    %6770 = vmatpush1.msra.mxu0 0.0
    %6771 = vmatprep.subr.mxu0 0.0
    %6772 = vmatpush1.msra.mxu0 0.0
    %6773 = vmatprep.subr.mxu0 0.0
    %6774 = vmatpush1.msra.mxu0 0.0
    %6775 = vmatprep.subr.mxu0 0.0
    %6776 = vmatpush1.msra.mxu0 0.0
    %6777 = vmatprep.subr.mxu0 0.0
    %6778 = vmatpush1.msra.mxu0 0.0
    %6779 = vmatprep.subr.mxu0 0.0
    %6780 = vmatpush1.msra.mxu0 0.0
    %6781 = vmatprep.subr.mxu0 0.0
    %6782 = vmatpush1.msra.mxu0 0.0
    %6783 = vmatprep.subr.mxu0 0.0
    %6784 = vmatpush1.msra.mxu0 0.0
    %6785 = vmatprep.mubr.f32.mxu0 0.0
    %6786 = vmatmul.mubr.f32.gmra.mrb[0].mxu0 %v6710
    %v6787 = vpop.f32.mrb[0].mxu0
    %v6788 = vadd.f32 0.0, %v6787
    %v6789 = vpop.f32.mrb[0].mxu0
    %6790 = vmatprep.mubr.f32.mxu0 0.0
    %6791 = vmatmul.mubr.f32.gmra.mrb[0].mxu0 %v6713
    %v6792 = vpop.f32.mrb[0].mxu0
    %v6793 = vadd.f32 0.0, %v6792
    %v6794 = vpop.f32.mrb[0].mxu0
    %6795 = vmatprep.mubr.f32.mxu0 0.0
    %6796 = vmatmul.mubr.f32.gmra.mrb[0].mxu0 %v6716
    %v6797 = vpop.f32.mrb[0].mxu0
    %v6798 = vadd.f32 0.0, %v6797
    %v6799 = vpop.f32.mrb[0].mxu0
    %6800 = vmatprep.mubr.f32.mxu0 0.0
    %6801 = vmatmul.mubr.f32.gmra.mrb[0].mxu0 %v6719
    %v6802 = vpop.f32.mrb[0].mxu0
    %v6803 = vadd.f32 0.0, %v6802
    %v6804 = vpop.f32.mrb[0].mxu0
    %6805 = vdwg.mxu0
    %v6806 = vadd.f32 %v6620, %v6788
    %v6807 = vadd.f32 %v6621, %v6793
    %v6808 = vadd.f32 %v6622, %v6798
    %v6809 = vadd.f32 %v6623, %v6803
    %s6810 = scalar_lea.vmem %s7, 448
    %v6811 = vld [vmem:[%s6810] sm:$0xff]
    %v6812 = vld [vmem:[%s6810 + $0x8] sm:$0xff]
    %v6813 = vld [vmem:[%s6810 + $0x10] sm:$0xff]
    %v6814 = vld [vmem:[%s6810 + $0x18] sm:$0xff]
    %6815 = vmatprep.subr.mxu0 0.0
    %6816 = vmatpush1.msra.mxu0 %v6811
    %6817 = vmatprep.subr.mxu0 0.0
    %6818 = vmatpush1.msra.mxu0 %v6812
    %6819 = vmatprep.subr.mxu0 0.0
    %6820 = vmatpush1.msra.mxu0 %v6813
    %6821 = vmatprep.subr.mxu0 0.0
    %6822 = vmatpush1.msra.mxu0 %v6814
    %6823 = vmatprep.subr.mxu0 0.0
    %6824 = vmatpush1.msra.mxu0 0.0
    %6825 = vmatprep.subr.mxu0 0.0
    %6826 = vmatpush1.msra.mxu0 0.0
    %6827 = vmatprep.subr.mxu0 0.0
    %6828 = vmatpush1.msra.mxu0 0.0
    %6829 = vmatprep.subr.mxu0 0.0
    %6830 = vmatpush1.msra.mxu0 0.0
    %6831 = vmatprep.subr.mxu0 0.0
    %6832 = vmatpush1.msra.mxu0 0.0
    %6833 = vmatprep.subr.mxu0 0.0
    %6834 = vmatpush1.msra.mxu0 0.0
    %6835 = vmatprep.subr.mxu0 0.0
    %6836 = vmatpush1.msra.mxu0 0.0
    %6837 = vmatprep.subr.mxu0 0.0
    %6838 = vmatpush1.msra.mxu0 0.0
    %6839 = vmatprep.subr.mxu0 0.0
    %6840 = vmatpush1.msra.mxu0 0.0
    %6841 = vmatprep.subr.mxu0 0.0
    %6842 = vmatpush1.msra.mxu0 0.0
    %6843 = vmatprep.subr.mxu0 0.0
    %6844 = vmatpush1.msra.mxu0 0.0
    %6845 = vmatprep.subr.mxu0 0.0
    %6846 = vmatpush1.msra.mxu0 0.0
    %6847 = vmatprep.subr.mxu0 0.0
    %6848 = vmatpush1.msra.mxu0 0.0
    %6849 = vmatprep.subr.mxu0 0.0
    %6850 = vmatpush1.msra.mxu0 0.0
    %6851 = vmatprep.subr.mxu0 0.0
    %6852 = vmatpush1.msra.mxu0 0.0
    %6853 = vmatprep.subr.mxu0 0.0
    %6854 = vmatpush1.msra.mxu0 0.0
    %6855 = vmatprep.subr.mxu0 0.0
    %6856 = vmatpush1.msra.mxu0 0.0
    %6857 = vmatprep.subr.mxu0 0.0
    %6858 = vmatpush1.msra.mxu0 0.0
    %6859 = vmatprep.subr.mxu0 0.0
    %6860 = vmatpush1.msra.mxu0 0.0
    %6861 = vmatprep.subr.mxu0 0.0
    %6862 = vmatpush1.msra.mxu0 0.0
    %6863 = vmatprep.subr.mxu0 0.0
    %6864 = vmatpush1.msra.mxu0 0.0
    %6865 = vmatprep.subr.mxu0 0.0
    %6866 = vmatpush1.msra.mxu0 0.0
    %6867 = vmatprep.subr.mxu0 0.0
    %6868 = vmatpush1.msra.mxu0 0.0
    %6869 = vmatprep.subr.mxu0 0.0
    %6870 = vmatpush1.msra.mxu0 0.0
    %6871 = vmatprep.subr.mxu0 0.0
    %6872 = vmatpush1.msra.mxu0 0.0
    %6873 = vmatprep.subr.mxu0 0.0
    %6874 = vmatpush1.msra.mxu0 0.0
    %6875 = vmatprep.subr.mxu0 0.0
    %6876 = vmatpush1.msra.mxu0 0.0
    %6877 = vmatprep.subr.mxu0 0.0
    %6878 = vmatpush1.msra.mxu0 0.0
    %6879 = vmatprep.mubr.f32.mxu0 0.0
    %6880 = vmatmul.mubr.f32.gmra.mrb[0].mxu0 %v4214
    %v6881 = vpop.f32.mrb[0].mxu0
    %v6882 = vadd.f32 0.0, %v6881
    %v6883 = vpop.f32.mrb[0].mxu0
    %6884 = vmatprep.mubr.f32.mxu0 0.0
    %6885 = vmatmul.mubr.f32.gmra.mrb[0].mxu0 %v4217
    %v6886 = vpop.f32.mrb[0].mxu0
    %v6887 = vadd.f32 0.0, %v6886
    %v6888 = vpop.f32.mrb[0].mxu0
    %6889 = vdwg.mxu0
    %s6890 = scalar_lea.vmem %s8, 448
    %v6891 = vld [vmem:[%s6890] sm:$0xff]
    %v6892 = vld [vmem:[%s6890 + $0x8] sm:$0xff]
    %v6893 = vld [vmem:[%s6890 + $0x10] sm:$0xff]
    %v6894 = vld [vmem:[%s6890 + $0x18] sm:$0xff]
    %v6896 = vsel %vm4383, %v6891, 0
    %v6899 = vsel %vm4383, %v6892, 0
    %v6902 = vsel %vm4383, %v6893, 0
    %v6905 = vsel %vm4383, %v6894, 0
    %6907 = vmatprep.subr.mxu0 0.0
    %6908 = vmatpush1.msra.mxu0 %v6882
    %6909 = vmatprep.subr.mxu0 0.0
    %6910 = vmatpush1.msra.mxu0 %v6887
    %6911 = vmatprep.subr.mxu0 0.0
    %6912 = vmatpush1.msra.mxu0 0.0
    %6913 = vmatprep.subr.mxu0 0.0
    %6914 = vmatpush1.msra.mxu0 0.0
    %6915 = vmatprep.subr.mxu0 0.0
    %6916 = vmatpush1.msra.mxu0 0.0
    %6917 = vmatprep.subr.mxu0 0.0
    %6918 = vmatpush1.msra.mxu0 0.0
    %6919 = vmatprep.subr.mxu0 0.0
    %6920 = vmatpush1.msra.mxu0 0.0
    %6921 = vmatprep.subr.mxu0 0.0
    %6922 = vmatpush1.msra.mxu0 0.0
    %6923 = vmatprep.subr.mxu0 0.0
    %6924 = vmatpush1.msra.mxu0 0.0
    %6925 = vmatprep.subr.mxu0 0.0
    %6926 = vmatpush1.msra.mxu0 0.0
    %6927 = vmatprep.subr.mxu0 0.0
    %6928 = vmatpush1.msra.mxu0 0.0
    %6929 = vmatprep.subr.mxu0 0.0
    %6930 = vmatpush1.msra.mxu0 0.0
    %6931 = vmatprep.subr.mxu0 0.0
    %6932 = vmatpush1.msra.mxu0 0.0
    %6933 = vmatprep.subr.mxu0 0.0
    %6934 = vmatpush1.msra.mxu0 0.0
    %6935 = vmatprep.subr.mxu0 0.0
    %6936 = vmatpush1.msra.mxu0 0.0
    %6937 = vmatprep.subr.mxu0 0.0
    %6938 = vmatpush1.msra.mxu0 0.0
    %6939 = vmatprep.subr.mxu0 0.0
    %6940 = vmatpush1.msra.mxu0 0.0
    %6941 = vmatprep.subr.mxu0 0.0
    %6942 = vmatpush1.msra.mxu0 0.0
    %6943 = vmatprep.subr.mxu0 0.0
    %6944 = vmatpush1.msra.mxu0 0.0
    %6945 = vmatprep.subr.mxu0 0.0
    %6946 = vmatpush1.msra.mxu0 0.0
    %6947 = vmatprep.subr.mxu0 0.0
    %6948 = vmatpush1.msra.mxu0 0.0
    %6949 = vmatprep.subr.mxu0 0.0
    %6950 = vmatpush1.msra.mxu0 0.0
    %6951 = vmatprep.subr.mxu0 0.0
    %6952 = vmatpush1.msra.mxu0 0.0
    %6953 = vmatprep.subr.mxu0 0.0
    %6954 = vmatpush1.msra.mxu0 0.0
    %6955 = vmatprep.subr.mxu0 0.0
    %6956 = vmatpush1.msra.mxu0 0.0
    %6957 = vmatprep.subr.mxu0 0.0
    %6958 = vmatpush1.msra.mxu0 0.0
    %6959 = vmatprep.subr.mxu0 0.0
    %6960 = vmatpush1.msra.mxu0 0.0
    %6961 = vmatprep.subr.mxu0 0.0
    %6962 = vmatpush1.msra.mxu0 0.0
    %6963 = vmatprep.subr.mxu0 0.0
    %6964 = vmatpush1.msra.mxu0 0.0
    %6965 = vmatprep.subr.mxu0 0.0
    %6966 = vmatpush1.msra.mxu0 0.0
    %6967 = vmatprep.subr.mxu0 0.0
    %6968 = vmatpush1.msra.mxu0 0.0
    %6969 = vmatprep.subr.mxu0 0.0
    %6970 = vmatpush1.msra.mxu0 0.0
    %6971 = vmatprep.mubr.f32.mxu0 0.0
    %6972 = vmatmul.mubr.f32.gmra.mrb[0].mxu0 %v6896
    %v6973 = vpop.f32.mrb[0].mxu0
    %v6974 = vadd.f32 0.0, %v6973
    %v6975 = vpop.f32.mrb[0].mxu0
    %6976 = vmatprep.mubr.f32.mxu0 0.0
    %6977 = vmatmul.mubr.f32.gmra.mrb[0].mxu0 %v6899
    %v6978 = vpop.f32.mrb[0].mxu0
    %v6979 = vadd.f32 0.0, %v6978
    %v6980 = vpop.f32.mrb[0].mxu0
    %6981 = vmatprep.mubr.f32.mxu0 0.0
    %6982 = vmatmul.mubr.f32.gmra.mrb[0].mxu0 %v6902
    %v6983 = vpop.f32.mrb[0].mxu0
    %v6984 = vadd.f32 0.0, %v6983
    %v6985 = vpop.f32.mrb[0].mxu0
    %6986 = vmatprep.mubr.f32.mxu0 0.0
    %6987 = vmatmul.mubr.f32.gmra.mrb[0].mxu0 %v6905
    %v6988 = vpop.f32.mrb[0].mxu0
    %v6989 = vadd.f32 0.0, %v6988
    %v6990 = vpop.f32.mrb[0].mxu0
    %6991 = vdwg.mxu0
    %v6992 = vadd.f32 %v6806, %v6974
    %v6993 = vadd.f32 %v6807, %v6979
    %v6994 = vadd.f32 %v6808, %v6984
    %v6995 = vadd.f32 %v6809, %v6989
    %s6996 = scalar_lea.vmem %s7, 480
    %v6997 = vld [vmem:[%s6996] sm:$0xff]
    %v6998 = vld [vmem:[%s6996 + $0x8] sm:$0xff]
    %v6999 = vld [vmem:[%s6996 + $0x10] sm:$0xff]
    %v7000 = vld [vmem:[%s6996 + $0x18] sm:$0xff]
    %7001 = vmatprep.subr.mxu0 0.0
    %7002 = vmatpush1.msra.mxu0 %v6997
    %7003 = vmatprep.subr.mxu0 0.0
    %7004 = vmatpush1.msra.mxu0 %v6998
    %7005 = vmatprep.subr.mxu0 0.0
    %7006 = vmatpush1.msra.mxu0 %v6999
    %7007 = vmatprep.subr.mxu0 0.0
    %7008 = vmatpush1.msra.mxu0 %v7000
    %7009 = vmatprep.subr.mxu0 0.0
    %7010 = vmatpush1.msra.mxu0 0.0
    %7011 = vmatprep.subr.mxu0 0.0
    %7012 = vmatpush1.msra.mxu0 0.0
    %7013 = vmatprep.subr.mxu0 0.0
    %7014 = vmatpush1.msra.mxu0 0.0
    %7015 = vmatprep.subr.mxu0 0.0
    %7016 = vmatpush1.msra.mxu0 0.0
    %7017 = vmatprep.subr.mxu0 0.0
    %7018 = vmatpush1.msra.mxu0 0.0
    %7019 = vmatprep.subr.mxu0 0.0
    %7020 = vmatpush1.msra.mxu0 0.0
    %7021 = vmatprep.subr.mxu0 0.0
    %7022 = vmatpush1.msra.mxu0 0.0
    %7023 = vmatprep.subr.mxu0 0.0
    %7024 = vmatpush1.msra.mxu0 0.0
    %7025 = vmatprep.subr.mxu0 0.0
    %7026 = vmatpush1.msra.mxu0 0.0
    %7027 = vmatprep.subr.mxu0 0.0
    %7028 = vmatpush1.msra.mxu0 0.0
    %7029 = vmatprep.subr.mxu0 0.0
    %7030 = vmatpush1.msra.mxu0 0.0
    %7031 = vmatprep.subr.mxu0 0.0
    %7032 = vmatpush1.msra.mxu0 0.0
    %7033 = vmatprep.subr.mxu0 0.0
    %7034 = vmatpush1.msra.mxu0 0.0
    %7035 = vmatprep.subr.mxu0 0.0
    %7036 = vmatpush1.msra.mxu0 0.0
    %7037 = vmatprep.subr.mxu0 0.0
    %7038 = vmatpush1.msra.mxu0 0.0
    %7039 = vmatprep.subr.mxu0 0.0
    %7040 = vmatpush1.msra.mxu0 0.0
    %7041 = vmatprep.subr.mxu0 0.0
    %7042 = vmatpush1.msra.mxu0 0.0
    %7043 = vmatprep.subr.mxu0 0.0
    %7044 = vmatpush1.msra.mxu0 0.0
    %7045 = vmatprep.subr.mxu0 0.0
    %7046 = vmatpush1.msra.mxu0 0.0
    %7047 = vmatprep.subr.mxu0 0.0
    %7048 = vmatpush1.msra.mxu0 0.0
    %7049 = vmatprep.subr.mxu0 0.0
    %7050 = vmatpush1.msra.mxu0 0.0
    %7051 = vmatprep.subr.mxu0 0.0
    %7052 = vmatpush1.msra.mxu0 0.0
    %7053 = vmatprep.subr.mxu0 0.0
    %7054 = vmatpush1.msra.mxu0 0.0
    %7055 = vmatprep.subr.mxu0 0.0
    %7056 = vmatpush1.msra.mxu0 0.0
    %7057 = vmatprep.subr.mxu0 0.0
    %7058 = vmatpush1.msra.mxu0 0.0
    %7059 = vmatprep.subr.mxu0 0.0
    %7060 = vmatpush1.msra.mxu0 0.0
    %7061 = vmatprep.subr.mxu0 0.0
    %7062 = vmatpush1.msra.mxu0 0.0
    %7063 = vmatprep.subr.mxu0 0.0
    %7064 = vmatpush1.msra.mxu0 0.0
    %7065 = vmatprep.mubr.f32.mxu0 0.0
    %7066 = vmatmul.mubr.f32.gmra.mrb[0].mxu0 %v4214
    %v7067 = vpop.f32.mrb[0].mxu0
    %v7068 = vadd.f32 0.0, %v7067
    %v7069 = vpop.f32.mrb[0].mxu0
    %7070 = vmatprep.mubr.f32.mxu0 0.0
    %7071 = vmatmul.mubr.f32.gmra.mrb[0].mxu0 %v4217
    %v7072 = vpop.f32.mrb[0].mxu0
    %v7073 = vadd.f32 0.0, %v7072
    %v7074 = vpop.f32.mrb[0].mxu0
    %7075 = vdwg.mxu0
    %s7076 = scalar_lea.vmem %s8, 480
    %v7077 = vld [vmem:[%s7076] sm:$0xff]
    %v7078 = vld [vmem:[%s7076 + $0x8] sm:$0xff]
    %v7079 = vld [vmem:[%s7076 + $0x10] sm:$0xff]
    %v7080 = vld [vmem:[%s7076 + $0x18] sm:$0xff]
    %v7082 = vsel %vm4383, %v7077, 0
    %v7085 = vsel %vm4383, %v7078, 0
    %v7088 = vsel %vm4383, %v7079, 0
    %v7091 = vsel %vm4383, %v7080, 0
    %7093 = vmatprep.subr.mxu0 0.0
    %7094 = vmatpush1.msra.mxu0 %v7068
    %7095 = vmatprep.subr.mxu0 0.0
    %7096 = vmatpush1.msra.mxu0 %v7073
    %7097 = vmatprep.subr.mxu0 0.0
    %7098 = vmatpush1.msra.mxu0 0.0
    %7099 = vmatprep.subr.mxu0 0.0
    %7100 = vmatpush1.msra.mxu0 0.0
    %7101 = vmatprep.subr.mxu0 0.0
    %7102 = vmatpush1.msra.mxu0 0.0
    %7103 = vmatprep.subr.mxu0 0.0
    %7104 = vmatpush1.msra.mxu0 0.0
    %7105 = vmatprep.subr.mxu0 0.0
    %7106 = vmatpush1.msra.mxu0 0.0
    %7107 = vmatprep.subr.mxu0 0.0
    %7108 = vmatpush1.msra.mxu0 0.0
    %7109 = vmatprep.subr.mxu0 0.0
    %7110 = vmatpush1.msra.mxu0 0.0
    %7111 = vmatprep.subr.mxu0 0.0
    %7112 = vmatpush1.msra.mxu0 0.0
    %7113 = vmatprep.subr.mxu0 0.0
    %7114 = vmatpush1.msra.mxu0 0.0
    %7115 = vmatprep.subr.mxu0 0.0
    %7116 = vmatpush1.msra.mxu0 0.0
    %7117 = vmatprep.subr.mxu0 0.0
    %7118 = vmatpush1.msra.mxu0 0.0
    %7119 = vmatprep.subr.mxu0 0.0
    %7120 = vmatpush1.msra.mxu0 0.0
    %7121 = vmatprep.subr.mxu0 0.0
    %7122 = vmatpush1.msra.mxu0 0.0
    %7123 = vmatprep.subr.mxu0 0.0
    %7124 = vmatpush1.msra.mxu0 0.0
    %7125 = vmatprep.subr.mxu0 0.0
    %7126 = vmatpush1.msra.mxu0 0.0
    %7127 = vmatprep.subr.mxu0 0.0
    %7128 = vmatpush1.msra.mxu0 0.0
    %7129 = vmatprep.subr.mxu0 0.0
    %7130 = vmatpush1.msra.mxu0 0.0
    %7131 = vmatprep.subr.mxu0 0.0
    %7132 = vmatpush1.msra.mxu0 0.0
    %7133 = vmatprep.subr.mxu0 0.0
    %7134 = vmatpush1.msra.mxu0 0.0
    %7135 = vmatprep.subr.mxu0 0.0
    %7136 = vmatpush1.msra.mxu0 0.0
    %7137 = vmatprep.subr.mxu0 0.0
    %7138 = vmatpush1.msra.mxu0 0.0
    %7139 = vmatprep.subr.mxu0 0.0
    %7140 = vmatpush1.msra.mxu0 0.0
    %7141 = vmatprep.subr.mxu0 0.0
    %7142 = vmatpush1.msra.mxu0 0.0
    %7143 = vmatprep.subr.mxu0 0.0
    %7144 = vmatpush1.msra.mxu0 0.0
    %7145 = vmatprep.subr.mxu0 0.0
    %7146 = vmatpush1.msra.mxu0 0.0
    %7147 = vmatprep.subr.mxu0 0.0
    %7148 = vmatpush1.msra.mxu0 0.0
    %7149 = vmatprep.subr.mxu0 0.0
    %7150 = vmatpush1.msra.mxu0 0.0
    %7151 = vmatprep.subr.mxu0 0.0
    %7152 = vmatpush1.msra.mxu0 0.0
    %7153 = vmatprep.subr.mxu0 0.0
    %7154 = vmatpush1.msra.mxu0 0.0
    %7155 = vmatprep.subr.mxu0 0.0
    %7156 = vmatpush1.msra.mxu0 0.0
    %7157 = vmatprep.mubr.f32.mxu0 0.0
    %7158 = vmatmul.mubr.f32.gmra.mrb[0].mxu0 %v7082
    %v7159 = vpop.f32.mrb[0].mxu0
    %v7160 = vadd.f32 0.0, %v7159
    %v7161 = vpop.f32.mrb[0].mxu0
    %7162 = vmatprep.mubr.f32.mxu0 0.0
    %7163 = vmatmul.mubr.f32.gmra.mrb[0].mxu0 %v7085
    %v7164 = vpop.f32.mrb[0].mxu0
    %v7165 = vadd.f32 0.0, %v7164
    %v7166 = vpop.f32.mrb[0].mxu0
    %7167 = vmatprep.mubr.f32.mxu0 0.0
    %7168 = vmatmul.mubr.f32.gmra.mrb[0].mxu0 %v7088
    %v7169 = vpop.f32.mrb[0].mxu0
    %v7170 = vadd.f32 0.0, %v7169
    %v7171 = vpop.f32.mrb[0].mxu0
    %7172 = vmatprep.mubr.f32.mxu0 0.0
    %7173 = vmatmul.mubr.f32.gmra.mrb[0].mxu0 %v7091
    %v7174 = vpop.f32.mrb[0].mxu0
    %v7175 = vadd.f32 0.0, %v7174
    %v7176 = vpop.f32.mrb[0].mxu0
    %7177 = vdwg.mxu0
    %v7178 = vadd.f32 %v6992, %v7160
    %v7179 = vadd.f32 %v6993, %v7165
    %v7180 = vadd.f32 %v6994, %v7170
    %v7181 = vadd.f32 %v6995, %v7175
    %v7182 = vld [vmem:[%s9] sm:$0xff]
    %v7183 = vld [vmem:[%s9 + $0x8] sm:$0xff]
    %v7184 = vld [vmem:[%s9 + $0x10] sm:$0xff]
    %v7185 = vld [vmem:[%s9 + $0x18] sm:$0xff]
    %7187 = vset.pattern.permute.xlu0 0
    %7188 = vperm.xlu0 %7187, %v7182
    %v7189 = vpop.permute.xlu0 %7188
    %7192 = vset.pattern.permute.xlu0 0
    %7193 = vperm.xlu0 %7192, %v7183
    %v7194 = vpop.permute.xlu0 %7193
    %7197 = vset.pattern.permute.xlu0 0
    %7198 = vperm.xlu0 %7197, %v7184
    %v7199 = vpop.permute.xlu0 %7198
    %7202 = vset.pattern.permute.xlu0 0
    %7203 = vperm.xlu0 %7202, %v7185
    %v7204 = vpop.permute.xlu0 %7203
    %v7206 = vadd.f32 %v7178, %v7189
    %v7207 = vadd.f32 %v7179, %v7194
    %v7208 = vadd.f32 %v7180, %v7199
    %v7209 = vadd.f32 %v7181, %v7204
    %v7210 = vmax.f32 %v7206, 0.0
    %v7211 = vmax.f32 %v7207, 0.0
    %v7212 = vmax.f32 %v7208, 0.0
    %v7213 = vmax.f32 %v7209, 0.0
    %v7214 = vld [vmem:[#allocation6] sm:$0x1]
    %v7215 = vld [vmem:[#allocation2] sm:$0x1]
    %7217 = vset.pattern.permute.xlu0 0
    %7218 = vperm.xlu0 %7217, %v7215
    %v7219 = vpop.permute.xlu0 %7218
    %v7221 = vlaneseq
    %v7222 = vshrl.u32 %v7221, 7
    %v7223 = vsub.s32 0, %v7222
    %v7224 = vrot.slane %v7219, %v7223
    %v7226 = vsel %vm4212, %v7214, 0
    %7228 = vmatprep.subr.mxu0 0.0
    %7229 = vmatpush1.msra.mxu0 %v7210
    %7230 = vmatprep.subr.mxu0 0.0
    %7231 = vmatpush1.msra.mxu0 %v7211
    %7232 = vmatprep.subr.mxu0 0.0
    %7233 = vmatpush1.msra.mxu0 %v7212
    %7234 = vmatprep.subr.mxu0 0.0
    %7235 = vmatpush1.msra.mxu0 %v7213
    %7236 = vmatprep.subr.mxu0 0.0
    %7237 = vmatpush1.msra.mxu0 0.0
    %7238 = vmatprep.subr.mxu0 0.0
    %7239 = vmatpush1.msra.mxu0 0.0
    %7240 = vmatprep.subr.mxu0 0.0
    %7241 = vmatpush1.msra.mxu0 0.0
    %7242 = vmatprep.subr.mxu0 0.0
    %7243 = vmatpush1.msra.mxu0 0.0
    %7244 = vmatprep.subr.mxu0 0.0
    %7245 = vmatpush1.msra.mxu0 0.0
    %7246 = vmatprep.subr.mxu0 0.0
    %7247 = vmatpush1.msra.mxu0 0.0
    %7248 = vmatprep.subr.mxu0 0.0
    %7249 = vmatpush1.msra.mxu0 0.0
    %7250 = vmatprep.subr.mxu0 0.0
    %7251 = vmatpush1.msra.mxu0 0.0
    %7252 = vmatprep.subr.mxu0 0.0
    %7253 = vmatpush1.msra.mxu0 0.0
    %7254 = vmatprep.subr.mxu0 0.0
    %7255 = vmatpush1.msra.mxu0 0.0
    %7256 = vmatprep.subr.mxu0 0.0
    %7257 = vmatpush1.msra.mxu0 0.0
    %7258 = vmatprep.subr.mxu0 0.0
    %7259 = vmatpush1.msra.mxu0 0.0
    %7260 = vmatprep.subr.mxu0 0.0
    %7261 = vmatpush1.msra.mxu0 0.0
    %7262 = vmatprep.subr.mxu0 0.0
    %7263 = vmatpush1.msra.mxu0 0.0
    %7264 = vmatprep.subr.mxu0 0.0
    %7265 = vmatpush1.msra.mxu0 0.0
    %7266 = vmatprep.subr.mxu0 0.0
    %7267 = vmatpush1.msra.mxu0 0.0
    %7268 = vmatprep.subr.mxu0 0.0
    %7269 = vmatpush1.msra.mxu0 0.0
    %7270 = vmatprep.subr.mxu0 0.0
    %7271 = vmatpush1.msra.mxu0 0.0
    %7272 = vmatprep.subr.mxu0 0.0
    %7273 = vmatpush1.msra.mxu0 0.0
    %7274 = vmatprep.subr.mxu0 0.0
    %7275 = vmatpush1.msra.mxu0 0.0
    %7276 = vmatprep.subr.mxu0 0.0
    %7277 = vmatpush1.msra.mxu0 0.0
    %7278 = vmatprep.subr.mxu0 0.0
    %7279 = vmatpush1.msra.mxu0 0.0
    %7280 = vmatprep.subr.mxu0 0.0
    %7281 = vmatpush1.msra.mxu0 0.0
    %7282 = vmatprep.subr.mxu0 0.0
    %7283 = vmatpush1.msra.mxu0 0.0
    %7284 = vmatprep.subr.mxu0 0.0
    %7285 = vmatpush1.msra.mxu0 0.0
    %7286 = vmatprep.subr.mxu0 0.0
    %7287 = vmatpush1.msra.mxu0 0.0
    %7288 = vmatprep.subr.mxu0 0.0
    %7289 = vmatpush1.msra.mxu0 0.0
    %7290 = vmatprep.subr.mxu0 0.0
    %7291 = vmatpush1.msra.mxu0 0.0
    %7292 = vmatprep.mubr.f32.mxu0 0.0
    %7293 = vmatmul.mubr.f32.gmra.mrb[0].mxu0 %v7226
    %v7294 = vpop.f32.mrb[0].mxu0
    %v7295 = vadd.f32 %v7224, %v7294
    %v7296 = vpop.f32.mrb[0].mxu0
    %7297 = vdwg.mxu0
    %vm7298 = vcmask 8192
    %7299 = vst.msk [vmem:[#allocation8] sm:$0x1] %vm7298, %v7295
    // Predicated region
    $region58: #{_fused_forward.1} parent=1 // pred_check
      _
    $region59: #{_fused_forward.1} parent=1 // pred_check_branch
      %7301 = sbr.rel (0) target = $region61
    $region60: #{_fused_forward.1} parent=1 // pred_region
      %s7303 = ssub.s32 16, 16
      %7304 = vsyncadd [#allocation5], %s7303
      %s7306 = sshll.u32 [#allocation8], 4
      %s7307 = int_to_ptr.vmem [resolvable:$true] %s7306
      %7309 = dma.vmem_to_hbm [thread:$0]  %s7307, 16, %s12, [#allocation5]
    $region61: #{_fused_forward.1} parent=1 // pred_fallthru
      _
    // Predicated region
    $region62: #{_fused_forward.1} parent=1 // pred_check
      _
    $region63: #{_fused_forward.1} parent=1 // pred_check_branch
      %7311 = sbr.rel (0) target = $region65
    $region64: #{_fused_forward.1} parent=1 // pred_region
      %7312 = dma.done [#allocation5], 16
    $region65: #{_fused_forward.1} parent=1 // pred_fallthru
      _
    %7313 = vsyncpa [#allocation4], 1
    %7314 = vsyncpa [#allocation7], 1
    %7315 = vsyncpa [#allocation5], 1

</llo_original>
